<compile_context>
chip_gen: v6e
topology: v6e:2x2x1
jax: 0.10.0
libtpu: 0.0.40
codegen_flags: <defaults>
</compile_context>

<pallas_src>
import jax
import jax.numpy as jnp
from jax.experimental import pallas as pl
from jax.experimental.pallas import tpu as pltpu

D_MODEL = 32
N_HEADS = 4
D_K = D_MODEL // N_HEADS
D_FF = 64
N_LAYERS = 2
EPS = 1e-6

# Row layout of the packed per-layer bias / LN slab (lane-padded to 128).
_ROW_LN_G = 0          # rows 0..2 : LN gammas for sublayers 0,1,2      (D)
_ROW_LN_B = 3          # rows 3..5 : LN betas  for sublayers 0,1,2      (D)
_ROW_BQKV = 6          # fused self-attn QKV bias                       (3D)
_ROW_BO_S = 7          # self-attn output bias                          (D)
_ROW_BQ_X = 8          # cross-attn Q bias                              (D)
_ROW_BKV_X = 9         # fused cross-attn K/V bias                      (2D)
_ROW_BO_X = 10         # cross-attn output bias                         (D)
_ROW_FFB1 = 11         # FFN bias 1                                     (D_FF)
_ROW_FFB2 = 12         # FFN bias 2                                     (D)
_SLAB_ROWS = 16        # padded to a multiple of 8 sublanes


# ------------------------------ fused kernel ----------------------------------

def _decoder_kernel(
    x_ref, mem_ref, tmask_ref, smask_ref,            # activations / 0-1 masks
    wqkv_ref, wo_s_ref,                               # self-attention weights
    wq_x_ref, wkv_x_ref, wo_x_ref,                    # cross-attention weights
    ffw1_ref, ffw2_ref,                               # FFN weights
    bias_ref,                                         # (L, 16, 128) bias/LN slab
    fnorm_ref,                                        # (2, D) final LN gamma/beta
    o_ref,                                            # output (1, S_T, D)
):
    x = x_ref[0].astype(jnp.float32)                  # (S_T, D)
    mem = mem_ref[0].astype(jnp.float32)              # (S_S, D)

    neg = jnp.float32(-1e9)
    tbias = jnp.where(tmask_ref[0] != 0, jnp.float32(0.0), neg)   # (S_T, S_T)
    sbias = jnp.where(smask_ref[0] != 0, jnp.float32(0.0), neg)   # (S_T, S_S)

    def layer_norm(v, g, b):
        mu = jnp.mean(v, axis=-1, keepdims=True)
        d = v - mu
        var = jnp.sum(d * d, axis=-1, keepdims=True) * (1.0 / (D_MODEL - 1))
        return g * d / (jnp.sqrt(var) + EPS) + b

    scale = 1.0 / (float(D_K) ** 0.5)

    def mha(q, k, v, bias, wo, bo):
        # q: (Sq, D), k/v: (Skv, D), bias: (Sq, Skv), wo: (D, D), bo: (1, D).
        sq = q.shape[0]
        skv = k.shape[0]
        # Heads on a leading batch axis -> one batched contraction per step
        # (no 8-lane slices, no per-head tiny MXU ops).
        qh = jnp.swapaxes(q.reshape(sq, N_HEADS, D_K), 0, 1)    # (H, Sq, Dk)
        kh = jnp.swapaxes(k.reshape(skv, N_HEADS, D_K), 0, 1)   # (H, Skv, Dk)
        vh = jnp.swapaxes(v.reshape(skv, N_HEADS, D_K), 0, 1)   # (H, Skv, Dk)

        sc = jnp.einsum("hqd,hkd->hqk", qh, kh,
                        preferred_element_type=jnp.float32) * scale
        sc = sc + bias[None, :, :]
        sc = sc - jnp.max(sc, axis=-1, keepdims=True)
        p = jnp.exp(sc)
        p = p / jnp.sum(p, axis=-1, keepdims=True)               # exact softmax

        ctx = jnp.einsum("hqk,hkd->hqd", p, vh,
                         preferred_element_type=jnp.float32)     # (H, Sq, Dk)
        ctx = jnp.swapaxes(ctx, 0, 1).reshape(sq, D_MODEL)       # (Sq, D)
        return jnp.dot(ctx, wo, preferred_element_type=jnp.float32) + bo

    n_layers = wqkv_ref.shape[0]
    for l in range(n_layers):            # static unroll; weights stay resident
        slab = bias_ref[l]                                   # (16, 128)
        ln_g = slab[_ROW_LN_G:_ROW_LN_G + 3, :D_MODEL]       # (3, D)
        ln_b = slab[_ROW_LN_B:_ROW_LN_B + 3, :D_MODEL]       # (3, D)
        bqkv = slab[_ROW_BQKV:_ROW_BQKV + 1, :3 * D_MODEL]
        bo_s = slab[_ROW_BO_S:_ROW_BO_S + 1, :D_MODEL]
        bq_x = slab[_ROW_BQ_X:_ROW_BQ_X + 1, :D_MODEL]
        bkv_x = slab[_ROW_BKV_X:_ROW_BKV_X + 1, :2 * D_MODEL]
        bo_x = slab[_ROW_BO_X:_ROW_BO_X + 1, :D_MODEL]
        ffb1 = slab[_ROW_FFB1:_ROW_FFB1 + 1, :D_FF]
        ffb2 = slab[_ROW_FFB2:_ROW_FFB2 + 1, :D_MODEL]

        # ---- sublayer 0: masked self-attention (fused QKV matmul) -----------
        xn = layer_norm(x, ln_g[0:1], ln_b[0:1])
        qkv = jnp.dot(xn, wqkv_ref[l], preferred_element_type=jnp.float32) + bqkv
        x = x + mha(qkv[:, :D_MODEL],
                    qkv[:, D_MODEL:2 * D_MODEL],
                    qkv[:, 2 * D_MODEL:],
                    tbias, wo_s_ref[l], bo_s)

        # ---- sublayer 1: cross-attention over encoder memory ----------------
        xn = layer_norm(x, ln_g[1:2], ln_b[1:2])
        qx = jnp.dot(xn, wq_x_ref[l], preferred_element_type=jnp.float32) + bq_x
        kvx = jnp.dot(mem, wkv_x_ref[l], preferred_element_type=jnp.float32) + bkv_x
        x = x + mha(qx, kvx[:, :D_MODEL], kvx[:, D_MODEL:],
                    sbias, wo_x_ref[l], bo_x)

        # ---- sublayer 2: position-wise feed-forward --------------------------
        xn = layer_norm(x, ln_g[2:3], ln_b[2:3])
        h1 = jnp.maximum(
            jnp.dot(xn, ffw1_ref[l], preferred_element_type=jnp.float32) + ffb1,
            0.0)
        x = x + jnp.dot(h1, ffw2_ref[l], preferred_element_type=jnp.float32) + ffb2

    # ---- final LayerNorm + store --------------------------------------------
    y = layer_norm(x, fnorm_ref[0:1, :], fnorm_ref[1:2, :])
    o_ref[0] = y.astype(o_ref.dtype)


# ------------------------------ wrapper ----------------------------------------

def _pad_row(v, width=128):
    return jnp.pad(v, ((0, 0), (0, width - v.shape[1])))


def _layer_bias_slab(p):
    rows = [
        p["ln0_g"], p["ln1_g"], p["ln2_g"],
        p["ln0_b"], p["ln1_b"], p["ln2_b"],
        jnp.concatenate([p["self_attn"]["bq"], p["self_attn"]["bk"],
                         p["self_attn"]["bv"]], 1),
        p["self_attn"]["bo"],
        p["src_attn"]["bq"],
        jnp.concatenate([p["src_attn"]["bk"], p["src_attn"]["bv"]], 1),
        p["src_attn"]["bo"],
        p["ff_b1"],
        p["ff_b2"],
    ]
    slab = jnp.concatenate([_pad_row(r) for r in rows], axis=0)      # (13, 128)
    return jnp.pad(slab, ((0, _SLAB_ROWS - slab.shape[0]), (0, 0)))  # (16, 128)


@jax.jit
def decoder_forward(x, memory, src_mask, tgt_mask, params):
    B, S_T, D = x.shape
    S_S = memory.shape[1]
    layers = params["layers"]
    L = len(layers)

    def stack(fn):
        return jnp.stack([fn(p) for p in layers], axis=0)

    # Stacked (layer-leading) weights; fused QKV / KV matrices.
    wqkv = stack(lambda p: jnp.concatenate(
        [p["self_attn"]["wq"], p["self_attn"]["wk"], p["self_attn"]["wv"]], 1))
    wo_s = stack(lambda p: p["self_attn"]["wo"])
    wq_x = stack(lambda p: p["src_attn"]["wq"])
    wkv_x = stack(lambda p: jnp.concatenate(
        [p["src_attn"]["wk"], p["src_attn"]["wv"]], 1))
    wo_x = stack(lambda p: p["src_attn"]["wo"])
    ffw1 = stack(lambda p: p["ff_w1"])
    ffw2 = stack(lambda p: p["ff_w2"])
    bias_slab = stack(_layer_bias_slab)                               # (L, 16, 128)
    fnorm = jnp.concatenate([params["norm_g"], params["norm_b"]], 0)  # (2, D)

    # 0/1 masks (1 = attend, 0 = masked); converted to -1e9 bias in-kernel.
    tmaskf = tgt_mask[:, 0].astype(jnp.float32)                       # (B, S_T, S_T)
    smaskf = src_mask[:, 0].astype(jnp.float32)                       # (B, S_T, S_S)

    bmap = lambda b: (b, 0, 0)     # batch-indexed blocks
    wmap = lambda b: (0, 0, 0)     # constant -> VMEM-resident, DMA'd once

    return pl.pallas_call(
        _decoder_kernel,
        out_shape=jax.ShapeDtypeStruct((B, S_T, D), x.dtype),
        grid=(B,),
        in_specs=[
            pl.BlockSpec((1, S_T, D), bmap),            # x
            pl.BlockSpec((1, S_S, D), bmap),            # memory
            pl.BlockSpec((1, S_T, S_T), bmap),          # tgt mask (0/1)
            pl.BlockSpec((1, S_T, S_S), bmap),          # src mask (0/1)
            pl.BlockSpec((L, D, 3 * D), wmap),          # fused Wqkv (self)
            pl.BlockSpec((L, D, D), wmap),              # Wo (self)
            pl.BlockSpec((L, D, D), wmap),              # Wq (cross)
            pl.BlockSpec((L, D, 2 * D), wmap),          # fused Wkv (cross)
            pl.BlockSpec((L, D, D), wmap),              # Wo (cross)
            pl.BlockSpec((L, D, D_FF), wmap),           # FFN W1
            pl.BlockSpec((L, D_FF, D), wmap),           # FFN W2
            pl.BlockSpec((L, _SLAB_ROWS, 128), wmap),   # packed bias / LN slab
            pl.BlockSpec((2, D), lambda b: (0, 0)),     # final LN gamma/beta
        ],
        out_specs=pl.BlockSpec((1, S_T, D), bmap),
        compiler_params=pltpu.CompilerParams(
            dimension_semantics=("parallel",),          # megacore split over batch
        ),
    )(x, memory, tmaskf, smaskf, wqkv, wo_s, wq_x, wkv_x, wo_x,
      ffw1, ffw2, bias_slab, fnorm)


# ------------------------------ parameter init --------------------------------

def _dense(key, din, dout):
    kw, kb = jax.random.split(key)
    w = jax.random.normal(kw, (din, dout), jnp.float32) / jnp.sqrt(jnp.float32(din))
    b = jax.random.normal(kb, (1, dout), jnp.float32) * 0.01
    return w, b


def _attn_params(key):
    kq, kk, kv, ko = jax.random.split(key, 4)
    wq, bq = _dense(kq, D_MODEL, D_MODEL)
    wk, bk = _dense(kk, D_MODEL, D_MODEL)
    wv, bv = _dense(kv, D_MODEL, D_MODEL)
    wo, bo = _dense(ko, D_MODEL, D_MODEL)
    return dict(wq=wq, bq=bq, wk=wk, bk=bk, wv=wv, bv=bv, wo=wo, bo=bo)


def init_params(key):
    ones = jnp.ones((1, D_MODEL), jnp.float32)
    zeros = jnp.zeros((1, D_MODEL), jnp.float32)
    layers = []
    for lk in jax.random.split(key, N_LAYERS):
        k_self, k_src, k_f1, k_f2 = jax.random.split(lk, 4)
        w1, b1 = _dense(k_f1, D_MODEL, D_FF)
        w2, b2 = _dense(k_f2, D_FF, D_MODEL)
        layers.append(dict(
            self_attn=_attn_params(k_self),
            src_attn=_attn_params(k_src),
            ff_w1=w1, ff_b1=b1, ff_w2=w2, ff_b2=b2,
            ln0_g=ones, ln0_b=zeros,
            ln1_g=ones, ln1_b=zeros,
            ln2_g=ones, ln2_b=zeros,
        ))
    return dict(layers=layers, norm_g=ones, norm_b=zeros)


# --------------------------- pure-JAX reference -------------------------------

def _ref_ln(x, g, b):
    mean = x.mean(-1, keepdims=True)
    d = x - mean
    var = (d * d).sum(-1, keepdims=True) / (x.shape[-1] - 1)
    return g * d / (jnp.sqrt(var) + EPS) + b


def _ref_mha(q_in, kv_in, mask, p):
    B, Sq, D = q_in.shape
    Skv = kv_in.shape[1]
    q = (q_in.reshape(-1, D) @ p["wq"] + p["bq"]).reshape(B, Sq, N_HEADS, D_K).transpose(0, 2, 1, 3)
    k = (kv_in.reshape(-1, D) @ p["wk"] + p["bk"]).reshape(B, Skv, N_HEADS, D_K).transpose(0, 2, 1, 3)
    v = (kv_in.reshape(-1, D) @ p["wv"] + p["bv"]).reshape(B, Skv, N_HEADS, D_K).transpose(0, 2, 1, 3)
    s = jnp.einsum("bhqd,bhkd->bhqk", q, k) / jnp.sqrt(jnp.float32(D_K))
    s = jnp.where(mask == 0, -1e9, s)
    a = jax.nn.softmax(s, axis=-1)
    ctx = jnp.einsum("bhqk,bhkd->bhqd", a, v).transpose(0, 2, 1, 3).reshape(B * Sq, D)
    return (ctx @ p["wo"] + p["bo"]).reshape(B, Sq, D)


def decoder_reference(x, memory, src_mask, tgt_mask, params):
    for p in params["layers"]:
        B, S, D = x.shape
        xn = _ref_ln(x.reshape(B * S, D), p["ln0_g"], p["ln0_b"]).reshape(B, S, D)
        x = x + _ref_mha(xn, xn, tgt_mask, p["self_attn"])
        xn = _ref_ln(x.reshape(B * S, D), p["ln1_g"], p["ln1_b"]).reshape(B, S, D)
        x = x + _ref_mha(xn, memory, src_mask, p["src_attn"])
        xn = _ref_ln(x.reshape(B * S, D), p["ln2_g"], p["ln2_b"])
        h = jnp.maximum(xn @ p["ff_w1"] + p["ff_b1"], 0.0)
        x = x + (h @ p["ff_w2"] + p["ff_b2"]).reshape(B, S, D)
    B, S, D = x.shape
    return _ref_ln(x.reshape(B * S, D), params["norm_g"], params["norm_b"]).reshape(B, S, D)


# ----------------------------------- main --------------------------------------

if __name__ == "__main__":
    B, S_TGT, S_SRC = 2, 8, 16

    key = jax.random.PRNGKey(0)
    kp, kx, km = jax.random.split(key, 3)
    params = init_params(kp)
    x = jax.random.normal(kx, (B, S_TGT, D_MODEL), jnp.float32)
    memory = jax.random.normal(km, (B, S_SRC, D_MODEL), jnp.float32)

    # masks: 1 = attend, 0 = masked (semantics of masked_fill(mask == 0, -1e9))
    tgt_mask = jnp.tril(jnp.ones((S_TGT, S_TGT), jnp.int32))[None, None]
    tgt_mask = jnp.broadcast_to(tgt_mask, (B, 1, S_TGT, S_TGT))
    src_lens = jnp.array([S_SRC, S_SRC - 5], jnp.int32)
    src_mask = (jnp.arange(S_SRC)[None, :] < src_lens[:, None]).astype(jnp.int32)
    src_mask = jnp.broadcast_to(src_mask[:, None, None, :], (B, 1, S_TGT, S_SRC))

    out = decoder_forward(x, memory, src_mask, tgt_mask, params)
    out = jax.block_until_ready(out)

    ref = decoder_reference(x, memory, src_mask, tgt_mask, params)
    assert out.shape == (B, S_TGT, D_MODEL)
    assert bool(jnp.all(jnp.isfinite(out)))
    assert bool(jnp.allclose(out, ref, atol=2e-3, rtol=2e-3)), \
        float(jnp.max(jnp.abs(out - ref)))

    print("KERNEL_OK")
</pallas_src>

<mosaic_0001>
module attributes {stable_mosaic.version = 11 : i64} {
  func.func @_decoder_kernel(%arg0: i32, %arg1: memref<1x8x32xf32, #tpu.memory_space<vmem>>, %arg2: memref<1x16x32xf32, #tpu.memory_space<vmem>>, %arg3: memref<1x8x8xf32, #tpu.memory_space<vmem>>, %arg4: memref<1x8x16xf32, #tpu.memory_space<vmem>>, %arg5: memref<2x32x96xf32, #tpu.memory_space<vmem>>, %arg6: memref<2x32x32xf32, #tpu.memory_space<vmem>>, %arg7: memref<2x32x32xf32, #tpu.memory_space<vmem>>, %arg8: memref<2x32x64xf32, #tpu.memory_space<vmem>>, %arg9: memref<2x32x32xf32, #tpu.memory_space<vmem>>, %arg10: memref<2x32x64xf32, #tpu.memory_space<vmem>>, %arg11: memref<2x64x32xf32, #tpu.memory_space<vmem>>, %arg12: memref<2x16x128xf32, #tpu.memory_space<vmem>>, %arg13: memref<2x32xf32, #tpu.memory_space<vmem>>, %arg14: memref<1x8x32xf32, #tpu.memory_space<vmem>>) attributes {dimension_semantics = [#tpu.dimension_semantics<parallel>], iteration_bounds = array<i64: 2>, scalar_prefetch = 0 : i64, scratch_operands = 0 : i64, tpu.core_type = #tpu.core_type<tc>, window_params = [{transform_indices = @transform_0, window_bounds = array<i64: 1, 8, 32>}, {transform_indices = @transform_1, window_bounds = array<i64: 1, 16, 32>}, {transform_indices = @transform_2, window_bounds = array<i64: 1, 8, 8>}, {transform_indices = @transform_3, window_bounds = array<i64: 1, 8, 16>}, {pipeline_mode = #tpu.pipeline_mode<synchronous>, transform_indices = @transform_4, window_bounds = array<i64: 2, 32, 96>}, {pipeline_mode = #tpu.pipeline_mode<synchronous>, transform_indices = @transform_5, window_bounds = array<i64: 2, 32, 32>}, {pipeline_mode = #tpu.pipeline_mode<synchronous>, transform_indices = @transform_6, window_bounds = array<i64: 2, 32, 32>}, {pipeline_mode = #tpu.pipeline_mode<synchronous>, transform_indices = @transform_7, window_bounds = array<i64: 2, 32, 64>}, {pipeline_mode = #tpu.pipeline_mode<synchronous>, transform_indices = @transform_8, window_bounds = array<i64: 2, 32, 32>}, {pipeline_mode = #tpu.pipeline_mode<synchronous>, transform_indices = @transform_9, window_bounds = array<i64: 2, 32, 64>}, {pipeline_mode = #tpu.pipeline_mode<synchronous>, transform_indices = @transform_10, window_bounds = array<i64: 2, 64, 32>}, {pipeline_mode = #tpu.pipeline_mode<synchronous>, transform_indices = @transform_11, window_bounds = array<i64: 2, 16, 128>}, {pipeline_mode = #tpu.pipeline_mode<synchronous>, transform_indices = @transform_12, window_bounds = array<i64: 2, 32>}, {transform_indices = @transform_13, window_bounds = array<i64: 1, 8, 32>}]} {
    %c0 = arith.constant 0 : index
    %c0_0 = arith.constant 0 : index
    %c0_1 = arith.constant 0 : index
    %0 = vector.load %arg1[%c0, %c0_0, %c0_1] : memref<1x8x32xf32, #tpu.memory_space<vmem>>, vector<1x8x32xf32>
    %1 = vector.shape_cast %0 : vector<1x8x32xf32> to vector<8x32xf32>
    %c0_2 = arith.constant 0 : index
    %c0_3 = arith.constant 0 : index
    %c0_4 = arith.constant 0 : index
    %2 = vector.load %arg2[%c0_2, %c0_3, %c0_4] : memref<1x16x32xf32, #tpu.memory_space<vmem>>, vector<1x16x32xf32>
    %3 = vector.shape_cast %2 : vector<1x16x32xf32> to vector<16x32xf32>
    %c0_5 = arith.constant 0 : index
    %c0_6 = arith.constant 0 : index
    %c0_7 = arith.constant 0 : index
    %4 = vector.load %arg3[%c0_5, %c0_6, %c0_7] : memref<1x8x8xf32, #tpu.memory_space<vmem>>, vector<1x8x8xf32>
    %5 = vector.shape_cast %4 : vector<1x8x8xf32> to vector<8x8xf32>
    %cst = arith.constant 0.000000e+00 : f32
    %6 = vector.broadcast %cst : f32 to vector<8x8xf32>
    %7 = arith.cmpf one, %5, %6 : vector<8x8xf32>
    %cst_8 = arith.constant 0.000000e+00 : f32
    %cst_9 = arith.constant -1.000000e+09 : f32
    %8 = vector.broadcast %cst_8 : f32 to vector<8x8xf32>
    %9 = vector.broadcast %cst_9 : f32 to vector<8x8xf32>
    %10 = arith.select %7, %8, %9 : vector<8x8xi1>, vector<8x8xf32>
    %c0_10 = arith.constant 0 : index
    %c0_11 = arith.constant 0 : index
    %c0_12 = arith.constant 0 : index
    %11 = vector.load %arg4[%c0_10, %c0_11, %c0_12] : memref<1x8x16xf32, #tpu.memory_space<vmem>>, vector<1x8x16xf32>
    %12 = vector.shape_cast %11 : vector<1x8x16xf32> to vector<8x16xf32>
    %cst_13 = arith.constant 0.000000e+00 : f32
    %13 = vector.broadcast %cst_13 : f32 to vector<8x16xf32>
    %14 = arith.cmpf one, %12, %13 : vector<8x16xf32>
    %cst_14 = arith.constant 0.000000e+00 : f32
    %cst_15 = arith.constant -1.000000e+09 : f32
    %15 = vector.broadcast %cst_14 : f32 to vector<8x16xf32>
    %16 = vector.broadcast %cst_15 : f32 to vector<8x16xf32>
    %17 = arith.select %14, %15, %16 : vector<8x16xi1>, vector<8x16xf32>
    %c0_16 = arith.constant 0 : index
    %c0_17 = arith.constant 0 : index
    %c0_18 = arith.constant 0 : index
    %18 = vector.load %arg12[%c0_16, %c0_17, %c0_18] : memref<2x16x128xf32, #tpu.memory_space<vmem>>, vector<1x16x128xf32>
    %19 = vector.shape_cast %18 : vector<1x16x128xf32> to vector<16x128xf32>
    %20 = vector.extract_strided_slice %19 {offsets = [0, 0], sizes = [3, 32], strides = [1, 1]} : vector<16x128xf32> to vector<3x32xf32>
    %21 = vector.extract_strided_slice %19 {offsets = [3, 0], sizes = [3, 32], strides = [1, 1]} : vector<16x128xf32> to vector<3x32xf32>
    %22 = vector.extract_strided_slice %19 {offsets = [6, 0], sizes = [1, 96], strides = [1, 1]} : vector<16x128xf32> to vector<1x96xf32>
    %23 = vector.extract_strided_slice %19 {offsets = [7, 0], sizes = [1, 32], strides = [1, 1]} : vector<16x128xf32> to vector<1x32xf32>
    %24 = vector.extract_strided_slice %19 {offsets = [8, 0], sizes = [1, 32], strides = [1, 1]} : vector<16x128xf32> to vector<1x32xf32>
    %25 = vector.extract_strided_slice %19 {offsets = [9, 0], sizes = [1, 64], strides = [1, 1]} : vector<16x128xf32> to vector<1x64xf32>
    %26 = vector.extract_strided_slice %19 {offsets = [10, 0], sizes = [1, 32], strides = [1, 1]} : vector<16x128xf32> to vector<1x32xf32>
    %27 = vector.extract_strided_slice %19 {offsets = [11, 0], sizes = [1, 64], strides = [1, 1]} : vector<16x128xf32> to vector<1x64xf32>
    %28 = vector.extract_strided_slice %19 {offsets = [12, 0], sizes = [1, 32], strides = [1, 1]} : vector<16x128xf32> to vector<1x32xf32>
    %29 = vector.extract_strided_slice %20 {offsets = [0, 0], sizes = [1, 32], strides = [1, 1]} : vector<3x32xf32> to vector<1x32xf32>
    %30 = vector.extract_strided_slice %21 {offsets = [0, 0], sizes = [1, 32], strides = [1, 1]} : vector<3x32xf32> to vector<1x32xf32>
    %cst_19 = arith.constant dense<0.000000e+00> : vector<8xf32>
    %31 = vector.multi_reduction <add>, %1, %cst_19 [1] : vector<8x32xf32> to vector<8xf32>
    %32 = vector.shape_cast %31 : vector<8xf32> to vector<8x1xf32>
    %cst_20 = arith.constant 3.200000e+01 : f32
    %33 = vector.broadcast %cst_20 : f32 to vector<8x1xf32>
    %34 = arith.divf %32, %33 : vector<8x1xf32>
    %35 = vector.broadcast %34 : vector<8x1xf32> to vector<8x32xf32>
    %36 = arith.subf %1, %35 : vector<8x32xf32>
    %37 = arith.mulf %36, %36 : vector<8x32xf32>
    %cst_21 = arith.constant dense<0.000000e+00> : vector<8xf32>
    %38 = vector.multi_reduction <add>, %37, %cst_21 [1] : vector<8x32xf32> to vector<8xf32>
    %39 = vector.shape_cast %38 : vector<8xf32> to vector<8x1xf32>
    %cst_22 = arith.constant 0.0322580636 : f32
    %40 = vector.broadcast %cst_22 : f32 to vector<8x1xf32>
    %41 = arith.mulf %39, %40 : vector<8x1xf32>
    %42 = vector.broadcast %29 : vector<1x32xf32> to vector<8x32xf32>
    %43 = arith.mulf %42, %36 : vector<8x32xf32>
    %44 = math.sqrt %41 : vector<8x1xf32>
    %cst_23 = arith.constant 9.99999997E-7 : f32
    %45 = vector.broadcast %cst_23 : f32 to vector<8x1xf32>
    %46 = arith.addf %44, %45 : vector<8x1xf32>
    %47 = vector.broadcast %46 : vector<8x1xf32> to vector<8x32xf32>
    %48 = arith.divf %43, %47 : vector<8x32xf32>
    %49 = vector.broadcast %30 : vector<1x32xf32> to vector<8x32xf32>
    %50 = arith.addf %48, %49 : vector<8x32xf32>
    %c0_24 = arith.constant 0 : index
    %c0_25 = arith.constant 0 : index
    %c0_26 = arith.constant 0 : index
    %51 = vector.load %arg5[%c0_24, %c0_25, %c0_26] : memref<2x32x96xf32, #tpu.memory_space<vmem>>, vector<1x32x96xf32>
    %52 = vector.shape_cast %51 : vector<1x32x96xf32> to vector<32x96xf32>
    %cst_27 = arith.constant dense<0.000000e+00> : vector<8x96xf32>
    %53 = tpu.matmul %50, %52, %cst_27 {dimension_numbers = #tpu.dot_dimension_numbers<[1], [0], [0], [1], [0, 0, 1, 1], [], []>} : vector<8x32xf32>, vector<32x96xf32>, vector<8x96xf32> -> vector<8x96xf32>
    %54 = vector.broadcast %22 : vector<1x96xf32> to vector<8x96xf32>
    %55 = arith.addf %53, %54 : vector<8x96xf32>
    %56 = vector.extract_strided_slice %55 {offsets = [0, 0], sizes = [8, 32], strides = [1, 1]} : vector<8x96xf32> to vector<8x32xf32>
    %57 = vector.extract_strided_slice %55 {offsets = [0, 32], sizes = [8, 32], strides = [1, 1]} : vector<8x96xf32> to vector<8x32xf32>
    %58 = vector.extract_strided_slice %55 {offsets = [0, 64], sizes = [8, 32], strides = [1, 1]} : vector<8x96xf32> to vector<8x32xf32>
    %c0_28 = arith.constant 0 : index
    %c0_29 = arith.constant 0 : index
    %c0_30 = arith.constant 0 : index
    %59 = vector.load %arg6[%c0_28, %c0_29, %c0_30] : memref<2x32x32xf32, #tpu.memory_space<vmem>>, vector<1x32x32xf32>
    %60 = vector.shape_cast %59 : vector<1x32x32xf32> to vector<32x32xf32>
    %61 = vector.shape_cast %56 : vector<8x32xf32> to vector<8x4x8xf32>
    %62 = tpu.transpose %61, [1, 0, 2] : vector<8x4x8xf32> -> vector<4x8x8xf32>
    %63 = vector.shape_cast %57 : vector<8x32xf32> to vector<8x4x8xf32>
    %64 = tpu.transpose %63, [1, 0, 2] : vector<8x4x8xf32> -> vector<4x8x8xf32>
    %65 = vector.shape_cast %58 : vector<8x32xf32> to vector<8x4x8xf32>
    %66 = tpu.transpose %65, [1, 0, 2] : vector<8x4x8xf32> -> vector<4x8x8xf32>
    "tpu.trace_start"() <{level = 10 : i32, message = "hqd,hkd->hqk"}> : () -> ()
    %cst_31 = arith.constant dense<0.000000e+00> : vector<4x8x8xf32>
    %67 = tpu.matmul %62, %64, %cst_31 {dimension_numbers = #tpu.dot_dimension_numbers<[2], [2], [1], [1], [0, 0, 0, 1, 1, 1], [0], [0]>} : vector<4x8x8xf32>, vector<4x8x8xf32>, vector<4x8x8xf32> -> vector<4x8x8xf32>
    "tpu.trace_stop"() : () -> ()
    %cst_32 = arith.constant 0.353553385 : f32
    %68 = vector.broadcast %cst_32 : f32 to vector<4x8x8xf32>
    %69 = arith.mulf %67, %68 : vector<4x8x8xf32>
    %70 = vector.shape_cast %10 : vector<8x8xf32> to vector<1x8x8xf32>
    %71 = vector.broadcast %70 : vector<1x8x8xf32> to vector<4x8x8xf32>
    %72 = arith.addf %69, %71 : vector<4x8x8xf32>
    %cst_33 = arith.constant dense<0xFF800000> : vector<4x8xf32>
    %73 = vector.multi_reduction <maximumf>, %72, %cst_33 [2] : vector<4x8x8xf32> to vector<4x8xf32>
    %74 = vector.shape_cast %73 : vector<4x8xf32> to vector<4x8x1xf32>
    %75 = vector.broadcast %74 : vector<4x8x1xf32> to vector<4x8x8xf32>
    %76 = arith.subf %72, %75 : vector<4x8x8xf32>
    %77 = math.exp %76 : vector<4x8x8xf32>
    %cst_34 = arith.constant dense<0.000000e+00> : vector<4x8xf32>
    %78 = vector.multi_reduction <add>, %77, %cst_34 [2] : vector<4x8x8xf32> to vector<4x8xf32>
    %79 = vector.shape_cast %78 : vector<4x8xf32> to vector<4x8x1xf32>
    %80 = vector.broadcast %79 : vector<4x8x1xf32> to vector<4x8x8xf32>
    %81 = arith.divf %77, %80 : vector<4x8x8xf32>
    "tpu.trace_start"() <{level = 10 : i32, message = "hqk,hkd->hqd"}> : () -> ()
    %cst_35 = arith.constant dense<0.000000e+00> : vector<4x8x8xf32>
    %82 = tpu.matmul %81, %66, %cst_35 {dimension_numbers = #tpu.dot_dimension_numbers<[2], [1], [1], [2], [0, 0, 0, 1, 1, 2], [0], [0]>} : vector<4x8x8xf32>, vector<4x8x8xf32>, vector<4x8x8xf32> -> vector<4x8x8xf32>
    "tpu.trace_stop"() : () -> ()
    %83 = tpu.transpose %82, [1, 0, 2] : vector<4x8x8xf32> -> vector<8x4x8xf32>
    %84 = vector.shape_cast %83 : vector<8x4x8xf32> to vector<8x32xf32>
    %cst_36 = arith.constant dense<0.000000e+00> : vector<8x32xf32>
    %85 = tpu.matmul %84, %60, %cst_36 {dimension_numbers = #tpu.dot_dimension_numbers<[1], [0], [0], [1], [0, 0, 1, 1], [], []>} : vector<8x32xf32>, vector<32x32xf32>, vector<8x32xf32> -> vector<8x32xf32>
    %86 = vector.broadcast %23 : vector<1x32xf32> to vector<8x32xf32>
    %87 = arith.addf %85, %86 : vector<8x32xf32>
    %88 = arith.addf %1, %87 : vector<8x32xf32>
    %89 = vector.extract_strided_slice %20 {offsets = [1, 0], sizes = [1, 32], strides = [1, 1]} : vector<3x32xf32> to vector<1x32xf32>
    %90 = vector.extract_strided_slice %21 {offsets = [1, 0], sizes = [1, 32], strides = [1, 1]} : vector<3x32xf32> to vector<1x32xf32>
    %cst_37 = arith.constant dense<0.000000e+00> : vector<8xf32>
    %91 = vector.multi_reduction <add>, %88, %cst_37 [1] : vector<8x32xf32> to vector<8xf32>
    %92 = vector.shape_cast %91 : vector<8xf32> to vector<8x1xf32>
    %cst_38 = arith.constant 3.200000e+01 : f32
    %93 = vector.broadcast %cst_38 : f32 to vector<8x1xf32>
    %94 = arith.divf %92, %93 : vector<8x1xf32>
    %95 = vector.broadcast %94 : vector<8x1xf32> to vector<8x32xf32>
    %96 = arith.subf %88, %95 : vector<8x32xf32>
    %97 = arith.mulf %96, %96 : vector<8x32xf32>
    %cst_39 = arith.constant dense<0.000000e+00> : vector<8xf32>
    %98 = vector.multi_reduction <add>, %97, %cst_39 [1] : vector<8x32xf32> to vector<8xf32>
    %99 = vector.shape_cast %98 : vector<8xf32> to vector<8x1xf32>
    %cst_40 = arith.constant 0.0322580636 : f32
    %100 = vector.broadcast %cst_40 : f32 to vector<8x1xf32>
    %101 = arith.mulf %99, %100 : vector<8x1xf32>
    %102 = vector.broadcast %89 : vector<1x32xf32> to vector<8x32xf32>
    %103 = arith.mulf %102, %96 : vector<8x32xf32>
    %104 = math.sqrt %101 : vector<8x1xf32>
    %cst_41 = arith.constant 9.99999997E-7 : f32
    %105 = vector.broadcast %cst_41 : f32 to vector<8x1xf32>
    %106 = arith.addf %104, %105 : vector<8x1xf32>
    %107 = vector.broadcast %106 : vector<8x1xf32> to vector<8x32xf32>
    %108 = arith.divf %103, %107 : vector<8x32xf32>
    %109 = vector.broadcast %90 : vector<1x32xf32> to vector<8x32xf32>
    %110 = arith.addf %108, %109 : vector<8x32xf32>
    %c0_42 = arith.constant 0 : index
    %c0_43 = arith.constant 0 : index
    %c0_44 = arith.constant 0 : index
    %111 = vector.load %arg7[%c0_42, %c0_43, %c0_44] : memref<2x32x32xf32, #tpu.memory_space<vmem>>, vector<1x32x32xf32>
    %112 = vector.shape_cast %111 : vector<1x32x32xf32> to vector<32x32xf32>
    %cst_45 = arith.constant dense<0.000000e+00> : vector<8x32xf32>
    %113 = tpu.matmul %110, %112, %cst_45 {dimension_numbers = #tpu.dot_dimension_numbers<[1], [0], [0], [1], [0, 0, 1, 1], [], []>} : vector<8x32xf32>, vector<32x32xf32>, vector<8x32xf32> -> vector<8x32xf32>
    %114 = vector.broadcast %24 : vector<1x32xf32> to vector<8x32xf32>
    %115 = arith.addf %113, %114 : vector<8x32xf32>
    %c0_46 = arith.constant 0 : index
    %c0_47 = arith.constant 0 : index
    %c0_48 = arith.constant 0 : index
    %116 = vector.load %arg8[%c0_46, %c0_47, %c0_48] : memref<2x32x64xf32, #tpu.memory_space<vmem>>, vector<1x32x64xf32>
    %117 = vector.shape_cast %116 : vector<1x32x64xf32> to vector<32x64xf32>
    %cst_49 = arith.constant dense<0.000000e+00> : vector<16x64xf32>
    %118 = tpu.matmul %3, %117, %cst_49 {dimension_numbers = #tpu.dot_dimension_numbers<[1], [0], [0], [1], [0, 0, 1, 1], [], []>} : vector<16x32xf32>, vector<32x64xf32>, vector<16x64xf32> -> vector<16x64xf32>
    %119 = vector.broadcast %25 : vector<1x64xf32> to vector<16x64xf32>
    %120 = arith.addf %118, %119 : vector<16x64xf32>
    %121 = vector.extract_strided_slice %120 {offsets = [0, 0], sizes = [16, 32], strides = [1, 1]} : vector<16x64xf32> to vector<16x32xf32>
    %122 = vector.extract_strided_slice %120 {offsets = [0, 32], sizes = [16, 32], strides = [1, 1]} : vector<16x64xf32> to vector<16x32xf32>
    %c0_50 = arith.constant 0 : index
    %c0_51 = arith.constant 0 : index
    %c0_52 = arith.constant 0 : index
    %123 = vector.load %arg9[%c0_50, %c0_51, %c0_52] : memref<2x32x32xf32, #tpu.memory_space<vmem>>, vector<1x32x32xf32>
    %124 = vector.shape_cast %123 : vector<1x32x32xf32> to vector<32x32xf32>
    %125 = vector.shape_cast %115 : vector<8x32xf32> to vector<8x4x8xf32>
    %126 = tpu.transpose %125, [1, 0, 2] : vector<8x4x8xf32> -> vector<4x8x8xf32>
    %127 = vector.shape_cast %121 : vector<16x32xf32> to vector<16x4x8xf32>
    %128 = tpu.transpose %127, [1, 0, 2] : vector<16x4x8xf32> -> vector<4x16x8xf32>
    %129 = vector.shape_cast %122 : vector<16x32xf32> to vector<16x4x8xf32>
    %130 = tpu.transpose %129, [1, 0, 2] : vector<16x4x8xf32> -> vector<4x16x8xf32>
    "tpu.trace_start"() <{level = 10 : i32, message = "hqd,hkd->hqk"}> : () -> ()
    %cst_53 = arith.constant dense<0.000000e+00> : vector<4x8x16xf32>
    %131 = tpu.matmul %126, %128, %cst_53 {dimension_numbers = #tpu.dot_dimension_numbers<[2], [2], [1], [1], [0, 0, 0, 1, 1, 1], [0], [0]>} : vector<4x8x8xf32>, vector<4x16x8xf32>, vector<4x8x16xf32> -> vector<4x8x16xf32>
    "tpu.trace_stop"() : () -> ()
    %cst_54 = arith.constant 0.353553385 : f32
    %132 = vector.broadcast %cst_54 : f32 to vector<4x8x16xf32>
    %133 = arith.mulf %131, %132 : vector<4x8x16xf32>
    %134 = vector.shape_cast %17 : vector<8x16xf32> to vector<1x8x16xf32>
    %135 = vector.broadcast %134 : vector<1x8x16xf32> to vector<4x8x16xf32>
    %136 = arith.addf %133, %135 : vector<4x8x16xf32>
    %cst_55 = arith.constant dense<0xFF800000> : vector<4x8xf32>
    %137 = vector.multi_reduction <maximumf>, %136, %cst_55 [2] : vector<4x8x16xf32> to vector<4x8xf32>
    %138 = vector.shape_cast %137 : vector<4x8xf32> to vector<4x8x1xf32>
    %139 = vector.broadcast %138 : vector<4x8x1xf32> to vector<4x8x16xf32>
    %140 = arith.subf %136, %139 : vector<4x8x16xf32>
    %141 = math.exp %140 : vector<4x8x16xf32>
    %cst_56 = arith.constant dense<0.000000e+00> : vector<4x8xf32>
    %142 = vector.multi_reduction <add>, %141, %cst_56 [2] : vector<4x8x16xf32> to vector<4x8xf32>
    %143 = vector.shape_cast %142 : vector<4x8xf32> to vector<4x8x1xf32>
    %144 = vector.broadcast %143 : vector<4x8x1xf32> to vector<4x8x16xf32>
    %145 = arith.divf %141, %144 : vector<4x8x16xf32>
    "tpu.trace_start"() <{level = 10 : i32, message = "hqk,hkd->hqd"}> : () -> ()
    %cst_57 = arith.constant dense<0.000000e+00> : vector<4x8x8xf32>
    %146 = tpu.matmul %145, %130, %cst_57 {dimension_numbers = #tpu.dot_dimension_numbers<[2], [1], [1], [2], [0, 0, 0, 1, 1, 2], [0], [0]>} : vector<4x8x16xf32>, vector<4x16x8xf32>, vector<4x8x8xf32> -> vector<4x8x8xf32>
    "tpu.trace_stop"() : () -> ()
    %147 = tpu.transpose %146, [1, 0, 2] : vector<4x8x8xf32> -> vector<8x4x8xf32>
    %148 = vector.shape_cast %147 : vector<8x4x8xf32> to vector<8x32xf32>
    %cst_58 = arith.constant dense<0.000000e+00> : vector<8x32xf32>
    %149 = tpu.matmul %148, %124, %cst_58 {dimension_numbers = #tpu.dot_dimension_numbers<[1], [0], [0], [1], [0, 0, 1, 1], [], []>} : vector<8x32xf32>, vector<32x32xf32>, vector<8x32xf32> -> vector<8x32xf32>
    %150 = vector.broadcast %26 : vector<1x32xf32> to vector<8x32xf32>
    %151 = arith.addf %149, %150 : vector<8x32xf32>
    %152 = arith.addf %88, %151 : vector<8x32xf32>
    %153 = vector.extract_strided_slice %20 {offsets = [2, 0], sizes = [1, 32], strides = [1, 1]} : vector<3x32xf32> to vector<1x32xf32>
    %154 = vector.extract_strided_slice %21 {offsets = [2, 0], sizes = [1, 32], strides = [1, 1]} : vector<3x32xf32> to vector<1x32xf32>
    %cst_59 = arith.constant dense<0.000000e+00> : vector<8xf32>
    %155 = vector.multi_reduction <add>, %152, %cst_59 [1] : vector<8x32xf32> to vector<8xf32>
    %156 = vector.shape_cast %155 : vector<8xf32> to vector<8x1xf32>
    %cst_60 = arith.constant 3.200000e+01 : f32
    %157 = vector.broadcast %cst_60 : f32 to vector<8x1xf32>
    %158 = arith.divf %156, %157 : vector<8x1xf32>
    %159 = vector.broadcast %158 : vector<8x1xf32> to vector<8x32xf32>
    %160 = arith.subf %152, %159 : vector<8x32xf32>
    %161 = arith.mulf %160, %160 : vector<8x32xf32>
    %cst_61 = arith.constant dense<0.000000e+00> : vector<8xf32>
    %162 = vector.multi_reduction <add>, %161, %cst_61 [1] : vector<8x32xf32> to vector<8xf32>
    %163 = vector.shape_cast %162 : vector<8xf32> to vector<8x1xf32>
    %cst_62 = arith.constant 0.0322580636 : f32
    %164 = vector.broadcast %cst_62 : f32 to vector<8x1xf32>
    %165 = arith.mulf %163, %164 : vector<8x1xf32>
    %166 = vector.broadcast %153 : vector<1x32xf32> to vector<8x32xf32>
    %167 = arith.mulf %166, %160 : vector<8x32xf32>
    %168 = math.sqrt %165 : vector<8x1xf32>
    %cst_63 = arith.constant 9.99999997E-7 : f32
    %169 = vector.broadcast %cst_63 : f32 to vector<8x1xf32>
    %170 = arith.addf %168, %169 : vector<8x1xf32>
    %171 = vector.broadcast %170 : vector<8x1xf32> to vector<8x32xf32>
    %172 = arith.divf %167, %171 : vector<8x32xf32>
    %173 = vector.broadcast %154 : vector<1x32xf32> to vector<8x32xf32>
    %174 = arith.addf %172, %173 : vector<8x32xf32>
    %c0_64 = arith.constant 0 : index
    %c0_65 = arith.constant 0 : index
    %c0_66 = arith.constant 0 : index
    %175 = vector.load %arg10[%c0_64, %c0_65, %c0_66] : memref<2x32x64xf32, #tpu.memory_space<vmem>>, vector<1x32x64xf32>
    %176 = vector.shape_cast %175 : vector<1x32x64xf32> to vector<32x64xf32>
    %cst_67 = arith.constant dense<0.000000e+00> : vector<8x64xf32>
    %177 = tpu.matmul %174, %176, %cst_67 {dimension_numbers = #tpu.dot_dimension_numbers<[1], [0], [0], [1], [0, 0, 1, 1], [], []>} : vector<8x32xf32>, vector<32x64xf32>, vector<8x64xf32> -> vector<8x64xf32>
    %178 = vector.broadcast %27 : vector<1x64xf32> to vector<8x64xf32>
    %179 = arith.addf %177, %178 : vector<8x64xf32>
    %cst_68 = arith.constant 0.000000e+00 : f32
    %180 = vector.broadcast %cst_68 : f32 to vector<8x64xf32>
    %181 = arith.maximumf %179, %180 : vector<8x64xf32>
    %c0_69 = arith.constant 0 : index
    %c0_70 = arith.constant 0 : index
    %c0_71 = arith.constant 0 : index
    %182 = vector.load %arg11[%c0_69, %c0_70, %c0_71] : memref<2x64x32xf32, #tpu.memory_space<vmem>>, vector<1x64x32xf32>
    %183 = vector.shape_cast %182 : vector<1x64x32xf32> to vector<64x32xf32>
    %cst_72 = arith.constant dense<0.000000e+00> : vector<8x32xf32>
    %184 = tpu.matmul %181, %183, %cst_72 {dimension_numbers = #tpu.dot_dimension_numbers<[1], [0], [0], [1], [0, 0, 1, 1], [], []>} : vector<8x64xf32>, vector<64x32xf32>, vector<8x32xf32> -> vector<8x32xf32>
    %185 = arith.addf %152, %184 : vector<8x32xf32>
    %186 = vector.broadcast %28 : vector<1x32xf32> to vector<8x32xf32>
    %187 = arith.addf %185, %186 : vector<8x32xf32>
    %c1 = arith.constant 1 : index
    %c0_73 = arith.constant 0 : index
    %c0_74 = arith.constant 0 : index
    %188 = vector.load %arg12[%c1, %c0_73, %c0_74] : memref<2x16x128xf32, #tpu.memory_space<vmem>>, vector<1x16x128xf32>
    %189 = vector.shape_cast %188 : vector<1x16x128xf32> to vector<16x128xf32>
    %190 = vector.extract_strided_slice %189 {offsets = [0, 0], sizes = [3, 32], strides = [1, 1]} : vector<16x128xf32> to vector<3x32xf32>
    %191 = vector.extract_strided_slice %189 {offsets = [3, 0], sizes = [3, 32], strides = [1, 1]} : vector<16x128xf32> to vector<3x32xf32>
    %192 = vector.extract_strided_slice %189 {offsets = [6, 0], sizes = [1, 96], strides = [1, 1]} : vector<16x128xf32> to vector<1x96xf32>
    %193 = vector.extract_strided_slice %189 {offsets = [7, 0], sizes = [1, 32], strides = [1, 1]} : vector<16x128xf32> to vector<1x32xf32>
    %194 = vector.extract_strided_slice %189 {offsets = [8, 0], sizes = [1, 32], strides = [1, 1]} : vector<16x128xf32> to vector<1x32xf32>
    %195 = vector.extract_strided_slice %189 {offsets = [9, 0], sizes = [1, 64], strides = [1, 1]} : vector<16x128xf32> to vector<1x64xf32>
    %196 = vector.extract_strided_slice %189 {offsets = [10, 0], sizes = [1, 32], strides = [1, 1]} : vector<16x128xf32> to vector<1x32xf32>
    %197 = vector.extract_strided_slice %189 {offsets = [11, 0], sizes = [1, 64], strides = [1, 1]} : vector<16x128xf32> to vector<1x64xf32>
    %198 = vector.extract_strided_slice %189 {offsets = [12, 0], sizes = [1, 32], strides = [1, 1]} : vector<16x128xf32> to vector<1x32xf32>
    %199 = vector.extract_strided_slice %190 {offsets = [0, 0], sizes = [1, 32], strides = [1, 1]} : vector<3x32xf32> to vector<1x32xf32>
    %200 = vector.extract_strided_slice %191 {offsets = [0, 0], sizes = [1, 32], strides = [1, 1]} : vector<3x32xf32> to vector<1x32xf32>
    %cst_75 = arith.constant dense<0.000000e+00> : vector<8xf32>
    %201 = vector.multi_reduction <add>, %187, %cst_75 [1] : vector<8x32xf32> to vector<8xf32>
    %202 = vector.shape_cast %201 : vector<8xf32> to vector<8x1xf32>
    %cst_76 = arith.constant 3.200000e+01 : f32
    %203 = vector.broadcast %cst_76 : f32 to vector<8x1xf32>
    %204 = arith.divf %202, %203 : vector<8x1xf32>
    %205 = vector.broadcast %204 : vector<8x1xf32> to vector<8x32xf32>
    %206 = arith.subf %187, %205 : vector<8x32xf32>
    %207 = arith.mulf %206, %206 : vector<8x32xf32>
    %cst_77 = arith.constant dense<0.000000e+00> : vector<8xf32>
    %208 = vector.multi_reduction <add>, %207, %cst_77 [1] : vector<8x32xf32> to vector<8xf32>
    %209 = vector.shape_cast %208 : vector<8xf32> to vector<8x1xf32>
    %cst_78 = arith.constant 0.0322580636 : f32
    %210 = vector.broadcast %cst_78 : f32 to vector<8x1xf32>
    %211 = arith.mulf %209, %210 : vector<8x1xf32>
    %212 = vector.broadcast %199 : vector<1x32xf32> to vector<8x32xf32>
    %213 = arith.mulf %212, %206 : vector<8x32xf32>
    %214 = math.sqrt %211 : vector<8x1xf32>
    %cst_79 = arith.constant 9.99999997E-7 : f32
    %215 = vector.broadcast %cst_79 : f32 to vector<8x1xf32>
    %216 = arith.addf %214, %215 : vector<8x1xf32>
    %217 = vector.broadcast %216 : vector<8x1xf32> to vector<8x32xf32>
    %218 = arith.divf %213, %217 : vector<8x32xf32>
    %219 = vector.broadcast %200 : vector<1x32xf32> to vector<8x32xf32>
    %220 = arith.addf %218, %219 : vector<8x32xf32>
    %c1_80 = arith.constant 1 : index
    %c0_81 = arith.constant 0 : index
    %c0_82 = arith.constant 0 : index
    %221 = vector.load %arg5[%c1_80, %c0_81, %c0_82] : memref<2x32x96xf32, #tpu.memory_space<vmem>>, vector<1x32x96xf32>
    %222 = vector.shape_cast %221 : vector<1x32x96xf32> to vector<32x96xf32>
    %cst_83 = arith.constant dense<0.000000e+00> : vector<8x96xf32>
    %223 = tpu.matmul %220, %222, %cst_83 {dimension_numbers = #tpu.dot_dimension_numbers<[1], [0], [0], [1], [0, 0, 1, 1], [], []>} : vector<8x32xf32>, vector<32x96xf32>, vector<8x96xf32> -> vector<8x96xf32>
    %224 = vector.broadcast %192 : vector<1x96xf32> to vector<8x96xf32>
    %225 = arith.addf %223, %224 : vector<8x96xf32>
    %226 = vector.extract_strided_slice %225 {offsets = [0, 0], sizes = [8, 32], strides = [1, 1]} : vector<8x96xf32> to vector<8x32xf32>
    %227 = vector.extract_strided_slice %225 {offsets = [0, 32], sizes = [8, 32], strides = [1, 1]} : vector<8x96xf32> to vector<8x32xf32>
    %228 = vector.extract_strided_slice %225 {offsets = [0, 64], sizes = [8, 32], strides = [1, 1]} : vector<8x96xf32> to vector<8x32xf32>
    %c1_84 = arith.constant 1 : index
    %c0_85 = arith.constant 0 : index
    %c0_86 = arith.constant 0 : index
    %229 = vector.load %arg6[%c1_84, %c0_85, %c0_86] : memref<2x32x32xf32, #tpu.memory_space<vmem>>, vector<1x32x32xf32>
    %230 = vector.shape_cast %229 : vector<1x32x32xf32> to vector<32x32xf32>
    %231 = vector.shape_cast %226 : vector<8x32xf32> to vector<8x4x8xf32>
    %232 = tpu.transpose %231, [1, 0, 2] : vector<8x4x8xf32> -> vector<4x8x8xf32>
    %233 = vector.shape_cast %227 : vector<8x32xf32> to vector<8x4x8xf32>
    %234 = tpu.transpose %233, [1, 0, 2] : vector<8x4x8xf32> -> vector<4x8x8xf32>
    %235 = vector.shape_cast %228 : vector<8x32xf32> to vector<8x4x8xf32>
    %236 = tpu.transpose %235, [1, 0, 2] : vector<8x4x8xf32> -> vector<4x8x8xf32>
    "tpu.trace_start"() <{level = 10 : i32, message = "hqd,hkd->hqk"}> : () -> ()
    %cst_87 = arith.constant dense<0.000000e+00> : vector<4x8x8xf32>
    %237 = tpu.matmul %232, %234, %cst_87 {dimension_numbers = #tpu.dot_dimension_numbers<[2], [2], [1], [1], [0, 0, 0, 1, 1, 1], [0], [0]>} : vector<4x8x8xf32>, vector<4x8x8xf32>, vector<4x8x8xf32> -> vector<4x8x8xf32>
    "tpu.trace_stop"() : () -> ()
    %cst_88 = arith.constant 0.353553385 : f32
    %238 = vector.broadcast %cst_88 : f32 to vector<4x8x8xf32>
    %239 = arith.mulf %237, %238 : vector<4x8x8xf32>
    %240 = vector.shape_cast %10 : vector<8x8xf32> to vector<1x8x8xf32>
    %241 = vector.broadcast %240 : vector<1x8x8xf32> to vector<4x8x8xf32>
    %242 = arith.addf %239, %241 : vector<4x8x8xf32>
    %cst_89 = arith.constant dense<0xFF800000> : vector<4x8xf32>
    %243 = vector.multi_reduction <maximumf>, %242, %cst_89 [2] : vector<4x8x8xf32> to vector<4x8xf32>
    %244 = vector.shape_cast %243 : vector<4x8xf32> to vector<4x8x1xf32>
    %245 = vector.broadcast %244 : vector<4x8x1xf32> to vector<4x8x8xf32>
    %246 = arith.subf %242, %245 : vector<4x8x8xf32>
    %247 = math.exp %246 : vector<4x8x8xf32>
    %cst_90 = arith.constant dense<0.000000e+00> : vector<4x8xf32>
    %248 = vector.multi_reduction <add>, %247, %cst_90 [2] : vector<4x8x8xf32> to vector<4x8xf32>
    %249 = vector.shape_cast %248 : vector<4x8xf32> to vector<4x8x1xf32>
    %250 = vector.broadcast %249 : vector<4x8x1xf32> to vector<4x8x8xf32>
    %251 = arith.divf %247, %250 : vector<4x8x8xf32>
    "tpu.trace_start"() <{level = 10 : i32, message = "hqk,hkd->hqd"}> : () -> ()
    %cst_91 = arith.constant dense<0.000000e+00> : vector<4x8x8xf32>
    %252 = tpu.matmul %251, %236, %cst_91 {dimension_numbers = #tpu.dot_dimension_numbers<[2], [1], [1], [2], [0, 0, 0, 1, 1, 2], [0], [0]>} : vector<4x8x8xf32>, vector<4x8x8xf32>, vector<4x8x8xf32> -> vector<4x8x8xf32>
    "tpu.trace_stop"() : () -> ()
    %253 = tpu.transpose %252, [1, 0, 2] : vector<4x8x8xf32> -> vector<8x4x8xf32>
    %254 = vector.shape_cast %253 : vector<8x4x8xf32> to vector<8x32xf32>
    %cst_92 = arith.constant dense<0.000000e+00> : vector<8x32xf32>
    %255 = tpu.matmul %254, %230, %cst_92 {dimension_numbers = #tpu.dot_dimension_numbers<[1], [0], [0], [1], [0, 0, 1, 1], [], []>} : vector<8x32xf32>, vector<32x32xf32>, vector<8x32xf32> -> vector<8x32xf32>
    %256 = vector.broadcast %193 : vector<1x32xf32> to vector<8x32xf32>
    %257 = arith.addf %255, %256 : vector<8x32xf32>
    %258 = arith.addf %187, %257 : vector<8x32xf32>
    %259 = vector.extract_strided_slice %190 {offsets = [1, 0], sizes = [1, 32], strides = [1, 1]} : vector<3x32xf32> to vector<1x32xf32>
    %260 = vector.extract_strided_slice %191 {offsets = [1, 0], sizes = [1, 32], strides = [1, 1]} : vector<3x32xf32> to vector<1x32xf32>
    %cst_93 = arith.constant dense<0.000000e+00> : vector<8xf32>
    %261 = vector.multi_reduction <add>, %258, %cst_93 [1] : vector<8x32xf32> to vector<8xf32>
    %262 = vector.shape_cast %261 : vector<8xf32> to vector<8x1xf32>
    %cst_94 = arith.constant 3.200000e+01 : f32
    %263 = vector.broadcast %cst_94 : f32 to vector<8x1xf32>
    %264 = arith.divf %262, %263 : vector<8x1xf32>
    %265 = vector.broadcast %264 : vector<8x1xf32> to vector<8x32xf32>
    %266 = arith.subf %258, %265 : vector<8x32xf32>
    %267 = arith.mulf %266, %266 : vector<8x32xf32>
    %cst_95 = arith.constant dense<0.000000e+00> : vector<8xf32>
    %268 = vector.multi_reduction <add>, %267, %cst_95 [1] : vector<8x32xf32> to vector<8xf32>
    %269 = vector.shape_cast %268 : vector<8xf32> to vector<8x1xf32>
    %cst_96 = arith.constant 0.0322580636 : f32
    %270 = vector.broadcast %cst_96 : f32 to vector<8x1xf32>
    %271 = arith.mulf %269, %270 : vector<8x1xf32>
    %272 = vector.broadcast %259 : vector<1x32xf32> to vector<8x32xf32>
    %273 = arith.mulf %272, %266 : vector<8x32xf32>
    %274 = math.sqrt %271 : vector<8x1xf32>
    %cst_97 = arith.constant 9.99999997E-7 : f32
    %275 = vector.broadcast %cst_97 : f32 to vector<8x1xf32>
    %276 = arith.addf %274, %275 : vector<8x1xf32>
    %277 = vector.broadcast %276 : vector<8x1xf32> to vector<8x32xf32>
    %278 = arith.divf %273, %277 : vector<8x32xf32>
    %279 = vector.broadcast %260 : vector<1x32xf32> to vector<8x32xf32>
    %280 = arith.addf %278, %279 : vector<8x32xf32>
    %c1_98 = arith.constant 1 : index
    %c0_99 = arith.constant 0 : index
    %c0_100 = arith.constant 0 : index
    %281 = vector.load %arg7[%c1_98, %c0_99, %c0_100] : memref<2x32x32xf32, #tpu.memory_space<vmem>>, vector<1x32x32xf32>
    %282 = vector.shape_cast %281 : vector<1x32x32xf32> to vector<32x32xf32>
    %cst_101 = arith.constant dense<0.000000e+00> : vector<8x32xf32>
    %283 = tpu.matmul %280, %282, %cst_101 {dimension_numbers = #tpu.dot_dimension_numbers<[1], [0], [0], [1], [0, 0, 1, 1], [], []>} : vector<8x32xf32>, vector<32x32xf32>, vector<8x32xf32> -> vector<8x32xf32>
    %284 = vector.broadcast %194 : vector<1x32xf32> to vector<8x32xf32>
    %285 = arith.addf %283, %284 : vector<8x32xf32>
    %c1_102 = arith.constant 1 : index
    %c0_103 = arith.constant 0 : index
    %c0_104 = arith.constant 0 : index
    %286 = vector.load %arg8[%c1_102, %c0_103, %c0_104] : memref<2x32x64xf32, #tpu.memory_space<vmem>>, vector<1x32x64xf32>
    %287 = vector.shape_cast %286 : vector<1x32x64xf32> to vector<32x64xf32>
    %cst_105 = arith.constant dense<0.000000e+00> : vector<16x64xf32>
    %288 = tpu.matmul %3, %287, %cst_105 {dimension_numbers = #tpu.dot_dimension_numbers<[1], [0], [0], [1], [0, 0, 1, 1], [], []>} : vector<16x32xf32>, vector<32x64xf32>, vector<16x64xf32> -> vector<16x64xf32>
    %289 = vector.broadcast %195 : vector<1x64xf32> to vector<16x64xf32>
    %290 = arith.addf %288, %289 : vector<16x64xf32>
    %291 = vector.extract_strided_slice %290 {offsets = [0, 0], sizes = [16, 32], strides = [1, 1]} : vector<16x64xf32> to vector<16x32xf32>
    %292 = vector.extract_strided_slice %290 {offsets = [0, 32], sizes = [16, 32], strides = [1, 1]} : vector<16x64xf32> to vector<16x32xf32>
    %c1_106 = arith.constant 1 : index
    %c0_107 = arith.constant 0 : index
    %c0_108 = arith.constant 0 : index
    %293 = vector.load %arg9[%c1_106, %c0_107, %c0_108] : memref<2x32x32xf32, #tpu.memory_space<vmem>>, vector<1x32x32xf32>
    %294 = vector.shape_cast %293 : vector<1x32x32xf32> to vector<32x32xf32>
    %295 = vector.shape_cast %285 : vector<8x32xf32> to vector<8x4x8xf32>
    %296 = tpu.transpose %295, [1, 0, 2] : vector<8x4x8xf32> -> vector<4x8x8xf32>
    %297 = vector.shape_cast %291 : vector<16x32xf32> to vector<16x4x8xf32>
    %298 = tpu.transpose %297, [1, 0, 2] : vector<16x4x8xf32> -> vector<4x16x8xf32>
    %299 = vector.shape_cast %292 : vector<16x32xf32> to vector<16x4x8xf32>
    %300 = tpu.transpose %299, [1, 0, 2] : vector<16x4x8xf32> -> vector<4x16x8xf32>
    "tpu.trace_start"() <{level = 10 : i32, message = "hqd,hkd->hqk"}> : () -> ()
    %cst_109 = arith.constant dense<0.000000e+00> : vector<4x8x16xf32>
    %301 = tpu.matmul %296, %298, %cst_109 {dimension_numbers = #tpu.dot_dimension_numbers<[2], [2], [1], [1], [0, 0, 0, 1, 1, 1], [0], [0]>} : vector<4x8x8xf32>, vector<4x16x8xf32>, vector<4x8x16xf32> -> vector<4x8x16xf32>
    "tpu.trace_stop"() : () -> ()
    %cst_110 = arith.constant 0.353553385 : f32
    %302 = vector.broadcast %cst_110 : f32 to vector<4x8x16xf32>
    %303 = arith.mulf %301, %302 : vector<4x8x16xf32>
    %304 = vector.shape_cast %17 : vector<8x16xf32> to vector<1x8x16xf32>
    %305 = vector.broadcast %304 : vector<1x8x16xf32> to vector<4x8x16xf32>
    %306 = arith.addf %303, %305 : vector<4x8x16xf32>
    %cst_111 = arith.constant dense<0xFF800000> : vector<4x8xf32>
    %307 = vector.multi_reduction <maximumf>, %306, %cst_111 [2] : vector<4x8x16xf32> to vector<4x8xf32>
    %308 = vector.shape_cast %307 : vector<4x8xf32> to vector<4x8x1xf32>
    %309 = vector.broadcast %308 : vector<4x8x1xf32> to vector<4x8x16xf32>
    %310 = arith.subf %306, %309 : vector<4x8x16xf32>
    %311 = math.exp %310 : vector<4x8x16xf32>
    %cst_112 = arith.constant dense<0.000000e+00> : vector<4x8xf32>
    %312 = vector.multi_reduction <add>, %311, %cst_112 [2] : vector<4x8x16xf32> to vector<4x8xf32>
    %313 = vector.shape_cast %312 : vector<4x8xf32> to vector<4x8x1xf32>
    %314 = vector.broadcast %313 : vector<4x8x1xf32> to vector<4x8x16xf32>
    %315 = arith.divf %311, %314 : vector<4x8x16xf32>
    "tpu.trace_start"() <{level = 10 : i32, message = "hqk,hkd->hqd"}> : () -> ()
    %cst_113 = arith.constant dense<0.000000e+00> : vector<4x8x8xf32>
    %316 = tpu.matmul %315, %300, %cst_113 {dimension_numbers = #tpu.dot_dimension_numbers<[2], [1], [1], [2], [0, 0, 0, 1, 1, 2], [0], [0]>} : vector<4x8x16xf32>, vector<4x16x8xf32>, vector<4x8x8xf32> -> vector<4x8x8xf32>
    "tpu.trace_stop"() : () -> ()
    %317 = tpu.transpose %316, [1, 0, 2] : vector<4x8x8xf32> -> vector<8x4x8xf32>
    %318 = vector.shape_cast %317 : vector<8x4x8xf32> to vector<8x32xf32>
    %cst_114 = arith.constant dense<0.000000e+00> : vector<8x32xf32>
    %319 = tpu.matmul %318, %294, %cst_114 {dimension_numbers = #tpu.dot_dimension_numbers<[1], [0], [0], [1], [0, 0, 1, 1], [], []>} : vector<8x32xf32>, vector<32x32xf32>, vector<8x32xf32> -> vector<8x32xf32>
    %320 = vector.broadcast %196 : vector<1x32xf32> to vector<8x32xf32>
    %321 = arith.addf %319, %320 : vector<8x32xf32>
    %322 = arith.addf %258, %321 : vector<8x32xf32>
    %323 = vector.extract_strided_slice %190 {offsets = [2, 0], sizes = [1, 32], strides = [1, 1]} : vector<3x32xf32> to vector<1x32xf32>
    %324 = vector.extract_strided_slice %191 {offsets = [2, 0], sizes = [1, 32], strides = [1, 1]} : vector<3x32xf32> to vector<1x32xf32>
    %cst_115 = arith.constant dense<0.000000e+00> : vector<8xf32>
    %325 = vector.multi_reduction <add>, %322, %cst_115 [1] : vector<8x32xf32> to vector<8xf32>
    %326 = vector.shape_cast %325 : vector<8xf32> to vector<8x1xf32>
    %cst_116 = arith.constant 3.200000e+01 : f32
    %327 = vector.broadcast %cst_116 : f32 to vector<8x1xf32>
    %328 = arith.divf %326, %327 : vector<8x1xf32>
    %329 = vector.broadcast %328 : vector<8x1xf32> to vector<8x32xf32>
    %330 = arith.subf %322, %329 : vector<8x32xf32>
    %331 = arith.mulf %330, %330 : vector<8x32xf32>
    %cst_117 = arith.constant dense<0.000000e+00> : vector<8xf32>
    %332 = vector.multi_reduction <add>, %331, %cst_117 [1] : vector<8x32xf32> to vector<8xf32>
    %333 = vector.shape_cast %332 : vector<8xf32> to vector<8x1xf32>
    %cst_118 = arith.constant 0.0322580636 : f32
    %334 = vector.broadcast %cst_118 : f32 to vector<8x1xf32>
    %335 = arith.mulf %333, %334 : vector<8x1xf32>
    %336 = vector.broadcast %323 : vector<1x32xf32> to vector<8x32xf32>
    %337 = arith.mulf %336, %330 : vector<8x32xf32>
    %338 = math.sqrt %335 : vector<8x1xf32>
    %cst_119 = arith.constant 9.99999997E-7 : f32
    %339 = vector.broadcast %cst_119 : f32 to vector<8x1xf32>
    %340 = arith.addf %338, %339 : vector<8x1xf32>
    %341 = vector.broadcast %340 : vector<8x1xf32> to vector<8x32xf32>
    %342 = arith.divf %337, %341 : vector<8x32xf32>
    %343 = vector.broadcast %324 : vector<1x32xf32> to vector<8x32xf32>
    %344 = arith.addf %342, %343 : vector<8x32xf32>
    %c1_120 = arith.constant 1 : index
    %c0_121 = arith.constant 0 : index
    %c0_122 = arith.constant 0 : index
    %345 = vector.load %arg10[%c1_120, %c0_121, %c0_122] : memref<2x32x64xf32, #tpu.memory_space<vmem>>, vector<1x32x64xf32>
    %346 = vector.shape_cast %345 : vector<1x32x64xf32> to vector<32x64xf32>
    %cst_123 = arith.constant dense<0.000000e+00> : vector<8x64xf32>
    %347 = tpu.matmul %344, %346, %cst_123 {dimension_numbers = #tpu.dot_dimension_numbers<[1], [0], [0], [1], [0, 0, 1, 1], [], []>} : vector<8x32xf32>, vector<32x64xf32>, vector<8x64xf32> -> vector<8x64xf32>
    %348 = vector.broadcast %197 : vector<1x64xf32> to vector<8x64xf32>
    %349 = arith.addf %347, %348 : vector<8x64xf32>
    %cst_124 = arith.constant 0.000000e+00 : f32
    %350 = vector.broadcast %cst_124 : f32 to vector<8x64xf32>
    %351 = arith.maximumf %349, %350 : vector<8x64xf32>
    %c1_125 = arith.constant 1 : index
    %c0_126 = arith.constant 0 : index
    %c0_127 = arith.constant 0 : index
    %352 = vector.load %arg11[%c1_125, %c0_126, %c0_127] : memref<2x64x32xf32, #tpu.memory_space<vmem>>, vector<1x64x32xf32>
    %353 = vector.shape_cast %352 : vector<1x64x32xf32> to vector<64x32xf32>
    %cst_128 = arith.constant dense<0.000000e+00> : vector<8x32xf32>
    %354 = tpu.matmul %351, %353, %cst_128 {dimension_numbers = #tpu.dot_dimension_numbers<[1], [0], [0], [1], [0, 0, 1, 1], [], []>} : vector<8x64xf32>, vector<64x32xf32>, vector<8x32xf32> -> vector<8x32xf32>
    %355 = arith.addf %322, %354 : vector<8x32xf32>
    %356 = vector.broadcast %198 : vector<1x32xf32> to vector<8x32xf32>
    %357 = arith.addf %355, %356 : vector<8x32xf32>
    %c0_129 = arith.constant 0 : index
    %c0_130 = arith.constant 0 : index
    %358 = vector.load %arg13[%c0_129, %c0_130] : memref<2x32xf32, #tpu.memory_space<vmem>>, vector<1x32xf32>
    %c1_131 = arith.constant 1 : index
    %c0_132 = arith.constant 0 : index
    %359 = vector.load %arg13[%c1_131, %c0_132] : memref<2x32xf32, #tpu.memory_space<vmem>>, vector<1x32xf32>
    %cst_133 = arith.constant dense<0.000000e+00> : vector<8xf32>
    %360 = vector.multi_reduction <add>, %357, %cst_133 [1] : vector<8x32xf32> to vector<8xf32>
    %361 = vector.shape_cast %360 : vector<8xf32> to vector<8x1xf32>
    %cst_134 = arith.constant 3.200000e+01 : f32
    %362 = vector.broadcast %cst_134 : f32 to vector<8x1xf32>
    %363 = arith.divf %361, %362 : vector<8x1xf32>
    %364 = vector.broadcast %363 : vector<8x1xf32> to vector<8x32xf32>
    %365 = arith.subf %357, %364 : vector<8x32xf32>
    %366 = arith.mulf %365, %365 : vector<8x32xf32>
    %cst_135 = arith.constant dense<0.000000e+00> : vector<8xf32>
    %367 = vector.multi_reduction <add>, %366, %cst_135 [1] : vector<8x32xf32> to vector<8xf32>
    %368 = vector.shape_cast %367 : vector<8xf32> to vector<8x1xf32>
    %cst_136 = arith.constant 0.0322580636 : f32
    %369 = vector.broadcast %cst_136 : f32 to vector<8x1xf32>
    %370 = arith.mulf %368, %369 : vector<8x1xf32>
    %371 = vector.broadcast %358 : vector<1x32xf32> to vector<8x32xf32>
    %372 = arith.mulf %371, %365 : vector<8x32xf32>
    %373 = math.sqrt %370 : vector<8x1xf32>
    %cst_137 = arith.constant 9.99999997E-7 : f32
    %374 = vector.broadcast %cst_137 : f32 to vector<8x1xf32>
    %375 = arith.addf %373, %374 : vector<8x1xf32>
    %376 = vector.broadcast %375 : vector<8x1xf32> to vector<8x32xf32>
    %377 = arith.divf %372, %376 : vector<8x32xf32>
    %378 = vector.broadcast %359 : vector<1x32xf32> to vector<8x32xf32>
    %379 = arith.addf %377, %378 : vector<8x32xf32>
    %c0_138 = arith.constant 0 : index
    %c0_139 = arith.constant 0 : index
    %c0_140 = arith.constant 0 : index
    %380 = vector.load %arg14[%c0_138, %c0_139, %c0_140] : memref<1x8x32xf32, #tpu.memory_space<vmem>>, vector<1x8x32xf32>
    %381 = vector.shape_cast %380 : vector<1x8x32xf32> to vector<8x32xf32>
    %382 = vector.shape_cast %379 : vector<8x32xf32> to vector<1x8x32xf32>
    tpu.vector_store %arg14[%c0_138, %c0_139, %c0_140], %382 {strides = array<i32>} : memref<1x8x32xf32, #tpu.memory_space<vmem>>, vector<1x8x32xf32>,
    return
  }
  func.func @transform_0(%arg0: i32) -> (i32, i32, i32) {
    %c0_i32 = arith.constant 0 : i32
    %c0_i32_0 = arith.constant 0 : i32
    %c0_i32_1 = arith.constant 0 : i32
    return %arg0, %c0_i32, %c0_i32_0 : i32, i32, i32
  }
  func.func @transform_1(%arg0: i32) -> (i32, i32, i32) {
    %c0_i32 = arith.constant 0 : i32
    %c0_i32_0 = arith.constant 0 : i32
    %c0_i32_1 = arith.constant 0 : i32
    return %arg0, %c0_i32, %c0_i32_0 : i32, i32, i32
  }
  func.func @transform_2(%arg0: i32) -> (i32, i32, i32) {
    %c0_i32 = arith.constant 0 : i32
    %c0_i32_0 = arith.constant 0 : i32
    %c0_i32_1 = arith.constant 0 : i32
    return %arg0, %c0_i32, %c0_i32_0 : i32, i32, i32
  }
  func.func @transform_3(%arg0: i32) -> (i32, i32, i32) {
    %c0_i32 = arith.constant 0 : i32
    %c0_i32_0 = arith.constant 0 : i32
    %c0_i32_1 = arith.constant 0 : i32
    return %arg0, %c0_i32, %c0_i32_0 : i32, i32, i32
  }
  func.func @transform_4(%arg0: i32) -> (i32, i32, i32) {
    %c0_i32 = arith.constant 0 : i32
    %c0_i32_0 = arith.constant 0 : i32
    %c0_i32_1 = arith.constant 0 : i32
    %c0_i32_2 = arith.constant 0 : i32
    return %c0_i32, %c0_i32_0, %c0_i32_1 : i32, i32, i32
  }
  func.func @transform_5(%arg0: i32) -> (i32, i32, i32) {
    %c0_i32 = arith.constant 0 : i32
    %c0_i32_0 = arith.constant 0 : i32
    %c0_i32_1 = arith.constant 0 : i32
    %c0_i32_2 = arith.constant 0 : i32
    return %c0_i32, %c0_i32_0, %c0_i32_1 : i32, i32, i32
  }
  func.func @transform_6(%arg0: i32) -> (i32, i32, i32) {
    %c0_i32 = arith.constant 0 : i32
    %c0_i32_0 = arith.constant 0 : i32
    %c0_i32_1 = arith.constant 0 : i32
    %c0_i32_2 = arith.constant 0 : i32
    return %c0_i32, %c0_i32_0, %c0_i32_1 : i32, i32, i32
  }
  func.func @transform_7(%arg0: i32) -> (i32, i32, i32) {
    %c0_i32 = arith.constant 0 : i32
    %c0_i32_0 = arith.constant 0 : i32
    %c0_i32_1 = arith.constant 0 : i32
    %c0_i32_2 = arith.constant 0 : i32
    return %c0_i32, %c0_i32_0, %c0_i32_1 : i32, i32, i32
  }
  func.func @transform_8(%arg0: i32) -> (i32, i32, i32) {
    %c0_i32 = arith.constant 0 : i32
    %c0_i32_0 = arith.constant 0 : i32
    %c0_i32_1 = arith.constant 0 : i32
    %c0_i32_2 = arith.constant 0 : i32
    return %c0_i32, %c0_i32_0, %c0_i32_1 : i32, i32, i32
  }
  func.func @transform_9(%arg0: i32) -> (i32, i32, i32) {
    %c0_i32 = arith.constant 0 : i32
    %c0_i32_0 = arith.constant 0 : i32
    %c0_i32_1 = arith.constant 0 : i32
    %c0_i32_2 = arith.constant 0 : i32
    return %c0_i32, %c0_i32_0, %c0_i32_1 : i32, i32, i32
  }
  func.func @transform_10(%arg0: i32) -> (i32, i32, i32) {
    %c0_i32 = arith.constant 0 : i32
    %c0_i32_0 = arith.constant 0 : i32
    %c0_i32_1 = arith.constant 0 : i32
    %c0_i32_2 = arith.constant 0 : i32
    return %c0_i32, %c0_i32_0, %c0_i32_1 : i32, i32, i32
  }
  func.func @transform_11(%arg0: i32) -> (i32, i32, i32) {
    %c0_i32 = arith.constant 0 : i32
    %c0_i32_0 = arith.constant 0 : i32
    %c0_i32_1 = arith.constant 0 : i32
    %c0_i32_2 = arith.constant 0 : i32
    return %c0_i32, %c0_i32_0, %c0_i32_1 : i32, i32, i32
  }
  func.func @transform_12(%arg0: i32) -> (i32, i32) {
    %c0_i32 = arith.constant 0 : i32
    %c0_i32_0 = arith.constant 0 : i32
    %c0_i32_1 = arith.constant 0 : i32
    return %c0_i32, %c0_i32_0 : i32, i32
  }
  func.func @transform_13(%arg0: i32) -> (i32, i32, i32) {
    %c0_i32 = arith.constant 0 : i32
    %c0_i32_0 = arith.constant 0 : i32
    %c0_i32_1 = arith.constant 0 : i32
    return %arg0, %c0_i32, %c0_i32_0 : i32, i32, i32
  }
}

</mosaic_0001>

<llo_original>
// kernel: decoder_forward.1
$region0: #{decoder_forward.1}
  #allocation0 [shape = 'u32[]', space=smem, size = 0x4, offset = 0x4, fixed_abs, tag = 'smem constant byte address 0x4 - core index']
  #allocation1 [shape = 'u32[144,128]{1,0:T(1,128)}', space=vmem, size = 0x12000, scoped, tag = 'internal scratch']
  %s0 = inlined_call_operand.vmem [shape: f32[2,8,32], index: 0, kind: input, shape index: {}]
  %s1 = inlined_call_operand.vmem [shape: f32[2,16,32], index: 1, kind: input, shape index: {}]
  %s2 = inlined_call_operand.vmem [shape: f32[2,8,8], index: 2, kind: input, shape index: {}]
  %s3 = inlined_call_operand.vmem [shape: f32[2,8,16], index: 3, kind: input, shape index: {}]
  %s4 = inlined_call_operand.vmem [shape: f32[2,32,96], index: 4, kind: input, shape index: {}]
  %s5 = inlined_call_operand.vmem [shape: f32[2,32,32], index: 5, kind: input, shape index: {}]
  %s6 = inlined_call_operand.vmem [shape: f32[2,32,32], index: 6, kind: input, shape index: {}]
  %s7 = inlined_call_operand.vmem [shape: f32[2,32,64], index: 7, kind: input, shape index: {}]
  %s8 = inlined_call_operand.vmem [shape: f32[2,32,32], index: 8, kind: input, shape index: {}]
  %s9 = inlined_call_operand.vmem [shape: f32[2,32,64], index: 9, kind: input, shape index: {}]
  %s10 = inlined_call_operand.vmem [shape: f32[2,64,32], index: 10, kind: input, shape index: {}]
  %s11 = inlined_call_operand.vmem [shape: f32[2,16,128], index: 11, kind: input, shape index: {}]
  %s12 = inlined_call_operand.vmem [shape: f32[2,32], index: 12, kind: input, shape index: {}]
  %s13 = inlined_call_operand.hbm [shape: f32[2,8,32], index: 13, kind: output, shape index: {}]
  %s14 = sld [smem:[#allocation0]]
  $region85: #{decoder_forward.1} parent=0
    _
  %s16 = ssub.s32 1, %s14
  %s17 = scalar_select 0, %s16, %s14
  $region1: #{decoder_forward.1} parent=0
    #allocation2 [shape = 'u8[8192]{0}', space=vmem, size = 0x2000, scoped, tag = 'output window, operand 0']
    #allocation3 [shape = 's32[2]{0}', space=sflag, size = 0x8, scoped, tag = 'scoped memory for decoder_forward.1']
    %18 = vsyncpa [#allocation3], 0
    %s19 = scalar_lea.sflag [#allocation3], 1
    %20 = vsyncpa %s19, 0
    loop: start=0, step=1, limit=4
    $region2: #{decoder_forward.1} parent=1 // loop_pre_header
      _
    $region3: #{decoder_forward.1} parent=1 // loop_header
      %s22 = sphi 0, %s26
      %p23 = scmp.ge.s32.totalorder %s22, 4
      %s32 = sphi 0, %s34
      %s35 = sphi 0, %s32
      %s36 = sphi 0, %s35
      %s52 = sphi 0, %s36
      %s58 = sphi 0, %s60
      %s61 = sphi 0, %s58
      %s62 = sphi 0, %s61
      %s78 = sphi 0, %s62
      %s84 = sphi 0, %s86
      %s87 = sphi 0, %s84
      %s88 = sphi 0, %s87
      %s104 = sphi 0, %s88
      %s110 = sphi 0, %s112
      %s113 = sphi 0, %s110
      %s114 = sphi 0, %s113
      %s130 = sphi 0, %s114
      %s134 = sphi 0, %s134
      %s136 = sphi 0, %s134
      %s137 = sphi 0, %s136
      %s151 = sphi 0, %s137
      %s155 = sphi 0, %s155
      %s157 = sphi 0, %s155
      %s158 = sphi 0, %s157
      %s172 = sphi 0, %s158
      %s176 = sphi 0, %s176
      %s178 = sphi 0, %s176
      %s179 = sphi 0, %s178
      %s193 = sphi 0, %s179
      %s197 = sphi 0, %s197
      %s199 = sphi 0, %s197
      %s200 = sphi 0, %s199
      %s214 = sphi 0, %s200
      %s218 = sphi 0, %s218
      %s220 = sphi 0, %s218
      %s221 = sphi 0, %s220
      %s235 = sphi 0, %s221
      %s239 = sphi 0, %s239
      %s241 = sphi 0, %s239
      %s242 = sphi 0, %s241
      %s256 = sphi 0, %s242
      %s260 = sphi 0, %s260
      %s262 = sphi 0, %s260
      %s263 = sphi 0, %s262
      %s277 = sphi 0, %s263
      %s281 = sphi 0, %s281
      %s283 = sphi 0, %s281
      %s284 = sphi 0, %s283
      %s298 = sphi 0, %s284
      %s302 = sphi 0, %s302
      %s304 = sphi 0, %s302
      %s305 = sphi 0, %s304
      %s319 = sphi 0, %s305
      %s325 = sphi 0, %s327
      %s328 = sphi 0, %s325
      %s329 = sphi 0, %s328
      %s345 = sphi 0, %s329
    $region4: #{decoder_forward.1} parent=1 // loop_header_branch
      %25 = sbr.rel (%p23) target = $region8
    $region5: #{decoder_forward.1} parent=1 // loop_body
      %s27 = ssub.s32 %s22, 1
      %s28 = ssub.s32 %s22, 2
      %s29 = sadd.s32 %s22, 1
      %s30 = ssub.s32 %s22, %s29
      %p31 = scmp.eq.s32.totalorder %s30, 0
      %s33 = sadd.s32 %s32, 1
      %s34 = scalar_select %p31, %s32, %s33
      %p37 = pneg %p31
      %p38 = scmp.eq.s32.totalorder %s22, 1
      %p39 = por %p37, %p38
      %p40 = scmp.ne.s32.totalorder %s32, %s35
      %p41 = scmp.eq.s32.totalorder %s22, 0
      %p42 = por %p40, %p41
      %p43 = scmp.ne.s32.totalorder %s32, %s35
      %p44 = scmp.eq.s32.totalorder %s27, 1
      %p45 = por %p43, %p44
      %p46 = scmp.ne.s32.totalorder %s35, %s36
      %p47 = scmp.eq.s32.totalorder %s27, 0
      %p48 = por %p46, %p47
      %p49 = scmp.ne.s32.totalorder %s35, %s36
      %p50 = scmp.eq.s32.totalorder %s28, 1
      %p51 = por %p49, %p50
      %p53 = scmp.ne.s32.totalorder %s36, %s52
      %p54 = scmp.eq.s32.totalorder %s28, 0
      %p55 = por %p53, %p54
      %s56 = ssub.s32 %s22, %s29
      %p57 = scmp.eq.s32.totalorder %s56, 0
      %s59 = sadd.s32 %s58, 1
      %s60 = scalar_select %p57, %s58, %s59
      %p63 = pneg %p57
      %p64 = scmp.eq.s32.totalorder %s22, 1
      %p65 = por %p63, %p64
      %p66 = scmp.ne.s32.totalorder %s58, %s61
      %p67 = scmp.eq.s32.totalorder %s22, 0
      %p68 = por %p66, %p67
      %p69 = scmp.ne.s32.totalorder %s58, %s61
      %p70 = scmp.eq.s32.totalorder %s27, 1
      %p71 = por %p69, %p70
      %p72 = scmp.ne.s32.totalorder %s61, %s62
      %p73 = scmp.eq.s32.totalorder %s27, 0
      %p74 = por %p72, %p73
      %p75 = scmp.ne.s32.totalorder %s61, %s62
      %p76 = scmp.eq.s32.totalorder %s28, 1
      %p77 = por %p75, %p76
      %p79 = scmp.ne.s32.totalorder %s62, %s78
      %p80 = scmp.eq.s32.totalorder %s28, 0
      %p81 = por %p79, %p80
      %s82 = ssub.s32 %s22, %s29
      %p83 = scmp.eq.s32.totalorder %s82, 0
      %s85 = sadd.s32 %s84, 1
      %s86 = scalar_select %p83, %s84, %s85
      %p89 = pneg %p83
      %p90 = scmp.eq.s32.totalorder %s22, 1
      %p91 = por %p89, %p90
      %p92 = scmp.ne.s32.totalorder %s84, %s87
      %p93 = scmp.eq.s32.totalorder %s22, 0
      %p94 = por %p92, %p93
      %p95 = scmp.ne.s32.totalorder %s84, %s87
      %p96 = scmp.eq.s32.totalorder %s27, 1
      %p97 = por %p95, %p96
      %p98 = scmp.ne.s32.totalorder %s87, %s88
      %p99 = scmp.eq.s32.totalorder %s27, 0
      %p100 = por %p98, %p99
      %p101 = scmp.ne.s32.totalorder %s87, %s88
      %p102 = scmp.eq.s32.totalorder %s28, 1
      %p103 = por %p101, %p102
      %p105 = scmp.ne.s32.totalorder %s88, %s104
      %p106 = scmp.eq.s32.totalorder %s28, 0
      %p107 = por %p105, %p106
      %s108 = ssub.s32 %s22, %s29
      %p109 = scmp.eq.s32.totalorder %s108, 0
      %s111 = sadd.s32 %s110, 1
      %s112 = scalar_select %p109, %s110, %s111
      %p115 = pneg %p109
      %p116 = scmp.eq.s32.totalorder %s22, 1
      %p117 = por %p115, %p116
      %p118 = scmp.ne.s32.totalorder %s110, %s113
      %p119 = scmp.eq.s32.totalorder %s22, 0
      %p120 = por %p118, %p119
      %p121 = scmp.ne.s32.totalorder %s110, %s113
      %p122 = scmp.eq.s32.totalorder %s27, 1
      %p123 = por %p121, %p122
      %p124 = scmp.ne.s32.totalorder %s113, %s114
      %p125 = scmp.eq.s32.totalorder %s27, 0
      %p126 = por %p124, %p125
      %p127 = scmp.ne.s32.totalorder %s113, %s114
      %p128 = scmp.eq.s32.totalorder %s28, 1
      %p129 = por %p127, %p128
      %p131 = scmp.ne.s32.totalorder %s114, %s130
      %p132 = scmp.eq.s32.totalorder %s28, 0
      %p133 = por %p131, %p132
      %s135 = sadd.s32 %s134, 1
      %p138 = scmp.eq.s32.totalorder %s22, 1
      %p139 = scmp.ne.s32.totalorder %s134, %s136
      %p140 = scmp.eq.s32.totalorder %s22, 0
      %p141 = por %p139, %p140
      %p142 = scmp.ne.s32.totalorder %s134, %s136
      %p143 = scmp.eq.s32.totalorder %s27, 1
      %p144 = por %p142, %p143
      %p145 = scmp.ne.s32.totalorder %s136, %s137
      %p146 = scmp.eq.s32.totalorder %s27, 0
      %p147 = por %p145, %p146
      %p148 = scmp.ne.s32.totalorder %s136, %s137
      %p149 = scmp.eq.s32.totalorder %s28, 1
      %p150 = por %p148, %p149
      %p152 = scmp.ne.s32.totalorder %s137, %s151
      %p153 = scmp.eq.s32.totalorder %s28, 0
      %p154 = por %p152, %p153
      %s156 = sadd.s32 %s155, 1
      %p159 = scmp.eq.s32.totalorder %s22, 1
      %p160 = scmp.ne.s32.totalorder %s155, %s157
      %p161 = scmp.eq.s32.totalorder %s22, 0
      %p162 = por %p160, %p161
      %p163 = scmp.ne.s32.totalorder %s155, %s157
      %p164 = scmp.eq.s32.totalorder %s27, 1
      %p165 = por %p163, %p164
      %p166 = scmp.ne.s32.totalorder %s157, %s158
      %p167 = scmp.eq.s32.totalorder %s27, 0
      %p168 = por %p166, %p167
      %p169 = scmp.ne.s32.totalorder %s157, %s158
      %p170 = scmp.eq.s32.totalorder %s28, 1
      %p171 = por %p169, %p170
      %p173 = scmp.ne.s32.totalorder %s158, %s172
      %p174 = scmp.eq.s32.totalorder %s28, 0
      %p175 = por %p173, %p174
      %s177 = sadd.s32 %s176, 1
      %p180 = scmp.eq.s32.totalorder %s22, 1
      %p181 = scmp.ne.s32.totalorder %s176, %s178
      %p182 = scmp.eq.s32.totalorder %s22, 0
      %p183 = por %p181, %p182
      %p184 = scmp.ne.s32.totalorder %s176, %s178
      %p185 = scmp.eq.s32.totalorder %s27, 1
      %p186 = por %p184, %p185
      %p187 = scmp.ne.s32.totalorder %s178, %s179
      %p188 = scmp.eq.s32.totalorder %s27, 0
      %p189 = por %p187, %p188
      %p190 = scmp.ne.s32.totalorder %s178, %s179
      %p191 = scmp.eq.s32.totalorder %s28, 1
      %p192 = por %p190, %p191
      %p194 = scmp.ne.s32.totalorder %s179, %s193
      %p195 = scmp.eq.s32.totalorder %s28, 0
      %p196 = por %p194, %p195
      %s198 = sadd.s32 %s197, 1
      %p201 = scmp.eq.s32.totalorder %s22, 1
      %p202 = scmp.ne.s32.totalorder %s197, %s199
      %p203 = scmp.eq.s32.totalorder %s22, 0
      %p204 = por %p202, %p203
      %p205 = scmp.ne.s32.totalorder %s197, %s199
      %p206 = scmp.eq.s32.totalorder %s27, 1
      %p207 = por %p205, %p206
      %p208 = scmp.ne.s32.totalorder %s199, %s200
      %p209 = scmp.eq.s32.totalorder %s27, 0
      %p210 = por %p208, %p209
      %p211 = scmp.ne.s32.totalorder %s199, %s200
      %p212 = scmp.eq.s32.totalorder %s28, 1
      %p213 = por %p211, %p212
      %p215 = scmp.ne.s32.totalorder %s200, %s214
      %p216 = scmp.eq.s32.totalorder %s28, 0
      %p217 = por %p215, %p216
      %s219 = sadd.s32 %s218, 1
      %p222 = scmp.eq.s32.totalorder %s22, 1
      %p223 = scmp.ne.s32.totalorder %s218, %s220
      %p224 = scmp.eq.s32.totalorder %s22, 0
      %p225 = por %p223, %p224
      %p226 = scmp.ne.s32.totalorder %s218, %s220
      %p227 = scmp.eq.s32.totalorder %s27, 1
      %p228 = por %p226, %p227
      %p229 = scmp.ne.s32.totalorder %s220, %s221
      %p230 = scmp.eq.s32.totalorder %s27, 0
      %p231 = por %p229, %p230
      %p232 = scmp.ne.s32.totalorder %s220, %s221
      %p233 = scmp.eq.s32.totalorder %s28, 1
      %p234 = por %p232, %p233
      %p236 = scmp.ne.s32.totalorder %s221, %s235
      %p237 = scmp.eq.s32.totalorder %s28, 0
      %p238 = por %p236, %p237
      %s240 = sadd.s32 %s239, 1
      %p243 = scmp.eq.s32.totalorder %s22, 1
      %p244 = scmp.ne.s32.totalorder %s239, %s241
      %p245 = scmp.eq.s32.totalorder %s22, 0
      %p246 = por %p244, %p245
      %p247 = scmp.ne.s32.totalorder %s239, %s241
      %p248 = scmp.eq.s32.totalorder %s27, 1
      %p249 = por %p247, %p248
      %p250 = scmp.ne.s32.totalorder %s241, %s242
      %p251 = scmp.eq.s32.totalorder %s27, 0
      %p252 = por %p250, %p251
      %p253 = scmp.ne.s32.totalorder %s241, %s242
      %p254 = scmp.eq.s32.totalorder %s28, 1
      %p255 = por %p253, %p254
      %p257 = scmp.ne.s32.totalorder %s242, %s256
      %p258 = scmp.eq.s32.totalorder %s28, 0
      %p259 = por %p257, %p258
      %s261 = sadd.s32 %s260, 1
      %p264 = scmp.eq.s32.totalorder %s22, 1
      %p265 = scmp.ne.s32.totalorder %s260, %s262
      %p266 = scmp.eq.s32.totalorder %s22, 0
      %p267 = por %p265, %p266
      %p268 = scmp.ne.s32.totalorder %s260, %s262
      %p269 = scmp.eq.s32.totalorder %s27, 1
      %p270 = por %p268, %p269
      %p271 = scmp.ne.s32.totalorder %s262, %s263
      %p272 = scmp.eq.s32.totalorder %s27, 0
      %p273 = por %p271, %p272
      %p274 = scmp.ne.s32.totalorder %s262, %s263
      %p275 = scmp.eq.s32.totalorder %s28, 1
      %p276 = por %p274, %p275
      %p278 = scmp.ne.s32.totalorder %s263, %s277
      %p279 = scmp.eq.s32.totalorder %s28, 0
      %p280 = por %p278, %p279
      %s282 = sadd.s32 %s281, 1
      %p285 = scmp.eq.s32.totalorder %s22, 1
      %p286 = scmp.ne.s32.totalorder %s281, %s283
      %p287 = scmp.eq.s32.totalorder %s22, 0
      %p288 = por %p286, %p287
      %p289 = scmp.ne.s32.totalorder %s281, %s283
      %p290 = scmp.eq.s32.totalorder %s27, 1
      %p291 = por %p289, %p290
      %p292 = scmp.ne.s32.totalorder %s283, %s284
      %p293 = scmp.eq.s32.totalorder %s27, 0
      %p294 = por %p292, %p293
      %p295 = scmp.ne.s32.totalorder %s283, %s284
      %p296 = scmp.eq.s32.totalorder %s28, 1
      %p297 = por %p295, %p296
      %p299 = scmp.ne.s32.totalorder %s284, %s298
      %p300 = scmp.eq.s32.totalorder %s28, 0
      %p301 = por %p299, %p300
      %s303 = sadd.s32 %s302, 1
      %p306 = scmp.eq.s32.totalorder %s22, 1
      %p307 = scmp.ne.s32.totalorder %s302, %s304
      %p308 = scmp.eq.s32.totalorder %s22, 0
      %p309 = por %p307, %p308
      %p310 = scmp.ne.s32.totalorder %s302, %s304
      %p311 = scmp.eq.s32.totalorder %s27, 1
      %p312 = por %p310, %p311
      %p313 = scmp.ne.s32.totalorder %s304, %s305
      %p314 = scmp.eq.s32.totalorder %s27, 0
      %p315 = por %p313, %p314
      %p316 = scmp.ne.s32.totalorder %s304, %s305
      %p317 = scmp.eq.s32.totalorder %s28, 1
      %p318 = por %p316, %p317
      %p320 = scmp.ne.s32.totalorder %s305, %s319
      %p321 = scmp.eq.s32.totalorder %s28, 0
      %p322 = por %p320, %p321
      %s323 = ssub.s32 %s22, %s29
      %p324 = scmp.eq.s32.totalorder %s323, 0
      %s326 = sadd.s32 %s325, 1
      %s327 = scalar_select %p324, %s325, %s326
      %p330 = pneg %p324
      %p331 = scmp.eq.s32.totalorder %s22, 1
      %p332 = por %p330, %p331
      %p333 = scmp.ne.s32.totalorder %s325, %s328
      %p334 = scmp.eq.s32.totalorder %s22, 0
      %p335 = por %p333, %p334
      %p336 = scmp.ne.s32.totalorder %s325, %s328
      %p337 = scmp.eq.s32.totalorder %s27, 1
      %p338 = por %p336, %p337
      %p339 = scmp.ne.s32.totalorder %s328, %s329
      %p340 = scmp.eq.s32.totalorder %s27, 0
      %p341 = por %p339, %p340
      %p342 = scmp.ne.s32.totalorder %s328, %s329
      %p343 = scmp.eq.s32.totalorder %s28, 1
      %p344 = por %p342, %p343
      %p346 = scmp.ne.s32.totalorder %s329, %s345
      %p347 = scmp.eq.s32.totalorder %s28, 0
      %p348 = por %p346, %p347
      %p349 = scmp.le.s32.totalorder 1, %s22
      %p350 = scmp.lt.s32.totalorder %s22, 3
      %p351 = pnand %p349, %p350
      %p352 = pneg %p351
      // Predicated region
      $region9: #{decoder_forward.1} parent=5 // pred_check
        _
      $region10: #{decoder_forward.1} parent=5 // pred_check_branch
        %354 = sbr.rel (%p351) target = $region12
      $region11: #{decoder_forward.1} parent=5 // pred_region
        %s355 = ssub.s32 %s22, 1
        // Predicated region
        $region13: #{decoder_forward.1} parent=11 // pred_check
          %p356 = pneg %p147
        $region14: #{decoder_forward.1} parent=11 // pred_check_branch
          %358 = sbr.rel (%p356) target = $region16
        $region15: #{decoder_forward.1} parent=11 // pred_region
          _
        $region16: #{decoder_forward.1} parent=11 // pred_fallthru
          _
        // Predicated region
        $region17: #{decoder_forward.1} parent=11 // pred_check
          %p359 = pneg %p168
        $region18: #{decoder_forward.1} parent=11 // pred_check_branch
          %361 = sbr.rel (%p359) target = $region20
        $region19: #{decoder_forward.1} parent=11 // pred_region
          _
        $region20: #{decoder_forward.1} parent=11 // pred_fallthru
          _
        // Predicated region
        $region21: #{decoder_forward.1} parent=11 // pred_check
          %p362 = pneg %p189
        $region22: #{decoder_forward.1} parent=11 // pred_check_branch
          %364 = sbr.rel (%p362) target = $region24
        $region23: #{decoder_forward.1} parent=11 // pred_region
          _
        $region24: #{decoder_forward.1} parent=11 // pred_fallthru
          _
        // Predicated region
        $region25: #{decoder_forward.1} parent=11 // pred_check
          %p365 = pneg %p210
        $region26: #{decoder_forward.1} parent=11 // pred_check_branch
          %367 = sbr.rel (%p365) target = $region28
        $region27: #{decoder_forward.1} parent=11 // pred_region
          _
        $region28: #{decoder_forward.1} parent=11 // pred_fallthru
          _
        // Predicated region
        $region29: #{decoder_forward.1} parent=11 // pred_check
          %p368 = pneg %p231
        $region30: #{decoder_forward.1} parent=11 // pred_check_branch
          %370 = sbr.rel (%p368) target = $region32
        $region31: #{decoder_forward.1} parent=11 // pred_region
          _
        $region32: #{decoder_forward.1} parent=11 // pred_fallthru
          _
        // Predicated region
        $region33: #{decoder_forward.1} parent=11 // pred_check
          %p371 = pneg %p252
        $region34: #{decoder_forward.1} parent=11 // pred_check_branch
          %373 = sbr.rel (%p371) target = $region36
        $region35: #{decoder_forward.1} parent=11 // pred_region
          _
        $region36: #{decoder_forward.1} parent=11 // pred_fallthru
          _
        // Predicated region
        $region37: #{decoder_forward.1} parent=11 // pred_check
          %p374 = pneg %p273
        $region38: #{decoder_forward.1} parent=11 // pred_check_branch
          %376 = sbr.rel (%p374) target = $region40
        $region39: #{decoder_forward.1} parent=11 // pred_region
          _
        $region40: #{decoder_forward.1} parent=11 // pred_fallthru
          _
        // Predicated region
        $region41: #{decoder_forward.1} parent=11 // pred_check
          %p377 = pneg %p294
        $region42: #{decoder_forward.1} parent=11 // pred_check_branch
          %379 = sbr.rel (%p377) target = $region44
        $region43: #{decoder_forward.1} parent=11 // pred_region
          _
        $region44: #{decoder_forward.1} parent=11 // pred_fallthru
          _
        // Predicated region
        $region45: #{decoder_forward.1} parent=11 // pred_check
          %p380 = pneg %p315
        $region46: #{decoder_forward.1} parent=11 // pred_check_branch
          %382 = sbr.rel (%p380) target = $region48
        $region47: #{decoder_forward.1} parent=11 // pred_region
          _
        $region48: #{decoder_forward.1} parent=11 // pred_fallthru
          _
      $region12: #{decoder_forward.1} parent=5 // pred_fallthru
        _
      %p383 = scmp.lt.s32.totalorder %s22, 2
      // Predicated region
      $region49: #{decoder_forward.1} parent=5 // pred_check
        %p384 = pneg %p383
      $region50: #{decoder_forward.1} parent=5 // pred_check_branch
        %386 = sbr.rel (%p384) target = $region52
      $region51: #{decoder_forward.1} parent=5 // pred_region
        // Predicated region
        $region53: #{decoder_forward.1} parent=51 // pred_check
          %p387 = pneg %p42
        $region54: #{decoder_forward.1} parent=51 // pred_check_branch
          %389 = sbr.rel (%p387) target = $region56
        $region55: #{decoder_forward.1} parent=51 // pred_region
          %p390 = scmp.lt.s32.totalorder %s22, 1
          %s391 = scalar_select %p390, %s22, 1
          %s392 = smul.addr %s391, 8
          %s393 = scalar_lea.vmem %s0, %s392
        $region56: #{decoder_forward.1} parent=51 // pred_fallthru
          _
        // Predicated region
        $region57: #{decoder_forward.1} parent=51 // pred_check
          %p394 = pneg %p68
        $region58: #{decoder_forward.1} parent=51 // pred_check_branch
          %396 = sbr.rel (%p394) target = $region60
        $region59: #{decoder_forward.1} parent=51 // pred_region
          %p397 = scmp.lt.s32.totalorder %s22, 1
          %s398 = scalar_select %p397, %s22, 1
          %s399 = smul.addr %s398, 2
          %s400 = smul.addr %s399, 8
          %s401 = scalar_lea.vmem %s1, %s400
        $region60: #{decoder_forward.1} parent=51 // pred_fallthru
          _
        // Predicated region
        $region61: #{decoder_forward.1} parent=51 // pred_check
          %p402 = pneg %p94
        $region62: #{decoder_forward.1} parent=51 // pred_check_branch
          %404 = sbr.rel (%p402) target = $region64
        $region63: #{decoder_forward.1} parent=51 // pred_region
          %p405 = scmp.lt.s32.totalorder %s22, 1
          %s406 = scalar_select %p405, %s22, 1
          %s407 = smul.addr %s406, 8
          %s408 = scalar_lea.vmem %s2, %s407
        $region64: #{decoder_forward.1} parent=51 // pred_fallthru
          _
        // Predicated region
        $region65: #{decoder_forward.1} parent=51 // pred_check
          %p409 = pneg %p120
        $region66: #{decoder_forward.1} parent=51 // pred_check_branch
          %411 = sbr.rel (%p409) target = $region68
        $region67: #{decoder_forward.1} parent=51 // pred_region
          %p412 = scmp.lt.s32.totalorder %s22, 1
          %s413 = scalar_select %p412, %s22, 1
          %s414 = smul.addr %s413, 8
          %s415 = scalar_lea.vmem %s3, %s414
        $region68: #{decoder_forward.1} parent=51 // pred_fallthru
          _
      $region52: #{decoder_forward.1} parent=5 // pred_fallthru
        _
      %p416 = scmp.le.s32.totalorder 1, %s22
      %p417 = scmp.lt.s32.totalorder %s22, 3
      %p418 = pnand %p416, %p417
      %p419 = pneg %p418
      // Predicated region
      $region69: #{decoder_forward.1} parent=5 // pred_check
        _
      $region70: #{decoder_forward.1} parent=5 // pred_check_branch
        %421 = sbr.rel (%p418) target = $region72
      $region71: #{decoder_forward.1} parent=5 // pred_region
        %s422 = ssub.s32 %s22, 1
        %p423 = scmp.lt.s32.totalorder %s27, 1
        %s424 = scalar_select %p423, %s27, 1
        %s425 = smul.addr %s424, 8
        %s426 = scalar_lea.vmem %s0, %s425
        %p427 = pneg %p48
        %p428 = pneg %p45
        %p429 = scmp.lt.s32.totalorder %s27, 1
        %s430 = scalar_select %p429, %s27, 1
        %s431 = smul.addr %s430, 2
        %s432 = smul.addr %s431, 8
        %s433 = scalar_lea.vmem %s1, %s432
        %p434 = pneg %p74
        %p435 = pneg %p71
        %p436 = scmp.lt.s32.totalorder %s27, 1
        %s437 = scalar_select %p436, %s27, 1
        %s438 = smul.addr %s437, 8
        %s439 = scalar_lea.vmem %s2, %s438
        %p440 = pneg %p100
        %p441 = pneg %p97
        %p442 = scmp.lt.s32.totalorder %s27, 1
        %s443 = scalar_select %p442, %s27, 1
        %s444 = smul.addr %s443, 8
        %s445 = scalar_lea.vmem %s3, %s444
        %p446 = pneg %p126
        %p447 = pneg %p123
        %p448 = pneg %p147
        %p449 = pneg %p144
        %p450 = pneg %p168
        %p451 = pneg %p165
        %p452 = pneg %p189
        %p453 = pneg %p186
        %p454 = pneg %p210
        %p455 = pneg %p207
        %p456 = pneg %p231
        %p457 = pneg %p228
        %p458 = pneg %p252
        %p459 = pneg %p249
        %p460 = pneg %p273
        %p461 = pneg %p270
        %p462 = pneg %p294
        %p463 = pneg %p291
        %p464 = pneg %p315
        %p465 = pneg %p312
        %p466 = pneg %p341
        %p467 = pneg %p338
        %s468 = sand.u32 %s328, 1
        %s469 = scalar_lea.sflag [#allocation3], %s468
        %s470 = sand.u32 %s328, 1
        %s471 = smul.addr %s470, 8
        %s472 = scalar_lea.vmem [#allocation2], %s471
        %p473 = scmp.lt.s32.totalorder %s27, 1
        %s474 = scalar_select %p473, %s27, 1
        %s475 = smul.addr %s474, 8
        %s476 = scalar_lea.vmem %s0, %s475
        %p477 = scmp.lt.s32.totalorder %s27, 1
        %s478 = scalar_select %p477, %s27, 1
        %s479 = smul.addr %s478, 2
        %s480 = smul.addr %s479, 8
        %s481 = scalar_lea.vmem %s1, %s480
        %p482 = scmp.lt.s32.totalorder %s27, 1
        %s483 = scalar_select %p482, %s27, 1
        %s484 = smul.addr %s483, 8
        %s485 = scalar_lea.vmem %s2, %s484
        %p486 = scmp.lt.s32.totalorder %s27, 1
        %s487 = scalar_select %p486, %s27, 1
        %s488 = smul.addr %s487, 8
        %s489 = scalar_lea.vmem %s3, %s488
        %v490 = vld [vmem:[%s476] sm:$0xff]
        %v491 = vld [vmem:[%s481] sm:$0xff]
        %v492 = vld [vmem:[%s481 + $0x8] sm:$0xff]
        %v493 = vld [vmem:[%s485] sm:$0xff]
        %vm494 = vcmp.ne.f32.partialorder %v493, 0.0
        %v495 = vsel %vm494, 0.0, -1e+09
        %v496 = vld [vmem:[%s489] sm:$0xff]
        %vm497 = vcmp.ne.f32.partialorder %v496, 0.0
        %v498 = vsel %vm497, 0.0, -1e+09
        %v499 = vld [vmem:[%s11] sm:$0xff]
        %v500 = vld [vmem:[%s11 + $0x8] sm:$0xff]
        %vm501 = vcmask 261120
        %v502 = vsel %vm501, %v490, 0.0
        %503 = vadd.xlane.f32.xlu0 %v502
        %v504 = vpop.xlane.xlu0 %503
        %v505 = vrcp.pop 32.0
        %v506 = vmul.f32 %v504, %v505
        %v507 = vsub.f32 %v490, %v506
        %v508 = vmul.f32 %v507, %v507
        %v509 = vsel %vm501, %v508, 0.0
        %510 = vadd.xlane.f32.xlu0 %v509
        %v511 = vpop.xlane.xlu0 %510
        %v512 = vmul.f32 %v511, 0.032258064
        %v513 = vlaneseq
        %v514 = vshrl.u32 %v513, 7
        %v515 = vsub.s32 0, %v514
        %v516 = vrot.slane %v499, %v515
        %v517 = vmul.f32 %v516, %v507
        %v518 = vrsqrt.pop %v512
        %v519 = vmul.f32 %v512, %v518
        %vm520 = vcmp.eq.f32.partialorder %v512, inf
        %v521 = vsel %vm520, %v512, %v519
        %vm522 = vcmp.eq.f32.partialorder %v512, 0.0
        %v523 = vand.u32 %v512, 2147483648
        %v524 = vsel %vm522, %v523, %v521
        %v525 = vadd.f32 %v524, 1e-06
        %v526 = vrcp.pop %v525
        %v527 = vmul.f32 %v517, %v526
        %v528 = vlaneseq
        %v529 = vshrl.u32 %v528, 7
        %v530 = vsub.s32 3, %v529
        %v531 = vrot.slane %v499, %v530
        %v532 = vadd.f32 %v527, %v531
        %v533 = vld [vmem:[%s4] sm:$0xff]
        %v534 = vld [vmem:[%s4 + $0x8] sm:$0xff]
        %v535 = vld [vmem:[%s4 + $0x10] sm:$0xff]
        %v536 = vld [vmem:[%s4 + $0x18] sm:$0xff]
        %v537 = vlaneseq
        %v538 = vshrl.u32 %v537, 7
        %v539 = vsub.s32 6, %v538
        %v540 = vrot.slane %v499, %v539
        %v542 = vsel %vm501, %v532, 0
        %544 = vmatprep.subr.mxu0 0.0
        %545 = vmatpush1.msra.mxu0 0.0
        %546 = vmatprep.subr.mxu0 0.0
        %547 = vmatpush1.msra.mxu0 0.0
        %548 = vmatprep.subr.mxu0 0.0
        %549 = vmatpush1.msra.mxu0 0.0
        %550 = vmatprep.subr.mxu0 0.0
        %551 = vmatpush1.msra.mxu0 0.0
        %552 = vmatprep.subr.mxu0 0.0
        %553 = vmatpush1.msra.mxu0 0.0
        %554 = vmatprep.subr.mxu0 0.0
        %555 = vmatpush1.msra.mxu0 0.0
        %556 = vmatprep.subr.mxu0 0.0
        %557 = vmatpush1.msra.mxu0 0.0
        %558 = vmatprep.subr.mxu0 0.0
        %559 = vmatpush1.msra.mxu0 0.0
        %560 = vmatprep.subr.mxu0 0.0
        %561 = vmatpush1.msra.mxu0 0.0
        %562 = vmatprep.subr.mxu0 0.0
        %563 = vmatpush1.msra.mxu0 0.0
        %564 = vmatprep.subr.mxu0 0.0
        %565 = vmatpush1.msra.mxu0 0.0
        %566 = vmatprep.subr.mxu0 0.0
        %567 = vmatpush1.msra.mxu0 0.0
        %568 = vmatprep.subr.mxu0 0.0
        %569 = vmatpush1.msra.mxu0 %v536
        %570 = vmatprep.subr.mxu0 0.0
        %571 = vmatpush1.msra.mxu0 %v535
        %572 = vmatprep.subr.mxu0 0.0
        %573 = vmatpush1.msra.mxu0 %v534
        %574 = vmatprep.subr.mxu0 0.0
        %575 = vmatpush1.msra.mxu0 %v533
        %576 = vmatprep.subr.mxu0 0.0
        %577 = vmatpush2.msra.mxu0 0.0
        %578 = vmatprep.subr.mxu0 0.0
        %579 = vmatpush2.msra.mxu0 0.0
        %580 = vmatprep.subr.mxu0 0.0
        %581 = vmatpush2.msra.mxu0 0.0
        %582 = vmatprep.subr.mxu0 0.0
        %583 = vmatpush2.msra.mxu0 0.0
        %584 = vmatprep.subr.mxu0 0.0
        %585 = vmatpush2.msra.mxu0 0.0
        %586 = vmatprep.subr.mxu0 0.0
        %587 = vmatpush2.msra.mxu0 0.0
        %588 = vmatprep.subr.mxu0 0.0
        %589 = vmatpush2.msra.mxu0 0.0
        %590 = vmatprep.subr.mxu0 0.0
        %591 = vmatpush2.msra.mxu0 0.0
        %592 = vmatprep.subr.mxu0 0.0
        %593 = vmatpush2.msra.mxu0 0.0
        %594 = vmatprep.subr.mxu0 0.0
        %595 = vmatpush2.msra.mxu0 0.0
        %596 = vmatprep.subr.mxu0 0.0
        %597 = vmatpush2.msra.mxu0 0.0
        %598 = vmatprep.subr.mxu0 0.0
        %599 = vmatpush2.msra.mxu0 0.0
        %600 = vmatprep.subr.mxu0 0.0
        %601 = vmatpush2.msra.mxu0 0.0
        %602 = vmatprep.subr.mxu0 0.0
        %603 = vmatpush2.msra.mxu0 0.0
        %604 = vmatprep.subr.mxu0 0.0
        %605 = vmatpush2.msra.mxu0 0.0
        %606 = vmatprep.subr.mxu0 0.0
        %607 = vmatpush2.msra.mxu0 0.0
        %608 = vmatprep.mubr.f32.mxu0 0.0
        %609 = vmatmul.mubr.f32.gmra.mxu0 %v542
        %v610 = vpop.f32.mrf.mxu0
        %v611 = vadd.f32 %v540, %v610
        %v612 = vpop.f32.mrf.mxu0
        %613 = vdwg.mxu0
        %v614 = vld [vmem:[%s5] sm:$0xff]
        %v615 = vld [vmem:[%s5 + $0x8] sm:$0xff]
        %v616 = vld [vmem:[%s5 + $0x10] sm:$0xff]
        %v617 = vld [vmem:[%s5 + $0x18] sm:$0xff]
        %619 = vrot.lane.b32.xlu0 %v611, 120
        %v620 = vpop.permute.xlu0 %619
        %622 = vrot.lane.b32.xlu0 %v611, 112
        %v623 = vpop.permute.xlu0 %622
        %625 = vrot.lane.b32.xlu0 %v611, 104
        %v626 = vpop.permute.xlu0 %625
        %v628 = vcombine.low %v611, %v623
        %v629 = vcombine.high %v611, %v623
        %v631 = vunpack.c.l.s4 1983009808
        %v632 = vunpack.c.0.s8 %v631
        %v633 = vlaneseq
        %v634 = vshrl.u32 %v633, 7
        %v635 = vsub.s32 %v632, %v634
        %v636 = vrot.slane %v628, %v635
        %v638 = vunpack.c.l.s4 1983009808
        %v639 = vunpack.c.0.s8 %v638
        %v640 = vlaneseq
        %v641 = vshrl.u32 %v640, 7
        %v642 = vsub.s32 %v639, %v641
        %v643 = vrot.slane %v629, %v642
        %v644 = vcombine.low %v620, %v626
        %v645 = vcombine.high %v620, %v626
        %v647 = vunpack.c.l.s4 1983009808
        %v648 = vunpack.c.0.s8 %v647
        %v649 = vlaneseq
        %v650 = vshrl.u32 %v649, 7
        %v651 = vsub.s32 %v648, %v650
        %v652 = vrot.slane %v644, %v651
        %v654 = vunpack.c.l.s4 1983009808
        %v655 = vunpack.c.0.s8 %v654
        %v656 = vlaneseq
        %v657 = vshrl.u32 %v656, 7
        %v658 = vsub.s32 %v655, %v657
        %v659 = vrot.slane %v645, %v658
        %v660 = vcombine.low %v636, %v652
        %v661 = vcombine.high %v636, %v652
        %v663 = vunpack.c.l.s4 1934713408
        %v664 = vunpack.c.0.s8 %v663
        %v665 = vlaneseq
        %v666 = vshrl.u32 %v665, 7
        %v667 = vsub.s32 %v664, %v666
        %v668 = vrot.slane %v660, %v667
        %v670 = vunpack.c.l.s4 1934713408
        %v671 = vunpack.c.0.s8 %v670
        %v672 = vlaneseq
        %v673 = vshrl.u32 %v672, 7
        %v674 = vsub.s32 %v671, %v673
        %v675 = vrot.slane %v661, %v674
        %v676 = vcombine.low %v643, %v659
        %v677 = vcombine.high %v643, %v659
        %v679 = vunpack.c.l.s4 1934713408
        %v680 = vunpack.c.0.s8 %v679
        %v681 = vlaneseq
        %v682 = vshrl.u32 %v681, 7
        %v683 = vsub.s32 %v680, %v682
        %v684 = vrot.slane %v676, %v683
        %v686 = vunpack.c.l.s4 1934713408
        %v687 = vunpack.c.0.s8 %v686
        %v688 = vlaneseq
        %v689 = vshrl.u32 %v688, 7
        %v690 = vsub.s32 %v687, %v689
        %v691 = vrot.slane %v677, %v690
        %v692 = vcombine.high %v668, 0.0
        %v693 = vcombine.high %v675, 0.0
        %v694 = vcombine.high %v684, 0.0
        %v695 = vcombine.high %v691, 0.0
        %v696 = vcombine.low %v668, %v675
        %v698 = vunpack.c.l.s4 1983009808
        %v699 = vunpack.c.0.s8 %v698
        %v700 = vlaneseq
        %v701 = vshrl.u32 %v700, 7
        %v702 = vsub.s32 %v699, %v701
        %v703 = vrot.slane %v696, %v702
        %v704 = vcombine.low %v692, %v693
        %v706 = vunpack.c.l.s4 1983009808
        %v707 = vunpack.c.0.s8 %v706
        %v708 = vlaneseq
        %v709 = vshrl.u32 %v708, 7
        %v710 = vsub.s32 %v707, %v709
        %v711 = vrot.slane %v704, %v710
        %v712 = vcombine.low %v684, %v691
        %v714 = vunpack.c.l.s4 1983009808
        %v715 = vunpack.c.0.s8 %v714
        %v716 = vlaneseq
        %v717 = vshrl.u32 %v716, 7
        %v718 = vsub.s32 %v715, %v717
        %v719 = vrot.slane %v712, %v718
        %v720 = vcombine.low %v694, %v695
        %v722 = vunpack.c.l.s4 1983009808
        %v723 = vunpack.c.0.s8 %v722
        %v724 = vlaneseq
        %v725 = vshrl.u32 %v724, 7
        %v726 = vsub.s32 %v723, %v725
        %v727 = vrot.slane %v720, %v726
        %v728 = vcombine.low %v703, %v711
        %v729 = vcombine.high %v703, %v711
        %v731 = vunpack.c.l.s4 1934713408
        %v732 = vunpack.c.0.s8 %v731
        %v733 = vlaneseq
        %v734 = vshrl.u32 %v733, 7
        %v735 = vsub.s32 %v732, %v734
        %v736 = vrot.slane %v728, %v735
        %v738 = vunpack.c.l.s4 1934713408
        %v739 = vunpack.c.0.s8 %v738
        %v740 = vlaneseq
        %v741 = vshrl.u32 %v740, 7
        %v742 = vsub.s32 %v739, %v741
        %v743 = vrot.slane %v729, %v742
        %v744 = vcombine.low %v719, %v727
        %v745 = vcombine.high %v719, %v727
        %v747 = vunpack.c.l.s4 1934713408
        %v748 = vunpack.c.0.s8 %v747
        %v749 = vlaneseq
        %v750 = vshrl.u32 %v749, 7
        %v751 = vsub.s32 %v748, %v750
        %v752 = vrot.slane %v744, %v751
        %v754 = vunpack.c.l.s4 1934713408
        %v755 = vunpack.c.0.s8 %v754
        %v756 = vlaneseq
        %v757 = vshrl.u32 %v756, 7
        %v758 = vsub.s32 %v755, %v757
        %v759 = vrot.slane %v745, %v758
        %v760 = vcombine.low %v736, %v752
        %v761 = vcombine.high %v736, %v752
        %v762 = vcombine.low %v743, %v759
        %v763 = vcombine.high %v743, %v759
        %764 = vrot.lane.b32.xlu0 %v611, 96
        %v765 = vpop.permute.xlu0 %764
        %766 = vrot.lane.b32.xlu0 %v620, 96
        %v767 = vpop.permute.xlu0 %766
        %768 = vrot.lane.b32.xlu0 %v623, 96
        %v769 = vpop.permute.xlu0 %768
        %770 = vrot.lane.b32.xlu0 %v626, 96
        %v771 = vpop.permute.xlu0 %770
        %v776 = vcombine.low %v765, %v769
        %v777 = vcombine.high %v765, %v769
        %v779 = vunpack.c.l.s4 1983009808
        %v780 = vunpack.c.0.s8 %v779
        %v781 = vlaneseq
        %v782 = vshrl.u32 %v781, 7
        %v783 = vsub.s32 %v780, %v782
        %v784 = vrot.slane %v776, %v783
        %v786 = vunpack.c.l.s4 1983009808
        %v787 = vunpack.c.0.s8 %v786
        %v788 = vlaneseq
        %v789 = vshrl.u32 %v788, 7
        %v790 = vsub.s32 %v787, %v789
        %v791 = vrot.slane %v777, %v790
        %v792 = vcombine.low %v767, %v771
        %v793 = vcombine.high %v767, %v771
        %v795 = vunpack.c.l.s4 1983009808
        %v796 = vunpack.c.0.s8 %v795
        %v797 = vlaneseq
        %v798 = vshrl.u32 %v797, 7
        %v799 = vsub.s32 %v796, %v798
        %v800 = vrot.slane %v792, %v799
        %v802 = vunpack.c.l.s4 1983009808
        %v803 = vunpack.c.0.s8 %v802
        %v804 = vlaneseq
        %v805 = vshrl.u32 %v804, 7
        %v806 = vsub.s32 %v803, %v805
        %v807 = vrot.slane %v793, %v806
        %v808 = vcombine.low %v784, %v800
        %v809 = vcombine.high %v784, %v800
        %v811 = vunpack.c.l.s4 1934713408
        %v812 = vunpack.c.0.s8 %v811
        %v813 = vlaneseq
        %v814 = vshrl.u32 %v813, 7
        %v815 = vsub.s32 %v812, %v814
        %v816 = vrot.slane %v808, %v815
        %v818 = vunpack.c.l.s4 1934713408
        %v819 = vunpack.c.0.s8 %v818
        %v820 = vlaneseq
        %v821 = vshrl.u32 %v820, 7
        %v822 = vsub.s32 %v819, %v821
        %v823 = vrot.slane %v809, %v822
        %v824 = vcombine.low %v791, %v807
        %v825 = vcombine.high %v791, %v807
        %v827 = vunpack.c.l.s4 1934713408
        %v828 = vunpack.c.0.s8 %v827
        %v829 = vlaneseq
        %v830 = vshrl.u32 %v829, 7
        %v831 = vsub.s32 %v828, %v830
        %v832 = vrot.slane %v824, %v831
        %v834 = vunpack.c.l.s4 1934713408
        %v835 = vunpack.c.0.s8 %v834
        %v836 = vlaneseq
        %v837 = vshrl.u32 %v836, 7
        %v838 = vsub.s32 %v835, %v837
        %v839 = vrot.slane %v825, %v838
        %v840 = vcombine.high %v816, 0.0
        %v841 = vcombine.high %v823, 0.0
        %v842 = vcombine.high %v832, 0.0
        %v843 = vcombine.high %v839, 0.0
        %v844 = vcombine.low %v816, %v823
        %v846 = vunpack.c.l.s4 1983009808
        %v847 = vunpack.c.0.s8 %v846
        %v848 = vlaneseq
        %v849 = vshrl.u32 %v848, 7
        %v850 = vsub.s32 %v847, %v849
        %v851 = vrot.slane %v844, %v850
        %v852 = vcombine.low %v840, %v841
        %v854 = vunpack.c.l.s4 1983009808
        %v855 = vunpack.c.0.s8 %v854
        %v856 = vlaneseq
        %v857 = vshrl.u32 %v856, 7
        %v858 = vsub.s32 %v855, %v857
        %v859 = vrot.slane %v852, %v858
        %v860 = vcombine.low %v832, %v839
        %v862 = vunpack.c.l.s4 1983009808
        %v863 = vunpack.c.0.s8 %v862
        %v864 = vlaneseq
        %v865 = vshrl.u32 %v864, 7
        %v866 = vsub.s32 %v863, %v865
        %v867 = vrot.slane %v860, %v866
        %v868 = vcombine.low %v842, %v843
        %v870 = vunpack.c.l.s4 1983009808
        %v871 = vunpack.c.0.s8 %v870
        %v872 = vlaneseq
        %v873 = vshrl.u32 %v872, 7
        %v874 = vsub.s32 %v871, %v873
        %v875 = vrot.slane %v868, %v874
        %v876 = vcombine.low %v851, %v859
        %v877 = vcombine.high %v851, %v859
        %v879 = vunpack.c.l.s4 1934713408
        %v880 = vunpack.c.0.s8 %v879
        %v881 = vlaneseq
        %v882 = vshrl.u32 %v881, 7
        %v883 = vsub.s32 %v880, %v882
        %v884 = vrot.slane %v876, %v883
        %v886 = vunpack.c.l.s4 1934713408
        %v887 = vunpack.c.0.s8 %v886
        %v888 = vlaneseq
        %v889 = vshrl.u32 %v888, 7
        %v890 = vsub.s32 %v887, %v889
        %v891 = vrot.slane %v877, %v890
        %v892 = vcombine.low %v867, %v875
        %v893 = vcombine.high %v867, %v875
        %v895 = vunpack.c.l.s4 1934713408
        %v896 = vunpack.c.0.s8 %v895
        %v897 = vlaneseq
        %v898 = vshrl.u32 %v897, 7
        %v899 = vsub.s32 %v896, %v898
        %v900 = vrot.slane %v892, %v899
        %v902 = vunpack.c.l.s4 1934713408
        %v903 = vunpack.c.0.s8 %v902
        %v904 = vlaneseq
        %v905 = vshrl.u32 %v904, 7
        %v906 = vsub.s32 %v903, %v905
        %v907 = vrot.slane %v893, %v906
        %v908 = vcombine.low %v884, %v900
        %v909 = vcombine.high %v884, %v900
        %v910 = vcombine.low %v891, %v907
        %v911 = vcombine.high %v891, %v907
        %912 = vrot.lane.b32.xlu0 %v611, 64
        %v913 = vpop.permute.xlu0 %912
        %914 = vrot.lane.b32.xlu0 %v620, 64
        %v915 = vpop.permute.xlu0 %914
        %916 = vrot.lane.b32.xlu0 %v623, 64
        %v917 = vpop.permute.xlu0 %916
        %918 = vrot.lane.b32.xlu0 %v626, 64
        %v919 = vpop.permute.xlu0 %918
        %v924 = vcombine.low %v913, %v917
        %v925 = vcombine.high %v913, %v917
        %v927 = vunpack.c.l.s4 1983009808
        %v928 = vunpack.c.0.s8 %v927
        %v929 = vlaneseq
        %v930 = vshrl.u32 %v929, 7
        %v931 = vsub.s32 %v928, %v930
        %v932 = vrot.slane %v924, %v931
        %v934 = vunpack.c.l.s4 1983009808
        %v935 = vunpack.c.0.s8 %v934
        %v936 = vlaneseq
        %v937 = vshrl.u32 %v936, 7
        %v938 = vsub.s32 %v935, %v937
        %v939 = vrot.slane %v925, %v938
        %v940 = vcombine.low %v915, %v919
        %v941 = vcombine.high %v915, %v919
        %v943 = vunpack.c.l.s4 1983009808
        %v944 = vunpack.c.0.s8 %v943
        %v945 = vlaneseq
        %v946 = vshrl.u32 %v945, 7
        %v947 = vsub.s32 %v944, %v946
        %v948 = vrot.slane %v940, %v947
        %v950 = vunpack.c.l.s4 1983009808
        %v951 = vunpack.c.0.s8 %v950
        %v952 = vlaneseq
        %v953 = vshrl.u32 %v952, 7
        %v954 = vsub.s32 %v951, %v953
        %v955 = vrot.slane %v941, %v954
        %v956 = vcombine.low %v932, %v948
        %v957 = vcombine.high %v932, %v948
        %v959 = vunpack.c.l.s4 1934713408
        %v960 = vunpack.c.0.s8 %v959
        %v961 = vlaneseq
        %v962 = vshrl.u32 %v961, 7
        %v963 = vsub.s32 %v960, %v962
        %v964 = vrot.slane %v956, %v963
        %v966 = vunpack.c.l.s4 1934713408
        %v967 = vunpack.c.0.s8 %v966
        %v968 = vlaneseq
        %v969 = vshrl.u32 %v968, 7
        %v970 = vsub.s32 %v967, %v969
        %v971 = vrot.slane %v957, %v970
        %v972 = vcombine.low %v939, %v955
        %v973 = vcombine.high %v939, %v955
        %v975 = vunpack.c.l.s4 1934713408
        %v976 = vunpack.c.0.s8 %v975
        %v977 = vlaneseq
        %v978 = vshrl.u32 %v977, 7
        %v979 = vsub.s32 %v976, %v978
        %v980 = vrot.slane %v972, %v979
        %v982 = vunpack.c.l.s4 1934713408
        %v983 = vunpack.c.0.s8 %v982
        %v984 = vlaneseq
        %v985 = vshrl.u32 %v984, 7
        %v986 = vsub.s32 %v983, %v985
        %v987 = vrot.slane %v973, %v986
        %v988 = vcombine.high %v964, 0.0
        %v989 = vcombine.high %v971, 0.0
        %v990 = vcombine.high %v980, 0.0
        %v991 = vcombine.high %v987, 0.0
        %v992 = vcombine.low %v964, %v971
        %v994 = vunpack.c.l.s4 1983009808
        %v995 = vunpack.c.0.s8 %v994
        %v996 = vlaneseq
        %v997 = vshrl.u32 %v996, 7
        %v998 = vsub.s32 %v995, %v997
        %v999 = vrot.slane %v992, %v998
        %v1000 = vcombine.low %v988, %v989
        %v1002 = vunpack.c.l.s4 1983009808
        %v1003 = vunpack.c.0.s8 %v1002
        %v1004 = vlaneseq
        %v1005 = vshrl.u32 %v1004, 7
        %v1006 = vsub.s32 %v1003, %v1005
        %v1007 = vrot.slane %v1000, %v1006
        %v1008 = vcombine.low %v980, %v987
        %v1010 = vunpack.c.l.s4 1983009808
        %v1011 = vunpack.c.0.s8 %v1010
        %v1012 = vlaneseq
        %v1013 = vshrl.u32 %v1012, 7
        %v1014 = vsub.s32 %v1011, %v1013
        %v1015 = vrot.slane %v1008, %v1014
        %v1016 = vcombine.low %v990, %v991
        %v1018 = vunpack.c.l.s4 1983009808
        %v1019 = vunpack.c.0.s8 %v1018
        %v1020 = vlaneseq
        %v1021 = vshrl.u32 %v1020, 7
        %v1022 = vsub.s32 %v1019, %v1021
        %v1023 = vrot.slane %v1016, %v1022
        %v1024 = vcombine.low %v999, %v1007
        %v1025 = vcombine.high %v999, %v1007
        %v1027 = vunpack.c.l.s4 1934713408
        %v1028 = vunpack.c.0.s8 %v1027
        %v1029 = vlaneseq
        %v1030 = vshrl.u32 %v1029, 7
        %v1031 = vsub.s32 %v1028, %v1030
        %v1032 = vrot.slane %v1024, %v1031
        %v1034 = vunpack.c.l.s4 1934713408
        %v1035 = vunpack.c.0.s8 %v1034
        %v1036 = vlaneseq
        %v1037 = vshrl.u32 %v1036, 7
        %v1038 = vsub.s32 %v1035, %v1037
        %v1039 = vrot.slane %v1025, %v1038
        %v1040 = vcombine.low %v1015, %v1023
        %v1041 = vcombine.high %v1015, %v1023
        %v1043 = vunpack.c.l.s4 1934713408
        %v1044 = vunpack.c.0.s8 %v1043
        %v1045 = vlaneseq
        %v1046 = vshrl.u32 %v1045, 7
        %v1047 = vsub.s32 %v1044, %v1046
        %v1048 = vrot.slane %v1040, %v1047
        %v1050 = vunpack.c.l.s4 1934713408
        %v1051 = vunpack.c.0.s8 %v1050
        %v1052 = vlaneseq
        %v1053 = vshrl.u32 %v1052, 7
        %v1054 = vsub.s32 %v1051, %v1053
        %v1055 = vrot.slane %v1041, %v1054
        %v1056 = vcombine.low %v1032, %v1048
        %v1057 = vcombine.high %v1032, %v1048
        %v1058 = vcombine.low %v1039, %v1055
        %v1059 = vcombine.high %v1039, %v1055
        %vm1060 = vcmask 64512
        %v1062 = vsel %vm1060, %v760, 0
        %v1065 = vsel %vm1060, %v908, 0
        %1067 = vmatprep.subr.mxu0 0.0
        %1068 = vmatpush1.xpose.msra.mxu0 0.0
        %1069 = vmatprep.subr.mxu0 0.0
        %1070 = vmatpush1.xpose.msra.mxu0 0.0
        %1071 = vmatprep.subr.mxu0 0.0
        %1072 = vmatpush1.xpose.msra.mxu0 0.0
        %1073 = vmatprep.subr.mxu0 0.0
        %1074 = vmatpush1.xpose.msra.mxu0 0.0
        %1075 = vmatprep.subr.mxu0 0.0
        %1076 = vmatpush1.xpose.msra.mxu0 0.0
        %1077 = vmatprep.subr.mxu0 0.0
        %1078 = vmatpush1.xpose.msra.mxu0 0.0
        %1079 = vmatprep.subr.mxu0 0.0
        %1080 = vmatpush1.xpose.msra.mxu0 0.0
        %1081 = vmatprep.subr.mxu0 0.0
        %1082 = vmatpush1.xpose.msra.mxu0 0.0
        %1083 = vmatprep.subr.mxu0 0.0
        %1084 = vmatpush1.xpose.msra.mxu0 0.0
        %1085 = vmatprep.subr.mxu0 0.0
        %1086 = vmatpush1.xpose.msra.mxu0 0.0
        %1087 = vmatprep.subr.mxu0 0.0
        %1088 = vmatpush1.xpose.msra.mxu0 0.0
        %1089 = vmatprep.subr.mxu0 0.0
        %1090 = vmatpush1.xpose.msra.mxu0 0.0
        %1091 = vmatprep.subr.mxu0 0.0
        %1092 = vmatpush1.xpose.msra.mxu0 0.0
        %1093 = vmatprep.subr.mxu0 0.0
        %1094 = vmatpush1.xpose.msra.mxu0 0.0
        %1095 = vmatprep.subr.mxu0 0.0
        %1096 = vmatpush1.xpose.msra.mxu0 0.0
        %1097 = vmatprep.subr.mxu0 0.0
        %1098 = vmatpush1.xpose.msra.mxu0 %v1065
        %1099 = vmatprep.subr.mxu0 0.0
        %1100 = vmatpush2.xpose.msra.mxu0 0.0
        %1101 = vmatprep.subr.mxu0 0.0
        %1102 = vmatpush2.xpose.msra.mxu0 0.0
        %1103 = vmatprep.subr.mxu0 0.0
        %1104 = vmatpush2.xpose.msra.mxu0 0.0
        %1105 = vmatprep.subr.mxu0 0.0
        %1106 = vmatpush2.xpose.msra.mxu0 0.0
        %1107 = vmatprep.subr.mxu0 0.0
        %1108 = vmatpush2.xpose.msra.mxu0 0.0
        %1109 = vmatprep.subr.mxu0 0.0
        %1110 = vmatpush2.xpose.msra.mxu0 0.0
        %1111 = vmatprep.subr.mxu0 0.0
        %1112 = vmatpush2.xpose.msra.mxu0 0.0
        %1113 = vmatprep.subr.mxu0 0.0
        %1114 = vmatpush2.xpose.msra.mxu0 0.0
        %1115 = vmatprep.subr.mxu0 0.0
        %1116 = vmatpush2.xpose.msra.mxu0 0.0
        %1117 = vmatprep.subr.mxu0 0.0
        %1118 = vmatpush2.xpose.msra.mxu0 0.0
        %1119 = vmatprep.subr.mxu0 0.0
        %1120 = vmatpush2.xpose.msra.mxu0 0.0
        %1121 = vmatprep.subr.mxu0 0.0
        %1122 = vmatpush2.xpose.msra.mxu0 0.0
        %1123 = vmatprep.subr.mxu0 0.0
        %1124 = vmatpush2.xpose.msra.mxu0 0.0
        %1125 = vmatprep.subr.mxu0 0.0
        %1126 = vmatpush2.xpose.msra.mxu0 0.0
        %1127 = vmatprep.subr.mxu0 0.0
        %1128 = vmatpush2.xpose.msra.mxu0 0.0
        %1129 = vmatprep.subr.mxu0 0.0
        %1130 = vmatpush2.xpose.msra.mxu0 0.0
        %1131 = vmatprep.mubr.f32.mxu0 0.0
        %1132 = vmatmul.mubr.f32.gmra.mxu0 %v1062
        %v1133 = vpop.f32.mrf.mxu0
        %v1134 = vadd.f32 0.0, %v1133
        %v1135 = vpop.f32.mrf.mxu0
        %1136 = vdwg.mxu0
        %v1138 = vsel %vm1060, %v761, 0
        %v1141 = vsel %vm1060, %v909, 0
        %1143 = vmatprep.subr.mxu0 0.0
        %1144 = vmatpush1.xpose.msra.mxu0 0.0
        %1145 = vmatprep.subr.mxu0 0.0
        %1146 = vmatpush1.xpose.msra.mxu0 0.0
        %1147 = vmatprep.subr.mxu0 0.0
        %1148 = vmatpush1.xpose.msra.mxu0 0.0
        %1149 = vmatprep.subr.mxu0 0.0
        %1150 = vmatpush1.xpose.msra.mxu0 0.0
        %1151 = vmatprep.subr.mxu0 0.0
        %1152 = vmatpush1.xpose.msra.mxu0 0.0
        %1153 = vmatprep.subr.mxu0 0.0
        %1154 = vmatpush1.xpose.msra.mxu0 0.0
        %1155 = vmatprep.subr.mxu0 0.0
        %1156 = vmatpush1.xpose.msra.mxu0 0.0
        %1157 = vmatprep.subr.mxu0 0.0
        %1158 = vmatpush1.xpose.msra.mxu0 0.0
        %1159 = vmatprep.subr.mxu0 0.0
        %1160 = vmatpush1.xpose.msra.mxu0 0.0
        %1161 = vmatprep.subr.mxu0 0.0
        %1162 = vmatpush1.xpose.msra.mxu0 0.0
        %1163 = vmatprep.subr.mxu0 0.0
        %1164 = vmatpush1.xpose.msra.mxu0 0.0
        %1165 = vmatprep.subr.mxu0 0.0
        %1166 = vmatpush1.xpose.msra.mxu0 0.0
        %1167 = vmatprep.subr.mxu0 0.0
        %1168 = vmatpush1.xpose.msra.mxu0 0.0
        %1169 = vmatprep.subr.mxu0 0.0
        %1170 = vmatpush1.xpose.msra.mxu0 0.0
        %1171 = vmatprep.subr.mxu0 0.0
        %1172 = vmatpush1.xpose.msra.mxu0 0.0
        %1173 = vmatprep.subr.mxu0 0.0
        %1174 = vmatpush1.xpose.msra.mxu0 %v1141
        %1175 = vmatprep.subr.mxu0 0.0
        %1176 = vmatpush2.xpose.msra.mxu0 0.0
        %1177 = vmatprep.subr.mxu0 0.0
        %1178 = vmatpush2.xpose.msra.mxu0 0.0
        %1179 = vmatprep.subr.mxu0 0.0
        %1180 = vmatpush2.xpose.msra.mxu0 0.0
        %1181 = vmatprep.subr.mxu0 0.0
        %1182 = vmatpush2.xpose.msra.mxu0 0.0
        %1183 = vmatprep.subr.mxu0 0.0
        %1184 = vmatpush2.xpose.msra.mxu0 0.0
        %1185 = vmatprep.subr.mxu0 0.0
        %1186 = vmatpush2.xpose.msra.mxu0 0.0
        %1187 = vmatprep.subr.mxu0 0.0
        %1188 = vmatpush2.xpose.msra.mxu0 0.0
        %1189 = vmatprep.subr.mxu0 0.0
        %1190 = vmatpush2.xpose.msra.mxu0 0.0
        %1191 = vmatprep.subr.mxu0 0.0
        %1192 = vmatpush2.xpose.msra.mxu0 0.0
        %1193 = vmatprep.subr.mxu0 0.0
        %1194 = vmatpush2.xpose.msra.mxu0 0.0
        %1195 = vmatprep.subr.mxu0 0.0
        %1196 = vmatpush2.xpose.msra.mxu0 0.0
        %1197 = vmatprep.subr.mxu0 0.0
        %1198 = vmatpush2.xpose.msra.mxu0 0.0
        %1199 = vmatprep.subr.mxu0 0.0
        %1200 = vmatpush2.xpose.msra.mxu0 0.0
        %1201 = vmatprep.subr.mxu0 0.0
        %1202 = vmatpush2.xpose.msra.mxu0 0.0
        %1203 = vmatprep.subr.mxu0 0.0
        %1204 = vmatpush2.xpose.msra.mxu0 0.0
        %1205 = vmatprep.subr.mxu0 0.0
        %1206 = vmatpush2.xpose.msra.mxu0 0.0
        %1207 = vmatprep.mubr.f32.mxu0 0.0
        %1208 = vmatmul.mubr.f32.gmra.mxu0 %v1138
        %v1209 = vpop.f32.mrf.mxu0
        %v1210 = vadd.f32 0.0, %v1209
        %v1211 = vpop.f32.mrf.mxu0
        %1212 = vdwg.mxu0
        %v1214 = vsel %vm1060, %v762, 0
        %v1217 = vsel %vm1060, %v910, 0
        %1219 = vmatprep.subr.mxu0 0.0
        %1220 = vmatpush1.xpose.msra.mxu0 0.0
        %1221 = vmatprep.subr.mxu0 0.0
        %1222 = vmatpush1.xpose.msra.mxu0 0.0
        %1223 = vmatprep.subr.mxu0 0.0
        %1224 = vmatpush1.xpose.msra.mxu0 0.0
        %1225 = vmatprep.subr.mxu0 0.0
        %1226 = vmatpush1.xpose.msra.mxu0 0.0
        %1227 = vmatprep.subr.mxu0 0.0
        %1228 = vmatpush1.xpose.msra.mxu0 0.0
        %1229 = vmatprep.subr.mxu0 0.0
        %1230 = vmatpush1.xpose.msra.mxu0 0.0
        %1231 = vmatprep.subr.mxu0 0.0
        %1232 = vmatpush1.xpose.msra.mxu0 0.0
        %1233 = vmatprep.subr.mxu0 0.0
        %1234 = vmatpush1.xpose.msra.mxu0 0.0
        %1235 = vmatprep.subr.mxu0 0.0
        %1236 = vmatpush1.xpose.msra.mxu0 0.0
        %1237 = vmatprep.subr.mxu0 0.0
        %1238 = vmatpush1.xpose.msra.mxu0 0.0
        %1239 = vmatprep.subr.mxu0 0.0
        %1240 = vmatpush1.xpose.msra.mxu0 0.0
        %1241 = vmatprep.subr.mxu0 0.0
        %1242 = vmatpush1.xpose.msra.mxu0 0.0
        %1243 = vmatprep.subr.mxu0 0.0
        %1244 = vmatpush1.xpose.msra.mxu0 0.0
        %1245 = vmatprep.subr.mxu0 0.0
        %1246 = vmatpush1.xpose.msra.mxu0 0.0
        %1247 = vmatprep.subr.mxu0 0.0
        %1248 = vmatpush1.xpose.msra.mxu0 0.0
        %1249 = vmatprep.subr.mxu0 0.0
        %1250 = vmatpush1.xpose.msra.mxu0 %v1217
        %1251 = vmatprep.subr.mxu0 0.0
        %1252 = vmatpush2.xpose.msra.mxu0 0.0
        %1253 = vmatprep.subr.mxu0 0.0
        %1254 = vmatpush2.xpose.msra.mxu0 0.0
        %1255 = vmatprep.subr.mxu0 0.0
        %1256 = vmatpush2.xpose.msra.mxu0 0.0
        %1257 = vmatprep.subr.mxu0 0.0
        %1258 = vmatpush2.xpose.msra.mxu0 0.0
        %1259 = vmatprep.subr.mxu0 0.0
        %1260 = vmatpush2.xpose.msra.mxu0 0.0
        %1261 = vmatprep.subr.mxu0 0.0
        %1262 = vmatpush2.xpose.msra.mxu0 0.0
        %1263 = vmatprep.subr.mxu0 0.0
        %1264 = vmatpush2.xpose.msra.mxu0 0.0
        %1265 = vmatprep.subr.mxu0 0.0
        %1266 = vmatpush2.xpose.msra.mxu0 0.0
        %1267 = vmatprep.subr.mxu0 0.0
        %1268 = vmatpush2.xpose.msra.mxu0 0.0
        %1269 = vmatprep.subr.mxu0 0.0
        %1270 = vmatpush2.xpose.msra.mxu0 0.0
        %1271 = vmatprep.subr.mxu0 0.0
        %1272 = vmatpush2.xpose.msra.mxu0 0.0
        %1273 = vmatprep.subr.mxu0 0.0
        %1274 = vmatpush2.xpose.msra.mxu0 0.0
        %1275 = vmatprep.subr.mxu0 0.0
        %1276 = vmatpush2.xpose.msra.mxu0 0.0
        %1277 = vmatprep.subr.mxu0 0.0
        %1278 = vmatpush2.xpose.msra.mxu0 0.0
        %1279 = vmatprep.subr.mxu0 0.0
        %1280 = vmatpush2.xpose.msra.mxu0 0.0
        %1281 = vmatprep.subr.mxu0 0.0
        %1282 = vmatpush2.xpose.msra.mxu0 0.0
        %1283 = vmatprep.mubr.f32.mxu0 0.0
        %1284 = vmatmul.mubr.f32.gmra.mxu0 %v1214
        %v1285 = vpop.f32.mrf.mxu0
        %v1286 = vadd.f32 0.0, %v1285
        %v1287 = vpop.f32.mrf.mxu0
        %1288 = vdwg.mxu0
        %v1290 = vsel %vm1060, %v763, 0
        %v1293 = vsel %vm1060, %v911, 0
        %1295 = vmatprep.subr.mxu0 0.0
        %1296 = vmatpush1.xpose.msra.mxu0 0.0
        %1297 = vmatprep.subr.mxu0 0.0
        %1298 = vmatpush1.xpose.msra.mxu0 0.0
        %1299 = vmatprep.subr.mxu0 0.0
        %1300 = vmatpush1.xpose.msra.mxu0 0.0
        %1301 = vmatprep.subr.mxu0 0.0
        %1302 = vmatpush1.xpose.msra.mxu0 0.0
        %1303 = vmatprep.subr.mxu0 0.0
        %1304 = vmatpush1.xpose.msra.mxu0 0.0
        %1305 = vmatprep.subr.mxu0 0.0
        %1306 = vmatpush1.xpose.msra.mxu0 0.0
        %1307 = vmatprep.subr.mxu0 0.0
        %1308 = vmatpush1.xpose.msra.mxu0 0.0
        %1309 = vmatprep.subr.mxu0 0.0
        %1310 = vmatpush1.xpose.msra.mxu0 0.0
        %1311 = vmatprep.subr.mxu0 0.0
        %1312 = vmatpush1.xpose.msra.mxu0 0.0
        %1313 = vmatprep.subr.mxu0 0.0
        %1314 = vmatpush1.xpose.msra.mxu0 0.0
        %1315 = vmatprep.subr.mxu0 0.0
        %1316 = vmatpush1.xpose.msra.mxu0 0.0
        %1317 = vmatprep.subr.mxu0 0.0
        %1318 = vmatpush1.xpose.msra.mxu0 0.0
        %1319 = vmatprep.subr.mxu0 0.0
        %1320 = vmatpush1.xpose.msra.mxu0 0.0
        %1321 = vmatprep.subr.mxu0 0.0
        %1322 = vmatpush1.xpose.msra.mxu0 0.0
        %1323 = vmatprep.subr.mxu0 0.0
        %1324 = vmatpush1.xpose.msra.mxu0 0.0
        %1325 = vmatprep.subr.mxu0 0.0
        %1326 = vmatpush1.xpose.msra.mxu0 %v1293
        %1327 = vmatprep.subr.mxu0 0.0
        %1328 = vmatpush2.xpose.msra.mxu0 0.0
        %1329 = vmatprep.subr.mxu0 0.0
        %1330 = vmatpush2.xpose.msra.mxu0 0.0
        %1331 = vmatprep.subr.mxu0 0.0
        %1332 = vmatpush2.xpose.msra.mxu0 0.0
        %1333 = vmatprep.subr.mxu0 0.0
        %1334 = vmatpush2.xpose.msra.mxu0 0.0
        %1335 = vmatprep.subr.mxu0 0.0
        %1336 = vmatpush2.xpose.msra.mxu0 0.0
        %1337 = vmatprep.subr.mxu0 0.0
        %1338 = vmatpush2.xpose.msra.mxu0 0.0
        %1339 = vmatprep.subr.mxu0 0.0
        %1340 = vmatpush2.xpose.msra.mxu0 0.0
        %1341 = vmatprep.subr.mxu0 0.0
        %1342 = vmatpush2.xpose.msra.mxu0 0.0
        %1343 = vmatprep.subr.mxu0 0.0
        %1344 = vmatpush2.xpose.msra.mxu0 0.0
        %1345 = vmatprep.subr.mxu0 0.0
        %1346 = vmatpush2.xpose.msra.mxu0 0.0
        %1347 = vmatprep.subr.mxu0 0.0
        %1348 = vmatpush2.xpose.msra.mxu0 0.0
        %1349 = vmatprep.subr.mxu0 0.0
        %1350 = vmatpush2.xpose.msra.mxu0 0.0
        %1351 = vmatprep.subr.mxu0 0.0
        %1352 = vmatpush2.xpose.msra.mxu0 0.0
        %1353 = vmatprep.subr.mxu0 0.0
        %1354 = vmatpush2.xpose.msra.mxu0 0.0
        %1355 = vmatprep.subr.mxu0 0.0
        %1356 = vmatpush2.xpose.msra.mxu0 0.0
        %1357 = vmatprep.subr.mxu0 0.0
        %1358 = vmatpush2.xpose.msra.mxu0 0.0
        %1359 = vmatprep.mubr.f32.mxu0 0.0
        %1360 = vmatmul.mubr.f32.gmra.mxu0 %v1290
        %v1361 = vpop.f32.mrf.mxu0
        %v1362 = vadd.f32 0.0, %v1361
        %v1363 = vpop.f32.mrf.mxu0
        %1364 = vdwg.mxu0
        %v1365 = vmul.f32 %v1134, 0.35355338
        %v1366 = vmul.f32 %v1210, 0.35355338
        %v1367 = vmul.f32 %v1286, 0.35355338
        %v1368 = vmul.f32 %v1362, 0.35355338
        %v1369 = vadd.f32 %v1365, %v495
        %v1370 = vadd.f32 %v1366, %v495
        %v1371 = vadd.f32 %v1367, %v495
        %v1372 = vadd.f32 %v1368, %v495
        %v1373 = vsel %vm1060, %v1369, -inf
        %1374 = vmax.xlane.f32.xlu0 %v1373
        %v1375 = vpop.xlane.xlu0 %1374
        %v1376 = vsel %vm1060, %v1370, -inf
        %1377 = vmax.xlane.f32.xlu0 %v1376
        %v1378 = vpop.xlane.xlu0 %1377
        %v1379 = vsel %vm1060, %v1371, -inf
        %1380 = vmax.xlane.f32.xlu0 %v1379
        %v1381 = vpop.xlane.xlu0 %1380
        %v1382 = vsel %vm1060, %v1372, -inf
        %1383 = vmax.xlane.f32.xlu0 %v1382
        %v1384 = vpop.xlane.xlu0 %1383
        %v1385 = vsub.f32 %v1369, %v1375
        %v1386 = vsub.f32 %v1370, %v1378
        %v1387 = vsub.f32 %v1371, %v1381
        %v1388 = vsub.f32 %v1372, %v1384
        %v1389 = vmul.f32 %v1385, 1.442695
        %v1390 = vpow.pop %v1389
        %v1391 = vmul.f32 %v1386, 1.442695
        %v1392 = vpow.pop %v1391
        %v1393 = vmul.f32 %v1387, 1.442695
        %v1394 = vpow.pop %v1393
        %v1395 = vmul.f32 %v1388, 1.442695
        %v1396 = vpow.pop %v1395
        %v1397 = vsel %vm1060, %v1390, 0.0
        %1398 = vadd.xlane.f32.xlu0 %v1397
        %v1399 = vpop.xlane.xlu0 %1398
        %v1400 = vsel %vm1060, %v1392, 0.0
        %1401 = vadd.xlane.f32.xlu0 %v1400
        %v1402 = vpop.xlane.xlu0 %1401
        %v1403 = vsel %vm1060, %v1394, 0.0
        %1404 = vadd.xlane.f32.xlu0 %v1403
        %v1405 = vpop.xlane.xlu0 %1404
        %v1406 = vsel %vm1060, %v1396, 0.0
        %1407 = vadd.xlane.f32.xlu0 %v1406
        %v1408 = vpop.xlane.xlu0 %1407
        %v1409 = vrcp.pop %v1399
        %v1410 = vmul.f32 %v1390, %v1409
        %v1411 = vrcp.pop %v1402
        %v1412 = vmul.f32 %v1392, %v1411
        %v1413 = vrcp.pop %v1405
        %v1414 = vmul.f32 %v1394, %v1413
        %v1415 = vrcp.pop %v1408
        %v1416 = vmul.f32 %v1396, %v1415
        %v1418 = vsel %vm1060, %v1410, 0
        %1420 = vmatprep.subr.mxu0 0.0
        %1421 = vmatpush1.msra.mxu0 0.0
        %1422 = vmatprep.subr.mxu0 0.0
        %1423 = vmatpush1.msra.mxu0 0.0
        %1424 = vmatprep.subr.mxu0 0.0
        %1425 = vmatpush1.msra.mxu0 0.0
        %1426 = vmatprep.subr.mxu0 0.0
        %1427 = vmatpush1.msra.mxu0 0.0
        %1428 = vmatprep.subr.mxu0 0.0
        %1429 = vmatpush1.msra.mxu0 0.0
        %1430 = vmatprep.subr.mxu0 0.0
        %1431 = vmatpush1.msra.mxu0 0.0
        %1432 = vmatprep.subr.mxu0 0.0
        %1433 = vmatpush1.msra.mxu0 0.0
        %1434 = vmatprep.subr.mxu0 0.0
        %1435 = vmatpush1.msra.mxu0 0.0
        %1436 = vmatprep.subr.mxu0 0.0
        %1437 = vmatpush1.msra.mxu0 0.0
        %1438 = vmatprep.subr.mxu0 0.0
        %1439 = vmatpush1.msra.mxu0 0.0
        %1440 = vmatprep.subr.mxu0 0.0
        %1441 = vmatpush1.msra.mxu0 0.0
        %1442 = vmatprep.subr.mxu0 0.0
        %1443 = vmatpush1.msra.mxu0 0.0
        %1444 = vmatprep.subr.mxu0 0.0
        %1445 = vmatpush1.msra.mxu0 0.0
        %1446 = vmatprep.subr.mxu0 0.0
        %1447 = vmatpush1.msra.mxu0 0.0
        %1448 = vmatprep.subr.mxu0 0.0
        %1449 = vmatpush1.msra.mxu0 0.0
        %1450 = vmatprep.subr.mxu0 0.0
        %1451 = vmatpush1.msra.mxu0 %v1056
        %1452 = vmatprep.subr.mxu0 0.0
        %1453 = vmatpush2.msra.mxu0 0.0
        %1454 = vmatprep.subr.mxu0 0.0
        %1455 = vmatpush2.msra.mxu0 0.0
        %1456 = vmatprep.subr.mxu0 0.0
        %1457 = vmatpush2.msra.mxu0 0.0
        %1458 = vmatprep.subr.mxu0 0.0
        %1459 = vmatpush2.msra.mxu0 0.0
        %1460 = vmatprep.subr.mxu0 0.0
        %1461 = vmatpush2.msra.mxu0 0.0
        %1462 = vmatprep.subr.mxu0 0.0
        %1463 = vmatpush2.msra.mxu0 0.0
        %1464 = vmatprep.subr.mxu0 0.0
        %1465 = vmatpush2.msra.mxu0 0.0
        %1466 = vmatprep.subr.mxu0 0.0
        %1467 = vmatpush2.msra.mxu0 0.0
        %1468 = vmatprep.subr.mxu0 0.0
        %1469 = vmatpush2.msra.mxu0 0.0
        %1470 = vmatprep.subr.mxu0 0.0
        %1471 = vmatpush2.msra.mxu0 0.0
        %1472 = vmatprep.subr.mxu0 0.0
        %1473 = vmatpush2.msra.mxu0 0.0
        %1474 = vmatprep.subr.mxu0 0.0
        %1475 = vmatpush2.msra.mxu0 0.0
        %1476 = vmatprep.subr.mxu0 0.0
        %1477 = vmatpush2.msra.mxu0 0.0
        %1478 = vmatprep.subr.mxu0 0.0
        %1479 = vmatpush2.msra.mxu0 0.0
        %1480 = vmatprep.subr.mxu0 0.0
        %1481 = vmatpush2.msra.mxu0 0.0
        %1482 = vmatprep.subr.mxu0 0.0
        %1483 = vmatpush2.msra.mxu0 0.0
        %1484 = vmatprep.mubr.f32.mxu0 0.0
        %1485 = vmatmul.mubr.f32.gmra.mxu0 %v1418
        %v1486 = vpop.f32.mrf.mxu0
        %v1487 = vadd.f32 0.0, %v1486
        %v1488 = vpop.f32.mrf.mxu0
        %1489 = vdwg.mxu0
        %v1491 = vsel %vm1060, %v1412, 0
        %1493 = vmatprep.subr.mxu0 0.0
        %1494 = vmatpush1.msra.mxu0 0.0
        %1495 = vmatprep.subr.mxu0 0.0
        %1496 = vmatpush1.msra.mxu0 0.0
        %1497 = vmatprep.subr.mxu0 0.0
        %1498 = vmatpush1.msra.mxu0 0.0
        %1499 = vmatprep.subr.mxu0 0.0
        %1500 = vmatpush1.msra.mxu0 0.0
        %1501 = vmatprep.subr.mxu0 0.0
        %1502 = vmatpush1.msra.mxu0 0.0
        %1503 = vmatprep.subr.mxu0 0.0
        %1504 = vmatpush1.msra.mxu0 0.0
        %1505 = vmatprep.subr.mxu0 0.0
        %1506 = vmatpush1.msra.mxu0 0.0
        %1507 = vmatprep.subr.mxu0 0.0
        %1508 = vmatpush1.msra.mxu0 0.0
        %1509 = vmatprep.subr.mxu0 0.0
        %1510 = vmatpush1.msra.mxu0 0.0
        %1511 = vmatprep.subr.mxu0 0.0
        %1512 = vmatpush1.msra.mxu0 0.0
        %1513 = vmatprep.subr.mxu0 0.0
        %1514 = vmatpush1.msra.mxu0 0.0
        %1515 = vmatprep.subr.mxu0 0.0
        %1516 = vmatpush1.msra.mxu0 0.0
        %1517 = vmatprep.subr.mxu0 0.0
        %1518 = vmatpush1.msra.mxu0 0.0
        %1519 = vmatprep.subr.mxu0 0.0
        %1520 = vmatpush1.msra.mxu0 0.0
        %1521 = vmatprep.subr.mxu0 0.0
        %1522 = vmatpush1.msra.mxu0 0.0
        %1523 = vmatprep.subr.mxu0 0.0
        %1524 = vmatpush1.msra.mxu0 %v1057
        %1525 = vmatprep.subr.mxu0 0.0
        %1526 = vmatpush2.msra.mxu0 0.0
        %1527 = vmatprep.subr.mxu0 0.0
        %1528 = vmatpush2.msra.mxu0 0.0
        %1529 = vmatprep.subr.mxu0 0.0
        %1530 = vmatpush2.msra.mxu0 0.0
        %1531 = vmatprep.subr.mxu0 0.0
        %1532 = vmatpush2.msra.mxu0 0.0
        %1533 = vmatprep.subr.mxu0 0.0
        %1534 = vmatpush2.msra.mxu0 0.0
        %1535 = vmatprep.subr.mxu0 0.0
        %1536 = vmatpush2.msra.mxu0 0.0
        %1537 = vmatprep.subr.mxu0 0.0
        %1538 = vmatpush2.msra.mxu0 0.0
        %1539 = vmatprep.subr.mxu0 0.0
        %1540 = vmatpush2.msra.mxu0 0.0
        %1541 = vmatprep.subr.mxu0 0.0
        %1542 = vmatpush2.msra.mxu0 0.0
        %1543 = vmatprep.subr.mxu0 0.0
        %1544 = vmatpush2.msra.mxu0 0.0
        %1545 = vmatprep.subr.mxu0 0.0
        %1546 = vmatpush2.msra.mxu0 0.0
        %1547 = vmatprep.subr.mxu0 0.0
        %1548 = vmatpush2.msra.mxu0 0.0
        %1549 = vmatprep.subr.mxu0 0.0
        %1550 = vmatpush2.msra.mxu0 0.0
        %1551 = vmatprep.subr.mxu0 0.0
        %1552 = vmatpush2.msra.mxu0 0.0
        %1553 = vmatprep.subr.mxu0 0.0
        %1554 = vmatpush2.msra.mxu0 0.0
        %1555 = vmatprep.subr.mxu0 0.0
        %1556 = vmatpush2.msra.mxu0 0.0
        %1557 = vmatprep.mubr.f32.mxu0 0.0
        %1558 = vmatmul.mubr.f32.gmra.mxu0 %v1491
        %v1559 = vpop.f32.mrf.mxu0
        %v1560 = vadd.f32 0.0, %v1559
        %v1561 = vpop.f32.mrf.mxu0
        %1562 = vdwg.mxu0
        %v1564 = vsel %vm1060, %v1414, 0
        %1566 = vmatprep.subr.mxu0 0.0
        %1567 = vmatpush1.msra.mxu0 0.0
        %1568 = vmatprep.subr.mxu0 0.0
        %1569 = vmatpush1.msra.mxu0 0.0
        %1570 = vmatprep.subr.mxu0 0.0
        %1571 = vmatpush1.msra.mxu0 0.0
        %1572 = vmatprep.subr.mxu0 0.0
        %1573 = vmatpush1.msra.mxu0 0.0
        %1574 = vmatprep.subr.mxu0 0.0
        %1575 = vmatpush1.msra.mxu0 0.0
        %1576 = vmatprep.subr.mxu0 0.0
        %1577 = vmatpush1.msra.mxu0 0.0
        %1578 = vmatprep.subr.mxu0 0.0
        %1579 = vmatpush1.msra.mxu0 0.0
        %1580 = vmatprep.subr.mxu0 0.0
        %1581 = vmatpush1.msra.mxu0 0.0
        %1582 = vmatprep.subr.mxu0 0.0
        %1583 = vmatpush1.msra.mxu0 0.0
        %1584 = vmatprep.subr.mxu0 0.0
        %1585 = vmatpush1.msra.mxu0 0.0
        %1586 = vmatprep.subr.mxu0 0.0
        %1587 = vmatpush1.msra.mxu0 0.0
        %1588 = vmatprep.subr.mxu0 0.0
        %1589 = vmatpush1.msra.mxu0 0.0
        %1590 = vmatprep.subr.mxu0 0.0
        %1591 = vmatpush1.msra.mxu0 0.0
        %1592 = vmatprep.subr.mxu0 0.0
        %1593 = vmatpush1.msra.mxu0 0.0
        %1594 = vmatprep.subr.mxu0 0.0
        %1595 = vmatpush1.msra.mxu0 0.0
        %1596 = vmatprep.subr.mxu0 0.0
        %1597 = vmatpush1.msra.mxu0 %v1058
        %1598 = vmatprep.subr.mxu0 0.0
        %1599 = vmatpush2.msra.mxu0 0.0
        %1600 = vmatprep.subr.mxu0 0.0
        %1601 = vmatpush2.msra.mxu0 0.0
        %1602 = vmatprep.subr.mxu0 0.0
        %1603 = vmatpush2.msra.mxu0 0.0
        %1604 = vmatprep.subr.mxu0 0.0
        %1605 = vmatpush2.msra.mxu0 0.0
        %1606 = vmatprep.subr.mxu0 0.0
        %1607 = vmatpush2.msra.mxu0 0.0
        %1608 = vmatprep.subr.mxu0 0.0
        %1609 = vmatpush2.msra.mxu0 0.0
        %1610 = vmatprep.subr.mxu0 0.0
        %1611 = vmatpush2.msra.mxu0 0.0
        %1612 = vmatprep.subr.mxu0 0.0
        %1613 = vmatpush2.msra.mxu0 0.0
        %1614 = vmatprep.subr.mxu0 0.0
        %1615 = vmatpush2.msra.mxu0 0.0
        %1616 = vmatprep.subr.mxu0 0.0
        %1617 = vmatpush2.msra.mxu0 0.0
        %1618 = vmatprep.subr.mxu0 0.0
        %1619 = vmatpush2.msra.mxu0 0.0
        %1620 = vmatprep.subr.mxu0 0.0
        %1621 = vmatpush2.msra.mxu0 0.0
        %1622 = vmatprep.subr.mxu0 0.0
        %1623 = vmatpush2.msra.mxu0 0.0
        %1624 = vmatprep.subr.mxu0 0.0
        %1625 = vmatpush2.msra.mxu0 0.0
        %1626 = vmatprep.subr.mxu0 0.0
        %1627 = vmatpush2.msra.mxu0 0.0
        %1628 = vmatprep.subr.mxu0 0.0
        %1629 = vmatpush2.msra.mxu0 0.0
        %1630 = vmatprep.mubr.f32.mxu0 0.0
        %1631 = vmatmul.mubr.f32.gmra.mxu0 %v1564
        %v1632 = vpop.f32.mrf.mxu0
        %v1633 = vadd.f32 0.0, %v1632
        %v1634 = vpop.f32.mrf.mxu0
        %1635 = vdwg.mxu0
        %v1637 = vsel %vm1060, %v1416, 0
        %1639 = vmatprep.subr.mxu0 0.0
        %1640 = vmatpush1.msra.mxu0 0.0
        %1641 = vmatprep.subr.mxu0 0.0
        %1642 = vmatpush1.msra.mxu0 0.0
        %1643 = vmatprep.subr.mxu0 0.0
        %1644 = vmatpush1.msra.mxu0 0.0
        %1645 = vmatprep.subr.mxu0 0.0
        %1646 = vmatpush1.msra.mxu0 0.0
        %1647 = vmatprep.subr.mxu0 0.0
        %1648 = vmatpush1.msra.mxu0 0.0
        %1649 = vmatprep.subr.mxu0 0.0
        %1650 = vmatpush1.msra.mxu0 0.0
        %1651 = vmatprep.subr.mxu0 0.0
        %1652 = vmatpush1.msra.mxu0 0.0
        %1653 = vmatprep.subr.mxu0 0.0
        %1654 = vmatpush1.msra.mxu0 0.0
        %1655 = vmatprep.subr.mxu0 0.0
        %1656 = vmatpush1.msra.mxu0 0.0
        %1657 = vmatprep.subr.mxu0 0.0
        %1658 = vmatpush1.msra.mxu0 0.0
        %1659 = vmatprep.subr.mxu0 0.0
        %1660 = vmatpush1.msra.mxu0 0.0
        %1661 = vmatprep.subr.mxu0 0.0
        %1662 = vmatpush1.msra.mxu0 0.0
        %1663 = vmatprep.subr.mxu0 0.0
        %1664 = vmatpush1.msra.mxu0 0.0
        %1665 = vmatprep.subr.mxu0 0.0
        %1666 = vmatpush1.msra.mxu0 0.0
        %1667 = vmatprep.subr.mxu0 0.0
        %1668 = vmatpush1.msra.mxu0 0.0
        %1669 = vmatprep.subr.mxu0 0.0
        %1670 = vmatpush1.msra.mxu0 %v1059
        %1671 = vmatprep.subr.mxu0 0.0
        %1672 = vmatpush2.msra.mxu0 0.0
        %1673 = vmatprep.subr.mxu0 0.0
        %1674 = vmatpush2.msra.mxu0 0.0
        %1675 = vmatprep.subr.mxu0 0.0
        %1676 = vmatpush2.msra.mxu0 0.0
        %1677 = vmatprep.subr.mxu0 0.0
        %1678 = vmatpush2.msra.mxu0 0.0
        %1679 = vmatprep.subr.mxu0 0.0
        %1680 = vmatpush2.msra.mxu0 0.0
        %1681 = vmatprep.subr.mxu0 0.0
        %1682 = vmatpush2.msra.mxu0 0.0
        %1683 = vmatprep.subr.mxu0 0.0
        %1684 = vmatpush2.msra.mxu0 0.0
        %1685 = vmatprep.subr.mxu0 0.0
        %1686 = vmatpush2.msra.mxu0 0.0
        %1687 = vmatprep.subr.mxu0 0.0
        %1688 = vmatpush2.msra.mxu0 0.0
        %1689 = vmatprep.subr.mxu0 0.0
        %1690 = vmatpush2.msra.mxu0 0.0
        %1691 = vmatprep.subr.mxu0 0.0
        %1692 = vmatpush2.msra.mxu0 0.0
        %1693 = vmatprep.subr.mxu0 0.0
        %1694 = vmatpush2.msra.mxu0 0.0
        %1695 = vmatprep.subr.mxu0 0.0
        %1696 = vmatpush2.msra.mxu0 0.0
        %1697 = vmatprep.subr.mxu0 0.0
        %1698 = vmatpush2.msra.mxu0 0.0
        %1699 = vmatprep.subr.mxu0 0.0
        %1700 = vmatpush2.msra.mxu0 0.0
        %1701 = vmatprep.subr.mxu0 0.0
        %1702 = vmatpush2.msra.mxu0 0.0
        %1703 = vmatprep.mubr.f32.mxu0 0.0
        %1704 = vmatmul.mubr.f32.gmra.mxu0 %v1637
        %v1705 = vpop.f32.mrf.mxu0
        %v1706 = vadd.f32 0.0, %v1705
        %v1707 = vpop.f32.mrf.mxu0
        %1708 = vdwg.mxu0
        %v1709 = vcombine.low %v1487, %v1633
        %v1710 = vcombine.high %v1487, %v1633
        %v1712 = vunpack.c.l.s4 1983009808
        %v1713 = vunpack.c.0.s8 %v1712
        %v1714 = vlaneseq
        %v1715 = vshrl.u32 %v1714, 7
        %v1716 = vsub.s32 %v1713, %v1715
        %v1717 = vrot.slane %v1709, %v1716
        %v1719 = vunpack.c.l.s4 1983009808
        %v1720 = vunpack.c.0.s8 %v1719
        %v1721 = vlaneseq
        %v1722 = vshrl.u32 %v1721, 7
        %v1723 = vsub.s32 %v1720, %v1722
        %v1724 = vrot.slane %v1710, %v1723
        %v1725 = vcombine.low %v1560, %v1706
        %v1726 = vcombine.high %v1560, %v1706
        %v1728 = vunpack.c.l.s4 1983009808
        %v1729 = vunpack.c.0.s8 %v1728
        %v1730 = vlaneseq
        %v1731 = vshrl.u32 %v1730, 7
        %v1732 = vsub.s32 %v1729, %v1731
        %v1733 = vrot.slane %v1725, %v1732
        %v1735 = vunpack.c.l.s4 1983009808
        %v1736 = vunpack.c.0.s8 %v1735
        %v1737 = vlaneseq
        %v1738 = vshrl.u32 %v1737, 7
        %v1739 = vsub.s32 %v1736, %v1738
        %v1740 = vrot.slane %v1726, %v1739
        %v1741 = vcombine.low %v1717, %v1733
        %v1742 = vcombine.high %v1717, %v1733
        %v1744 = vunpack.c.l.s4 1934713408
        %v1745 = vunpack.c.0.s8 %v1744
        %v1746 = vlaneseq
        %v1747 = vshrl.u32 %v1746, 7
        %v1748 = vsub.s32 %v1745, %v1747
        %v1749 = vrot.slane %v1741, %v1748
        %v1751 = vunpack.c.l.s4 1934713408
        %v1752 = vunpack.c.0.s8 %v1751
        %v1753 = vlaneseq
        %v1754 = vshrl.u32 %v1753, 7
        %v1755 = vsub.s32 %v1752, %v1754
        %v1756 = vrot.slane %v1742, %v1755
        %v1757 = vcombine.low %v1724, %v1740
        %v1758 = vcombine.high %v1724, %v1740
        %v1760 = vunpack.c.l.s4 1934713408
        %v1761 = vunpack.c.0.s8 %v1760
        %v1762 = vlaneseq
        %v1763 = vshrl.u32 %v1762, 7
        %v1764 = vsub.s32 %v1761, %v1763
        %v1765 = vrot.slane %v1757, %v1764
        %v1767 = vunpack.c.l.s4 1934713408
        %v1768 = vunpack.c.0.s8 %v1767
        %v1769 = vlaneseq
        %v1770 = vshrl.u32 %v1769, 7
        %v1771 = vsub.s32 %v1768, %v1770
        %v1772 = vrot.slane %v1758, %v1771
        %v1773 = vcombine.high %v1749, 0.0
        %v1774 = vcombine.high %v1756, 0.0
        %v1775 = vcombine.high %v1765, 0.0
        %v1776 = vcombine.high %v1772, 0.0
        %v1777 = vcombine.low %v1749, %v1756
        %v1779 = vunpack.c.l.s4 1983009808
        %v1780 = vunpack.c.0.s8 %v1779
        %v1781 = vlaneseq
        %v1782 = vshrl.u32 %v1781, 7
        %v1783 = vsub.s32 %v1780, %v1782
        %v1784 = vrot.slane %v1777, %v1783
        %v1785 = vcombine.low %v1773, %v1774
        %v1787 = vunpack.c.l.s4 1983009808
        %v1788 = vunpack.c.0.s8 %v1787
        %v1789 = vlaneseq
        %v1790 = vshrl.u32 %v1789, 7
        %v1791 = vsub.s32 %v1788, %v1790
        %v1792 = vrot.slane %v1785, %v1791
        %v1793 = vcombine.low %v1765, %v1772
        %v1795 = vunpack.c.l.s4 1983009808
        %v1796 = vunpack.c.0.s8 %v1795
        %v1797 = vlaneseq
        %v1798 = vshrl.u32 %v1797, 7
        %v1799 = vsub.s32 %v1796, %v1798
        %v1800 = vrot.slane %v1793, %v1799
        %v1801 = vcombine.low %v1775, %v1776
        %v1803 = vunpack.c.l.s4 1983009808
        %v1804 = vunpack.c.0.s8 %v1803
        %v1805 = vlaneseq
        %v1806 = vshrl.u32 %v1805, 7
        %v1807 = vsub.s32 %v1804, %v1806
        %v1808 = vrot.slane %v1801, %v1807
        %v1809 = vcombine.low %v1784, %v1792
        %v1810 = vcombine.high %v1784, %v1792
        %v1812 = vunpack.c.l.s4 1934713408
        %v1813 = vunpack.c.0.s8 %v1812
        %v1814 = vlaneseq
        %v1815 = vshrl.u32 %v1814, 7
        %v1816 = vsub.s32 %v1813, %v1815
        %v1817 = vrot.slane %v1809, %v1816
        %v1819 = vunpack.c.l.s4 1934713408
        %v1820 = vunpack.c.0.s8 %v1819
        %v1821 = vlaneseq
        %v1822 = vshrl.u32 %v1821, 7
        %v1823 = vsub.s32 %v1820, %v1822
        %v1824 = vrot.slane %v1810, %v1823
        %v1825 = vcombine.low %v1800, %v1808
        %v1826 = vcombine.high %v1800, %v1808
        %v1828 = vunpack.c.l.s4 1934713408
        %v1829 = vunpack.c.0.s8 %v1828
        %v1830 = vlaneseq
        %v1831 = vshrl.u32 %v1830, 7
        %v1832 = vsub.s32 %v1829, %v1831
        %v1833 = vrot.slane %v1825, %v1832
        %v1835 = vunpack.c.l.s4 1934713408
        %v1836 = vunpack.c.0.s8 %v1835
        %v1837 = vlaneseq
        %v1838 = vshrl.u32 %v1837, 7
        %v1839 = vsub.s32 %v1836, %v1838
        %v1840 = vrot.slane %v1826, %v1839
        %v1841 = vcombine.low %v1817, %v1833
        %v1842 = vcombine.high %v1817, %v1833
        %v1843 = vcombine.low %v1824, %v1840
        %v1844 = vcombine.high %v1824, %v1840
        %1846 = vrot.lane.b32.xlu0 %v1842, 8
        %v1847 = vpop.permute.xlu0 %1846
        %1850 = vrot.lane.b32.xlu0 %v1843, 16
        %v1851 = vpop.permute.xlu0 %1850
        %1854 = vrot.lane.b32.xlu0 %v1844, 24
        %v1855 = vpop.permute.xlu0 %1854
        %v1857 = vsel %vm1060, %v1841, %v1847
        %vm1858 = vcmask 130048
        %v1859 = vsel %vm1858, %v1857, %v1851
        %vm1860 = vcmask 195584
        %v1861 = vsel %vm1860, %v1859, %v1855
        %v1862 = vlaneseq
        %v1863 = vshrl.u32 %v1862, 7
        %v1864 = vsub.s32 7, %v1863
        %v1865 = vrot.slane %v499, %v1864
        %v1867 = vsel %vm501, %v1861, 0
        %1869 = vmatprep.subr.mxu0 0.0
        %1870 = vmatpush1.msra.mxu0 0.0
        %1871 = vmatprep.subr.mxu0 0.0
        %1872 = vmatpush1.msra.mxu0 0.0
        %1873 = vmatprep.subr.mxu0 0.0
        %1874 = vmatpush1.msra.mxu0 0.0
        %1875 = vmatprep.subr.mxu0 0.0
        %1876 = vmatpush1.msra.mxu0 0.0
        %1877 = vmatprep.subr.mxu0 0.0
        %1878 = vmatpush1.msra.mxu0 0.0
        %1879 = vmatprep.subr.mxu0 0.0
        %1880 = vmatpush1.msra.mxu0 0.0
        %1881 = vmatprep.subr.mxu0 0.0
        %1882 = vmatpush1.msra.mxu0 0.0
        %1883 = vmatprep.subr.mxu0 0.0
        %1884 = vmatpush1.msra.mxu0 0.0
        %1885 = vmatprep.subr.mxu0 0.0
        %1886 = vmatpush1.msra.mxu0 0.0
        %1887 = vmatprep.subr.mxu0 0.0
        %1888 = vmatpush1.msra.mxu0 0.0
        %1889 = vmatprep.subr.mxu0 0.0
        %1890 = vmatpush1.msra.mxu0 0.0
        %1891 = vmatprep.subr.mxu0 0.0
        %1892 = vmatpush1.msra.mxu0 0.0
        %1893 = vmatprep.subr.mxu0 0.0
        %1894 = vmatpush1.msra.mxu0 %v617
        %1895 = vmatprep.subr.mxu0 0.0
        %1896 = vmatpush1.msra.mxu0 %v616
        %1897 = vmatprep.subr.mxu0 0.0
        %1898 = vmatpush1.msra.mxu0 %v615
        %1899 = vmatprep.subr.mxu0 0.0
        %1900 = vmatpush1.msra.mxu0 %v614
        %1901 = vmatprep.subr.mxu0 0.0
        %1902 = vmatpush2.msra.mxu0 0.0
        %1903 = vmatprep.subr.mxu0 0.0
        %1904 = vmatpush2.msra.mxu0 0.0
        %1905 = vmatprep.subr.mxu0 0.0
        %1906 = vmatpush2.msra.mxu0 0.0
        %1907 = vmatprep.subr.mxu0 0.0
        %1908 = vmatpush2.msra.mxu0 0.0
        %1909 = vmatprep.subr.mxu0 0.0
        %1910 = vmatpush2.msra.mxu0 0.0
        %1911 = vmatprep.subr.mxu0 0.0
        %1912 = vmatpush2.msra.mxu0 0.0
        %1913 = vmatprep.subr.mxu0 0.0
        %1914 = vmatpush2.msra.mxu0 0.0
        %1915 = vmatprep.subr.mxu0 0.0
        %1916 = vmatpush2.msra.mxu0 0.0
        %1917 = vmatprep.subr.mxu0 0.0
        %1918 = vmatpush2.msra.mxu0 0.0
        %1919 = vmatprep.subr.mxu0 0.0
        %1920 = vmatpush2.msra.mxu0 0.0
        %1921 = vmatprep.subr.mxu0 0.0
        %1922 = vmatpush2.msra.mxu0 0.0
        %1923 = vmatprep.subr.mxu0 0.0
        %1924 = vmatpush2.msra.mxu0 0.0
        %1925 = vmatprep.subr.mxu0 0.0
        %1926 = vmatpush2.msra.mxu0 0.0
        %1927 = vmatprep.subr.mxu0 0.0
        %1928 = vmatpush2.msra.mxu0 0.0
        %1929 = vmatprep.subr.mxu0 0.0
        %1930 = vmatpush2.msra.mxu0 0.0
        %1931 = vmatprep.subr.mxu0 0.0
        %1932 = vmatpush2.msra.mxu0 0.0
        %1933 = vmatprep.mubr.f32.mxu0 0.0
        %1934 = vmatmul.mubr.f32.gmra.mxu0 %v1867
        %v1935 = vpop.f32.mrf.mxu0
        %v1936 = vadd.f32 %v1865, %v1935
        %v1937 = vpop.f32.mrf.mxu0
        %1938 = vdwg.mxu0
        %v1939 = vadd.f32 %v490, %v1936
        %v1940 = vsel %vm501, %v1939, 0.0
        %1941 = vadd.xlane.f32.xlu0 %v1940
        %v1942 = vpop.xlane.xlu0 %1941
        %v1943 = vmul.f32 %v1942, %v505
        %v1944 = vsub.f32 %v1939, %v1943
        %v1945 = vmul.f32 %v1944, %v1944
        %v1946 = vsel %vm501, %v1945, 0.0
        %1947 = vadd.xlane.f32.xlu0 %v1946
        %v1948 = vpop.xlane.xlu0 %1947
        %v1949 = vmul.f32 %v1948, 0.032258064
        %v1950 = vlaneseq
        %v1951 = vshrl.u32 %v1950, 7
        %v1952 = vsub.s32 1, %v1951
        %v1953 = vrot.slane %v499, %v1952
        %v1954 = vmul.f32 %v1953, %v1944
        %v1955 = vrsqrt.pop %v1949
        %v1956 = vmul.f32 %v1949, %v1955
        %vm1957 = vcmp.eq.f32.partialorder %v1949, inf
        %v1958 = vsel %vm1957, %v1949, %v1956
        %vm1959 = vcmp.eq.f32.partialorder %v1949, 0.0
        %v1960 = vand.u32 %v1949, 2147483648
        %v1961 = vsel %vm1959, %v1960, %v1958
        %v1962 = vadd.f32 %v1961, 1e-06
        %v1963 = vrcp.pop %v1962
        %v1964 = vmul.f32 %v1954, %v1963
        %v1965 = vlaneseq
        %v1966 = vshrl.u32 %v1965, 7
        %v1967 = vsub.s32 4, %v1966
        %v1968 = vrot.slane %v499, %v1967
        %v1969 = vadd.f32 %v1964, %v1968
        %v1970 = vld [vmem:[%s6] sm:$0xff]
        %v1971 = vld [vmem:[%s6 + $0x8] sm:$0xff]
        %v1972 = vld [vmem:[%s6 + $0x10] sm:$0xff]
        %v1973 = vld [vmem:[%s6 + $0x18] sm:$0xff]
        %v1974 = vlaneseq
        %v1975 = vshrl.u32 %v1974, 7
        %v1976 = vsub.s32 0, %v1975
        %v1977 = vrot.slane %v500, %v1976
        %v1979 = vsel %vm501, %v1969, 0
        %1981 = vmatprep.subr.mxu0 0.0
        %1982 = vmatpush1.msra.mxu0 0.0
        %1983 = vmatprep.subr.mxu0 0.0
        %1984 = vmatpush1.msra.mxu0 0.0
        %1985 = vmatprep.subr.mxu0 0.0
        %1986 = vmatpush1.msra.mxu0 0.0
        %1987 = vmatprep.subr.mxu0 0.0
        %1988 = vmatpush1.msra.mxu0 0.0
        %1989 = vmatprep.subr.mxu0 0.0
        %1990 = vmatpush1.msra.mxu0 0.0
        %1991 = vmatprep.subr.mxu0 0.0
        %1992 = vmatpush1.msra.mxu0 0.0
        %1993 = vmatprep.subr.mxu0 0.0
        %1994 = vmatpush1.msra.mxu0 0.0
        %1995 = vmatprep.subr.mxu0 0.0
        %1996 = vmatpush1.msra.mxu0 0.0
        %1997 = vmatprep.subr.mxu0 0.0
        %1998 = vmatpush1.msra.mxu0 0.0
        %1999 = vmatprep.subr.mxu0 0.0
        %2000 = vmatpush1.msra.mxu0 0.0
        %2001 = vmatprep.subr.mxu0 0.0
        %2002 = vmatpush1.msra.mxu0 0.0
        %2003 = vmatprep.subr.mxu0 0.0
        %2004 = vmatpush1.msra.mxu0 0.0
        %2005 = vmatprep.subr.mxu0 0.0
        %2006 = vmatpush1.msra.mxu0 %v1973
        %2007 = vmatprep.subr.mxu0 0.0
        %2008 = vmatpush1.msra.mxu0 %v1972
        %2009 = vmatprep.subr.mxu0 0.0
        %2010 = vmatpush1.msra.mxu0 %v1971
        %2011 = vmatprep.subr.mxu0 0.0
        %2012 = vmatpush1.msra.mxu0 %v1970
        %2013 = vmatprep.subr.mxu0 0.0
        %2014 = vmatpush2.msra.mxu0 0.0
        %2015 = vmatprep.subr.mxu0 0.0
        %2016 = vmatpush2.msra.mxu0 0.0
        %2017 = vmatprep.subr.mxu0 0.0
        %2018 = vmatpush2.msra.mxu0 0.0
        %2019 = vmatprep.subr.mxu0 0.0
        %2020 = vmatpush2.msra.mxu0 0.0
        %2021 = vmatprep.subr.mxu0 0.0
        %2022 = vmatpush2.msra.mxu0 0.0
        %2023 = vmatprep.subr.mxu0 0.0
        %2024 = vmatpush2.msra.mxu0 0.0
        %2025 = vmatprep.subr.mxu0 0.0
        %2026 = vmatpush2.msra.mxu0 0.0
        %2027 = vmatprep.subr.mxu0 0.0
        %2028 = vmatpush2.msra.mxu0 0.0
        %2029 = vmatprep.subr.mxu0 0.0
        %2030 = vmatpush2.msra.mxu0 0.0
        %2031 = vmatprep.subr.mxu0 0.0
        %2032 = vmatpush2.msra.mxu0 0.0
        %2033 = vmatprep.subr.mxu0 0.0
        %2034 = vmatpush2.msra.mxu0 0.0
        %2035 = vmatprep.subr.mxu0 0.0
        %2036 = vmatpush2.msra.mxu0 0.0
        %2037 = vmatprep.subr.mxu0 0.0
        %2038 = vmatpush2.msra.mxu0 0.0
        %2039 = vmatprep.subr.mxu0 0.0
        %2040 = vmatpush2.msra.mxu0 0.0
        %2041 = vmatprep.subr.mxu0 0.0
        %2042 = vmatpush2.msra.mxu0 0.0
        %2043 = vmatprep.subr.mxu0 0.0
        %2044 = vmatpush2.msra.mxu0 0.0
        %2045 = vmatprep.mubr.f32.mxu0 0.0
        %2046 = vmatmul.mubr.f32.gmra.mxu0 %v1979
        %v2047 = vpop.f32.mrf.mxu0
        %v2048 = vadd.f32 %v1977, %v2047
        %v2049 = vpop.f32.mrf.mxu0
        %2050 = vdwg.mxu0
        %v2051 = vld [vmem:[%s7] sm:$0xff]
        %v2052 = vld [vmem:[%s7 + $0x8] sm:$0xff]
        %v2053 = vld [vmem:[%s7 + $0x10] sm:$0xff]
        %v2054 = vld [vmem:[%s7 + $0x18] sm:$0xff]
        %v2055 = vlaneseq
        %v2056 = vshrl.u32 %v2055, 7
        %v2057 = vsub.s32 1, %v2056
        %v2058 = vrot.slane %v500, %v2057
        %v2060 = vsel %vm501, %v491, 0
        %v2063 = vsel %vm501, %v492, 0
        %2065 = vmatprep.subr.mxu0 0.0
        %2066 = vmatpush1.msra.mxu0 0.0
        %2067 = vmatprep.subr.mxu0 0.0
        %2068 = vmatpush1.msra.mxu0 0.0
        %2069 = vmatprep.subr.mxu0 0.0
        %2070 = vmatpush1.msra.mxu0 0.0
        %2071 = vmatprep.subr.mxu0 0.0
        %2072 = vmatpush1.msra.mxu0 0.0
        %2073 = vmatprep.subr.mxu0 0.0
        %2074 = vmatpush1.msra.mxu0 0.0
        %2075 = vmatprep.subr.mxu0 0.0
        %2076 = vmatpush1.msra.mxu0 0.0
        %2077 = vmatprep.subr.mxu0 0.0
        %2078 = vmatpush1.msra.mxu0 0.0
        %2079 = vmatprep.subr.mxu0 0.0
        %2080 = vmatpush1.msra.mxu0 0.0
        %2081 = vmatprep.subr.mxu0 0.0
        %2082 = vmatpush1.msra.mxu0 0.0
        %2083 = vmatprep.subr.mxu0 0.0
        %2084 = vmatpush1.msra.mxu0 0.0
        %2085 = vmatprep.subr.mxu0 0.0
        %2086 = vmatpush1.msra.mxu0 0.0
        %2087 = vmatprep.subr.mxu0 0.0
        %2088 = vmatpush1.msra.mxu0 0.0
        %2089 = vmatprep.subr.mxu0 0.0
        %2090 = vmatpush1.msra.mxu0 %v2054
        %2091 = vmatprep.subr.mxu0 0.0
        %2092 = vmatpush1.msra.mxu0 %v2053
        %2093 = vmatprep.subr.mxu0 0.0
        %2094 = vmatpush1.msra.mxu0 %v2052
        %2095 = vmatprep.subr.mxu0 0.0
        %2096 = vmatpush1.msra.mxu0 %v2051
        %2097 = vmatprep.subr.mxu0 0.0
        %2098 = vmatpush2.msra.mxu0 0.0
        %2099 = vmatprep.subr.mxu0 0.0
        %2100 = vmatpush2.msra.mxu0 0.0
        %2101 = vmatprep.subr.mxu0 0.0
        %2102 = vmatpush2.msra.mxu0 0.0
        %2103 = vmatprep.subr.mxu0 0.0
        %2104 = vmatpush2.msra.mxu0 0.0
        %2105 = vmatprep.subr.mxu0 0.0
        %2106 = vmatpush2.msra.mxu0 0.0
        %2107 = vmatprep.subr.mxu0 0.0
        %2108 = vmatpush2.msra.mxu0 0.0
        %2109 = vmatprep.subr.mxu0 0.0
        %2110 = vmatpush2.msra.mxu0 0.0
        %2111 = vmatprep.subr.mxu0 0.0
        %2112 = vmatpush2.msra.mxu0 0.0
        %2113 = vmatprep.subr.mxu0 0.0
        %2114 = vmatpush2.msra.mxu0 0.0
        %2115 = vmatprep.subr.mxu0 0.0
        %2116 = vmatpush2.msra.mxu0 0.0
        %2117 = vmatprep.subr.mxu0 0.0
        %2118 = vmatpush2.msra.mxu0 0.0
        %2119 = vmatprep.subr.mxu0 0.0
        %2120 = vmatpush2.msra.mxu0 0.0
        %2121 = vmatprep.subr.mxu0 0.0
        %2122 = vmatpush2.msra.mxu0 0.0
        %2123 = vmatprep.subr.mxu0 0.0
        %2124 = vmatpush2.msra.mxu0 0.0
        %2125 = vmatprep.subr.mxu0 0.0
        %2126 = vmatpush2.msra.mxu0 0.0
        %2127 = vmatprep.subr.mxu0 0.0
        %2128 = vmatpush2.msra.mxu0 0.0
        %2129 = vmatprep.mubr.f32.mxu0 0.0
        %2130 = vmatmul.mubr.f32.gmra.mxu0 %v2060
        %v2131 = vpop.f32.mrf.mxu0
        %v2132 = vadd.f32 %v2058, %v2131
        %v2133 = vpop.f32.mrf.mxu0
        %2134 = vmatprep.mubr.f32.mxu0 0.0
        %2135 = vmatmul.mubr.f32.gmra.mxu0 %v2063
        %v2136 = vpop.f32.mrf.mxu0
        %v2137 = vadd.f32 %v2058, %v2136
        %v2138 = vpop.f32.mrf.mxu0
        %2139 = vdwg.mxu0
        %v2140 = vld [vmem:[%s8] sm:$0xff]
        %v2141 = vld [vmem:[%s8 + $0x8] sm:$0xff]
        %v2142 = vld [vmem:[%s8 + $0x10] sm:$0xff]
        %v2143 = vld [vmem:[%s8 + $0x18] sm:$0xff]
        %2145 = vrot.lane.b32.xlu0 %v2048, 120
        %v2146 = vpop.permute.xlu0 %2145
        %2148 = vrot.lane.b32.xlu0 %v2048, 112
        %v2149 = vpop.permute.xlu0 %2148
        %2151 = vrot.lane.b32.xlu0 %v2048, 104
        %v2152 = vpop.permute.xlu0 %2151
        %v2154 = vcombine.low %v2048, %v2149
        %v2155 = vcombine.high %v2048, %v2149
        %v2157 = vunpack.c.l.s4 1983009808
        %v2158 = vunpack.c.0.s8 %v2157
        %v2159 = vlaneseq
        %v2160 = vshrl.u32 %v2159, 7
        %v2161 = vsub.s32 %v2158, %v2160
        %v2162 = vrot.slane %v2154, %v2161
        %v2164 = vunpack.c.l.s4 1983009808
        %v2165 = vunpack.c.0.s8 %v2164
        %v2166 = vlaneseq
        %v2167 = vshrl.u32 %v2166, 7
        %v2168 = vsub.s32 %v2165, %v2167
        %v2169 = vrot.slane %v2155, %v2168
        %v2170 = vcombine.low %v2146, %v2152
        %v2171 = vcombine.high %v2146, %v2152
        %v2173 = vunpack.c.l.s4 1983009808
        %v2174 = vunpack.c.0.s8 %v2173
        %v2175 = vlaneseq
        %v2176 = vshrl.u32 %v2175, 7
        %v2177 = vsub.s32 %v2174, %v2176
        %v2178 = vrot.slane %v2170, %v2177
        %v2180 = vunpack.c.l.s4 1983009808
        %v2181 = vunpack.c.0.s8 %v2180
        %v2182 = vlaneseq
        %v2183 = vshrl.u32 %v2182, 7
        %v2184 = vsub.s32 %v2181, %v2183
        %v2185 = vrot.slane %v2171, %v2184
        %v2186 = vcombine.low %v2162, %v2178
        %v2187 = vcombine.high %v2162, %v2178
        %v2189 = vunpack.c.l.s4 1934713408
        %v2190 = vunpack.c.0.s8 %v2189
        %v2191 = vlaneseq
        %v2192 = vshrl.u32 %v2191, 7
        %v2193 = vsub.s32 %v2190, %v2192
        %v2194 = vrot.slane %v2186, %v2193
        %v2196 = vunpack.c.l.s4 1934713408
        %v2197 = vunpack.c.0.s8 %v2196
        %v2198 = vlaneseq
        %v2199 = vshrl.u32 %v2198, 7
        %v2200 = vsub.s32 %v2197, %v2199
        %v2201 = vrot.slane %v2187, %v2200
        %v2202 = vcombine.low %v2169, %v2185
        %v2203 = vcombine.high %v2169, %v2185
        %v2205 = vunpack.c.l.s4 1934713408
        %v2206 = vunpack.c.0.s8 %v2205
        %v2207 = vlaneseq
        %v2208 = vshrl.u32 %v2207, 7
        %v2209 = vsub.s32 %v2206, %v2208
        %v2210 = vrot.slane %v2202, %v2209
        %v2212 = vunpack.c.l.s4 1934713408
        %v2213 = vunpack.c.0.s8 %v2212
        %v2214 = vlaneseq
        %v2215 = vshrl.u32 %v2214, 7
        %v2216 = vsub.s32 %v2213, %v2215
        %v2217 = vrot.slane %v2203, %v2216
        %v2218 = vcombine.high %v2194, 0.0
        %v2219 = vcombine.high %v2201, 0.0
        %v2220 = vcombine.high %v2210, 0.0
        %v2221 = vcombine.high %v2217, 0.0
        %v2222 = vcombine.low %v2194, %v2201
        %v2224 = vunpack.c.l.s4 1983009808
        %v2225 = vunpack.c.0.s8 %v2224
        %v2226 = vlaneseq
        %v2227 = vshrl.u32 %v2226, 7
        %v2228 = vsub.s32 %v2225, %v2227
        %v2229 = vrot.slane %v2222, %v2228
        %v2230 = vcombine.low %v2218, %v2219
        %v2232 = vunpack.c.l.s4 1983009808
        %v2233 = vunpack.c.0.s8 %v2232
        %v2234 = vlaneseq
        %v2235 = vshrl.u32 %v2234, 7
        %v2236 = vsub.s32 %v2233, %v2235
        %v2237 = vrot.slane %v2230, %v2236
        %v2238 = vcombine.low %v2210, %v2217
        %v2240 = vunpack.c.l.s4 1983009808
        %v2241 = vunpack.c.0.s8 %v2240
        %v2242 = vlaneseq
        %v2243 = vshrl.u32 %v2242, 7
        %v2244 = vsub.s32 %v2241, %v2243
        %v2245 = vrot.slane %v2238, %v2244
        %v2246 = vcombine.low %v2220, %v2221
        %v2248 = vunpack.c.l.s4 1983009808
        %v2249 = vunpack.c.0.s8 %v2248
        %v2250 = vlaneseq
        %v2251 = vshrl.u32 %v2250, 7
        %v2252 = vsub.s32 %v2249, %v2251
        %v2253 = vrot.slane %v2246, %v2252
        %v2254 = vcombine.low %v2229, %v2237
        %v2255 = vcombine.high %v2229, %v2237
        %v2257 = vunpack.c.l.s4 1934713408
        %v2258 = vunpack.c.0.s8 %v2257
        %v2259 = vlaneseq
        %v2260 = vshrl.u32 %v2259, 7
        %v2261 = vsub.s32 %v2258, %v2260
        %v2262 = vrot.slane %v2254, %v2261
        %v2264 = vunpack.c.l.s4 1934713408
        %v2265 = vunpack.c.0.s8 %v2264
        %v2266 = vlaneseq
        %v2267 = vshrl.u32 %v2266, 7
        %v2268 = vsub.s32 %v2265, %v2267
        %v2269 = vrot.slane %v2255, %v2268
        %v2270 = vcombine.low %v2245, %v2253
        %v2271 = vcombine.high %v2245, %v2253
        %v2273 = vunpack.c.l.s4 1934713408
        %v2274 = vunpack.c.0.s8 %v2273
        %v2275 = vlaneseq
        %v2276 = vshrl.u32 %v2275, 7
        %v2277 = vsub.s32 %v2274, %v2276
        %v2278 = vrot.slane %v2270, %v2277
        %v2280 = vunpack.c.l.s4 1934713408
        %v2281 = vunpack.c.0.s8 %v2280
        %v2282 = vlaneseq
        %v2283 = vshrl.u32 %v2282, 7
        %v2284 = vsub.s32 %v2281, %v2283
        %v2285 = vrot.slane %v2271, %v2284
        %v2286 = vcombine.low %v2262, %v2278
        %v2287 = vcombine.high %v2262, %v2278
        %v2288 = vcombine.low %v2269, %v2285
        %v2289 = vcombine.high %v2269, %v2285
        %2292 = vrot.lane.b32.xlu0 %v2132, 120
        %v2293 = vpop.permute.xlu0 %2292
        %2294 = vrot.lane.b32.xlu0 %v2137, 120
        %v2295 = vpop.permute.xlu0 %2294
        %2298 = vrot.lane.b32.xlu0 %v2132, 112
        %v2299 = vpop.permute.xlu0 %2298
        %2300 = vrot.lane.b32.xlu0 %v2137, 112
        %v2301 = vpop.permute.xlu0 %2300
        %2304 = vrot.lane.b32.xlu0 %v2132, 104
        %v2305 = vpop.permute.xlu0 %2304
        %2306 = vrot.lane.b32.xlu0 %v2137, 104
        %v2307 = vpop.permute.xlu0 %2306
        %v2310 = vcombine.low %v2132, %v2299
        %v2311 = vcombine.high %v2132, %v2299
        %v2313 = vunpack.c.l.s4 1983009808
        %v2314 = vunpack.c.0.s8 %v2313
        %v2315 = vlaneseq
        %v2316 = vshrl.u32 %v2315, 7
        %v2317 = vsub.s32 %v2314, %v2316
        %v2318 = vrot.slane %v2310, %v2317
        %v2320 = vunpack.c.l.s4 1983009808
        %v2321 = vunpack.c.0.s8 %v2320
        %v2322 = vlaneseq
        %v2323 = vshrl.u32 %v2322, 7
        %v2324 = vsub.s32 %v2321, %v2323
        %v2325 = vrot.slane %v2311, %v2324
        %v2326 = vcombine.low %v2293, %v2305
        %v2327 = vcombine.high %v2293, %v2305
        %v2329 = vunpack.c.l.s4 1983009808
        %v2330 = vunpack.c.0.s8 %v2329
        %v2331 = vlaneseq
        %v2332 = vshrl.u32 %v2331, 7
        %v2333 = vsub.s32 %v2330, %v2332
        %v2334 = vrot.slane %v2326, %v2333
        %v2336 = vunpack.c.l.s4 1983009808
        %v2337 = vunpack.c.0.s8 %v2336
        %v2338 = vlaneseq
        %v2339 = vshrl.u32 %v2338, 7
        %v2340 = vsub.s32 %v2337, %v2339
        %v2341 = vrot.slane %v2327, %v2340
        %v2342 = vcombine.low %v2318, %v2334
        %v2343 = vcombine.high %v2318, %v2334
        %v2345 = vunpack.c.l.s4 1934713408
        %v2346 = vunpack.c.0.s8 %v2345
        %v2347 = vlaneseq
        %v2348 = vshrl.u32 %v2347, 7
        %v2349 = vsub.s32 %v2346, %v2348
        %v2350 = vrot.slane %v2342, %v2349
        %v2352 = vunpack.c.l.s4 1934713408
        %v2353 = vunpack.c.0.s8 %v2352
        %v2354 = vlaneseq
        %v2355 = vshrl.u32 %v2354, 7
        %v2356 = vsub.s32 %v2353, %v2355
        %v2357 = vrot.slane %v2343, %v2356
        %v2358 = vcombine.low %v2325, %v2341
        %v2359 = vcombine.high %v2325, %v2341
        %v2361 = vunpack.c.l.s4 1934713408
        %v2362 = vunpack.c.0.s8 %v2361
        %v2363 = vlaneseq
        %v2364 = vshrl.u32 %v2363, 7
        %v2365 = vsub.s32 %v2362, %v2364
        %v2366 = vrot.slane %v2358, %v2365
        %v2368 = vunpack.c.l.s4 1934713408
        %v2369 = vunpack.c.0.s8 %v2368
        %v2370 = vlaneseq
        %v2371 = vshrl.u32 %v2370, 7
        %v2372 = vsub.s32 %v2369, %v2371
        %v2373 = vrot.slane %v2359, %v2372
        %v2374 = vcombine.high %v2350, 0.0
        %v2375 = vcombine.high %v2357, 0.0
        %v2376 = vcombine.high %v2366, 0.0
        %v2377 = vcombine.high %v2373, 0.0
        %v2378 = vcombine.low %v2137, %v2301
        %v2379 = vcombine.high %v2137, %v2301
        %v2381 = vunpack.c.l.s4 1983009808
        %v2382 = vunpack.c.0.s8 %v2381
        %v2383 = vlaneseq
        %v2384 = vshrl.u32 %v2383, 7
        %v2385 = vsub.s32 %v2382, %v2384
        %v2386 = vrot.slane %v2378, %v2385
        %v2388 = vunpack.c.l.s4 1983009808
        %v2389 = vunpack.c.0.s8 %v2388
        %v2390 = vlaneseq
        %v2391 = vshrl.u32 %v2390, 7
        %v2392 = vsub.s32 %v2389, %v2391
        %v2393 = vrot.slane %v2379, %v2392
        %v2394 = vcombine.low %v2295, %v2307
        %v2395 = vcombine.high %v2295, %v2307
        %v2397 = vunpack.c.l.s4 1983009808
        %v2398 = vunpack.c.0.s8 %v2397
        %v2399 = vlaneseq
        %v2400 = vshrl.u32 %v2399, 7
        %v2401 = vsub.s32 %v2398, %v2400
        %v2402 = vrot.slane %v2394, %v2401
        %v2404 = vunpack.c.l.s4 1983009808
        %v2405 = vunpack.c.0.s8 %v2404
        %v2406 = vlaneseq
        %v2407 = vshrl.u32 %v2406, 7
        %v2408 = vsub.s32 %v2405, %v2407
        %v2409 = vrot.slane %v2395, %v2408
        %v2410 = vcombine.low %v2386, %v2402
        %v2411 = vcombine.high %v2386, %v2402
        %v2413 = vunpack.c.l.s4 1934713408
        %v2414 = vunpack.c.0.s8 %v2413
        %v2415 = vlaneseq
        %v2416 = vshrl.u32 %v2415, 7
        %v2417 = vsub.s32 %v2414, %v2416
        %v2418 = vrot.slane %v2410, %v2417
        %v2420 = vunpack.c.l.s4 1934713408
        %v2421 = vunpack.c.0.s8 %v2420
        %v2422 = vlaneseq
        %v2423 = vshrl.u32 %v2422, 7
        %v2424 = vsub.s32 %v2421, %v2423
        %v2425 = vrot.slane %v2411, %v2424
        %v2426 = vcombine.low %v2393, %v2409
        %v2427 = vcombine.high %v2393, %v2409
        %v2429 = vunpack.c.l.s4 1934713408
        %v2430 = vunpack.c.0.s8 %v2429
        %v2431 = vlaneseq
        %v2432 = vshrl.u32 %v2431, 7
        %v2433 = vsub.s32 %v2430, %v2432
        %v2434 = vrot.slane %v2426, %v2433
        %v2436 = vunpack.c.l.s4 1934713408
        %v2437 = vunpack.c.0.s8 %v2436
        %v2438 = vlaneseq
        %v2439 = vshrl.u32 %v2438, 7
        %v2440 = vsub.s32 %v2437, %v2439
        %v2441 = vrot.slane %v2427, %v2440
        %v2442 = vcombine.high %v2418, 0.0
        %v2443 = vcombine.high %v2425, 0.0
        %v2444 = vcombine.high %v2434, 0.0
        %v2445 = vcombine.high %v2441, 0.0
        %v2446 = vcombine.low %v2350, %v2357
        %v2448 = vunpack.c.l.s4 1983009808
        %v2449 = vunpack.c.0.s8 %v2448
        %v2450 = vlaneseq
        %v2451 = vshrl.u32 %v2450, 7
        %v2452 = vsub.s32 %v2449, %v2451
        %v2453 = vrot.slane %v2446, %v2452
        %v2454 = vcombine.low %v2374, %v2375
        %v2456 = vunpack.c.l.s4 1983009808
        %v2457 = vunpack.c.0.s8 %v2456
        %v2458 = vlaneseq
        %v2459 = vshrl.u32 %v2458, 7
        %v2460 = vsub.s32 %v2457, %v2459
        %v2461 = vrot.slane %v2454, %v2460
        %v2462 = vcombine.low %v2366, %v2373
        %v2464 = vunpack.c.l.s4 1983009808
        %v2465 = vunpack.c.0.s8 %v2464
        %v2466 = vlaneseq
        %v2467 = vshrl.u32 %v2466, 7
        %v2468 = vsub.s32 %v2465, %v2467
        %v2469 = vrot.slane %v2462, %v2468
        %v2470 = vcombine.low %v2376, %v2377
        %v2472 = vunpack.c.l.s4 1983009808
        %v2473 = vunpack.c.0.s8 %v2472
        %v2474 = vlaneseq
        %v2475 = vshrl.u32 %v2474, 7
        %v2476 = vsub.s32 %v2473, %v2475
        %v2477 = vrot.slane %v2470, %v2476
        %v2478 = vcombine.low %v2453, %v2461
        %v2479 = vcombine.high %v2453, %v2461
        %v2481 = vunpack.c.l.s4 1934713408
        %v2482 = vunpack.c.0.s8 %v2481
        %v2483 = vlaneseq
        %v2484 = vshrl.u32 %v2483, 7
        %v2485 = vsub.s32 %v2482, %v2484
        %v2486 = vrot.slane %v2478, %v2485
        %v2488 = vunpack.c.l.s4 1934713408
        %v2489 = vunpack.c.0.s8 %v2488
        %v2490 = vlaneseq
        %v2491 = vshrl.u32 %v2490, 7
        %v2492 = vsub.s32 %v2489, %v2491
        %v2493 = vrot.slane %v2479, %v2492
        %v2494 = vcombine.low %v2469, %v2477
        %v2495 = vcombine.high %v2469, %v2477
        %v2497 = vunpack.c.l.s4 1934713408
        %v2498 = vunpack.c.0.s8 %v2497
        %v2499 = vlaneseq
        %v2500 = vshrl.u32 %v2499, 7
        %v2501 = vsub.s32 %v2498, %v2500
        %v2502 = vrot.slane %v2494, %v2501
        %v2504 = vunpack.c.l.s4 1934713408
        %v2505 = vunpack.c.0.s8 %v2504
        %v2506 = vlaneseq
        %v2507 = vshrl.u32 %v2506, 7
        %v2508 = vsub.s32 %v2505, %v2507
        %v2509 = vrot.slane %v2495, %v2508
        %v2510 = vcombine.low %v2486, %v2502
        %v2511 = vcombine.high %v2486, %v2502
        %v2512 = vcombine.low %v2493, %v2509
        %v2513 = vcombine.high %v2493, %v2509
        %v2514 = vcombine.low %v2418, %v2425
        %v2516 = vunpack.c.l.s4 1983009808
        %v2517 = vunpack.c.0.s8 %v2516
        %v2518 = vlaneseq
        %v2519 = vshrl.u32 %v2518, 7
        %v2520 = vsub.s32 %v2517, %v2519
        %v2521 = vrot.slane %v2514, %v2520
        %v2522 = vcombine.low %v2442, %v2443
        %v2524 = vunpack.c.l.s4 1983009808
        %v2525 = vunpack.c.0.s8 %v2524
        %v2526 = vlaneseq
        %v2527 = vshrl.u32 %v2526, 7
        %v2528 = vsub.s32 %v2525, %v2527
        %v2529 = vrot.slane %v2522, %v2528
        %v2530 = vcombine.low %v2434, %v2441
        %v2532 = vunpack.c.l.s4 1983009808
        %v2533 = vunpack.c.0.s8 %v2532
        %v2534 = vlaneseq
        %v2535 = vshrl.u32 %v2534, 7
        %v2536 = vsub.s32 %v2533, %v2535
        %v2537 = vrot.slane %v2530, %v2536
        %v2538 = vcombine.low %v2444, %v2445
        %v2540 = vunpack.c.l.s4 1983009808
        %v2541 = vunpack.c.0.s8 %v2540
        %v2542 = vlaneseq
        %v2543 = vshrl.u32 %v2542, 7
        %v2544 = vsub.s32 %v2541, %v2543
        %v2545 = vrot.slane %v2538, %v2544
        %v2546 = vcombine.low %v2521, %v2529
        %v2547 = vcombine.high %v2521, %v2529
        %v2549 = vunpack.c.l.s4 1934713408
        %v2550 = vunpack.c.0.s8 %v2549
        %v2551 = vlaneseq
        %v2552 = vshrl.u32 %v2551, 7
        %v2553 = vsub.s32 %v2550, %v2552
        %v2554 = vrot.slane %v2546, %v2553
        %v2556 = vunpack.c.l.s4 1934713408
        %v2557 = vunpack.c.0.s8 %v2556
        %v2558 = vlaneseq
        %v2559 = vshrl.u32 %v2558, 7
        %v2560 = vsub.s32 %v2557, %v2559
        %v2561 = vrot.slane %v2547, %v2560
        %v2562 = vcombine.low %v2537, %v2545
        %v2563 = vcombine.high %v2537, %v2545
        %v2565 = vunpack.c.l.s4 1934713408
        %v2566 = vunpack.c.0.s8 %v2565
        %v2567 = vlaneseq
        %v2568 = vshrl.u32 %v2567, 7
        %v2569 = vsub.s32 %v2566, %v2568
        %v2570 = vrot.slane %v2562, %v2569
        %v2572 = vunpack.c.l.s4 1934713408
        %v2573 = vunpack.c.0.s8 %v2572
        %v2574 = vlaneseq
        %v2575 = vshrl.u32 %v2574, 7
        %v2576 = vsub.s32 %v2573, %v2575
        %v2577 = vrot.slane %v2563, %v2576
        %v2578 = vcombine.low %v2554, %v2570
        %v2579 = vcombine.high %v2554, %v2570
        %v2580 = vcombine.low %v2561, %v2577
        %v2581 = vcombine.high %v2561, %v2577
        %2582 = vrot.lane.b32.xlu0 %v2132, 96
        %v2583 = vpop.permute.xlu0 %2582
        %2584 = vrot.lane.b32.xlu0 %v2137, 96
        %v2585 = vpop.permute.xlu0 %2584
        %2586 = vrot.lane.b32.xlu0 %v2293, 96
        %v2587 = vpop.permute.xlu0 %2586
        %2588 = vrot.lane.b32.xlu0 %v2295, 96
        %v2589 = vpop.permute.xlu0 %2588
        %2590 = vrot.lane.b32.xlu0 %v2299, 96
        %v2591 = vpop.permute.xlu0 %2590
        %2592 = vrot.lane.b32.xlu0 %v2301, 96
        %v2593 = vpop.permute.xlu0 %2592
        %2594 = vrot.lane.b32.xlu0 %v2305, 96
        %v2595 = vpop.permute.xlu0 %2594
        %2596 = vrot.lane.b32.xlu0 %v2307, 96
        %v2597 = vpop.permute.xlu0 %2596
        %v2606 = vcombine.low %v2583, %v2591
        %v2607 = vcombine.high %v2583, %v2591
        %v2609 = vunpack.c.l.s4 1983009808
        %v2610 = vunpack.c.0.s8 %v2609
        %v2611 = vlaneseq
        %v2612 = vshrl.u32 %v2611, 7
        %v2613 = vsub.s32 %v2610, %v2612
        %v2614 = vrot.slane %v2606, %v2613
        %v2616 = vunpack.c.l.s4 1983009808
        %v2617 = vunpack.c.0.s8 %v2616
        %v2618 = vlaneseq
        %v2619 = vshrl.u32 %v2618, 7
        %v2620 = vsub.s32 %v2617, %v2619
        %v2621 = vrot.slane %v2607, %v2620
        %v2622 = vcombine.low %v2587, %v2595
        %v2623 = vcombine.high %v2587, %v2595
        %v2625 = vunpack.c.l.s4 1983009808
        %v2626 = vunpack.c.0.s8 %v2625
        %v2627 = vlaneseq
        %v2628 = vshrl.u32 %v2627, 7
        %v2629 = vsub.s32 %v2626, %v2628
        %v2630 = vrot.slane %v2622, %v2629
        %v2632 = vunpack.c.l.s4 1983009808
        %v2633 = vunpack.c.0.s8 %v2632
        %v2634 = vlaneseq
        %v2635 = vshrl.u32 %v2634, 7
        %v2636 = vsub.s32 %v2633, %v2635
        %v2637 = vrot.slane %v2623, %v2636
        %v2638 = vcombine.low %v2614, %v2630
        %v2639 = vcombine.high %v2614, %v2630
        %v2641 = vunpack.c.l.s4 1934713408
        %v2642 = vunpack.c.0.s8 %v2641
        %v2643 = vlaneseq
        %v2644 = vshrl.u32 %v2643, 7
        %v2645 = vsub.s32 %v2642, %v2644
        %v2646 = vrot.slane %v2638, %v2645
        %v2648 = vunpack.c.l.s4 1934713408
        %v2649 = vunpack.c.0.s8 %v2648
        %v2650 = vlaneseq
        %v2651 = vshrl.u32 %v2650, 7
        %v2652 = vsub.s32 %v2649, %v2651
        %v2653 = vrot.slane %v2639, %v2652
        %v2654 = vcombine.low %v2621, %v2637
        %v2655 = vcombine.high %v2621, %v2637
        %v2657 = vunpack.c.l.s4 1934713408
        %v2658 = vunpack.c.0.s8 %v2657
        %v2659 = vlaneseq
        %v2660 = vshrl.u32 %v2659, 7
        %v2661 = vsub.s32 %v2658, %v2660
        %v2662 = vrot.slane %v2654, %v2661
        %v2664 = vunpack.c.l.s4 1934713408
        %v2665 = vunpack.c.0.s8 %v2664
        %v2666 = vlaneseq
        %v2667 = vshrl.u32 %v2666, 7
        %v2668 = vsub.s32 %v2665, %v2667
        %v2669 = vrot.slane %v2655, %v2668
        %v2670 = vcombine.high %v2646, 0.0
        %v2671 = vcombine.high %v2653, 0.0
        %v2672 = vcombine.high %v2662, 0.0
        %v2673 = vcombine.high %v2669, 0.0
        %v2674 = vcombine.low %v2585, %v2593
        %v2675 = vcombine.high %v2585, %v2593
        %v2677 = vunpack.c.l.s4 1983009808
        %v2678 = vunpack.c.0.s8 %v2677
        %v2679 = vlaneseq
        %v2680 = vshrl.u32 %v2679, 7
        %v2681 = vsub.s32 %v2678, %v2680
        %v2682 = vrot.slane %v2674, %v2681
        %v2684 = vunpack.c.l.s4 1983009808
        %v2685 = vunpack.c.0.s8 %v2684
        %v2686 = vlaneseq
        %v2687 = vshrl.u32 %v2686, 7
        %v2688 = vsub.s32 %v2685, %v2687
        %v2689 = vrot.slane %v2675, %v2688
        %v2690 = vcombine.low %v2589, %v2597
        %v2691 = vcombine.high %v2589, %v2597
        %v2693 = vunpack.c.l.s4 1983009808
        %v2694 = vunpack.c.0.s8 %v2693
        %v2695 = vlaneseq
        %v2696 = vshrl.u32 %v2695, 7
        %v2697 = vsub.s32 %v2694, %v2696
        %v2698 = vrot.slane %v2690, %v2697
        %v2700 = vunpack.c.l.s4 1983009808
        %v2701 = vunpack.c.0.s8 %v2700
        %v2702 = vlaneseq
        %v2703 = vshrl.u32 %v2702, 7
        %v2704 = vsub.s32 %v2701, %v2703
        %v2705 = vrot.slane %v2691, %v2704
        %v2706 = vcombine.low %v2682, %v2698
        %v2707 = vcombine.high %v2682, %v2698
        %v2709 = vunpack.c.l.s4 1934713408
        %v2710 = vunpack.c.0.s8 %v2709
        %v2711 = vlaneseq
        %v2712 = vshrl.u32 %v2711, 7
        %v2713 = vsub.s32 %v2710, %v2712
        %v2714 = vrot.slane %v2706, %v2713
        %v2716 = vunpack.c.l.s4 1934713408
        %v2717 = vunpack.c.0.s8 %v2716
        %v2718 = vlaneseq
        %v2719 = vshrl.u32 %v2718, 7
        %v2720 = vsub.s32 %v2717, %v2719
        %v2721 = vrot.slane %v2707, %v2720
        %v2722 = vcombine.low %v2689, %v2705
        %v2723 = vcombine.high %v2689, %v2705
        %v2725 = vunpack.c.l.s4 1934713408
        %v2726 = vunpack.c.0.s8 %v2725
        %v2727 = vlaneseq
        %v2728 = vshrl.u32 %v2727, 7
        %v2729 = vsub.s32 %v2726, %v2728
        %v2730 = vrot.slane %v2722, %v2729
        %v2732 = vunpack.c.l.s4 1934713408
        %v2733 = vunpack.c.0.s8 %v2732
        %v2734 = vlaneseq
        %v2735 = vshrl.u32 %v2734, 7
        %v2736 = vsub.s32 %v2733, %v2735
        %v2737 = vrot.slane %v2723, %v2736
        %v2738 = vcombine.high %v2714, 0.0
        %v2739 = vcombine.high %v2721, 0.0
        %v2740 = vcombine.high %v2730, 0.0
        %v2741 = vcombine.high %v2737, 0.0
        %v2742 = vcombine.low %v2646, %v2653
        %v2744 = vunpack.c.l.s4 1983009808
        %v2745 = vunpack.c.0.s8 %v2744
        %v2746 = vlaneseq
        %v2747 = vshrl.u32 %v2746, 7
        %v2748 = vsub.s32 %v2745, %v2747
        %v2749 = vrot.slane %v2742, %v2748
        %v2750 = vcombine.low %v2670, %v2671
        %v2752 = vunpack.c.l.s4 1983009808
        %v2753 = vunpack.c.0.s8 %v2752
        %v2754 = vlaneseq
        %v2755 = vshrl.u32 %v2754, 7
        %v2756 = vsub.s32 %v2753, %v2755
        %v2757 = vrot.slane %v2750, %v2756
        %v2758 = vcombine.low %v2662, %v2669
        %v2760 = vunpack.c.l.s4 1983009808
        %v2761 = vunpack.c.0.s8 %v2760
        %v2762 = vlaneseq
        %v2763 = vshrl.u32 %v2762, 7
        %v2764 = vsub.s32 %v2761, %v2763
        %v2765 = vrot.slane %v2758, %v2764
        %v2766 = vcombine.low %v2672, %v2673
        %v2768 = vunpack.c.l.s4 1983009808
        %v2769 = vunpack.c.0.s8 %v2768
        %v2770 = vlaneseq
        %v2771 = vshrl.u32 %v2770, 7
        %v2772 = vsub.s32 %v2769, %v2771
        %v2773 = vrot.slane %v2766, %v2772
        %v2774 = vcombine.low %v2749, %v2757
        %v2775 = vcombine.high %v2749, %v2757
        %v2777 = vunpack.c.l.s4 1934713408
        %v2778 = vunpack.c.0.s8 %v2777
        %v2779 = vlaneseq
        %v2780 = vshrl.u32 %v2779, 7
        %v2781 = vsub.s32 %v2778, %v2780
        %v2782 = vrot.slane %v2774, %v2781
        %v2784 = vunpack.c.l.s4 1934713408
        %v2785 = vunpack.c.0.s8 %v2784
        %v2786 = vlaneseq
        %v2787 = vshrl.u32 %v2786, 7
        %v2788 = vsub.s32 %v2785, %v2787
        %v2789 = vrot.slane %v2775, %v2788
        %v2790 = vcombine.low %v2765, %v2773
        %v2791 = vcombine.high %v2765, %v2773
        %v2793 = vunpack.c.l.s4 1934713408
        %v2794 = vunpack.c.0.s8 %v2793
        %v2795 = vlaneseq
        %v2796 = vshrl.u32 %v2795, 7
        %v2797 = vsub.s32 %v2794, %v2796
        %v2798 = vrot.slane %v2790, %v2797
        %v2800 = vunpack.c.l.s4 1934713408
        %v2801 = vunpack.c.0.s8 %v2800
        %v2802 = vlaneseq
        %v2803 = vshrl.u32 %v2802, 7
        %v2804 = vsub.s32 %v2801, %v2803
        %v2805 = vrot.slane %v2791, %v2804
        %v2806 = vcombine.low %v2782, %v2798
        %v2807 = vcombine.high %v2782, %v2798
        %v2808 = vcombine.low %v2789, %v2805
        %v2809 = vcombine.high %v2789, %v2805
        %v2810 = vcombine.low %v2714, %v2721
        %v2812 = vunpack.c.l.s4 1983009808
        %v2813 = vunpack.c.0.s8 %v2812
        %v2814 = vlaneseq
        %v2815 = vshrl.u32 %v2814, 7
        %v2816 = vsub.s32 %v2813, %v2815
        %v2817 = vrot.slane %v2810, %v2816
        %v2818 = vcombine.low %v2738, %v2739
        %v2820 = vunpack.c.l.s4 1983009808
        %v2821 = vunpack.c.0.s8 %v2820
        %v2822 = vlaneseq
        %v2823 = vshrl.u32 %v2822, 7
        %v2824 = vsub.s32 %v2821, %v2823
        %v2825 = vrot.slane %v2818, %v2824
        %v2826 = vcombine.low %v2730, %v2737
        %v2828 = vunpack.c.l.s4 1983009808
        %v2829 = vunpack.c.0.s8 %v2828
        %v2830 = vlaneseq
        %v2831 = vshrl.u32 %v2830, 7
        %v2832 = vsub.s32 %v2829, %v2831
        %v2833 = vrot.slane %v2826, %v2832
        %v2834 = vcombine.low %v2740, %v2741
        %v2836 = vunpack.c.l.s4 1983009808
        %v2837 = vunpack.c.0.s8 %v2836
        %v2838 = vlaneseq
        %v2839 = vshrl.u32 %v2838, 7
        %v2840 = vsub.s32 %v2837, %v2839
        %v2841 = vrot.slane %v2834, %v2840
        %v2842 = vcombine.low %v2817, %v2825
        %v2843 = vcombine.high %v2817, %v2825
        %v2845 = vunpack.c.l.s4 1934713408
        %v2846 = vunpack.c.0.s8 %v2845
        %v2847 = vlaneseq
        %v2848 = vshrl.u32 %v2847, 7
        %v2849 = vsub.s32 %v2846, %v2848
        %v2850 = vrot.slane %v2842, %v2849
        %v2852 = vunpack.c.l.s4 1934713408
        %v2853 = vunpack.c.0.s8 %v2852
        %v2854 = vlaneseq
        %v2855 = vshrl.u32 %v2854, 7
        %v2856 = vsub.s32 %v2853, %v2855
        %v2857 = vrot.slane %v2843, %v2856
        %v2858 = vcombine.low %v2833, %v2841
        %v2859 = vcombine.high %v2833, %v2841
        %v2861 = vunpack.c.l.s4 1934713408
        %v2862 = vunpack.c.0.s8 %v2861
        %v2863 = vlaneseq
        %v2864 = vshrl.u32 %v2863, 7
        %v2865 = vsub.s32 %v2862, %v2864
        %v2866 = vrot.slane %v2858, %v2865
        %v2868 = vunpack.c.l.s4 1934713408
        %v2869 = vunpack.c.0.s8 %v2868
        %v2870 = vlaneseq
        %v2871 = vshrl.u32 %v2870, 7
        %v2872 = vsub.s32 %v2869, %v2871
        %v2873 = vrot.slane %v2859, %v2872
        %v2874 = vcombine.low %v2850, %v2866
        %v2875 = vcombine.high %v2850, %v2866
        %v2876 = vcombine.low %v2857, %v2873
        %v2877 = vcombine.high %v2857, %v2873
        %v2879 = vsel %vm1060, %v2286, 0
        %v2882 = vsel %vm1060, %v2510, 0
        %v2885 = vsel %vm1060, %v2578, 0
        %2887 = vmatprep.subr.mxu0 0.0
        %2888 = vmatpush1.xpose.msra.mxu0 0.0
        %2889 = vmatprep.subr.mxu0 0.0
        %2890 = vmatpush1.xpose.msra.mxu0 0.0
        %2891 = vmatprep.subr.mxu0 0.0
        %2892 = vmatpush1.xpose.msra.mxu0 0.0
        %2893 = vmatprep.subr.mxu0 0.0
        %2894 = vmatpush1.xpose.msra.mxu0 0.0
        %2895 = vmatprep.subr.mxu0 0.0
        %2896 = vmatpush1.xpose.msra.mxu0 0.0
        %2897 = vmatprep.subr.mxu0 0.0
        %2898 = vmatpush1.xpose.msra.mxu0 0.0
        %2899 = vmatprep.subr.mxu0 0.0
        %2900 = vmatpush1.xpose.msra.mxu0 0.0
        %2901 = vmatprep.subr.mxu0 0.0
        %2902 = vmatpush1.xpose.msra.mxu0 0.0
        %2903 = vmatprep.subr.mxu0 0.0
        %2904 = vmatpush1.xpose.msra.mxu0 0.0
        %2905 = vmatprep.subr.mxu0 0.0
        %2906 = vmatpush1.xpose.msra.mxu0 0.0
        %2907 = vmatprep.subr.mxu0 0.0
        %2908 = vmatpush1.xpose.msra.mxu0 0.0
        %2909 = vmatprep.subr.mxu0 0.0
        %2910 = vmatpush1.xpose.msra.mxu0 0.0
        %2911 = vmatprep.subr.mxu0 0.0
        %2912 = vmatpush1.xpose.msra.mxu0 0.0
        %2913 = vmatprep.subr.mxu0 0.0
        %2914 = vmatpush1.xpose.msra.mxu0 0.0
        %2915 = vmatprep.subr.mxu0 0.0
        %2916 = vmatpush1.xpose.msra.mxu0 %v2885
        %2917 = vmatprep.subr.mxu0 0.0
        %2918 = vmatpush1.xpose.msra.mxu0 %v2882
        %2919 = vmatprep.subr.mxu0 0.0
        %2920 = vmatpush2.xpose.msra.mxu0 0.0
        %2921 = vmatprep.subr.mxu0 0.0
        %2922 = vmatpush2.xpose.msra.mxu0 0.0
        %2923 = vmatprep.subr.mxu0 0.0
        %2924 = vmatpush2.xpose.msra.mxu0 0.0
        %2925 = vmatprep.subr.mxu0 0.0
        %2926 = vmatpush2.xpose.msra.mxu0 0.0
        %2927 = vmatprep.subr.mxu0 0.0
        %2928 = vmatpush2.xpose.msra.mxu0 0.0
        %2929 = vmatprep.subr.mxu0 0.0
        %2930 = vmatpush2.xpose.msra.mxu0 0.0
        %2931 = vmatprep.subr.mxu0 0.0
        %2932 = vmatpush2.xpose.msra.mxu0 0.0
        %2933 = vmatprep.subr.mxu0 0.0
        %2934 = vmatpush2.xpose.msra.mxu0 0.0
        %2935 = vmatprep.subr.mxu0 0.0
        %2936 = vmatpush2.xpose.msra.mxu0 0.0
        %2937 = vmatprep.subr.mxu0 0.0
        %2938 = vmatpush2.xpose.msra.mxu0 0.0
        %2939 = vmatprep.subr.mxu0 0.0
        %2940 = vmatpush2.xpose.msra.mxu0 0.0
        %2941 = vmatprep.subr.mxu0 0.0
        %2942 = vmatpush2.xpose.msra.mxu0 0.0
        %2943 = vmatprep.subr.mxu0 0.0
        %2944 = vmatpush2.xpose.msra.mxu0 0.0
        %2945 = vmatprep.subr.mxu0 0.0
        %2946 = vmatpush2.xpose.msra.mxu0 0.0
        %2947 = vmatprep.subr.mxu0 0.0
        %2948 = vmatpush2.xpose.msra.mxu0 0.0
        %2949 = vmatprep.subr.mxu0 0.0
        %2950 = vmatpush2.xpose.msra.mxu0 0.0
        %2951 = vmatprep.mubr.f32.mxu0 0.0
        %2952 = vmatmul.mubr.f32.gmra.mxu0 %v2879
        %v2953 = vpop.f32.mrf.mxu0
        %v2954 = vadd.f32 0.0, %v2953
        %v2955 = vpop.f32.mrf.mxu0
        %2956 = vdwg.mxu0
        %v2958 = vsel %vm1060, %v2287, 0
        %v2961 = vsel %vm1060, %v2511, 0
        %v2964 = vsel %vm1060, %v2579, 0
        %2966 = vmatprep.subr.mxu0 0.0
        %2967 = vmatpush1.xpose.msra.mxu0 0.0
        %2968 = vmatprep.subr.mxu0 0.0
        %2969 = vmatpush1.xpose.msra.mxu0 0.0
        %2970 = vmatprep.subr.mxu0 0.0
        %2971 = vmatpush1.xpose.msra.mxu0 0.0
        %2972 = vmatprep.subr.mxu0 0.0
        %2973 = vmatpush1.xpose.msra.mxu0 0.0
        %2974 = vmatprep.subr.mxu0 0.0
        %2975 = vmatpush1.xpose.msra.mxu0 0.0
        %2976 = vmatprep.subr.mxu0 0.0
        %2977 = vmatpush1.xpose.msra.mxu0 0.0
        %2978 = vmatprep.subr.mxu0 0.0
        %2979 = vmatpush1.xpose.msra.mxu0 0.0
        %2980 = vmatprep.subr.mxu0 0.0
        %2981 = vmatpush1.xpose.msra.mxu0 0.0
        %2982 = vmatprep.subr.mxu0 0.0
        %2983 = vmatpush1.xpose.msra.mxu0 0.0
        %2984 = vmatprep.subr.mxu0 0.0
        %2985 = vmatpush1.xpose.msra.mxu0 0.0
        %2986 = vmatprep.subr.mxu0 0.0
        %2987 = vmatpush1.xpose.msra.mxu0 0.0
        %2988 = vmatprep.subr.mxu0 0.0
        %2989 = vmatpush1.xpose.msra.mxu0 0.0
        %2990 = vmatprep.subr.mxu0 0.0
        %2991 = vmatpush1.xpose.msra.mxu0 0.0
        %2992 = vmatprep.subr.mxu0 0.0
        %2993 = vmatpush1.xpose.msra.mxu0 0.0
        %2994 = vmatprep.subr.mxu0 0.0
        %2995 = vmatpush1.xpose.msra.mxu0 %v2964
        %2996 = vmatprep.subr.mxu0 0.0
        %2997 = vmatpush1.xpose.msra.mxu0 %v2961
        %2998 = vmatprep.subr.mxu0 0.0
        %2999 = vmatpush2.xpose.msra.mxu0 0.0
        %3000 = vmatprep.subr.mxu0 0.0
        %3001 = vmatpush2.xpose.msra.mxu0 0.0
        %3002 = vmatprep.subr.mxu0 0.0
        %3003 = vmatpush2.xpose.msra.mxu0 0.0
        %3004 = vmatprep.subr.mxu0 0.0
        %3005 = vmatpush2.xpose.msra.mxu0 0.0
        %3006 = vmatprep.subr.mxu0 0.0
        %3007 = vmatpush2.xpose.msra.mxu0 0.0
        %3008 = vmatprep.subr.mxu0 0.0
        %3009 = vmatpush2.xpose.msra.mxu0 0.0
        %3010 = vmatprep.subr.mxu0 0.0
        %3011 = vmatpush2.xpose.msra.mxu0 0.0
        %3012 = vmatprep.subr.mxu0 0.0
        %3013 = vmatpush2.xpose.msra.mxu0 0.0
        %3014 = vmatprep.subr.mxu0 0.0
        %3015 = vmatpush2.xpose.msra.mxu0 0.0
        %3016 = vmatprep.subr.mxu0 0.0
        %3017 = vmatpush2.xpose.msra.mxu0 0.0
        %3018 = vmatprep.subr.mxu0 0.0
        %3019 = vmatpush2.xpose.msra.mxu0 0.0
        %3020 = vmatprep.subr.mxu0 0.0
        %3021 = vmatpush2.xpose.msra.mxu0 0.0
        %3022 = vmatprep.subr.mxu0 0.0
        %3023 = vmatpush2.xpose.msra.mxu0 0.0
        %3024 = vmatprep.subr.mxu0 0.0
        %3025 = vmatpush2.xpose.msra.mxu0 0.0
        %3026 = vmatprep.subr.mxu0 0.0
        %3027 = vmatpush2.xpose.msra.mxu0 0.0
        %3028 = vmatprep.subr.mxu0 0.0
        %3029 = vmatpush2.xpose.msra.mxu0 0.0
        %3030 = vmatprep.mubr.f32.mxu0 0.0
        %3031 = vmatmul.mubr.f32.gmra.mxu0 %v2958
        %v3032 = vpop.f32.mrf.mxu0
        %v3033 = vadd.f32 0.0, %v3032
        %v3034 = vpop.f32.mrf.mxu0
        %3035 = vdwg.mxu0
        %v3037 = vsel %vm1060, %v2288, 0
        %v3040 = vsel %vm1060, %v2512, 0
        %v3043 = vsel %vm1060, %v2580, 0
        %3045 = vmatprep.subr.mxu0 0.0
        %3046 = vmatpush1.xpose.msra.mxu0 0.0
        %3047 = vmatprep.subr.mxu0 0.0
        %3048 = vmatpush1.xpose.msra.mxu0 0.0
        %3049 = vmatprep.subr.mxu0 0.0
        %3050 = vmatpush1.xpose.msra.mxu0 0.0
        %3051 = vmatprep.subr.mxu0 0.0
        %3052 = vmatpush1.xpose.msra.mxu0 0.0
        %3053 = vmatprep.subr.mxu0 0.0
        %3054 = vmatpush1.xpose.msra.mxu0 0.0
        %3055 = vmatprep.subr.mxu0 0.0
        %3056 = vmatpush1.xpose.msra.mxu0 0.0
        %3057 = vmatprep.subr.mxu0 0.0
        %3058 = vmatpush1.xpose.msra.mxu0 0.0
        %3059 = vmatprep.subr.mxu0 0.0
        %3060 = vmatpush1.xpose.msra.mxu0 0.0
        %3061 = vmatprep.subr.mxu0 0.0
        %3062 = vmatpush1.xpose.msra.mxu0 0.0
        %3063 = vmatprep.subr.mxu0 0.0
        %3064 = vmatpush1.xpose.msra.mxu0 0.0
        %3065 = vmatprep.subr.mxu0 0.0
        %3066 = vmatpush1.xpose.msra.mxu0 0.0
        %3067 = vmatprep.subr.mxu0 0.0
        %3068 = vmatpush1.xpose.msra.mxu0 0.0
        %3069 = vmatprep.subr.mxu0 0.0
        %3070 = vmatpush1.xpose.msra.mxu0 0.0
        %3071 = vmatprep.subr.mxu0 0.0
        %3072 = vmatpush1.xpose.msra.mxu0 0.0
        %3073 = vmatprep.subr.mxu0 0.0
        %3074 = vmatpush1.xpose.msra.mxu0 %v3043
        %3075 = vmatprep.subr.mxu0 0.0
        %3076 = vmatpush1.xpose.msra.mxu0 %v3040
        %3077 = vmatprep.subr.mxu0 0.0
        %3078 = vmatpush2.xpose.msra.mxu0 0.0
        %3079 = vmatprep.subr.mxu0 0.0
        %3080 = vmatpush2.xpose.msra.mxu0 0.0
        %3081 = vmatprep.subr.mxu0 0.0
        %3082 = vmatpush2.xpose.msra.mxu0 0.0
        %3083 = vmatprep.subr.mxu0 0.0
        %3084 = vmatpush2.xpose.msra.mxu0 0.0
        %3085 = vmatprep.subr.mxu0 0.0
        %3086 = vmatpush2.xpose.msra.mxu0 0.0
        %3087 = vmatprep.subr.mxu0 0.0
        %3088 = vmatpush2.xpose.msra.mxu0 0.0
        %3089 = vmatprep.subr.mxu0 0.0
        %3090 = vmatpush2.xpose.msra.mxu0 0.0
        %3091 = vmatprep.subr.mxu0 0.0
        %3092 = vmatpush2.xpose.msra.mxu0 0.0
        %3093 = vmatprep.subr.mxu0 0.0
        %3094 = vmatpush2.xpose.msra.mxu0 0.0
        %3095 = vmatprep.subr.mxu0 0.0
        %3096 = vmatpush2.xpose.msra.mxu0 0.0
        %3097 = vmatprep.subr.mxu0 0.0
        %3098 = vmatpush2.xpose.msra.mxu0 0.0
        %3099 = vmatprep.subr.mxu0 0.0
        %3100 = vmatpush2.xpose.msra.mxu0 0.0
        %3101 = vmatprep.subr.mxu0 0.0
        %3102 = vmatpush2.xpose.msra.mxu0 0.0
        %3103 = vmatprep.subr.mxu0 0.0
        %3104 = vmatpush2.xpose.msra.mxu0 0.0
        %3105 = vmatprep.subr.mxu0 0.0
        %3106 = vmatpush2.xpose.msra.mxu0 0.0
        %3107 = vmatprep.subr.mxu0 0.0
        %3108 = vmatpush2.xpose.msra.mxu0 0.0
        %3109 = vmatprep.mubr.f32.mxu0 0.0
        %3110 = vmatmul.mubr.f32.gmra.mxu0 %v3037
        %v3111 = vpop.f32.mrf.mxu0
        %v3112 = vadd.f32 0.0, %v3111
        %v3113 = vpop.f32.mrf.mxu0
        %3114 = vdwg.mxu0
        %v3116 = vsel %vm1060, %v2289, 0
        %v3119 = vsel %vm1060, %v2513, 0
        %v3122 = vsel %vm1060, %v2581, 0
        %3124 = vmatprep.subr.mxu0 0.0
        %3125 = vmatpush1.xpose.msra.mxu0 0.0
        %3126 = vmatprep.subr.mxu0 0.0
        %3127 = vmatpush1.xpose.msra.mxu0 0.0
        %3128 = vmatprep.subr.mxu0 0.0
        %3129 = vmatpush1.xpose.msra.mxu0 0.0
        %3130 = vmatprep.subr.mxu0 0.0
        %3131 = vmatpush1.xpose.msra.mxu0 0.0
        %3132 = vmatprep.subr.mxu0 0.0
        %3133 = vmatpush1.xpose.msra.mxu0 0.0
        %3134 = vmatprep.subr.mxu0 0.0
        %3135 = vmatpush1.xpose.msra.mxu0 0.0
        %3136 = vmatprep.subr.mxu0 0.0
        %3137 = vmatpush1.xpose.msra.mxu0 0.0
        %3138 = vmatprep.subr.mxu0 0.0
        %3139 = vmatpush1.xpose.msra.mxu0 0.0
        %3140 = vmatprep.subr.mxu0 0.0
        %3141 = vmatpush1.xpose.msra.mxu0 0.0
        %3142 = vmatprep.subr.mxu0 0.0
        %3143 = vmatpush1.xpose.msra.mxu0 0.0
        %3144 = vmatprep.subr.mxu0 0.0
        %3145 = vmatpush1.xpose.msra.mxu0 0.0
        %3146 = vmatprep.subr.mxu0 0.0
        %3147 = vmatpush1.xpose.msra.mxu0 0.0
        %3148 = vmatprep.subr.mxu0 0.0
        %3149 = vmatpush1.xpose.msra.mxu0 0.0
        %3150 = vmatprep.subr.mxu0 0.0
        %3151 = vmatpush1.xpose.msra.mxu0 0.0
        %3152 = vmatprep.subr.mxu0 0.0
        %3153 = vmatpush1.xpose.msra.mxu0 %v3122
        %3154 = vmatprep.subr.mxu0 0.0
        %3155 = vmatpush1.xpose.msra.mxu0 %v3119
        %3156 = vmatprep.subr.mxu0 0.0
        %3157 = vmatpush2.xpose.msra.mxu0 0.0
        %3158 = vmatprep.subr.mxu0 0.0
        %3159 = vmatpush2.xpose.msra.mxu0 0.0
        %3160 = vmatprep.subr.mxu0 0.0
        %3161 = vmatpush2.xpose.msra.mxu0 0.0
        %3162 = vmatprep.subr.mxu0 0.0
        %3163 = vmatpush2.xpose.msra.mxu0 0.0
        %3164 = vmatprep.subr.mxu0 0.0
        %3165 = vmatpush2.xpose.msra.mxu0 0.0
        %3166 = vmatprep.subr.mxu0 0.0
        %3167 = vmatpush2.xpose.msra.mxu0 0.0
        %3168 = vmatprep.subr.mxu0 0.0
        %3169 = vmatpush2.xpose.msra.mxu0 0.0
        %3170 = vmatprep.subr.mxu0 0.0
        %3171 = vmatpush2.xpose.msra.mxu0 0.0
        %3172 = vmatprep.subr.mxu0 0.0
        %3173 = vmatpush2.xpose.msra.mxu0 0.0
        %3174 = vmatprep.subr.mxu0 0.0
        %3175 = vmatpush2.xpose.msra.mxu0 0.0
        %3176 = vmatprep.subr.mxu0 0.0
        %3177 = vmatpush2.xpose.msra.mxu0 0.0
        %3178 = vmatprep.subr.mxu0 0.0
        %3179 = vmatpush2.xpose.msra.mxu0 0.0
        %3180 = vmatprep.subr.mxu0 0.0
        %3181 = vmatpush2.xpose.msra.mxu0 0.0
        %3182 = vmatprep.subr.mxu0 0.0
        %3183 = vmatpush2.xpose.msra.mxu0 0.0
        %3184 = vmatprep.subr.mxu0 0.0
        %3185 = vmatpush2.xpose.msra.mxu0 0.0
        %3186 = vmatprep.subr.mxu0 0.0
        %3187 = vmatpush2.xpose.msra.mxu0 0.0
        %3188 = vmatprep.mubr.f32.mxu0 0.0
        %3189 = vmatmul.mubr.f32.gmra.mxu0 %v3116
        %v3190 = vpop.f32.mrf.mxu0
        %v3191 = vadd.f32 0.0, %v3190
        %v3192 = vpop.f32.mrf.mxu0
        %3193 = vdwg.mxu0
        %v3194 = vmul.f32 %v2954, 0.35355338
        %v3195 = vmul.f32 %v3033, 0.35355338
        %v3196 = vmul.f32 %v3112, 0.35355338
        %v3197 = vmul.f32 %v3191, 0.35355338
        %v3198 = vadd.f32 %v3194, %v498
        %v3199 = vadd.f32 %v3195, %v498
        %v3200 = vadd.f32 %v3196, %v498
        %v3201 = vadd.f32 %v3197, %v498
        %v3202 = vsel %vm1858, %v3198, -inf
        %3203 = vmax.xlane.f32.xlu0 %v3202
        %v3204 = vpop.xlane.xlu0 %3203
        %v3205 = vsel %vm1858, %v3199, -inf
        %3206 = vmax.xlane.f32.xlu0 %v3205
        %v3207 = vpop.xlane.xlu0 %3206
        %v3208 = vsel %vm1858, %v3200, -inf
        %3209 = vmax.xlane.f32.xlu0 %v3208
        %v3210 = vpop.xlane.xlu0 %3209
        %v3211 = vsel %vm1858, %v3201, -inf
        %3212 = vmax.xlane.f32.xlu0 %v3211
        %v3213 = vpop.xlane.xlu0 %3212
        %v3214 = vsub.f32 %v3198, %v3204
        %v3215 = vsub.f32 %v3199, %v3207
        %v3216 = vsub.f32 %v3200, %v3210
        %v3217 = vsub.f32 %v3201, %v3213
        %v3218 = vmul.f32 %v3214, 1.442695
        %v3219 = vpow.pop %v3218
        %v3220 = vmul.f32 %v3215, 1.442695
        %v3221 = vpow.pop %v3220
        %v3222 = vmul.f32 %v3216, 1.442695
        %v3223 = vpow.pop %v3222
        %v3224 = vmul.f32 %v3217, 1.442695
        %v3225 = vpow.pop %v3224
        %v3226 = vsel %vm1858, %v3219, 0.0
        %3227 = vadd.xlane.f32.xlu0 %v3226
        %v3228 = vpop.xlane.xlu0 %3227
        %v3229 = vsel %vm1858, %v3221, 0.0
        %3230 = vadd.xlane.f32.xlu0 %v3229
        %v3231 = vpop.xlane.xlu0 %3230
        %v3232 = vsel %vm1858, %v3223, 0.0
        %3233 = vadd.xlane.f32.xlu0 %v3232
        %v3234 = vpop.xlane.xlu0 %3233
        %v3235 = vsel %vm1858, %v3225, 0.0
        %3236 = vadd.xlane.f32.xlu0 %v3235
        %v3237 = vpop.xlane.xlu0 %3236
        %v3238 = vrcp.pop %v3228
        %v3239 = vmul.f32 %v3219, %v3238
        %v3240 = vrcp.pop %v3231
        %v3241 = vmul.f32 %v3221, %v3240
        %v3242 = vrcp.pop %v3234
        %v3243 = vmul.f32 %v3223, %v3242
        %v3244 = vrcp.pop %v3237
        %v3245 = vmul.f32 %v3225, %v3244
        %v3247 = vsel %vm1858, %v3239, 0
        %3249 = vmatprep.subr.mxu0 0.0
        %3250 = vmatpush1.msra.mxu0 0.0
        %3251 = vmatprep.subr.mxu0 0.0
        %3252 = vmatpush1.msra.mxu0 0.0
        %3253 = vmatprep.subr.mxu0 0.0
        %3254 = vmatpush1.msra.mxu0 0.0
        %3255 = vmatprep.subr.mxu0 0.0
        %3256 = vmatpush1.msra.mxu0 0.0
        %3257 = vmatprep.subr.mxu0 0.0
        %3258 = vmatpush1.msra.mxu0 0.0
        %3259 = vmatprep.subr.mxu0 0.0
        %3260 = vmatpush1.msra.mxu0 0.0
        %3261 = vmatprep.subr.mxu0 0.0
        %3262 = vmatpush1.msra.mxu0 0.0
        %3263 = vmatprep.subr.mxu0 0.0
        %3264 = vmatpush1.msra.mxu0 0.0
        %3265 = vmatprep.subr.mxu0 0.0
        %3266 = vmatpush1.msra.mxu0 0.0
        %3267 = vmatprep.subr.mxu0 0.0
        %3268 = vmatpush1.msra.mxu0 0.0
        %3269 = vmatprep.subr.mxu0 0.0
        %3270 = vmatpush1.msra.mxu0 0.0
        %3271 = vmatprep.subr.mxu0 0.0
        %3272 = vmatpush1.msra.mxu0 0.0
        %3273 = vmatprep.subr.mxu0 0.0
        %3274 = vmatpush1.msra.mxu0 0.0
        %3275 = vmatprep.subr.mxu0 0.0
        %3276 = vmatpush1.msra.mxu0 0.0
        %3277 = vmatprep.subr.mxu0 0.0
        %3278 = vmatpush1.msra.mxu0 %v2874
        %3279 = vmatprep.subr.mxu0 0.0
        %3280 = vmatpush1.msra.mxu0 %v2806
        %3281 = vmatprep.subr.mxu0 0.0
        %3282 = vmatpush2.msra.mxu0 0.0
        %3283 = vmatprep.subr.mxu0 0.0
        %3284 = vmatpush2.msra.mxu0 0.0
        %3285 = vmatprep.subr.mxu0 0.0
        %3286 = vmatpush2.msra.mxu0 0.0
        %3287 = vmatprep.subr.mxu0 0.0
        %3288 = vmatpush2.msra.mxu0 0.0
        %3289 = vmatprep.subr.mxu0 0.0
        %3290 = vmatpush2.msra.mxu0 0.0
        %3291 = vmatprep.subr.mxu0 0.0
        %3292 = vmatpush2.msra.mxu0 0.0
        %3293 = vmatprep.subr.mxu0 0.0
        %3294 = vmatpush2.msra.mxu0 0.0
        %3295 = vmatprep.subr.mxu0 0.0
        %3296 = vmatpush2.msra.mxu0 0.0
        %3297 = vmatprep.subr.mxu0 0.0
        %3298 = vmatpush2.msra.mxu0 0.0
        %3299 = vmatprep.subr.mxu0 0.0
        %3300 = vmatpush2.msra.mxu0 0.0
        %3301 = vmatprep.subr.mxu0 0.0
        %3302 = vmatpush2.msra.mxu0 0.0
        %3303 = vmatprep.subr.mxu0 0.0
        %3304 = vmatpush2.msra.mxu0 0.0
        %3305 = vmatprep.subr.mxu0 0.0
        %3306 = vmatpush2.msra.mxu0 0.0
        %3307 = vmatprep.subr.mxu0 0.0
        %3308 = vmatpush2.msra.mxu0 0.0
        %3309 = vmatprep.subr.mxu0 0.0
        %3310 = vmatpush2.msra.mxu0 0.0
        %3311 = vmatprep.subr.mxu0 0.0
        %3312 = vmatpush2.msra.mxu0 0.0
        %3313 = vmatprep.mubr.f32.mxu0 0.0
        %3314 = vmatmul.mubr.f32.gmra.mxu0 %v3247
        %v3315 = vpop.f32.mrf.mxu0
        %v3316 = vadd.f32 0.0, %v3315
        %v3317 = vpop.f32.mrf.mxu0
        %3318 = vdwg.mxu0
        %v3320 = vsel %vm1858, %v3241, 0
        %3322 = vmatprep.subr.mxu0 0.0
        %3323 = vmatpush1.msra.mxu0 0.0
        %3324 = vmatprep.subr.mxu0 0.0
        %3325 = vmatpush1.msra.mxu0 0.0
        %3326 = vmatprep.subr.mxu0 0.0
        %3327 = vmatpush1.msra.mxu0 0.0
        %3328 = vmatprep.subr.mxu0 0.0
        %3329 = vmatpush1.msra.mxu0 0.0
        %3330 = vmatprep.subr.mxu0 0.0
        %3331 = vmatpush1.msra.mxu0 0.0
        %3332 = vmatprep.subr.mxu0 0.0
        %3333 = vmatpush1.msra.mxu0 0.0
        %3334 = vmatprep.subr.mxu0 0.0
        %3335 = vmatpush1.msra.mxu0 0.0
        %3336 = vmatprep.subr.mxu0 0.0
        %3337 = vmatpush1.msra.mxu0 0.0
        %3338 = vmatprep.subr.mxu0 0.0
        %3339 = vmatpush1.msra.mxu0 0.0
        %3340 = vmatprep.subr.mxu0 0.0
        %3341 = vmatpush1.msra.mxu0 0.0
        %3342 = vmatprep.subr.mxu0 0.0
        %3343 = vmatpush1.msra.mxu0 0.0
        %3344 = vmatprep.subr.mxu0 0.0
        %3345 = vmatpush1.msra.mxu0 0.0
        %3346 = vmatprep.subr.mxu0 0.0
        %3347 = vmatpush1.msra.mxu0 0.0
        %3348 = vmatprep.subr.mxu0 0.0
        %3349 = vmatpush1.msra.mxu0 0.0
        %3350 = vmatprep.subr.mxu0 0.0
        %3351 = vmatpush1.msra.mxu0 %v2875
        %3352 = vmatprep.subr.mxu0 0.0
        %3353 = vmatpush1.msra.mxu0 %v2807
        %3354 = vmatprep.subr.mxu0 0.0
        %3355 = vmatpush2.msra.mxu0 0.0
        %3356 = vmatprep.subr.mxu0 0.0
        %3357 = vmatpush2.msra.mxu0 0.0
        %3358 = vmatprep.subr.mxu0 0.0
        %3359 = vmatpush2.msra.mxu0 0.0
        %3360 = vmatprep.subr.mxu0 0.0
        %3361 = vmatpush2.msra.mxu0 0.0
        %3362 = vmatprep.subr.mxu0 0.0
        %3363 = vmatpush2.msra.mxu0 0.0
        %3364 = vmatprep.subr.mxu0 0.0
        %3365 = vmatpush2.msra.mxu0 0.0
        %3366 = vmatprep.subr.mxu0 0.0
        %3367 = vmatpush2.msra.mxu0 0.0
        %3368 = vmatprep.subr.mxu0 0.0
        %3369 = vmatpush2.msra.mxu0 0.0
        %3370 = vmatprep.subr.mxu0 0.0
        %3371 = vmatpush2.msra.mxu0 0.0
        %3372 = vmatprep.subr.mxu0 0.0
        %3373 = vmatpush2.msra.mxu0 0.0
        %3374 = vmatprep.subr.mxu0 0.0
        %3375 = vmatpush2.msra.mxu0 0.0
        %3376 = vmatprep.subr.mxu0 0.0
        %3377 = vmatpush2.msra.mxu0 0.0
        %3378 = vmatprep.subr.mxu0 0.0
        %3379 = vmatpush2.msra.mxu0 0.0
        %3380 = vmatprep.subr.mxu0 0.0
        %3381 = vmatpush2.msra.mxu0 0.0
        %3382 = vmatprep.subr.mxu0 0.0
        %3383 = vmatpush2.msra.mxu0 0.0
        %3384 = vmatprep.subr.mxu0 0.0
        %3385 = vmatpush2.msra.mxu0 0.0
        %3386 = vmatprep.mubr.f32.mxu0 0.0
        %3387 = vmatmul.mubr.f32.gmra.mxu0 %v3320
        %v3388 = vpop.f32.mrf.mxu0
        %v3389 = vadd.f32 0.0, %v3388
        %v3390 = vpop.f32.mrf.mxu0
        %3391 = vdwg.mxu0
        %v3393 = vsel %vm1858, %v3243, 0
        %3395 = vmatprep.subr.mxu0 0.0
        %3396 = vmatpush1.msra.mxu0 0.0
        %3397 = vmatprep.subr.mxu0 0.0
        %3398 = vmatpush1.msra.mxu0 0.0
        %3399 = vmatprep.subr.mxu0 0.0
        %3400 = vmatpush1.msra.mxu0 0.0
        %3401 = vmatprep.subr.mxu0 0.0
        %3402 = vmatpush1.msra.mxu0 0.0
        %3403 = vmatprep.subr.mxu0 0.0
        %3404 = vmatpush1.msra.mxu0 0.0
        %3405 = vmatprep.subr.mxu0 0.0
        %3406 = vmatpush1.msra.mxu0 0.0
        %3407 = vmatprep.subr.mxu0 0.0
        %3408 = vmatpush1.msra.mxu0 0.0
        %3409 = vmatprep.subr.mxu0 0.0
        %3410 = vmatpush1.msra.mxu0 0.0
        %3411 = vmatprep.subr.mxu0 0.0
        %3412 = vmatpush1.msra.mxu0 0.0
        %3413 = vmatprep.subr.mxu0 0.0
        %3414 = vmatpush1.msra.mxu0 0.0
        %3415 = vmatprep.subr.mxu0 0.0
        %3416 = vmatpush1.msra.mxu0 0.0
        %3417 = vmatprep.subr.mxu0 0.0
        %3418 = vmatpush1.msra.mxu0 0.0
        %3419 = vmatprep.subr.mxu0 0.0
        %3420 = vmatpush1.msra.mxu0 0.0
        %3421 = vmatprep.subr.mxu0 0.0
        %3422 = vmatpush1.msra.mxu0 0.0
        %3423 = vmatprep.subr.mxu0 0.0
        %3424 = vmatpush1.msra.mxu0 %v2876
        %3425 = vmatprep.subr.mxu0 0.0
        %3426 = vmatpush1.msra.mxu0 %v2808
        %3427 = vmatprep.subr.mxu0 0.0
        %3428 = vmatpush2.msra.mxu0 0.0
        %3429 = vmatprep.subr.mxu0 0.0
        %3430 = vmatpush2.msra.mxu0 0.0
        %3431 = vmatprep.subr.mxu0 0.0
        %3432 = vmatpush2.msra.mxu0 0.0
        %3433 = vmatprep.subr.mxu0 0.0
        %3434 = vmatpush2.msra.mxu0 0.0
        %3435 = vmatprep.subr.mxu0 0.0
        %3436 = vmatpush2.msra.mxu0 0.0
        %3437 = vmatprep.subr.mxu0 0.0
        %3438 = vmatpush2.msra.mxu0 0.0
        %3439 = vmatprep.subr.mxu0 0.0
        %3440 = vmatpush2.msra.mxu0 0.0
        %3441 = vmatprep.subr.mxu0 0.0
        %3442 = vmatpush2.msra.mxu0 0.0
        %3443 = vmatprep.subr.mxu0 0.0
        %3444 = vmatpush2.msra.mxu0 0.0
        %3445 = vmatprep.subr.mxu0 0.0
        %3446 = vmatpush2.msra.mxu0 0.0
        %3447 = vmatprep.subr.mxu0 0.0
        %3448 = vmatpush2.msra.mxu0 0.0
        %3449 = vmatprep.subr.mxu0 0.0
        %3450 = vmatpush2.msra.mxu0 0.0
        %3451 = vmatprep.subr.mxu0 0.0
        %3452 = vmatpush2.msra.mxu0 0.0
        %3453 = vmatprep.subr.mxu0 0.0
        %3454 = vmatpush2.msra.mxu0 0.0
        %3455 = vmatprep.subr.mxu0 0.0
        %3456 = vmatpush2.msra.mxu0 0.0
        %3457 = vmatprep.subr.mxu0 0.0
        %3458 = vmatpush2.msra.mxu0 0.0
        %3459 = vmatprep.mubr.f32.mxu0 0.0
        %3460 = vmatmul.mubr.f32.gmra.mxu0 %v3393
        %v3461 = vpop.f32.mrf.mxu0
        %v3462 = vadd.f32 0.0, %v3461
        %v3463 = vpop.f32.mrf.mxu0
        %3464 = vdwg.mxu0
        %v3466 = vsel %vm1858, %v3245, 0
        %3468 = vmatprep.subr.mxu0 0.0
        %3469 = vmatpush1.msra.mxu0 0.0
        %3470 = vmatprep.subr.mxu0 0.0
        %3471 = vmatpush1.msra.mxu0 0.0
        %3472 = vmatprep.subr.mxu0 0.0
        %3473 = vmatpush1.msra.mxu0 0.0
        %3474 = vmatprep.subr.mxu0 0.0
        %3475 = vmatpush1.msra.mxu0 0.0
        %3476 = vmatprep.subr.mxu0 0.0
        %3477 = vmatpush1.msra.mxu0 0.0
        %3478 = vmatprep.subr.mxu0 0.0
        %3479 = vmatpush1.msra.mxu0 0.0
        %3480 = vmatprep.subr.mxu0 0.0
        %3481 = vmatpush1.msra.mxu0 0.0
        %3482 = vmatprep.subr.mxu0 0.0
        %3483 = vmatpush1.msra.mxu0 0.0
        %3484 = vmatprep.subr.mxu0 0.0
        %3485 = vmatpush1.msra.mxu0 0.0
        %3486 = vmatprep.subr.mxu0 0.0
        %3487 = vmatpush1.msra.mxu0 0.0
        %3488 = vmatprep.subr.mxu0 0.0
        %3489 = vmatpush1.msra.mxu0 0.0
        %3490 = vmatprep.subr.mxu0 0.0
        %3491 = vmatpush1.msra.mxu0 0.0
        %3492 = vmatprep.subr.mxu0 0.0
        %3493 = vmatpush1.msra.mxu0 0.0
        %3494 = vmatprep.subr.mxu0 0.0
        %3495 = vmatpush1.msra.mxu0 0.0
        %3496 = vmatprep.subr.mxu0 0.0
        %3497 = vmatpush1.msra.mxu0 %v2877
        %3498 = vmatprep.subr.mxu0 0.0
        %3499 = vmatpush1.msra.mxu0 %v2809
        %3500 = vmatprep.subr.mxu0 0.0
        %3501 = vmatpush2.msra.mxu0 0.0
        %3502 = vmatprep.subr.mxu0 0.0
        %3503 = vmatpush2.msra.mxu0 0.0
        %3504 = vmatprep.subr.mxu0 0.0
        %3505 = vmatpush2.msra.mxu0 0.0
        %3506 = vmatprep.subr.mxu0 0.0
        %3507 = vmatpush2.msra.mxu0 0.0
        %3508 = vmatprep.subr.mxu0 0.0
        %3509 = vmatpush2.msra.mxu0 0.0
        %3510 = vmatprep.subr.mxu0 0.0
        %3511 = vmatpush2.msra.mxu0 0.0
        %3512 = vmatprep.subr.mxu0 0.0
        %3513 = vmatpush2.msra.mxu0 0.0
        %3514 = vmatprep.subr.mxu0 0.0
        %3515 = vmatpush2.msra.mxu0 0.0
        %3516 = vmatprep.subr.mxu0 0.0
        %3517 = vmatpush2.msra.mxu0 0.0
        %3518 = vmatprep.subr.mxu0 0.0
        %3519 = vmatpush2.msra.mxu0 0.0
        %3520 = vmatprep.subr.mxu0 0.0
        %3521 = vmatpush2.msra.mxu0 0.0
        %3522 = vmatprep.subr.mxu0 0.0
        %3523 = vmatpush2.msra.mxu0 0.0
        %3524 = vmatprep.subr.mxu0 0.0
        %3525 = vmatpush2.msra.mxu0 0.0
        %3526 = vmatprep.subr.mxu0 0.0
        %3527 = vmatpush2.msra.mxu0 0.0
        %3528 = vmatprep.subr.mxu0 0.0
        %3529 = vmatpush2.msra.mxu0 0.0
        %3530 = vmatprep.subr.mxu0 0.0
        %3531 = vmatpush2.msra.mxu0 0.0
        %3532 = vmatprep.mubr.f32.mxu0 0.0
        %3533 = vmatmul.mubr.f32.gmra.mxu0 %v3466
        %v3534 = vpop.f32.mrf.mxu0
        %v3535 = vadd.f32 0.0, %v3534
        %v3536 = vpop.f32.mrf.mxu0
        %3537 = vdwg.mxu0
        %v3538 = vcombine.low %v3316, %v3462
        %v3539 = vcombine.high %v3316, %v3462
        %v3541 = vunpack.c.l.s4 1983009808
        %v3542 = vunpack.c.0.s8 %v3541
        %v3543 = vlaneseq
        %v3544 = vshrl.u32 %v3543, 7
        %v3545 = vsub.s32 %v3542, %v3544
        %v3546 = vrot.slane %v3538, %v3545
        %v3548 = vunpack.c.l.s4 1983009808
        %v3549 = vunpack.c.0.s8 %v3548
        %v3550 = vlaneseq
        %v3551 = vshrl.u32 %v3550, 7
        %v3552 = vsub.s32 %v3549, %v3551
        %v3553 = vrot.slane %v3539, %v3552
        %v3554 = vcombine.low %v3389, %v3535
        %v3555 = vcombine.high %v3389, %v3535
        %v3557 = vunpack.c.l.s4 1983009808
        %v3558 = vunpack.c.0.s8 %v3557
        %v3559 = vlaneseq
        %v3560 = vshrl.u32 %v3559, 7
        %v3561 = vsub.s32 %v3558, %v3560
        %v3562 = vrot.slane %v3554, %v3561
        %v3564 = vunpack.c.l.s4 1983009808
        %v3565 = vunpack.c.0.s8 %v3564
        %v3566 = vlaneseq
        %v3567 = vshrl.u32 %v3566, 7
        %v3568 = vsub.s32 %v3565, %v3567
        %v3569 = vrot.slane %v3555, %v3568
        %v3570 = vcombine.low %v3546, %v3562
        %v3571 = vcombine.high %v3546, %v3562
        %v3573 = vunpack.c.l.s4 1934713408
        %v3574 = vunpack.c.0.s8 %v3573
        %v3575 = vlaneseq
        %v3576 = vshrl.u32 %v3575, 7
        %v3577 = vsub.s32 %v3574, %v3576
        %v3578 = vrot.slane %v3570, %v3577
        %v3580 = vunpack.c.l.s4 1934713408
        %v3581 = vunpack.c.0.s8 %v3580
        %v3582 = vlaneseq
        %v3583 = vshrl.u32 %v3582, 7
        %v3584 = vsub.s32 %v3581, %v3583
        %v3585 = vrot.slane %v3571, %v3584
        %v3586 = vcombine.low %v3553, %v3569
        %v3587 = vcombine.high %v3553, %v3569
        %v3589 = vunpack.c.l.s4 1934713408
        %v3590 = vunpack.c.0.s8 %v3589
        %v3591 = vlaneseq
        %v3592 = vshrl.u32 %v3591, 7
        %v3593 = vsub.s32 %v3590, %v3592
        %v3594 = vrot.slane %v3586, %v3593
        %v3596 = vunpack.c.l.s4 1934713408
        %v3597 = vunpack.c.0.s8 %v3596
        %v3598 = vlaneseq
        %v3599 = vshrl.u32 %v3598, 7
        %v3600 = vsub.s32 %v3597, %v3599
        %v3601 = vrot.slane %v3587, %v3600
        %v3602 = vcombine.high %v3578, 0.0
        %v3603 = vcombine.high %v3585, 0.0
        %v3604 = vcombine.high %v3594, 0.0
        %v3605 = vcombine.high %v3601, 0.0
        %v3606 = vcombine.low %v3578, %v3585
        %v3608 = vunpack.c.l.s4 1983009808
        %v3609 = vunpack.c.0.s8 %v3608
        %v3610 = vlaneseq
        %v3611 = vshrl.u32 %v3610, 7
        %v3612 = vsub.s32 %v3609, %v3611
        %v3613 = vrot.slane %v3606, %v3612
        %v3614 = vcombine.low %v3602, %v3603
        %v3616 = vunpack.c.l.s4 1983009808
        %v3617 = vunpack.c.0.s8 %v3616
        %v3618 = vlaneseq
        %v3619 = vshrl.u32 %v3618, 7
        %v3620 = vsub.s32 %v3617, %v3619
        %v3621 = vrot.slane %v3614, %v3620
        %v3622 = vcombine.low %v3594, %v3601
        %v3624 = vunpack.c.l.s4 1983009808
        %v3625 = vunpack.c.0.s8 %v3624
        %v3626 = vlaneseq
        %v3627 = vshrl.u32 %v3626, 7
        %v3628 = vsub.s32 %v3625, %v3627
        %v3629 = vrot.slane %v3622, %v3628
        %v3630 = vcombine.low %v3604, %v3605
        %v3632 = vunpack.c.l.s4 1983009808
        %v3633 = vunpack.c.0.s8 %v3632
        %v3634 = vlaneseq
        %v3635 = vshrl.u32 %v3634, 7
        %v3636 = vsub.s32 %v3633, %v3635
        %v3637 = vrot.slane %v3630, %v3636
        %v3638 = vcombine.low %v3613, %v3621
        %v3639 = vcombine.high %v3613, %v3621
        %v3641 = vunpack.c.l.s4 1934713408
        %v3642 = vunpack.c.0.s8 %v3641
        %v3643 = vlaneseq
        %v3644 = vshrl.u32 %v3643, 7
        %v3645 = vsub.s32 %v3642, %v3644
        %v3646 = vrot.slane %v3638, %v3645
        %v3648 = vunpack.c.l.s4 1934713408
        %v3649 = vunpack.c.0.s8 %v3648
        %v3650 = vlaneseq
        %v3651 = vshrl.u32 %v3650, 7
        %v3652 = vsub.s32 %v3649, %v3651
        %v3653 = vrot.slane %v3639, %v3652
        %v3654 = vcombine.low %v3629, %v3637
        %v3655 = vcombine.high %v3629, %v3637
        %v3657 = vunpack.c.l.s4 1934713408
        %v3658 = vunpack.c.0.s8 %v3657
        %v3659 = vlaneseq
        %v3660 = vshrl.u32 %v3659, 7
        %v3661 = vsub.s32 %v3658, %v3660
        %v3662 = vrot.slane %v3654, %v3661
        %v3664 = vunpack.c.l.s4 1934713408
        %v3665 = vunpack.c.0.s8 %v3664
        %v3666 = vlaneseq
        %v3667 = vshrl.u32 %v3666, 7
        %v3668 = vsub.s32 %v3665, %v3667
        %v3669 = vrot.slane %v3655, %v3668
        %v3670 = vcombine.low %v3646, %v3662
        %v3671 = vcombine.high %v3646, %v3662
        %v3672 = vcombine.low %v3653, %v3669
        %v3673 = vcombine.high %v3653, %v3669
        %3675 = vrot.lane.b32.xlu0 %v3671, 8
        %v3676 = vpop.permute.xlu0 %3675
        %3679 = vrot.lane.b32.xlu0 %v3672, 16
        %v3680 = vpop.permute.xlu0 %3679
        %3683 = vrot.lane.b32.xlu0 %v3673, 24
        %v3684 = vpop.permute.xlu0 %3683
        %v3686 = vsel %vm1060, %v3670, %v3676
        %v3687 = vsel %vm1858, %v3686, %v3680
        %v3688 = vsel %vm1860, %v3687, %v3684
        %v3689 = vlaneseq
        %v3690 = vshrl.u32 %v3689, 7
        %v3691 = vsub.s32 2, %v3690
        %v3692 = vrot.slane %v500, %v3691
        %v3694 = vsel %vm501, %v3688, 0
        %3696 = vmatprep.subr.mxu0 0.0
        %3697 = vmatpush1.msra.mxu0 0.0
        %3698 = vmatprep.subr.mxu0 0.0
        %3699 = vmatpush1.msra.mxu0 0.0
        %3700 = vmatprep.subr.mxu0 0.0
        %3701 = vmatpush1.msra.mxu0 0.0
        %3702 = vmatprep.subr.mxu0 0.0
        %3703 = vmatpush1.msra.mxu0 0.0
        %3704 = vmatprep.subr.mxu0 0.0
        %3705 = vmatpush1.msra.mxu0 0.0
        %3706 = vmatprep.subr.mxu0 0.0
        %3707 = vmatpush1.msra.mxu0 0.0
        %3708 = vmatprep.subr.mxu0 0.0
        %3709 = vmatpush1.msra.mxu0 0.0
        %3710 = vmatprep.subr.mxu0 0.0
        %3711 = vmatpush1.msra.mxu0 0.0
        %3712 = vmatprep.subr.mxu0 0.0
        %3713 = vmatpush1.msra.mxu0 0.0
        %3714 = vmatprep.subr.mxu0 0.0
        %3715 = vmatpush1.msra.mxu0 0.0
        %3716 = vmatprep.subr.mxu0 0.0
        %3717 = vmatpush1.msra.mxu0 0.0
        %3718 = vmatprep.subr.mxu0 0.0
        %3719 = vmatpush1.msra.mxu0 0.0
        %3720 = vmatprep.subr.mxu0 0.0
        %3721 = vmatpush1.msra.mxu0 %v2143
        %3722 = vmatprep.subr.mxu0 0.0
        %3723 = vmatpush1.msra.mxu0 %v2142
        %3724 = vmatprep.subr.mxu0 0.0
        %3725 = vmatpush1.msra.mxu0 %v2141
        %3726 = vmatprep.subr.mxu0 0.0
        %3727 = vmatpush1.msra.mxu0 %v2140
        %3728 = vmatprep.subr.mxu0 0.0
        %3729 = vmatpush2.msra.mxu0 0.0
        %3730 = vmatprep.subr.mxu0 0.0
        %3731 = vmatpush2.msra.mxu0 0.0
        %3732 = vmatprep.subr.mxu0 0.0
        %3733 = vmatpush2.msra.mxu0 0.0
        %3734 = vmatprep.subr.mxu0 0.0
        %3735 = vmatpush2.msra.mxu0 0.0
        %3736 = vmatprep.subr.mxu0 0.0
        %3737 = vmatpush2.msra.mxu0 0.0
        %3738 = vmatprep.subr.mxu0 0.0
        %3739 = vmatpush2.msra.mxu0 0.0
        %3740 = vmatprep.subr.mxu0 0.0
        %3741 = vmatpush2.msra.mxu0 0.0
        %3742 = vmatprep.subr.mxu0 0.0
        %3743 = vmatpush2.msra.mxu0 0.0
        %3744 = vmatprep.subr.mxu0 0.0
        %3745 = vmatpush2.msra.mxu0 0.0
        %3746 = vmatprep.subr.mxu0 0.0
        %3747 = vmatpush2.msra.mxu0 0.0
        %3748 = vmatprep.subr.mxu0 0.0
        %3749 = vmatpush2.msra.mxu0 0.0
        %3750 = vmatprep.subr.mxu0 0.0
        %3751 = vmatpush2.msra.mxu0 0.0
        %3752 = vmatprep.subr.mxu0 0.0
        %3753 = vmatpush2.msra.mxu0 0.0
        %3754 = vmatprep.subr.mxu0 0.0
        %3755 = vmatpush2.msra.mxu0 0.0
        %3756 = vmatprep.subr.mxu0 0.0
        %3757 = vmatpush2.msra.mxu0 0.0
        %3758 = vmatprep.subr.mxu0 0.0
        %3759 = vmatpush2.msra.mxu0 0.0
        %3760 = vmatprep.mubr.f32.mxu0 0.0
        %3761 = vmatmul.mubr.f32.gmra.mxu0 %v3694
        %v3762 = vpop.f32.mrf.mxu0
        %v3763 = vadd.f32 %v3692, %v3762
        %v3764 = vpop.f32.mrf.mxu0
        %3765 = vdwg.mxu0
        %v3766 = vadd.f32 %v1939, %v3763
        %v3767 = vsel %vm501, %v3766, 0.0
        %3768 = vadd.xlane.f32.xlu0 %v3767
        %v3769 = vpop.xlane.xlu0 %3768
        %v3770 = vmul.f32 %v3769, %v505
        %v3771 = vsub.f32 %v3766, %v3770
        %v3772 = vmul.f32 %v3771, %v3771
        %v3773 = vsel %vm501, %v3772, 0.0
        %3774 = vadd.xlane.f32.xlu0 %v3773
        %v3775 = vpop.xlane.xlu0 %3774
        %v3776 = vmul.f32 %v3775, 0.032258064
        %v3777 = vlaneseq
        %v3778 = vshrl.u32 %v3777, 7
        %v3779 = vsub.s32 2, %v3778
        %v3780 = vrot.slane %v499, %v3779
        %v3781 = vmul.f32 %v3780, %v3771
        %v3782 = vrsqrt.pop %v3776
        %v3783 = vmul.f32 %v3776, %v3782
        %vm3784 = vcmp.eq.f32.partialorder %v3776, inf
        %v3785 = vsel %vm3784, %v3776, %v3783
        %vm3786 = vcmp.eq.f32.partialorder %v3776, 0.0
        %v3787 = vand.u32 %v3776, 2147483648
        %v3788 = vsel %vm3786, %v3787, %v3785
        %v3789 = vadd.f32 %v3788, 1e-06
        %v3790 = vrcp.pop %v3789
        %v3791 = vmul.f32 %v3781, %v3790
        %v3792 = vlaneseq
        %v3793 = vshrl.u32 %v3792, 7
        %v3794 = vsub.s32 5, %v3793
        %v3795 = vrot.slane %v499, %v3794
        %v3796 = vadd.f32 %v3791, %v3795
        %v3797 = vld [vmem:[%s9] sm:$0xff]
        %v3798 = vld [vmem:[%s9 + $0x8] sm:$0xff]
        %v3799 = vld [vmem:[%s9 + $0x10] sm:$0xff]
        %v3800 = vld [vmem:[%s9 + $0x18] sm:$0xff]
        %v3801 = vlaneseq
        %v3802 = vshrl.u32 %v3801, 7
        %v3803 = vsub.s32 3, %v3802
        %v3804 = vrot.slane %v500, %v3803
        %v3806 = vsel %vm501, %v3796, 0
        %3808 = vmatprep.subr.mxu0 0.0
        %3809 = vmatpush1.msra.mxu0 0.0
        %3810 = vmatprep.subr.mxu0 0.0
        %3811 = vmatpush1.msra.mxu0 0.0
        %3812 = vmatprep.subr.mxu0 0.0
        %3813 = vmatpush1.msra.mxu0 0.0
        %3814 = vmatprep.subr.mxu0 0.0
        %3815 = vmatpush1.msra.mxu0 0.0
        %3816 = vmatprep.subr.mxu0 0.0
        %3817 = vmatpush1.msra.mxu0 0.0
        %3818 = vmatprep.subr.mxu0 0.0
        %3819 = vmatpush1.msra.mxu0 0.0
        %3820 = vmatprep.subr.mxu0 0.0
        %3821 = vmatpush1.msra.mxu0 0.0
        %3822 = vmatprep.subr.mxu0 0.0
        %3823 = vmatpush1.msra.mxu0 0.0
        %3824 = vmatprep.subr.mxu0 0.0
        %3825 = vmatpush1.msra.mxu0 0.0
        %3826 = vmatprep.subr.mxu0 0.0
        %3827 = vmatpush1.msra.mxu0 0.0
        %3828 = vmatprep.subr.mxu0 0.0
        %3829 = vmatpush1.msra.mxu0 0.0
        %3830 = vmatprep.subr.mxu0 0.0
        %3831 = vmatpush1.msra.mxu0 0.0
        %3832 = vmatprep.subr.mxu0 0.0
        %3833 = vmatpush1.msra.mxu0 %v3800
        %3834 = vmatprep.subr.mxu0 0.0
        %3835 = vmatpush1.msra.mxu0 %v3799
        %3836 = vmatprep.subr.mxu0 0.0
        %3837 = vmatpush1.msra.mxu0 %v3798
        %3838 = vmatprep.subr.mxu0 0.0
        %3839 = vmatpush1.msra.mxu0 %v3797
        %3840 = vmatprep.subr.mxu0 0.0
        %3841 = vmatpush2.msra.mxu0 0.0
        %3842 = vmatprep.subr.mxu0 0.0
        %3843 = vmatpush2.msra.mxu0 0.0
        %3844 = vmatprep.subr.mxu0 0.0
        %3845 = vmatpush2.msra.mxu0 0.0
        %3846 = vmatprep.subr.mxu0 0.0
        %3847 = vmatpush2.msra.mxu0 0.0
        %3848 = vmatprep.subr.mxu0 0.0
        %3849 = vmatpush2.msra.mxu0 0.0
        %3850 = vmatprep.subr.mxu0 0.0
        %3851 = vmatpush2.msra.mxu0 0.0
        %3852 = vmatprep.subr.mxu0 0.0
        %3853 = vmatpush2.msra.mxu0 0.0
        %3854 = vmatprep.subr.mxu0 0.0
        %3855 = vmatpush2.msra.mxu0 0.0
        %3856 = vmatprep.subr.mxu0 0.0
        %3857 = vmatpush2.msra.mxu0 0.0
        %3858 = vmatprep.subr.mxu0 0.0
        %3859 = vmatpush2.msra.mxu0 0.0
        %3860 = vmatprep.subr.mxu0 0.0
        %3861 = vmatpush2.msra.mxu0 0.0
        %3862 = vmatprep.subr.mxu0 0.0
        %3863 = vmatpush2.msra.mxu0 0.0
        %3864 = vmatprep.subr.mxu0 0.0
        %3865 = vmatpush2.msra.mxu0 0.0
        %3866 = vmatprep.subr.mxu0 0.0
        %3867 = vmatpush2.msra.mxu0 0.0
        %3868 = vmatprep.subr.mxu0 0.0
        %3869 = vmatpush2.msra.mxu0 0.0
        %3870 = vmatprep.subr.mxu0 0.0
        %3871 = vmatpush2.msra.mxu0 0.0
        %3872 = vmatprep.mubr.f32.mxu0 0.0
        %3873 = vmatmul.mubr.f32.gmra.mxu0 %v3806
        %v3874 = vpop.f32.mrf.mxu0
        %v3875 = vadd.f32 %v3804, %v3874
        %v3876 = vpop.f32.mrf.mxu0
        %3877 = vdwg.mxu0
        %v3878 = vmax.f32 %v3875, 0.0
        %v3879 = vld [vmem:[%s10] sm:$0xff]
        %v3880 = vld [vmem:[%s10 + $0x8] sm:$0xff]
        %v3881 = vld [vmem:[%s10 + $0x10] sm:$0xff]
        %v3882 = vld [vmem:[%s10 + $0x18] sm:$0xff]
        %v3883 = vld [vmem:[%s10 + $0x20] sm:$0xff]
        %v3884 = vld [vmem:[%s10 + $0x28] sm:$0xff]
        %v3885 = vld [vmem:[%s10 + $0x30] sm:$0xff]
        %v3886 = vld [vmem:[%s10 + $0x38] sm:$0xff]
        %vm3887 = vcmask 523264
        %v3889 = vsel %vm3887, %v3878, 0
        %3891 = vmatprep.subr.mxu0 0.0
        %3892 = vmatpush1.msra.mxu0 0.0
        %3893 = vmatprep.subr.mxu0 0.0
        %3894 = vmatpush1.msra.mxu0 0.0
        %3895 = vmatprep.subr.mxu0 0.0
        %3896 = vmatpush1.msra.mxu0 0.0
        %3897 = vmatprep.subr.mxu0 0.0
        %3898 = vmatpush1.msra.mxu0 0.0
        %3899 = vmatprep.subr.mxu0 0.0
        %3900 = vmatpush1.msra.mxu0 0.0
        %3901 = vmatprep.subr.mxu0 0.0
        %3902 = vmatpush1.msra.mxu0 0.0
        %3903 = vmatprep.subr.mxu0 0.0
        %3904 = vmatpush1.msra.mxu0 0.0
        %3905 = vmatprep.subr.mxu0 0.0
        %3906 = vmatpush1.msra.mxu0 0.0
        %3907 = vmatprep.subr.mxu0 0.0
        %3908 = vmatpush1.msra.mxu0 %v3886
        %3909 = vmatprep.subr.mxu0 0.0
        %3910 = vmatpush1.msra.mxu0 %v3885
        %3911 = vmatprep.subr.mxu0 0.0
        %3912 = vmatpush1.msra.mxu0 %v3884
        %3913 = vmatprep.subr.mxu0 0.0
        %3914 = vmatpush1.msra.mxu0 %v3883
        %3915 = vmatprep.subr.mxu0 0.0
        %3916 = vmatpush1.msra.mxu0 %v3882
        %3917 = vmatprep.subr.mxu0 0.0
        %3918 = vmatpush1.msra.mxu0 %v3881
        %3919 = vmatprep.subr.mxu0 0.0
        %3920 = vmatpush1.msra.mxu0 %v3880
        %3921 = vmatprep.subr.mxu0 0.0
        %3922 = vmatpush1.msra.mxu0 %v3879
        %3923 = vmatprep.subr.mxu0 0.0
        %3924 = vmatpush2.msra.mxu0 0.0
        %3925 = vmatprep.subr.mxu0 0.0
        %3926 = vmatpush2.msra.mxu0 0.0
        %3927 = vmatprep.subr.mxu0 0.0
        %3928 = vmatpush2.msra.mxu0 0.0
        %3929 = vmatprep.subr.mxu0 0.0
        %3930 = vmatpush2.msra.mxu0 0.0
        %3931 = vmatprep.subr.mxu0 0.0
        %3932 = vmatpush2.msra.mxu0 0.0
        %3933 = vmatprep.subr.mxu0 0.0
        %3934 = vmatpush2.msra.mxu0 0.0
        %3935 = vmatprep.subr.mxu0 0.0
        %3936 = vmatpush2.msra.mxu0 0.0
        %3937 = vmatprep.subr.mxu0 0.0
        %3938 = vmatpush2.msra.mxu0 0.0
        %3939 = vmatprep.subr.mxu0 0.0
        %3940 = vmatpush2.msra.mxu0 0.0
        %3941 = vmatprep.subr.mxu0 0.0
        %3942 = vmatpush2.msra.mxu0 0.0
        %3943 = vmatprep.subr.mxu0 0.0
        %3944 = vmatpush2.msra.mxu0 0.0
        %3945 = vmatprep.subr.mxu0 0.0
        %3946 = vmatpush2.msra.mxu0 0.0
        %3947 = vmatprep.subr.mxu0 0.0
        %3948 = vmatpush2.msra.mxu0 0.0
        %3949 = vmatprep.subr.mxu0 0.0
        %3950 = vmatpush2.msra.mxu0 0.0
        %3951 = vmatprep.subr.mxu0 0.0
        %3952 = vmatpush2.msra.mxu0 0.0
        %3953 = vmatprep.subr.mxu0 0.0
        %3954 = vmatpush2.msra.mxu0 0.0
        %3955 = vmatprep.mubr.f32.mxu0 0.0
        %3956 = vmatmul.mubr.f32.gmra.mxu0 %v3889
        %v3957 = vpop.f32.mrf.mxu0
        %v3958 = vadd.f32 0.0, %v3957
        %v3959 = vpop.f32.mrf.mxu0
        %3960 = vdwg.mxu0
        %v3961 = vadd.f32 %v3766, %v3958
        %v3962 = vlaneseq
        %v3963 = vshrl.u32 %v3962, 7
        %v3964 = vsub.s32 4, %v3963
        %v3965 = vrot.slane %v500, %v3964
        %v3966 = vadd.f32 %v3961, %v3965
        %s3967 = scalar_lea.vmem %s11, 16
        %v3968 = vld [vmem:[%s3967] sm:$0xff]
        %v3969 = vld [vmem:[%s3967 + $0x8] sm:$0xff]
        %v3970 = vsel %vm501, %v3966, 0.0
        %3971 = vadd.xlane.f32.xlu0 %v3970
        %v3972 = vpop.xlane.xlu0 %3971
        %v3973 = vmul.f32 %v3972, %v505
        %v3974 = vsub.f32 %v3966, %v3973
        %v3975 = vmul.f32 %v3974, %v3974
        %v3976 = vsel %vm501, %v3975, 0.0
        %3977 = vadd.xlane.f32.xlu0 %v3976
        %v3978 = vpop.xlane.xlu0 %3977
        %v3979 = vmul.f32 %v3978, 0.032258064
        %v3980 = vlaneseq
        %v3981 = vshrl.u32 %v3980, 7
        %v3982 = vsub.s32 0, %v3981
        %v3983 = vrot.slane %v3968, %v3982
        %v3984 = vmul.f32 %v3983, %v3974
        %v3985 = vrsqrt.pop %v3979
        %v3986 = vmul.f32 %v3979, %v3985
        %vm3987 = vcmp.eq.f32.partialorder %v3979, inf
        %v3988 = vsel %vm3987, %v3979, %v3986
        %vm3989 = vcmp.eq.f32.partialorder %v3979, 0.0
        %v3990 = vand.u32 %v3979, 2147483648
        %v3991 = vsel %vm3989, %v3990, %v3988
        %v3992 = vadd.f32 %v3991, 1e-06
        %v3993 = vrcp.pop %v3992
        %v3994 = vmul.f32 %v3984, %v3993
        %v3995 = vlaneseq
        %v3996 = vshrl.u32 %v3995, 7
        %v3997 = vsub.s32 3, %v3996
        %v3998 = vrot.slane %v3968, %v3997
        %v3999 = vadd.f32 %v3994, %v3998
        %s4000 = scalar_lea.vmem %s4, 32
        %v4001 = vld [vmem:[%s4000] sm:$0xff]
        %v4002 = vld [vmem:[%s4000 + $0x8] sm:$0xff]
        %v4003 = vld [vmem:[%s4000 + $0x10] sm:$0xff]
        %v4004 = vld [vmem:[%s4000 + $0x18] sm:$0xff]
        %v4005 = vlaneseq
        %v4006 = vshrl.u32 %v4005, 7
        %v4007 = vsub.s32 6, %v4006
        %v4008 = vrot.slane %v3968, %v4007
        %v4010 = vsel %vm501, %v3999, 0
        %4012 = vmatprep.subr.mxu0 0.0
        %4013 = vmatpush1.msra.mxu0 0.0
        %4014 = vmatprep.subr.mxu0 0.0
        %4015 = vmatpush1.msra.mxu0 0.0
        %4016 = vmatprep.subr.mxu0 0.0
        %4017 = vmatpush1.msra.mxu0 0.0
        %4018 = vmatprep.subr.mxu0 0.0
        %4019 = vmatpush1.msra.mxu0 0.0
        %4020 = vmatprep.subr.mxu0 0.0
        %4021 = vmatpush1.msra.mxu0 0.0
        %4022 = vmatprep.subr.mxu0 0.0
        %4023 = vmatpush1.msra.mxu0 0.0
        %4024 = vmatprep.subr.mxu0 0.0
        %4025 = vmatpush1.msra.mxu0 0.0
        %4026 = vmatprep.subr.mxu0 0.0
        %4027 = vmatpush1.msra.mxu0 0.0
        %4028 = vmatprep.subr.mxu0 0.0
        %4029 = vmatpush1.msra.mxu0 0.0
        %4030 = vmatprep.subr.mxu0 0.0
        %4031 = vmatpush1.msra.mxu0 0.0
        %4032 = vmatprep.subr.mxu0 0.0
        %4033 = vmatpush1.msra.mxu0 0.0
        %4034 = vmatprep.subr.mxu0 0.0
        %4035 = vmatpush1.msra.mxu0 0.0
        %4036 = vmatprep.subr.mxu0 0.0
        %4037 = vmatpush1.msra.mxu0 %v4004
        %4038 = vmatprep.subr.mxu0 0.0
        %4039 = vmatpush1.msra.mxu0 %v4003
        %4040 = vmatprep.subr.mxu0 0.0
        %4041 = vmatpush1.msra.mxu0 %v4002
        %4042 = vmatprep.subr.mxu0 0.0
        %4043 = vmatpush1.msra.mxu0 %v4001
        %4044 = vmatprep.subr.mxu0 0.0
        %4045 = vmatpush2.msra.mxu0 0.0
        %4046 = vmatprep.subr.mxu0 0.0
        %4047 = vmatpush2.msra.mxu0 0.0
        %4048 = vmatprep.subr.mxu0 0.0
        %4049 = vmatpush2.msra.mxu0 0.0
        %4050 = vmatprep.subr.mxu0 0.0
        %4051 = vmatpush2.msra.mxu0 0.0
        %4052 = vmatprep.subr.mxu0 0.0
        %4053 = vmatpush2.msra.mxu0 0.0
        %4054 = vmatprep.subr.mxu0 0.0
        %4055 = vmatpush2.msra.mxu0 0.0
        %4056 = vmatprep.subr.mxu0 0.0
        %4057 = vmatpush2.msra.mxu0 0.0
        %4058 = vmatprep.subr.mxu0 0.0
        %4059 = vmatpush2.msra.mxu0 0.0
        %4060 = vmatprep.subr.mxu0 0.0
        %4061 = vmatpush2.msra.mxu0 0.0
        %4062 = vmatprep.subr.mxu0 0.0
        %4063 = vmatpush2.msra.mxu0 0.0
        %4064 = vmatprep.subr.mxu0 0.0
        %4065 = vmatpush2.msra.mxu0 0.0
        %4066 = vmatprep.subr.mxu0 0.0
        %4067 = vmatpush2.msra.mxu0 0.0
        %4068 = vmatprep.subr.mxu0 0.0
        %4069 = vmatpush2.msra.mxu0 0.0
        %4070 = vmatprep.subr.mxu0 0.0
        %4071 = vmatpush2.msra.mxu0 0.0
        %4072 = vmatprep.subr.mxu0 0.0
        %4073 = vmatpush2.msra.mxu0 0.0
        %4074 = vmatprep.subr.mxu0 0.0
        %4075 = vmatpush2.msra.mxu0 0.0
        %4076 = vmatprep.mubr.f32.mxu0 0.0
        %4077 = vmatmul.mubr.f32.gmra.mxu0 %v4010
        %v4078 = vpop.f32.mrf.mxu0
        %v4079 = vadd.f32 %v4008, %v4078
        %v4080 = vpop.f32.mrf.mxu0
        %4081 = vdwg.mxu0
        %s4082 = scalar_lea.vmem %s5, 32
        %v4083 = vld [vmem:[%s4082] sm:$0xff]
        %v4084 = vld [vmem:[%s4082 + $0x8] sm:$0xff]
        %v4085 = vld [vmem:[%s4082 + $0x10] sm:$0xff]
        %v4086 = vld [vmem:[%s4082 + $0x18] sm:$0xff]
        %4088 = vrot.lane.b32.xlu0 %v4079, 120
        %v4089 = vpop.permute.xlu0 %4088
        %4091 = vrot.lane.b32.xlu0 %v4079, 112
        %v4092 = vpop.permute.xlu0 %4091
        %4094 = vrot.lane.b32.xlu0 %v4079, 104
        %v4095 = vpop.permute.xlu0 %4094
        %v4097 = vcombine.low %v4079, %v4092
        %v4098 = vcombine.high %v4079, %v4092
        %v4100 = vunpack.c.l.s4 1983009808
        %v4101 = vunpack.c.0.s8 %v4100
        %v4102 = vlaneseq
        %v4103 = vshrl.u32 %v4102, 7
        %v4104 = vsub.s32 %v4101, %v4103
        %v4105 = vrot.slane %v4097, %v4104
        %v4107 = vunpack.c.l.s4 1983009808
        %v4108 = vunpack.c.0.s8 %v4107
        %v4109 = vlaneseq
        %v4110 = vshrl.u32 %v4109, 7
        %v4111 = vsub.s32 %v4108, %v4110
        %v4112 = vrot.slane %v4098, %v4111
        %v4113 = vcombine.low %v4089, %v4095
        %v4114 = vcombine.high %v4089, %v4095
        %v4116 = vunpack.c.l.s4 1983009808
        %v4117 = vunpack.c.0.s8 %v4116
        %v4118 = vlaneseq
        %v4119 = vshrl.u32 %v4118, 7
        %v4120 = vsub.s32 %v4117, %v4119
        %v4121 = vrot.slane %v4113, %v4120
        %v4123 = vunpack.c.l.s4 1983009808
        %v4124 = vunpack.c.0.s8 %v4123
        %v4125 = vlaneseq
        %v4126 = vshrl.u32 %v4125, 7
        %v4127 = vsub.s32 %v4124, %v4126
        %v4128 = vrot.slane %v4114, %v4127
        %v4129 = vcombine.low %v4105, %v4121
        %v4130 = vcombine.high %v4105, %v4121
        %v4132 = vunpack.c.l.s4 1934713408
        %v4133 = vunpack.c.0.s8 %v4132
        %v4134 = vlaneseq
        %v4135 = vshrl.u32 %v4134, 7
        %v4136 = vsub.s32 %v4133, %v4135
        %v4137 = vrot.slane %v4129, %v4136
        %v4139 = vunpack.c.l.s4 1934713408
        %v4140 = vunpack.c.0.s8 %v4139
        %v4141 = vlaneseq
        %v4142 = vshrl.u32 %v4141, 7
        %v4143 = vsub.s32 %v4140, %v4142
        %v4144 = vrot.slane %v4130, %v4143
        %v4145 = vcombine.low %v4112, %v4128
        %v4146 = vcombine.high %v4112, %v4128
        %v4148 = vunpack.c.l.s4 1934713408
        %v4149 = vunpack.c.0.s8 %v4148
        %v4150 = vlaneseq
        %v4151 = vshrl.u32 %v4150, 7
        %v4152 = vsub.s32 %v4149, %v4151
        %v4153 = vrot.slane %v4145, %v4152
        %v4155 = vunpack.c.l.s4 1934713408
        %v4156 = vunpack.c.0.s8 %v4155
        %v4157 = vlaneseq
        %v4158 = vshrl.u32 %v4157, 7
        %v4159 = vsub.s32 %v4156, %v4158
        %v4160 = vrot.slane %v4146, %v4159
        %v4161 = vcombine.high %v4137, 0.0
        %v4162 = vcombine.high %v4144, 0.0
        %v4163 = vcombine.high %v4153, 0.0
        %v4164 = vcombine.high %v4160, 0.0
        %v4165 = vcombine.low %v4137, %v4144
        %v4167 = vunpack.c.l.s4 1983009808
        %v4168 = vunpack.c.0.s8 %v4167
        %v4169 = vlaneseq
        %v4170 = vshrl.u32 %v4169, 7
        %v4171 = vsub.s32 %v4168, %v4170
        %v4172 = vrot.slane %v4165, %v4171
        %v4173 = vcombine.low %v4161, %v4162
        %v4175 = vunpack.c.l.s4 1983009808
        %v4176 = vunpack.c.0.s8 %v4175
        %v4177 = vlaneseq
        %v4178 = vshrl.u32 %v4177, 7
        %v4179 = vsub.s32 %v4176, %v4178
        %v4180 = vrot.slane %v4173, %v4179
        %v4181 = vcombine.low %v4153, %v4160
        %v4183 = vunpack.c.l.s4 1983009808
        %v4184 = vunpack.c.0.s8 %v4183
        %v4185 = vlaneseq
        %v4186 = vshrl.u32 %v4185, 7
        %v4187 = vsub.s32 %v4184, %v4186
        %v4188 = vrot.slane %v4181, %v4187
        %v4189 = vcombine.low %v4163, %v4164
        %v4191 = vunpack.c.l.s4 1983009808
        %v4192 = vunpack.c.0.s8 %v4191
        %v4193 = vlaneseq
        %v4194 = vshrl.u32 %v4193, 7
        %v4195 = vsub.s32 %v4192, %v4194
        %v4196 = vrot.slane %v4189, %v4195
        %v4197 = vcombine.low %v4172, %v4180
        %v4198 = vcombine.high %v4172, %v4180
        %v4200 = vunpack.c.l.s4 1934713408
        %v4201 = vunpack.c.0.s8 %v4200
        %v4202 = vlaneseq
        %v4203 = vshrl.u32 %v4202, 7
        %v4204 = vsub.s32 %v4201, %v4203
        %v4205 = vrot.slane %v4197, %v4204
        %v4207 = vunpack.c.l.s4 1934713408
        %v4208 = vunpack.c.0.s8 %v4207
        %v4209 = vlaneseq
        %v4210 = vshrl.u32 %v4209, 7
        %v4211 = vsub.s32 %v4208, %v4210
        %v4212 = vrot.slane %v4198, %v4211
        %v4213 = vcombine.low %v4188, %v4196
        %v4214 = vcombine.high %v4188, %v4196
        %v4216 = vunpack.c.l.s4 1934713408
        %v4217 = vunpack.c.0.s8 %v4216
        %v4218 = vlaneseq
        %v4219 = vshrl.u32 %v4218, 7
        %v4220 = vsub.s32 %v4217, %v4219
        %v4221 = vrot.slane %v4213, %v4220
        %v4223 = vunpack.c.l.s4 1934713408
        %v4224 = vunpack.c.0.s8 %v4223
        %v4225 = vlaneseq
        %v4226 = vshrl.u32 %v4225, 7
        %v4227 = vsub.s32 %v4224, %v4226
        %v4228 = vrot.slane %v4214, %v4227
        %v4229 = vcombine.low %v4205, %v4221
        %v4230 = vcombine.high %v4205, %v4221
        %v4231 = vcombine.low %v4212, %v4228
        %v4232 = vcombine.high %v4212, %v4228
        %4233 = vrot.lane.b32.xlu0 %v4079, 96
        %v4234 = vpop.permute.xlu0 %4233
        %4235 = vrot.lane.b32.xlu0 %v4089, 96
        %v4236 = vpop.permute.xlu0 %4235
        %4237 = vrot.lane.b32.xlu0 %v4092, 96
        %v4238 = vpop.permute.xlu0 %4237
        %4239 = vrot.lane.b32.xlu0 %v4095, 96
        %v4240 = vpop.permute.xlu0 %4239
        %v4245 = vcombine.low %v4234, %v4238
        %v4246 = vcombine.high %v4234, %v4238
        %v4248 = vunpack.c.l.s4 1983009808
        %v4249 = vunpack.c.0.s8 %v4248
        %v4250 = vlaneseq
        %v4251 = vshrl.u32 %v4250, 7
        %v4252 = vsub.s32 %v4249, %v4251
        %v4253 = vrot.slane %v4245, %v4252
        %v4255 = vunpack.c.l.s4 1983009808
        %v4256 = vunpack.c.0.s8 %v4255
        %v4257 = vlaneseq
        %v4258 = vshrl.u32 %v4257, 7
        %v4259 = vsub.s32 %v4256, %v4258
        %v4260 = vrot.slane %v4246, %v4259
        %v4261 = vcombine.low %v4236, %v4240
        %v4262 = vcombine.high %v4236, %v4240
        %v4264 = vunpack.c.l.s4 1983009808
        %v4265 = vunpack.c.0.s8 %v4264
        %v4266 = vlaneseq
        %v4267 = vshrl.u32 %v4266, 7
        %v4268 = vsub.s32 %v4265, %v4267
        %v4269 = vrot.slane %v4261, %v4268
        %v4271 = vunpack.c.l.s4 1983009808
        %v4272 = vunpack.c.0.s8 %v4271
        %v4273 = vlaneseq
        %v4274 = vshrl.u32 %v4273, 7
        %v4275 = vsub.s32 %v4272, %v4274
        %v4276 = vrot.slane %v4262, %v4275
        %v4277 = vcombine.low %v4253, %v4269
        %v4278 = vcombine.high %v4253, %v4269
        %v4280 = vunpack.c.l.s4 1934713408
        %v4281 = vunpack.c.0.s8 %v4280
        %v4282 = vlaneseq
        %v4283 = vshrl.u32 %v4282, 7
        %v4284 = vsub.s32 %v4281, %v4283
        %v4285 = vrot.slane %v4277, %v4284
        %v4287 = vunpack.c.l.s4 1934713408
        %v4288 = vunpack.c.0.s8 %v4287
        %v4289 = vlaneseq
        %v4290 = vshrl.u32 %v4289, 7
        %v4291 = vsub.s32 %v4288, %v4290
        %v4292 = vrot.slane %v4278, %v4291
        %v4293 = vcombine.low %v4260, %v4276
        %v4294 = vcombine.high %v4260, %v4276
        %v4296 = vunpack.c.l.s4 1934713408
        %v4297 = vunpack.c.0.s8 %v4296
        %v4298 = vlaneseq
        %v4299 = vshrl.u32 %v4298, 7
        %v4300 = vsub.s32 %v4297, %v4299
        %v4301 = vrot.slane %v4293, %v4300
        %v4303 = vunpack.c.l.s4 1934713408
        %v4304 = vunpack.c.0.s8 %v4303
        %v4305 = vlaneseq
        %v4306 = vshrl.u32 %v4305, 7
        %v4307 = vsub.s32 %v4304, %v4306
        %v4308 = vrot.slane %v4294, %v4307
        %v4309 = vcombine.high %v4285, 0.0
        %v4310 = vcombine.high %v4292, 0.0
        %v4311 = vcombine.high %v4301, 0.0
        %v4312 = vcombine.high %v4308, 0.0
        %v4313 = vcombine.low %v4285, %v4292
        %v4315 = vunpack.c.l.s4 1983009808
        %v4316 = vunpack.c.0.s8 %v4315
        %v4317 = vlaneseq
        %v4318 = vshrl.u32 %v4317, 7
        %v4319 = vsub.s32 %v4316, %v4318
        %v4320 = vrot.slane %v4313, %v4319
        %v4321 = vcombine.low %v4309, %v4310
        %v4323 = vunpack.c.l.s4 1983009808
        %v4324 = vunpack.c.0.s8 %v4323
        %v4325 = vlaneseq
        %v4326 = vshrl.u32 %v4325, 7
        %v4327 = vsub.s32 %v4324, %v4326
        %v4328 = vrot.slane %v4321, %v4327
        %v4329 = vcombine.low %v4301, %v4308
        %v4331 = vunpack.c.l.s4 1983009808
        %v4332 = vunpack.c.0.s8 %v4331
        %v4333 = vlaneseq
        %v4334 = vshrl.u32 %v4333, 7
        %v4335 = vsub.s32 %v4332, %v4334
        %v4336 = vrot.slane %v4329, %v4335
        %v4337 = vcombine.low %v4311, %v4312
        %v4339 = vunpack.c.l.s4 1983009808
        %v4340 = vunpack.c.0.s8 %v4339
        %v4341 = vlaneseq
        %v4342 = vshrl.u32 %v4341, 7
        %v4343 = vsub.s32 %v4340, %v4342
        %v4344 = vrot.slane %v4337, %v4343
        %v4345 = vcombine.low %v4320, %v4328
        %v4346 = vcombine.high %v4320, %v4328
        %v4348 = vunpack.c.l.s4 1934713408
        %v4349 = vunpack.c.0.s8 %v4348
        %v4350 = vlaneseq
        %v4351 = vshrl.u32 %v4350, 7
        %v4352 = vsub.s32 %v4349, %v4351
        %v4353 = vrot.slane %v4345, %v4352
        %v4355 = vunpack.c.l.s4 1934713408
        %v4356 = vunpack.c.0.s8 %v4355
        %v4357 = vlaneseq
        %v4358 = vshrl.u32 %v4357, 7
        %v4359 = vsub.s32 %v4356, %v4358
        %v4360 = vrot.slane %v4346, %v4359
        %v4361 = vcombine.low %v4336, %v4344
        %v4362 = vcombine.high %v4336, %v4344
        %v4364 = vunpack.c.l.s4 1934713408
        %v4365 = vunpack.c.0.s8 %v4364
        %v4366 = vlaneseq
        %v4367 = vshrl.u32 %v4366, 7
        %v4368 = vsub.s32 %v4365, %v4367
        %v4369 = vrot.slane %v4361, %v4368
        %v4371 = vunpack.c.l.s4 1934713408
        %v4372 = vunpack.c.0.s8 %v4371
        %v4373 = vlaneseq
        %v4374 = vshrl.u32 %v4373, 7
        %v4375 = vsub.s32 %v4372, %v4374
        %v4376 = vrot.slane %v4362, %v4375
        %v4377 = vcombine.low %v4353, %v4369
        %v4378 = vcombine.high %v4353, %v4369
        %v4379 = vcombine.low %v4360, %v4376
        %v4380 = vcombine.high %v4360, %v4376
        %4381 = vrot.lane.b32.xlu0 %v4079, 64
        %v4382 = vpop.permute.xlu0 %4381
        %4383 = vrot.lane.b32.xlu0 %v4089, 64
        %v4384 = vpop.permute.xlu0 %4383
        %4385 = vrot.lane.b32.xlu0 %v4092, 64
        %v4386 = vpop.permute.xlu0 %4385
        %4387 = vrot.lane.b32.xlu0 %v4095, 64
        %v4388 = vpop.permute.xlu0 %4387
        %v4393 = vcombine.low %v4382, %v4386
        %v4394 = vcombine.high %v4382, %v4386
        %v4396 = vunpack.c.l.s4 1983009808
        %v4397 = vunpack.c.0.s8 %v4396
        %v4398 = vlaneseq
        %v4399 = vshrl.u32 %v4398, 7
        %v4400 = vsub.s32 %v4397, %v4399
        %v4401 = vrot.slane %v4393, %v4400
        %v4403 = vunpack.c.l.s4 1983009808
        %v4404 = vunpack.c.0.s8 %v4403
        %v4405 = vlaneseq
        %v4406 = vshrl.u32 %v4405, 7
        %v4407 = vsub.s32 %v4404, %v4406
        %v4408 = vrot.slane %v4394, %v4407
        %v4409 = vcombine.low %v4384, %v4388
        %v4410 = vcombine.high %v4384, %v4388
        %v4412 = vunpack.c.l.s4 1983009808
        %v4413 = vunpack.c.0.s8 %v4412
        %v4414 = vlaneseq
        %v4415 = vshrl.u32 %v4414, 7
        %v4416 = vsub.s32 %v4413, %v4415
        %v4417 = vrot.slane %v4409, %v4416
        %v4419 = vunpack.c.l.s4 1983009808
        %v4420 = vunpack.c.0.s8 %v4419
        %v4421 = vlaneseq
        %v4422 = vshrl.u32 %v4421, 7
        %v4423 = vsub.s32 %v4420, %v4422
        %v4424 = vrot.slane %v4410, %v4423
        %v4425 = vcombine.low %v4401, %v4417
        %v4426 = vcombine.high %v4401, %v4417
        %v4428 = vunpack.c.l.s4 1934713408
        %v4429 = vunpack.c.0.s8 %v4428
        %v4430 = vlaneseq
        %v4431 = vshrl.u32 %v4430, 7
        %v4432 = vsub.s32 %v4429, %v4431
        %v4433 = vrot.slane %v4425, %v4432
        %v4435 = vunpack.c.l.s4 1934713408
        %v4436 = vunpack.c.0.s8 %v4435
        %v4437 = vlaneseq
        %v4438 = vshrl.u32 %v4437, 7
        %v4439 = vsub.s32 %v4436, %v4438
        %v4440 = vrot.slane %v4426, %v4439
        %v4441 = vcombine.low %v4408, %v4424
        %v4442 = vcombine.high %v4408, %v4424
        %v4444 = vunpack.c.l.s4 1934713408
        %v4445 = vunpack.c.0.s8 %v4444
        %v4446 = vlaneseq
        %v4447 = vshrl.u32 %v4446, 7
        %v4448 = vsub.s32 %v4445, %v4447
        %v4449 = vrot.slane %v4441, %v4448
        %v4451 = vunpack.c.l.s4 1934713408
        %v4452 = vunpack.c.0.s8 %v4451
        %v4453 = vlaneseq
        %v4454 = vshrl.u32 %v4453, 7
        %v4455 = vsub.s32 %v4452, %v4454
        %v4456 = vrot.slane %v4442, %v4455
        %v4457 = vcombine.high %v4433, 0.0
        %v4458 = vcombine.high %v4440, 0.0
        %v4459 = vcombine.high %v4449, 0.0
        %v4460 = vcombine.high %v4456, 0.0
        %v4461 = vcombine.low %v4433, %v4440
        %v4463 = vunpack.c.l.s4 1983009808
        %v4464 = vunpack.c.0.s8 %v4463
        %v4465 = vlaneseq
        %v4466 = vshrl.u32 %v4465, 7
        %v4467 = vsub.s32 %v4464, %v4466
        %v4468 = vrot.slane %v4461, %v4467
        %v4469 = vcombine.low %v4457, %v4458
        %v4471 = vunpack.c.l.s4 1983009808
        %v4472 = vunpack.c.0.s8 %v4471
        %v4473 = vlaneseq
        %v4474 = vshrl.u32 %v4473, 7
        %v4475 = vsub.s32 %v4472, %v4474
        %v4476 = vrot.slane %v4469, %v4475
        %v4477 = vcombine.low %v4449, %v4456
        %v4479 = vunpack.c.l.s4 1983009808
        %v4480 = vunpack.c.0.s8 %v4479
        %v4481 = vlaneseq
        %v4482 = vshrl.u32 %v4481, 7
        %v4483 = vsub.s32 %v4480, %v4482
        %v4484 = vrot.slane %v4477, %v4483
        %v4485 = vcombine.low %v4459, %v4460
        %v4487 = vunpack.c.l.s4 1983009808
        %v4488 = vunpack.c.0.s8 %v4487
        %v4489 = vlaneseq
        %v4490 = vshrl.u32 %v4489, 7
        %v4491 = vsub.s32 %v4488, %v4490
        %v4492 = vrot.slane %v4485, %v4491
        %v4493 = vcombine.low %v4468, %v4476
        %v4494 = vcombine.high %v4468, %v4476
        %v4496 = vunpack.c.l.s4 1934713408
        %v4497 = vunpack.c.0.s8 %v4496
        %v4498 = vlaneseq
        %v4499 = vshrl.u32 %v4498, 7
        %v4500 = vsub.s32 %v4497, %v4499
        %v4501 = vrot.slane %v4493, %v4500
        %v4503 = vunpack.c.l.s4 1934713408
        %v4504 = vunpack.c.0.s8 %v4503
        %v4505 = vlaneseq
        %v4506 = vshrl.u32 %v4505, 7
        %v4507 = vsub.s32 %v4504, %v4506
        %v4508 = vrot.slane %v4494, %v4507
        %v4509 = vcombine.low %v4484, %v4492
        %v4510 = vcombine.high %v4484, %v4492
        %v4512 = vunpack.c.l.s4 1934713408
        %v4513 = vunpack.c.0.s8 %v4512
        %v4514 = vlaneseq
        %v4515 = vshrl.u32 %v4514, 7
        %v4516 = vsub.s32 %v4513, %v4515
        %v4517 = vrot.slane %v4509, %v4516
        %v4519 = vunpack.c.l.s4 1934713408
        %v4520 = vunpack.c.0.s8 %v4519
        %v4521 = vlaneseq
        %v4522 = vshrl.u32 %v4521, 7
        %v4523 = vsub.s32 %v4520, %v4522
        %v4524 = vrot.slane %v4510, %v4523
        %v4525 = vcombine.low %v4501, %v4517
        %v4526 = vcombine.high %v4501, %v4517
        %v4527 = vcombine.low %v4508, %v4524
        %v4528 = vcombine.high %v4508, %v4524
        %v4530 = vsel %vm1060, %v4229, 0
        %v4533 = vsel %vm1060, %v4377, 0
        %4535 = vmatprep.subr.mxu0 0.0
        %4536 = vmatpush1.xpose.msra.mxu0 0.0
        %4537 = vmatprep.subr.mxu0 0.0
        %4538 = vmatpush1.xpose.msra.mxu0 0.0
        %4539 = vmatprep.subr.mxu0 0.0
        %4540 = vmatpush1.xpose.msra.mxu0 0.0
        %4541 = vmatprep.subr.mxu0 0.0
        %4542 = vmatpush1.xpose.msra.mxu0 0.0
        %4543 = vmatprep.subr.mxu0 0.0
        %4544 = vmatpush1.xpose.msra.mxu0 0.0
        %4545 = vmatprep.subr.mxu0 0.0
        %4546 = vmatpush1.xpose.msra.mxu0 0.0
        %4547 = vmatprep.subr.mxu0 0.0
        %4548 = vmatpush1.xpose.msra.mxu0 0.0
        %4549 = vmatprep.subr.mxu0 0.0
        %4550 = vmatpush1.xpose.msra.mxu0 0.0
        %4551 = vmatprep.subr.mxu0 0.0
        %4552 = vmatpush1.xpose.msra.mxu0 0.0
        %4553 = vmatprep.subr.mxu0 0.0
        %4554 = vmatpush1.xpose.msra.mxu0 0.0
        %4555 = vmatprep.subr.mxu0 0.0
        %4556 = vmatpush1.xpose.msra.mxu0 0.0
        %4557 = vmatprep.subr.mxu0 0.0
        %4558 = vmatpush1.xpose.msra.mxu0 0.0
        %4559 = vmatprep.subr.mxu0 0.0
        %4560 = vmatpush1.xpose.msra.mxu0 0.0
        %4561 = vmatprep.subr.mxu0 0.0
        %4562 = vmatpush1.xpose.msra.mxu0 0.0
        %4563 = vmatprep.subr.mxu0 0.0
        %4564 = vmatpush1.xpose.msra.mxu0 0.0
        %4565 = vmatprep.subr.mxu0 0.0
        %4566 = vmatpush1.xpose.msra.mxu0 %v4533
        %4567 = vmatprep.subr.mxu0 0.0
        %4568 = vmatpush2.xpose.msra.mxu0 0.0
        %4569 = vmatprep.subr.mxu0 0.0
        %4570 = vmatpush2.xpose.msra.mxu0 0.0
        %4571 = vmatprep.subr.mxu0 0.0
        %4572 = vmatpush2.xpose.msra.mxu0 0.0
        %4573 = vmatprep.subr.mxu0 0.0
        %4574 = vmatpush2.xpose.msra.mxu0 0.0
        %4575 = vmatprep.subr.mxu0 0.0
        %4576 = vmatpush2.xpose.msra.mxu0 0.0
        %4577 = vmatprep.subr.mxu0 0.0
        %4578 = vmatpush2.xpose.msra.mxu0 0.0
        %4579 = vmatprep.subr.mxu0 0.0
        %4580 = vmatpush2.xpose.msra.mxu0 0.0
        %4581 = vmatprep.subr.mxu0 0.0
        %4582 = vmatpush2.xpose.msra.mxu0 0.0
        %4583 = vmatprep.subr.mxu0 0.0
        %4584 = vmatpush2.xpose.msra.mxu0 0.0
        %4585 = vmatprep.subr.mxu0 0.0
        %4586 = vmatpush2.xpose.msra.mxu0 0.0
        %4587 = vmatprep.subr.mxu0 0.0
        %4588 = vmatpush2.xpose.msra.mxu0 0.0
        %4589 = vmatprep.subr.mxu0 0.0
        %4590 = vmatpush2.xpose.msra.mxu0 0.0
        %4591 = vmatprep.subr.mxu0 0.0
        %4592 = vmatpush2.xpose.msra.mxu0 0.0
        %4593 = vmatprep.subr.mxu0 0.0
        %4594 = vmatpush2.xpose.msra.mxu0 0.0
        %4595 = vmatprep.subr.mxu0 0.0
        %4596 = vmatpush2.xpose.msra.mxu0 0.0
        %4597 = vmatprep.subr.mxu0 0.0
        %4598 = vmatpush2.xpose.msra.mxu0 0.0
        %4599 = vmatprep.mubr.f32.mxu0 0.0
        %4600 = vmatmul.mubr.f32.gmra.mxu0 %v4530
        %v4601 = vpop.f32.mrf.mxu0
        %v4602 = vadd.f32 0.0, %v4601
        %v4603 = vpop.f32.mrf.mxu0
        %4604 = vdwg.mxu0
        %v4606 = vsel %vm1060, %v4230, 0
        %v4609 = vsel %vm1060, %v4378, 0
        %4611 = vmatprep.subr.mxu0 0.0
        %4612 = vmatpush1.xpose.msra.mxu0 0.0
        %4613 = vmatprep.subr.mxu0 0.0
        %4614 = vmatpush1.xpose.msra.mxu0 0.0
        %4615 = vmatprep.subr.mxu0 0.0
        %4616 = vmatpush1.xpose.msra.mxu0 0.0
        %4617 = vmatprep.subr.mxu0 0.0
        %4618 = vmatpush1.xpose.msra.mxu0 0.0
        %4619 = vmatprep.subr.mxu0 0.0
        %4620 = vmatpush1.xpose.msra.mxu0 0.0
        %4621 = vmatprep.subr.mxu0 0.0
        %4622 = vmatpush1.xpose.msra.mxu0 0.0
        %4623 = vmatprep.subr.mxu0 0.0
        %4624 = vmatpush1.xpose.msra.mxu0 0.0
        %4625 = vmatprep.subr.mxu0 0.0
        %4626 = vmatpush1.xpose.msra.mxu0 0.0
        %4627 = vmatprep.subr.mxu0 0.0
        %4628 = vmatpush1.xpose.msra.mxu0 0.0
        %4629 = vmatprep.subr.mxu0 0.0
        %4630 = vmatpush1.xpose.msra.mxu0 0.0
        %4631 = vmatprep.subr.mxu0 0.0
        %4632 = vmatpush1.xpose.msra.mxu0 0.0
        %4633 = vmatprep.subr.mxu0 0.0
        %4634 = vmatpush1.xpose.msra.mxu0 0.0
        %4635 = vmatprep.subr.mxu0 0.0
        %4636 = vmatpush1.xpose.msra.mxu0 0.0
        %4637 = vmatprep.subr.mxu0 0.0
        %4638 = vmatpush1.xpose.msra.mxu0 0.0
        %4639 = vmatprep.subr.mxu0 0.0
        %4640 = vmatpush1.xpose.msra.mxu0 0.0
        %4641 = vmatprep.subr.mxu0 0.0
        %4642 = vmatpush1.xpose.msra.mxu0 %v4609
        %4643 = vmatprep.subr.mxu0 0.0
        %4644 = vmatpush2.xpose.msra.mxu0 0.0
        %4645 = vmatprep.subr.mxu0 0.0
        %4646 = vmatpush2.xpose.msra.mxu0 0.0
        %4647 = vmatprep.subr.mxu0 0.0
        %4648 = vmatpush2.xpose.msra.mxu0 0.0
        %4649 = vmatprep.subr.mxu0 0.0
        %4650 = vmatpush2.xpose.msra.mxu0 0.0
        %4651 = vmatprep.subr.mxu0 0.0
        %4652 = vmatpush2.xpose.msra.mxu0 0.0
        %4653 = vmatprep.subr.mxu0 0.0
        %4654 = vmatpush2.xpose.msra.mxu0 0.0
        %4655 = vmatprep.subr.mxu0 0.0
        %4656 = vmatpush2.xpose.msra.mxu0 0.0
        %4657 = vmatprep.subr.mxu0 0.0
        %4658 = vmatpush2.xpose.msra.mxu0 0.0
        %4659 = vmatprep.subr.mxu0 0.0
        %4660 = vmatpush2.xpose.msra.mxu0 0.0
        %4661 = vmatprep.subr.mxu0 0.0
        %4662 = vmatpush2.xpose.msra.mxu0 0.0
        %4663 = vmatprep.subr.mxu0 0.0
        %4664 = vmatpush2.xpose.msra.mxu0 0.0
        %4665 = vmatprep.subr.mxu0 0.0
        %4666 = vmatpush2.xpose.msra.mxu0 0.0
        %4667 = vmatprep.subr.mxu0 0.0
        %4668 = vmatpush2.xpose.msra.mxu0 0.0
        %4669 = vmatprep.subr.mxu0 0.0
        %4670 = vmatpush2.xpose.msra.mxu0 0.0
        %4671 = vmatprep.subr.mxu0 0.0
        %4672 = vmatpush2.xpose.msra.mxu0 0.0
        %4673 = vmatprep.subr.mxu0 0.0
        %4674 = vmatpush2.xpose.msra.mxu0 0.0
        %4675 = vmatprep.mubr.f32.mxu0 0.0
        %4676 = vmatmul.mubr.f32.gmra.mxu0 %v4606
        %v4677 = vpop.f32.mrf.mxu0
        %v4678 = vadd.f32 0.0, %v4677
        %v4679 = vpop.f32.mrf.mxu0
        %4680 = vdwg.mxu0
        %v4682 = vsel %vm1060, %v4231, 0
        %v4685 = vsel %vm1060, %v4379, 0
        %4687 = vmatprep.subr.mxu0 0.0
        %4688 = vmatpush1.xpose.msra.mxu0 0.0
        %4689 = vmatprep.subr.mxu0 0.0
        %4690 = vmatpush1.xpose.msra.mxu0 0.0
        %4691 = vmatprep.subr.mxu0 0.0
        %4692 = vmatpush1.xpose.msra.mxu0 0.0
        %4693 = vmatprep.subr.mxu0 0.0
        %4694 = vmatpush1.xpose.msra.mxu0 0.0
        %4695 = vmatprep.subr.mxu0 0.0
        %4696 = vmatpush1.xpose.msra.mxu0 0.0
        %4697 = vmatprep.subr.mxu0 0.0
        %4698 = vmatpush1.xpose.msra.mxu0 0.0
        %4699 = vmatprep.subr.mxu0 0.0
        %4700 = vmatpush1.xpose.msra.mxu0 0.0
        %4701 = vmatprep.subr.mxu0 0.0
        %4702 = vmatpush1.xpose.msra.mxu0 0.0
        %4703 = vmatprep.subr.mxu0 0.0
        %4704 = vmatpush1.xpose.msra.mxu0 0.0
        %4705 = vmatprep.subr.mxu0 0.0
        %4706 = vmatpush1.xpose.msra.mxu0 0.0
        %4707 = vmatprep.subr.mxu0 0.0
        %4708 = vmatpush1.xpose.msra.mxu0 0.0
        %4709 = vmatprep.subr.mxu0 0.0
        %4710 = vmatpush1.xpose.msra.mxu0 0.0
        %4711 = vmatprep.subr.mxu0 0.0
        %4712 = vmatpush1.xpose.msra.mxu0 0.0
        %4713 = vmatprep.subr.mxu0 0.0
        %4714 = vmatpush1.xpose.msra.mxu0 0.0
        %4715 = vmatprep.subr.mxu0 0.0
        %4716 = vmatpush1.xpose.msra.mxu0 0.0
        %4717 = vmatprep.subr.mxu0 0.0
        %4718 = vmatpush1.xpose.msra.mxu0 %v4685
        %4719 = vmatprep.subr.mxu0 0.0
        %4720 = vmatpush2.xpose.msra.mxu0 0.0
        %4721 = vmatprep.subr.mxu0 0.0
        %4722 = vmatpush2.xpose.msra.mxu0 0.0
        %4723 = vmatprep.subr.mxu0 0.0
        %4724 = vmatpush2.xpose.msra.mxu0 0.0
        %4725 = vmatprep.subr.mxu0 0.0
        %4726 = vmatpush2.xpose.msra.mxu0 0.0
        %4727 = vmatprep.subr.mxu0 0.0
        %4728 = vmatpush2.xpose.msra.mxu0 0.0
        %4729 = vmatprep.subr.mxu0 0.0
        %4730 = vmatpush2.xpose.msra.mxu0 0.0
        %4731 = vmatprep.subr.mxu0 0.0
        %4732 = vmatpush2.xpose.msra.mxu0 0.0
        %4733 = vmatprep.subr.mxu0 0.0
        %4734 = vmatpush2.xpose.msra.mxu0 0.0
        %4735 = vmatprep.subr.mxu0 0.0
        %4736 = vmatpush2.xpose.msra.mxu0 0.0
        %4737 = vmatprep.subr.mxu0 0.0
        %4738 = vmatpush2.xpose.msra.mxu0 0.0
        %4739 = vmatprep.subr.mxu0 0.0
        %4740 = vmatpush2.xpose.msra.mxu0 0.0
        %4741 = vmatprep.subr.mxu0 0.0
        %4742 = vmatpush2.xpose.msra.mxu0 0.0
        %4743 = vmatprep.subr.mxu0 0.0
        %4744 = vmatpush2.xpose.msra.mxu0 0.0
        %4745 = vmatprep.subr.mxu0 0.0
        %4746 = vmatpush2.xpose.msra.mxu0 0.0
        %4747 = vmatprep.subr.mxu0 0.0
        %4748 = vmatpush2.xpose.msra.mxu0 0.0
        %4749 = vmatprep.subr.mxu0 0.0
        %4750 = vmatpush2.xpose.msra.mxu0 0.0
        %4751 = vmatprep.mubr.f32.mxu0 0.0
        %4752 = vmatmul.mubr.f32.gmra.mxu0 %v4682
        %v4753 = vpop.f32.mrf.mxu0
        %v4754 = vadd.f32 0.0, %v4753
        %v4755 = vpop.f32.mrf.mxu0
        %4756 = vdwg.mxu0
        %v4758 = vsel %vm1060, %v4232, 0
        %v4761 = vsel %vm1060, %v4380, 0
        %4763 = vmatprep.subr.mxu0 0.0
        %4764 = vmatpush1.xpose.msra.mxu0 0.0
        %4765 = vmatprep.subr.mxu0 0.0
        %4766 = vmatpush1.xpose.msra.mxu0 0.0
        %4767 = vmatprep.subr.mxu0 0.0
        %4768 = vmatpush1.xpose.msra.mxu0 0.0
        %4769 = vmatprep.subr.mxu0 0.0
        %4770 = vmatpush1.xpose.msra.mxu0 0.0
        %4771 = vmatprep.subr.mxu0 0.0
        %4772 = vmatpush1.xpose.msra.mxu0 0.0
        %4773 = vmatprep.subr.mxu0 0.0
        %4774 = vmatpush1.xpose.msra.mxu0 0.0
        %4775 = vmatprep.subr.mxu0 0.0
        %4776 = vmatpush1.xpose.msra.mxu0 0.0
        %4777 = vmatprep.subr.mxu0 0.0
        %4778 = vmatpush1.xpose.msra.mxu0 0.0
        %4779 = vmatprep.subr.mxu0 0.0
        %4780 = vmatpush1.xpose.msra.mxu0 0.0
        %4781 = vmatprep.subr.mxu0 0.0
        %4782 = vmatpush1.xpose.msra.mxu0 0.0
        %4783 = vmatprep.subr.mxu0 0.0
        %4784 = vmatpush1.xpose.msra.mxu0 0.0
        %4785 = vmatprep.subr.mxu0 0.0
        %4786 = vmatpush1.xpose.msra.mxu0 0.0
        %4787 = vmatprep.subr.mxu0 0.0
        %4788 = vmatpush1.xpose.msra.mxu0 0.0
        %4789 = vmatprep.subr.mxu0 0.0
        %4790 = vmatpush1.xpose.msra.mxu0 0.0
        %4791 = vmatprep.subr.mxu0 0.0
        %4792 = vmatpush1.xpose.msra.mxu0 0.0
        %4793 = vmatprep.subr.mxu0 0.0
        %4794 = vmatpush1.xpose.msra.mxu0 %v4761
        %4795 = vmatprep.subr.mxu0 0.0
        %4796 = vmatpush2.xpose.msra.mxu0 0.0
        %4797 = vmatprep.subr.mxu0 0.0
        %4798 = vmatpush2.xpose.msra.mxu0 0.0
        %4799 = vmatprep.subr.mxu0 0.0
        %4800 = vmatpush2.xpose.msra.mxu0 0.0
        %4801 = vmatprep.subr.mxu0 0.0
        %4802 = vmatpush2.xpose.msra.mxu0 0.0
        %4803 = vmatprep.subr.mxu0 0.0
        %4804 = vmatpush2.xpose.msra.mxu0 0.0
        %4805 = vmatprep.subr.mxu0 0.0
        %4806 = vmatpush2.xpose.msra.mxu0 0.0
        %4807 = vmatprep.subr.mxu0 0.0
        %4808 = vmatpush2.xpose.msra.mxu0 0.0
        %4809 = vmatprep.subr.mxu0 0.0
        %4810 = vmatpush2.xpose.msra.mxu0 0.0
        %4811 = vmatprep.subr.mxu0 0.0
        %4812 = vmatpush2.xpose.msra.mxu0 0.0
        %4813 = vmatprep.subr.mxu0 0.0
        %4814 = vmatpush2.xpose.msra.mxu0 0.0
        %4815 = vmatprep.subr.mxu0 0.0
        %4816 = vmatpush2.xpose.msra.mxu0 0.0
        %4817 = vmatprep.subr.mxu0 0.0
        %4818 = vmatpush2.xpose.msra.mxu0 0.0
        %4819 = vmatprep.subr.mxu0 0.0
        %4820 = vmatpush2.xpose.msra.mxu0 0.0
        %4821 = vmatprep.subr.mxu0 0.0
        %4822 = vmatpush2.xpose.msra.mxu0 0.0
        %4823 = vmatprep.subr.mxu0 0.0
        %4824 = vmatpush2.xpose.msra.mxu0 0.0
        %4825 = vmatprep.subr.mxu0 0.0
        %4826 = vmatpush2.xpose.msra.mxu0 0.0
        %4827 = vmatprep.mubr.f32.mxu0 0.0
        %4828 = vmatmul.mubr.f32.gmra.mxu0 %v4758
        %v4829 = vpop.f32.mrf.mxu0
        %v4830 = vadd.f32 0.0, %v4829
        %v4831 = vpop.f32.mrf.mxu0
        %4832 = vdwg.mxu0
        %v4833 = vmul.f32 %v4602, 0.35355338
        %v4834 = vmul.f32 %v4678, 0.35355338
        %v4835 = vmul.f32 %v4754, 0.35355338
        %v4836 = vmul.f32 %v4830, 0.35355338
        %v4837 = vadd.f32 %v4833, %v495
        %v4838 = vadd.f32 %v4834, %v495
        %v4839 = vadd.f32 %v4835, %v495
        %v4840 = vadd.f32 %v4836, %v495
        %v4841 = vsel %vm1060, %v4837, -inf
        %4842 = vmax.xlane.f32.xlu0 %v4841
        %v4843 = vpop.xlane.xlu0 %4842
        %v4844 = vsel %vm1060, %v4838, -inf
        %4845 = vmax.xlane.f32.xlu0 %v4844
        %v4846 = vpop.xlane.xlu0 %4845
        %v4847 = vsel %vm1060, %v4839, -inf
        %4848 = vmax.xlane.f32.xlu0 %v4847
        %v4849 = vpop.xlane.xlu0 %4848
        %v4850 = vsel %vm1060, %v4840, -inf
        %4851 = vmax.xlane.f32.xlu0 %v4850
        %v4852 = vpop.xlane.xlu0 %4851
        %v4853 = vsub.f32 %v4837, %v4843
        %v4854 = vsub.f32 %v4838, %v4846
        %v4855 = vsub.f32 %v4839, %v4849
        %v4856 = vsub.f32 %v4840, %v4852
        %v4857 = vmul.f32 %v4853, 1.442695
        %v4858 = vpow.pop %v4857
        %v4859 = vmul.f32 %v4854, 1.442695
        %v4860 = vpow.pop %v4859
        %v4861 = vmul.f32 %v4855, 1.442695
        %v4862 = vpow.pop %v4861
        %v4863 = vmul.f32 %v4856, 1.442695
        %v4864 = vpow.pop %v4863
        %v4865 = vsel %vm1060, %v4858, 0.0
        %4866 = vadd.xlane.f32.xlu0 %v4865
        %v4867 = vpop.xlane.xlu0 %4866
        %v4868 = vsel %vm1060, %v4860, 0.0
        %4869 = vadd.xlane.f32.xlu0 %v4868
        %v4870 = vpop.xlane.xlu0 %4869
        %v4871 = vsel %vm1060, %v4862, 0.0
        %4872 = vadd.xlane.f32.xlu0 %v4871
        %v4873 = vpop.xlane.xlu0 %4872
        %v4874 = vsel %vm1060, %v4864, 0.0
        %4875 = vadd.xlane.f32.xlu0 %v4874
        %v4876 = vpop.xlane.xlu0 %4875
        %v4877 = vrcp.pop %v4867
        %v4878 = vmul.f32 %v4858, %v4877
        %v4879 = vrcp.pop %v4870
        %v4880 = vmul.f32 %v4860, %v4879
        %v4881 = vrcp.pop %v4873
        %v4882 = vmul.f32 %v4862, %v4881
        %v4883 = vrcp.pop %v4876
        %v4884 = vmul.f32 %v4864, %v4883
        %v4886 = vsel %vm1060, %v4878, 0
        %4888 = vmatprep.subr.mxu0 0.0
        %4889 = vmatpush1.msra.mxu0 0.0
        %4890 = vmatprep.subr.mxu0 0.0
        %4891 = vmatpush1.msra.mxu0 0.0
        %4892 = vmatprep.subr.mxu0 0.0
        %4893 = vmatpush1.msra.mxu0 0.0
        %4894 = vmatprep.subr.mxu0 0.0
        %4895 = vmatpush1.msra.mxu0 0.0
        %4896 = vmatprep.subr.mxu0 0.0
        %4897 = vmatpush1.msra.mxu0 0.0
        %4898 = vmatprep.subr.mxu0 0.0
        %4899 = vmatpush1.msra.mxu0 0.0
        %4900 = vmatprep.subr.mxu0 0.0
        %4901 = vmatpush1.msra.mxu0 0.0
        %4902 = vmatprep.subr.mxu0 0.0
        %4903 = vmatpush1.msra.mxu0 0.0
        %4904 = vmatprep.subr.mxu0 0.0
        %4905 = vmatpush1.msra.mxu0 0.0
        %4906 = vmatprep.subr.mxu0 0.0
        %4907 = vmatpush1.msra.mxu0 0.0
        %4908 = vmatprep.subr.mxu0 0.0
        %4909 = vmatpush1.msra.mxu0 0.0
        %4910 = vmatprep.subr.mxu0 0.0
        %4911 = vmatpush1.msra.mxu0 0.0
        %4912 = vmatprep.subr.mxu0 0.0
        %4913 = vmatpush1.msra.mxu0 0.0
        %4914 = vmatprep.subr.mxu0 0.0
        %4915 = vmatpush1.msra.mxu0 0.0
        %4916 = vmatprep.subr.mxu0 0.0
        %4917 = vmatpush1.msra.mxu0 0.0
        %4918 = vmatprep.subr.mxu0 0.0
        %4919 = vmatpush1.msra.mxu0 %v4525
        %4920 = vmatprep.subr.mxu0 0.0
        %4921 = vmatpush2.msra.mxu0 0.0
        %4922 = vmatprep.subr.mxu0 0.0
        %4923 = vmatpush2.msra.mxu0 0.0
        %4924 = vmatprep.subr.mxu0 0.0
        %4925 = vmatpush2.msra.mxu0 0.0
        %4926 = vmatprep.subr.mxu0 0.0
        %4927 = vmatpush2.msra.mxu0 0.0
        %4928 = vmatprep.subr.mxu0 0.0
        %4929 = vmatpush2.msra.mxu0 0.0
        %4930 = vmatprep.subr.mxu0 0.0
        %4931 = vmatpush2.msra.mxu0 0.0
        %4932 = vmatprep.subr.mxu0 0.0
        %4933 = vmatpush2.msra.mxu0 0.0
        %4934 = vmatprep.subr.mxu0 0.0
        %4935 = vmatpush2.msra.mxu0 0.0
        %4936 = vmatprep.subr.mxu0 0.0
        %4937 = vmatpush2.msra.mxu0 0.0
        %4938 = vmatprep.subr.mxu0 0.0
        %4939 = vmatpush2.msra.mxu0 0.0
        %4940 = vmatprep.subr.mxu0 0.0
        %4941 = vmatpush2.msra.mxu0 0.0
        %4942 = vmatprep.subr.mxu0 0.0
        %4943 = vmatpush2.msra.mxu0 0.0
        %4944 = vmatprep.subr.mxu0 0.0
        %4945 = vmatpush2.msra.mxu0 0.0
        %4946 = vmatprep.subr.mxu0 0.0
        %4947 = vmatpush2.msra.mxu0 0.0
        %4948 = vmatprep.subr.mxu0 0.0
        %4949 = vmatpush2.msra.mxu0 0.0
        %4950 = vmatprep.subr.mxu0 0.0
        %4951 = vmatpush2.msra.mxu0 0.0
        %4952 = vmatprep.mubr.f32.mxu0 0.0
        %4953 = vmatmul.mubr.f32.gmra.mxu0 %v4886
        %v4954 = vpop.f32.mrf.mxu0
        %v4955 = vadd.f32 0.0, %v4954
        %v4956 = vpop.f32.mrf.mxu0
        %4957 = vdwg.mxu0
        %v4959 = vsel %vm1060, %v4880, 0
        %4961 = vmatprep.subr.mxu0 0.0
        %4962 = vmatpush1.msra.mxu0 0.0
        %4963 = vmatprep.subr.mxu0 0.0
        %4964 = vmatpush1.msra.mxu0 0.0
        %4965 = vmatprep.subr.mxu0 0.0
        %4966 = vmatpush1.msra.mxu0 0.0
        %4967 = vmatprep.subr.mxu0 0.0
        %4968 = vmatpush1.msra.mxu0 0.0
        %4969 = vmatprep.subr.mxu0 0.0
        %4970 = vmatpush1.msra.mxu0 0.0
        %4971 = vmatprep.subr.mxu0 0.0
        %4972 = vmatpush1.msra.mxu0 0.0
        %4973 = vmatprep.subr.mxu0 0.0
        %4974 = vmatpush1.msra.mxu0 0.0
        %4975 = vmatprep.subr.mxu0 0.0
        %4976 = vmatpush1.msra.mxu0 0.0
        %4977 = vmatprep.subr.mxu0 0.0
        %4978 = vmatpush1.msra.mxu0 0.0
        %4979 = vmatprep.subr.mxu0 0.0
        %4980 = vmatpush1.msra.mxu0 0.0
        %4981 = vmatprep.subr.mxu0 0.0
        %4982 = vmatpush1.msra.mxu0 0.0
        %4983 = vmatprep.subr.mxu0 0.0
        %4984 = vmatpush1.msra.mxu0 0.0
        %4985 = vmatprep.subr.mxu0 0.0
        %4986 = vmatpush1.msra.mxu0 0.0
        %4987 = vmatprep.subr.mxu0 0.0
        %4988 = vmatpush1.msra.mxu0 0.0
        %4989 = vmatprep.subr.mxu0 0.0
        %4990 = vmatpush1.msra.mxu0 0.0
        %4991 = vmatprep.subr.mxu0 0.0
        %4992 = vmatpush1.msra.mxu0 %v4526
        %4993 = vmatprep.subr.mxu0 0.0
        %4994 = vmatpush2.msra.mxu0 0.0
        %4995 = vmatprep.subr.mxu0 0.0
        %4996 = vmatpush2.msra.mxu0 0.0
        %4997 = vmatprep.subr.mxu0 0.0
        %4998 = vmatpush2.msra.mxu0 0.0
        %4999 = vmatprep.subr.mxu0 0.0
        %5000 = vmatpush2.msra.mxu0 0.0
        %5001 = vmatprep.subr.mxu0 0.0
        %5002 = vmatpush2.msra.mxu0 0.0
        %5003 = vmatprep.subr.mxu0 0.0
        %5004 = vmatpush2.msra.mxu0 0.0
        %5005 = vmatprep.subr.mxu0 0.0
        %5006 = vmatpush2.msra.mxu0 0.0
        %5007 = vmatprep.subr.mxu0 0.0
        %5008 = vmatpush2.msra.mxu0 0.0
        %5009 = vmatprep.subr.mxu0 0.0
        %5010 = vmatpush2.msra.mxu0 0.0
        %5011 = vmatprep.subr.mxu0 0.0
        %5012 = vmatpush2.msra.mxu0 0.0
        %5013 = vmatprep.subr.mxu0 0.0
        %5014 = vmatpush2.msra.mxu0 0.0
        %5015 = vmatprep.subr.mxu0 0.0
        %5016 = vmatpush2.msra.mxu0 0.0
        %5017 = vmatprep.subr.mxu0 0.0
        %5018 = vmatpush2.msra.mxu0 0.0
        %5019 = vmatprep.subr.mxu0 0.0
        %5020 = vmatpush2.msra.mxu0 0.0
        %5021 = vmatprep.subr.mxu0 0.0
        %5022 = vmatpush2.msra.mxu0 0.0
        %5023 = vmatprep.subr.mxu0 0.0
        %5024 = vmatpush2.msra.mxu0 0.0
        %5025 = vmatprep.mubr.f32.mxu0 0.0
        %5026 = vmatmul.mubr.f32.gmra.mxu0 %v4959
        %v5027 = vpop.f32.mrf.mxu0
        %v5028 = vadd.f32 0.0, %v5027
        %v5029 = vpop.f32.mrf.mxu0
        %5030 = vdwg.mxu0
        %v5032 = vsel %vm1060, %v4882, 0
        %5034 = vmatprep.subr.mxu0 0.0
        %5035 = vmatpush1.msra.mxu0 0.0
        %5036 = vmatprep.subr.mxu0 0.0
        %5037 = vmatpush1.msra.mxu0 0.0
        %5038 = vmatprep.subr.mxu0 0.0
        %5039 = vmatpush1.msra.mxu0 0.0
        %5040 = vmatprep.subr.mxu0 0.0
        %5041 = vmatpush1.msra.mxu0 0.0
        %5042 = vmatprep.subr.mxu0 0.0
        %5043 = vmatpush1.msra.mxu0 0.0
        %5044 = vmatprep.subr.mxu0 0.0
        %5045 = vmatpush1.msra.mxu0 0.0
        %5046 = vmatprep.subr.mxu0 0.0
        %5047 = vmatpush1.msra.mxu0 0.0
        %5048 = vmatprep.subr.mxu0 0.0
        %5049 = vmatpush1.msra.mxu0 0.0
        %5050 = vmatprep.subr.mxu0 0.0
        %5051 = vmatpush1.msra.mxu0 0.0
        %5052 = vmatprep.subr.mxu0 0.0
        %5053 = vmatpush1.msra.mxu0 0.0
        %5054 = vmatprep.subr.mxu0 0.0
        %5055 = vmatpush1.msra.mxu0 0.0
        %5056 = vmatprep.subr.mxu0 0.0
        %5057 = vmatpush1.msra.mxu0 0.0
        %5058 = vmatprep.subr.mxu0 0.0
        %5059 = vmatpush1.msra.mxu0 0.0
        %5060 = vmatprep.subr.mxu0 0.0
        %5061 = vmatpush1.msra.mxu0 0.0
        %5062 = vmatprep.subr.mxu0 0.0
        %5063 = vmatpush1.msra.mxu0 0.0
        %5064 = vmatprep.subr.mxu0 0.0
        %5065 = vmatpush1.msra.mxu0 %v4527
        %5066 = vmatprep.subr.mxu0 0.0
        %5067 = vmatpush2.msra.mxu0 0.0
        %5068 = vmatprep.subr.mxu0 0.0
        %5069 = vmatpush2.msra.mxu0 0.0
        %5070 = vmatprep.subr.mxu0 0.0
        %5071 = vmatpush2.msra.mxu0 0.0
        %5072 = vmatprep.subr.mxu0 0.0
        %5073 = vmatpush2.msra.mxu0 0.0
        %5074 = vmatprep.subr.mxu0 0.0
        %5075 = vmatpush2.msra.mxu0 0.0
        %5076 = vmatprep.subr.mxu0 0.0
        %5077 = vmatpush2.msra.mxu0 0.0
        %5078 = vmatprep.subr.mxu0 0.0
        %5079 = vmatpush2.msra.mxu0 0.0
        %5080 = vmatprep.subr.mxu0 0.0
        %5081 = vmatpush2.msra.mxu0 0.0
        %5082 = vmatprep.subr.mxu0 0.0
        %5083 = vmatpush2.msra.mxu0 0.0
        %5084 = vmatprep.subr.mxu0 0.0
        %5085 = vmatpush2.msra.mxu0 0.0
        %5086 = vmatprep.subr.mxu0 0.0
        %5087 = vmatpush2.msra.mxu0 0.0
        %5088 = vmatprep.subr.mxu0 0.0
        %5089 = vmatpush2.msra.mxu0 0.0
        %5090 = vmatprep.subr.mxu0 0.0
        %5091 = vmatpush2.msra.mxu0 0.0
        %5092 = vmatprep.subr.mxu0 0.0
        %5093 = vmatpush2.msra.mxu0 0.0
        %5094 = vmatprep.subr.mxu0 0.0
        %5095 = vmatpush2.msra.mxu0 0.0
        %5096 = vmatprep.subr.mxu0 0.0
        %5097 = vmatpush2.msra.mxu0 0.0
        %5098 = vmatprep.mubr.f32.mxu0 0.0
        %5099 = vmatmul.mubr.f32.gmra.mxu0 %v5032
        %v5100 = vpop.f32.mrf.mxu0
        %v5101 = vadd.f32 0.0, %v5100
        %v5102 = vpop.f32.mrf.mxu0
        %5103 = vdwg.mxu0
        %v5105 = vsel %vm1060, %v4884, 0
        %5107 = vmatprep.subr.mxu0 0.0
        %5108 = vmatpush1.msra.mxu0 0.0
        %5109 = vmatprep.subr.mxu0 0.0
        %5110 = vmatpush1.msra.mxu0 0.0
        %5111 = vmatprep.subr.mxu0 0.0
        %5112 = vmatpush1.msra.mxu0 0.0
        %5113 = vmatprep.subr.mxu0 0.0
        %5114 = vmatpush1.msra.mxu0 0.0
        %5115 = vmatprep.subr.mxu0 0.0
        %5116 = vmatpush1.msra.mxu0 0.0
        %5117 = vmatprep.subr.mxu0 0.0
        %5118 = vmatpush1.msra.mxu0 0.0
        %5119 = vmatprep.subr.mxu0 0.0
        %5120 = vmatpush1.msra.mxu0 0.0
        %5121 = vmatprep.subr.mxu0 0.0
        %5122 = vmatpush1.msra.mxu0 0.0
        %5123 = vmatprep.subr.mxu0 0.0
        %5124 = vmatpush1.msra.mxu0 0.0
        %5125 = vmatprep.subr.mxu0 0.0
        %5126 = vmatpush1.msra.mxu0 0.0
        %5127 = vmatprep.subr.mxu0 0.0
        %5128 = vmatpush1.msra.mxu0 0.0
        %5129 = vmatprep.subr.mxu0 0.0
        %5130 = vmatpush1.msra.mxu0 0.0
        %5131 = vmatprep.subr.mxu0 0.0
        %5132 = vmatpush1.msra.mxu0 0.0
        %5133 = vmatprep.subr.mxu0 0.0
        %5134 = vmatpush1.msra.mxu0 0.0
        %5135 = vmatprep.subr.mxu0 0.0
        %5136 = vmatpush1.msra.mxu0 0.0
        %5137 = vmatprep.subr.mxu0 0.0
        %5138 = vmatpush1.msra.mxu0 %v4528
        %5139 = vmatprep.subr.mxu0 0.0
        %5140 = vmatpush2.msra.mxu0 0.0
        %5141 = vmatprep.subr.mxu0 0.0
        %5142 = vmatpush2.msra.mxu0 0.0
        %5143 = vmatprep.subr.mxu0 0.0
        %5144 = vmatpush2.msra.mxu0 0.0
        %5145 = vmatprep.subr.mxu0 0.0
        %5146 = vmatpush2.msra.mxu0 0.0
        %5147 = vmatprep.subr.mxu0 0.0
        %5148 = vmatpush2.msra.mxu0 0.0
        %5149 = vmatprep.subr.mxu0 0.0
        %5150 = vmatpush2.msra.mxu0 0.0
        %5151 = vmatprep.subr.mxu0 0.0
        %5152 = vmatpush2.msra.mxu0 0.0
        %5153 = vmatprep.subr.mxu0 0.0
        %5154 = vmatpush2.msra.mxu0 0.0
        %5155 = vmatprep.subr.mxu0 0.0
        %5156 = vmatpush2.msra.mxu0 0.0
        %5157 = vmatprep.subr.mxu0 0.0
        %5158 = vmatpush2.msra.mxu0 0.0
        %5159 = vmatprep.subr.mxu0 0.0
        %5160 = vmatpush2.msra.mxu0 0.0
        %5161 = vmatprep.subr.mxu0 0.0
        %5162 = vmatpush2.msra.mxu0 0.0
        %5163 = vmatprep.subr.mxu0 0.0
        %5164 = vmatpush2.msra.mxu0 0.0
        %5165 = vmatprep.subr.mxu0 0.0
        %5166 = vmatpush2.msra.mxu0 0.0
        %5167 = vmatprep.subr.mxu0 0.0
        %5168 = vmatpush2.msra.mxu0 0.0
        %5169 = vmatprep.subr.mxu0 0.0
        %5170 = vmatpush2.msra.mxu0 0.0
        %5171 = vmatprep.mubr.f32.mxu0 0.0
        %5172 = vmatmul.mubr.f32.gmra.mxu0 %v5105
        %v5173 = vpop.f32.mrf.mxu0
        %v5174 = vadd.f32 0.0, %v5173
        %v5175 = vpop.f32.mrf.mxu0
        %5176 = vdwg.mxu0
        %v5177 = vcombine.low %v4955, %v5101
        %v5178 = vcombine.high %v4955, %v5101
        %v5180 = vunpack.c.l.s4 1983009808
        %v5181 = vunpack.c.0.s8 %v5180
        %v5182 = vlaneseq
        %v5183 = vshrl.u32 %v5182, 7
        %v5184 = vsub.s32 %v5181, %v5183
        %v5185 = vrot.slane %v5177, %v5184
        %v5187 = vunpack.c.l.s4 1983009808
        %v5188 = vunpack.c.0.s8 %v5187
        %v5189 = vlaneseq
        %v5190 = vshrl.u32 %v5189, 7
        %v5191 = vsub.s32 %v5188, %v5190
        %v5192 = vrot.slane %v5178, %v5191
        %v5193 = vcombine.low %v5028, %v5174
        %v5194 = vcombine.high %v5028, %v5174
        %v5196 = vunpack.c.l.s4 1983009808
        %v5197 = vunpack.c.0.s8 %v5196
        %v5198 = vlaneseq
        %v5199 = vshrl.u32 %v5198, 7
        %v5200 = vsub.s32 %v5197, %v5199
        %v5201 = vrot.slane %v5193, %v5200
        %v5203 = vunpack.c.l.s4 1983009808
        %v5204 = vunpack.c.0.s8 %v5203
        %v5205 = vlaneseq
        %v5206 = vshrl.u32 %v5205, 7
        %v5207 = vsub.s32 %v5204, %v5206
        %v5208 = vrot.slane %v5194, %v5207
        %v5209 = vcombine.low %v5185, %v5201
        %v5210 = vcombine.high %v5185, %v5201
        %v5212 = vunpack.c.l.s4 1934713408
        %v5213 = vunpack.c.0.s8 %v5212
        %v5214 = vlaneseq
        %v5215 = vshrl.u32 %v5214, 7
        %v5216 = vsub.s32 %v5213, %v5215
        %v5217 = vrot.slane %v5209, %v5216
        %v5219 = vunpack.c.l.s4 1934713408
        %v5220 = vunpack.c.0.s8 %v5219
        %v5221 = vlaneseq
        %v5222 = vshrl.u32 %v5221, 7
        %v5223 = vsub.s32 %v5220, %v5222
        %v5224 = vrot.slane %v5210, %v5223
        %v5225 = vcombine.low %v5192, %v5208
        %v5226 = vcombine.high %v5192, %v5208
        %v5228 = vunpack.c.l.s4 1934713408
        %v5229 = vunpack.c.0.s8 %v5228
        %v5230 = vlaneseq
        %v5231 = vshrl.u32 %v5230, 7
        %v5232 = vsub.s32 %v5229, %v5231
        %v5233 = vrot.slane %v5225, %v5232
        %v5235 = vunpack.c.l.s4 1934713408
        %v5236 = vunpack.c.0.s8 %v5235
        %v5237 = vlaneseq
        %v5238 = vshrl.u32 %v5237, 7
        %v5239 = vsub.s32 %v5236, %v5238
        %v5240 = vrot.slane %v5226, %v5239
        %v5241 = vcombine.high %v5217, 0.0
        %v5242 = vcombine.high %v5224, 0.0
        %v5243 = vcombine.high %v5233, 0.0
        %v5244 = vcombine.high %v5240, 0.0
        %v5245 = vcombine.low %v5217, %v5224
        %v5247 = vunpack.c.l.s4 1983009808
        %v5248 = vunpack.c.0.s8 %v5247
        %v5249 = vlaneseq
        %v5250 = vshrl.u32 %v5249, 7
        %v5251 = vsub.s32 %v5248, %v5250
        %v5252 = vrot.slane %v5245, %v5251
        %v5253 = vcombine.low %v5241, %v5242
        %v5255 = vunpack.c.l.s4 1983009808
        %v5256 = vunpack.c.0.s8 %v5255
        %v5257 = vlaneseq
        %v5258 = vshrl.u32 %v5257, 7
        %v5259 = vsub.s32 %v5256, %v5258
        %v5260 = vrot.slane %v5253, %v5259
        %v5261 = vcombine.low %v5233, %v5240
        %v5263 = vunpack.c.l.s4 1983009808
        %v5264 = vunpack.c.0.s8 %v5263
        %v5265 = vlaneseq
        %v5266 = vshrl.u32 %v5265, 7
        %v5267 = vsub.s32 %v5264, %v5266
        %v5268 = vrot.slane %v5261, %v5267
        %v5269 = vcombine.low %v5243, %v5244
        %v5271 = vunpack.c.l.s4 1983009808
        %v5272 = vunpack.c.0.s8 %v5271
        %v5273 = vlaneseq
        %v5274 = vshrl.u32 %v5273, 7
        %v5275 = vsub.s32 %v5272, %v5274
        %v5276 = vrot.slane %v5269, %v5275
        %v5277 = vcombine.low %v5252, %v5260
        %v5278 = vcombine.high %v5252, %v5260
        %v5280 = vunpack.c.l.s4 1934713408
        %v5281 = vunpack.c.0.s8 %v5280
        %v5282 = vlaneseq
        %v5283 = vshrl.u32 %v5282, 7
        %v5284 = vsub.s32 %v5281, %v5283
        %v5285 = vrot.slane %v5277, %v5284
        %v5287 = vunpack.c.l.s4 1934713408
        %v5288 = vunpack.c.0.s8 %v5287
        %v5289 = vlaneseq
        %v5290 = vshrl.u32 %v5289, 7
        %v5291 = vsub.s32 %v5288, %v5290
        %v5292 = vrot.slane %v5278, %v5291
        %v5293 = vcombine.low %v5268, %v5276
        %v5294 = vcombine.high %v5268, %v5276
        %v5296 = vunpack.c.l.s4 1934713408
        %v5297 = vunpack.c.0.s8 %v5296
        %v5298 = vlaneseq
        %v5299 = vshrl.u32 %v5298, 7
        %v5300 = vsub.s32 %v5297, %v5299
        %v5301 = vrot.slane %v5293, %v5300
        %v5303 = vunpack.c.l.s4 1934713408
        %v5304 = vunpack.c.0.s8 %v5303
        %v5305 = vlaneseq
        %v5306 = vshrl.u32 %v5305, 7
        %v5307 = vsub.s32 %v5304, %v5306
        %v5308 = vrot.slane %v5294, %v5307
        %v5309 = vcombine.low %v5285, %v5301
        %v5310 = vcombine.high %v5285, %v5301
        %v5311 = vcombine.low %v5292, %v5308
        %v5312 = vcombine.high %v5292, %v5308
        %5314 = vrot.lane.b32.xlu0 %v5310, 8
        %v5315 = vpop.permute.xlu0 %5314
        %5318 = vrot.lane.b32.xlu0 %v5311, 16
        %v5319 = vpop.permute.xlu0 %5318
        %5322 = vrot.lane.b32.xlu0 %v5312, 24
        %v5323 = vpop.permute.xlu0 %5322
        %v5325 = vsel %vm1060, %v5309, %v5315
        %v5326 = vsel %vm1858, %v5325, %v5319
        %v5327 = vsel %vm1860, %v5326, %v5323
        %v5328 = vlaneseq
        %v5329 = vshrl.u32 %v5328, 7
        %v5330 = vsub.s32 7, %v5329
        %v5331 = vrot.slane %v3968, %v5330
        %v5333 = vsel %vm501, %v5327, 0
        %5335 = vmatprep.subr.mxu0 0.0
        %5336 = vmatpush1.msra.mxu0 0.0
        %5337 = vmatprep.subr.mxu0 0.0
        %5338 = vmatpush1.msra.mxu0 0.0
        %5339 = vmatprep.subr.mxu0 0.0
        %5340 = vmatpush1.msra.mxu0 0.0
        %5341 = vmatprep.subr.mxu0 0.0
        %5342 = vmatpush1.msra.mxu0 0.0
        %5343 = vmatprep.subr.mxu0 0.0
        %5344 = vmatpush1.msra.mxu0 0.0
        %5345 = vmatprep.subr.mxu0 0.0
        %5346 = vmatpush1.msra.mxu0 0.0
        %5347 = vmatprep.subr.mxu0 0.0
        %5348 = vmatpush1.msra.mxu0 0.0
        %5349 = vmatprep.subr.mxu0 0.0
        %5350 = vmatpush1.msra.mxu0 0.0
        %5351 = vmatprep.subr.mxu0 0.0
        %5352 = vmatpush1.msra.mxu0 0.0
        %5353 = vmatprep.subr.mxu0 0.0
        %5354 = vmatpush1.msra.mxu0 0.0
        %5355 = vmatprep.subr.mxu0 0.0
        %5356 = vmatpush1.msra.mxu0 0.0
        %5357 = vmatprep.subr.mxu0 0.0
        %5358 = vmatpush1.msra.mxu0 0.0
        %5359 = vmatprep.subr.mxu0 0.0
        %5360 = vmatpush1.msra.mxu0 %v4086
        %5361 = vmatprep.subr.mxu0 0.0
        %5362 = vmatpush1.msra.mxu0 %v4085
        %5363 = vmatprep.subr.mxu0 0.0
        %5364 = vmatpush1.msra.mxu0 %v4084
        %5365 = vmatprep.subr.mxu0 0.0
        %5366 = vmatpush1.msra.mxu0 %v4083
        %5367 = vmatprep.subr.mxu0 0.0
        %5368 = vmatpush2.msra.mxu0 0.0
        %5369 = vmatprep.subr.mxu0 0.0
        %5370 = vmatpush2.msra.mxu0 0.0
        %5371 = vmatprep.subr.mxu0 0.0
        %5372 = vmatpush2.msra.mxu0 0.0
        %5373 = vmatprep.subr.mxu0 0.0
        %5374 = vmatpush2.msra.mxu0 0.0
        %5375 = vmatprep.subr.mxu0 0.0
        %5376 = vmatpush2.msra.mxu0 0.0
        %5377 = vmatprep.subr.mxu0 0.0
        %5378 = vmatpush2.msra.mxu0 0.0
        %5379 = vmatprep.subr.mxu0 0.0
        %5380 = vmatpush2.msra.mxu0 0.0
        %5381 = vmatprep.subr.mxu0 0.0
        %5382 = vmatpush2.msra.mxu0 0.0
        %5383 = vmatprep.subr.mxu0 0.0
        %5384 = vmatpush2.msra.mxu0 0.0
        %5385 = vmatprep.subr.mxu0 0.0
        %5386 = vmatpush2.msra.mxu0 0.0
        %5387 = vmatprep.subr.mxu0 0.0
        %5388 = vmatpush2.msra.mxu0 0.0
        %5389 = vmatprep.subr.mxu0 0.0
        %5390 = vmatpush2.msra.mxu0 0.0
        %5391 = vmatprep.subr.mxu0 0.0
        %5392 = vmatpush2.msra.mxu0 0.0
        %5393 = vmatprep.subr.mxu0 0.0
        %5394 = vmatpush2.msra.mxu0 0.0
        %5395 = vmatprep.subr.mxu0 0.0
        %5396 = vmatpush2.msra.mxu0 0.0
        %5397 = vmatprep.subr.mxu0 0.0
        %5398 = vmatpush2.msra.mxu0 0.0
        %5399 = vmatprep.mubr.f32.mxu0 0.0
        %5400 = vmatmul.mubr.f32.gmra.mxu0 %v5333
        %v5401 = vpop.f32.mrf.mxu0
        %v5402 = vadd.f32 %v5331, %v5401
        %v5403 = vpop.f32.mrf.mxu0
        %5404 = vdwg.mxu0
        %v5405 = vadd.f32 %v3966, %v5402
        %v5406 = vsel %vm501, %v5405, 0.0
        %5407 = vadd.xlane.f32.xlu0 %v5406
        %v5408 = vpop.xlane.xlu0 %5407
        %v5409 = vmul.f32 %v5408, %v505
        %v5410 = vsub.f32 %v5405, %v5409
        %v5411 = vmul.f32 %v5410, %v5410
        %v5412 = vsel %vm501, %v5411, 0.0
        %5413 = vadd.xlane.f32.xlu0 %v5412
        %v5414 = vpop.xlane.xlu0 %5413
        %v5415 = vmul.f32 %v5414, 0.032258064
        %v5416 = vlaneseq
        %v5417 = vshrl.u32 %v5416, 7
        %v5418 = vsub.s32 1, %v5417
        %v5419 = vrot.slane %v3968, %v5418
        %v5420 = vmul.f32 %v5419, %v5410
        %v5421 = vrsqrt.pop %v5415
        %v5422 = vmul.f32 %v5415, %v5421
        %vm5423 = vcmp.eq.f32.partialorder %v5415, inf
        %v5424 = vsel %vm5423, %v5415, %v5422
        %vm5425 = vcmp.eq.f32.partialorder %v5415, 0.0
        %v5426 = vand.u32 %v5415, 2147483648
        %v5427 = vsel %vm5425, %v5426, %v5424
        %v5428 = vadd.f32 %v5427, 1e-06
        %v5429 = vrcp.pop %v5428
        %v5430 = vmul.f32 %v5420, %v5429
        %v5431 = vlaneseq
        %v5432 = vshrl.u32 %v5431, 7
        %v5433 = vsub.s32 4, %v5432
        %v5434 = vrot.slane %v3968, %v5433
        %v5435 = vadd.f32 %v5430, %v5434
        %s5436 = scalar_lea.vmem %s6, 32
        %v5437 = vld [vmem:[%s5436] sm:$0xff]
        %v5438 = vld [vmem:[%s5436 + $0x8] sm:$0xff]
        %v5439 = vld [vmem:[%s5436 + $0x10] sm:$0xff]
        %v5440 = vld [vmem:[%s5436 + $0x18] sm:$0xff]
        %v5441 = vlaneseq
        %v5442 = vshrl.u32 %v5441, 7
        %v5443 = vsub.s32 0, %v5442
        %v5444 = vrot.slane %v3969, %v5443
        %v5446 = vsel %vm501, %v5435, 0
        %5448 = vmatprep.subr.mxu0 0.0
        %5449 = vmatpush1.msra.mxu0 0.0
        %5450 = vmatprep.subr.mxu0 0.0
        %5451 = vmatpush1.msra.mxu0 0.0
        %5452 = vmatprep.subr.mxu0 0.0
        %5453 = vmatpush1.msra.mxu0 0.0
        %5454 = vmatprep.subr.mxu0 0.0
        %5455 = vmatpush1.msra.mxu0 0.0
        %5456 = vmatprep.subr.mxu0 0.0
        %5457 = vmatpush1.msra.mxu0 0.0
        %5458 = vmatprep.subr.mxu0 0.0
        %5459 = vmatpush1.msra.mxu0 0.0
        %5460 = vmatprep.subr.mxu0 0.0
        %5461 = vmatpush1.msra.mxu0 0.0
        %5462 = vmatprep.subr.mxu0 0.0
        %5463 = vmatpush1.msra.mxu0 0.0
        %5464 = vmatprep.subr.mxu0 0.0
        %5465 = vmatpush1.msra.mxu0 0.0
        %5466 = vmatprep.subr.mxu0 0.0
        %5467 = vmatpush1.msra.mxu0 0.0
        %5468 = vmatprep.subr.mxu0 0.0
        %5469 = vmatpush1.msra.mxu0 0.0
        %5470 = vmatprep.subr.mxu0 0.0
        %5471 = vmatpush1.msra.mxu0 0.0
        %5472 = vmatprep.subr.mxu0 0.0
        %5473 = vmatpush1.msra.mxu0 %v5440
        %5474 = vmatprep.subr.mxu0 0.0
        %5475 = vmatpush1.msra.mxu0 %v5439
        %5476 = vmatprep.subr.mxu0 0.0
        %5477 = vmatpush1.msra.mxu0 %v5438
        %5478 = vmatprep.subr.mxu0 0.0
        %5479 = vmatpush1.msra.mxu0 %v5437
        %5480 = vmatprep.subr.mxu0 0.0
        %5481 = vmatpush2.msra.mxu0 0.0
        %5482 = vmatprep.subr.mxu0 0.0
        %5483 = vmatpush2.msra.mxu0 0.0
        %5484 = vmatprep.subr.mxu0 0.0
        %5485 = vmatpush2.msra.mxu0 0.0
        %5486 = vmatprep.subr.mxu0 0.0
        %5487 = vmatpush2.msra.mxu0 0.0
        %5488 = vmatprep.subr.mxu0 0.0
        %5489 = vmatpush2.msra.mxu0 0.0
        %5490 = vmatprep.subr.mxu0 0.0
        %5491 = vmatpush2.msra.mxu0 0.0
        %5492 = vmatprep.subr.mxu0 0.0
        %5493 = vmatpush2.msra.mxu0 0.0
        %5494 = vmatprep.subr.mxu0 0.0
        %5495 = vmatpush2.msra.mxu0 0.0
        %5496 = vmatprep.subr.mxu0 0.0
        %5497 = vmatpush2.msra.mxu0 0.0
        %5498 = vmatprep.subr.mxu0 0.0
        %5499 = vmatpush2.msra.mxu0 0.0
        %5500 = vmatprep.subr.mxu0 0.0
        %5501 = vmatpush2.msra.mxu0 0.0
        %5502 = vmatprep.subr.mxu0 0.0
        %5503 = vmatpush2.msra.mxu0 0.0
        %5504 = vmatprep.subr.mxu0 0.0
        %5505 = vmatpush2.msra.mxu0 0.0
        %5506 = vmatprep.subr.mxu0 0.0
        %5507 = vmatpush2.msra.mxu0 0.0
        %5508 = vmatprep.subr.mxu0 0.0
        %5509 = vmatpush2.msra.mxu0 0.0
        %5510 = vmatprep.subr.mxu0 0.0
        %5511 = vmatpush2.msra.mxu0 0.0
        %5512 = vmatprep.mubr.f32.mxu0 0.0
        %5513 = vmatmul.mubr.f32.gmra.mxu0 %v5446
        %v5514 = vpop.f32.mrf.mxu0
        %v5515 = vadd.f32 %v5444, %v5514
        %v5516 = vpop.f32.mrf.mxu0
        %5517 = vdwg.mxu0
        %s5518 = scalar_lea.vmem %s7, 32
        %v5519 = vld [vmem:[%s5518] sm:$0xff]
        %v5520 = vld [vmem:[%s5518 + $0x8] sm:$0xff]
        %v5521 = vld [vmem:[%s5518 + $0x10] sm:$0xff]
        %v5522 = vld [vmem:[%s5518 + $0x18] sm:$0xff]
        %v5523 = vlaneseq
        %v5524 = vshrl.u32 %v5523, 7
        %v5525 = vsub.s32 1, %v5524
        %v5526 = vrot.slane %v3969, %v5525
        %5527 = vmatprep.subr.mxu0 0.0
        %5528 = vmatpush1.msra.mxu0 0.0
        %5529 = vmatprep.subr.mxu0 0.0
        %5530 = vmatpush1.msra.mxu0 0.0
        %5531 = vmatprep.subr.mxu0 0.0
        %5532 = vmatpush1.msra.mxu0 0.0
        %5533 = vmatprep.subr.mxu0 0.0
        %5534 = vmatpush1.msra.mxu0 0.0
        %5535 = vmatprep.subr.mxu0 0.0
        %5536 = vmatpush1.msra.mxu0 0.0
        %5537 = vmatprep.subr.mxu0 0.0
        %5538 = vmatpush1.msra.mxu0 0.0
        %5539 = vmatprep.subr.mxu0 0.0
        %5540 = vmatpush1.msra.mxu0 0.0
        %5541 = vmatprep.subr.mxu0 0.0
        %5542 = vmatpush1.msra.mxu0 0.0
        %5543 = vmatprep.subr.mxu0 0.0
        %5544 = vmatpush1.msra.mxu0 0.0
        %5545 = vmatprep.subr.mxu0 0.0
        %5546 = vmatpush1.msra.mxu0 0.0
        %5547 = vmatprep.subr.mxu0 0.0
        %5548 = vmatpush1.msra.mxu0 0.0
        %5549 = vmatprep.subr.mxu0 0.0
        %5550 = vmatpush1.msra.mxu0 0.0
        %5551 = vmatprep.subr.mxu0 0.0
        %5552 = vmatpush1.msra.mxu0 %v5522
        %5553 = vmatprep.subr.mxu0 0.0
        %5554 = vmatpush1.msra.mxu0 %v5521
        %5555 = vmatprep.subr.mxu0 0.0
        %5556 = vmatpush1.msra.mxu0 %v5520
        %5557 = vmatprep.subr.mxu0 0.0
        %5558 = vmatpush1.msra.mxu0 %v5519
        %5559 = vmatprep.subr.mxu0 0.0
        %5560 = vmatpush2.msra.mxu0 0.0
        %5561 = vmatprep.subr.mxu0 0.0
        %5562 = vmatpush2.msra.mxu0 0.0
        %5563 = vmatprep.subr.mxu0 0.0
        %5564 = vmatpush2.msra.mxu0 0.0
        %5565 = vmatprep.subr.mxu0 0.0
        %5566 = vmatpush2.msra.mxu0 0.0
        %5567 = vmatprep.subr.mxu0 0.0
        %5568 = vmatpush2.msra.mxu0 0.0
        %5569 = vmatprep.subr.mxu0 0.0
        %5570 = vmatpush2.msra.mxu0 0.0
        %5571 = vmatprep.subr.mxu0 0.0
        %5572 = vmatpush2.msra.mxu0 0.0
        %5573 = vmatprep.subr.mxu0 0.0
        %5574 = vmatpush2.msra.mxu0 0.0
        %5575 = vmatprep.subr.mxu0 0.0
        %5576 = vmatpush2.msra.mxu0 0.0
        %5577 = vmatprep.subr.mxu0 0.0
        %5578 = vmatpush2.msra.mxu0 0.0
        %5579 = vmatprep.subr.mxu0 0.0
        %5580 = vmatpush2.msra.mxu0 0.0
        %5581 = vmatprep.subr.mxu0 0.0
        %5582 = vmatpush2.msra.mxu0 0.0
        %5583 = vmatprep.subr.mxu0 0.0
        %5584 = vmatpush2.msra.mxu0 0.0
        %5585 = vmatprep.subr.mxu0 0.0
        %5586 = vmatpush2.msra.mxu0 0.0
        %5587 = vmatprep.subr.mxu0 0.0
        %5588 = vmatpush2.msra.mxu0 0.0
        %5589 = vmatprep.subr.mxu0 0.0
        %5590 = vmatpush2.msra.mxu0 0.0
        %5591 = vmatprep.mubr.f32.mxu0 0.0
        %5592 = vmatmul.mubr.f32.gmra.mxu0 %v2060
        %v5593 = vpop.f32.mrf.mxu0
        %v5594 = vadd.f32 %v5526, %v5593
        %v5595 = vpop.f32.mrf.mxu0
        %5596 = vmatprep.mubr.f32.mxu0 0.0
        %5597 = vmatmul.mubr.f32.gmra.mxu0 %v2063
        %v5598 = vpop.f32.mrf.mxu0
        %v5599 = vadd.f32 %v5526, %v5598
        %v5600 = vpop.f32.mrf.mxu0
        %5601 = vdwg.mxu0
        %s5602 = scalar_lea.vmem %s8, 32
        %v5603 = vld [vmem:[%s5602] sm:$0xff]
        %v5604 = vld [vmem:[%s5602 + $0x8] sm:$0xff]
        %v5605 = vld [vmem:[%s5602 + $0x10] sm:$0xff]
        %v5606 = vld [vmem:[%s5602 + $0x18] sm:$0xff]
        %5608 = vrot.lane.b32.xlu0 %v5515, 120
        %v5609 = vpop.permute.xlu0 %5608
        %5611 = vrot.lane.b32.xlu0 %v5515, 112
        %v5612 = vpop.permute.xlu0 %5611
        %5614 = vrot.lane.b32.xlu0 %v5515, 104
        %v5615 = vpop.permute.xlu0 %5614
        %v5617 = vcombine.low %v5515, %v5612
        %v5618 = vcombine.high %v5515, %v5612
        %v5620 = vunpack.c.l.s4 1983009808
        %v5621 = vunpack.c.0.s8 %v5620
        %v5622 = vlaneseq
        %v5623 = vshrl.u32 %v5622, 7
        %v5624 = vsub.s32 %v5621, %v5623
        %v5625 = vrot.slane %v5617, %v5624
        %v5627 = vunpack.c.l.s4 1983009808
        %v5628 = vunpack.c.0.s8 %v5627
        %v5629 = vlaneseq
        %v5630 = vshrl.u32 %v5629, 7
        %v5631 = vsub.s32 %v5628, %v5630
        %v5632 = vrot.slane %v5618, %v5631
        %v5633 = vcombine.low %v5609, %v5615
        %v5634 = vcombine.high %v5609, %v5615
        %v5636 = vunpack.c.l.s4 1983009808
        %v5637 = vunpack.c.0.s8 %v5636
        %v5638 = vlaneseq
        %v5639 = vshrl.u32 %v5638, 7
        %v5640 = vsub.s32 %v5637, %v5639
        %v5641 = vrot.slane %v5633, %v5640
        %v5643 = vunpack.c.l.s4 1983009808
        %v5644 = vunpack.c.0.s8 %v5643
        %v5645 = vlaneseq
        %v5646 = vshrl.u32 %v5645, 7
        %v5647 = vsub.s32 %v5644, %v5646
        %v5648 = vrot.slane %v5634, %v5647
        %v5649 = vcombine.low %v5625, %v5641
        %v5650 = vcombine.high %v5625, %v5641
        %v5652 = vunpack.c.l.s4 1934713408
        %v5653 = vunpack.c.0.s8 %v5652
        %v5654 = vlaneseq
        %v5655 = vshrl.u32 %v5654, 7
        %v5656 = vsub.s32 %v5653, %v5655
        %v5657 = vrot.slane %v5649, %v5656
        %v5659 = vunpack.c.l.s4 1934713408
        %v5660 = vunpack.c.0.s8 %v5659
        %v5661 = vlaneseq
        %v5662 = vshrl.u32 %v5661, 7
        %v5663 = vsub.s32 %v5660, %v5662
        %v5664 = vrot.slane %v5650, %v5663
        %v5665 = vcombine.low %v5632, %v5648
        %v5666 = vcombine.high %v5632, %v5648
        %v5668 = vunpack.c.l.s4 1934713408
        %v5669 = vunpack.c.0.s8 %v5668
        %v5670 = vlaneseq
        %v5671 = vshrl.u32 %v5670, 7
        %v5672 = vsub.s32 %v5669, %v5671
        %v5673 = vrot.slane %v5665, %v5672
        %v5675 = vunpack.c.l.s4 1934713408
        %v5676 = vunpack.c.0.s8 %v5675
        %v5677 = vlaneseq
        %v5678 = vshrl.u32 %v5677, 7
        %v5679 = vsub.s32 %v5676, %v5678
        %v5680 = vrot.slane %v5666, %v5679
        %v5681 = vcombine.high %v5657, 0.0
        %v5682 = vcombine.high %v5664, 0.0
        %v5683 = vcombine.high %v5673, 0.0
        %v5684 = vcombine.high %v5680, 0.0
        %v5685 = vcombine.low %v5657, %v5664
        %v5687 = vunpack.c.l.s4 1983009808
        %v5688 = vunpack.c.0.s8 %v5687
        %v5689 = vlaneseq
        %v5690 = vshrl.u32 %v5689, 7
        %v5691 = vsub.s32 %v5688, %v5690
        %v5692 = vrot.slane %v5685, %v5691
        %v5693 = vcombine.low %v5681, %v5682
        %v5695 = vunpack.c.l.s4 1983009808
        %v5696 = vunpack.c.0.s8 %v5695
        %v5697 = vlaneseq
        %v5698 = vshrl.u32 %v5697, 7
        %v5699 = vsub.s32 %v5696, %v5698
        %v5700 = vrot.slane %v5693, %v5699
        %v5701 = vcombine.low %v5673, %v5680
        %v5703 = vunpack.c.l.s4 1983009808
        %v5704 = vunpack.c.0.s8 %v5703
        %v5705 = vlaneseq
        %v5706 = vshrl.u32 %v5705, 7
        %v5707 = vsub.s32 %v5704, %v5706
        %v5708 = vrot.slane %v5701, %v5707
        %v5709 = vcombine.low %v5683, %v5684
        %v5711 = vunpack.c.l.s4 1983009808
        %v5712 = vunpack.c.0.s8 %v5711
        %v5713 = vlaneseq
        %v5714 = vshrl.u32 %v5713, 7
        %v5715 = vsub.s32 %v5712, %v5714
        %v5716 = vrot.slane %v5709, %v5715
        %v5717 = vcombine.low %v5692, %v5700
        %v5718 = vcombine.high %v5692, %v5700
        %v5720 = vunpack.c.l.s4 1934713408
        %v5721 = vunpack.c.0.s8 %v5720
        %v5722 = vlaneseq
        %v5723 = vshrl.u32 %v5722, 7
        %v5724 = vsub.s32 %v5721, %v5723
        %v5725 = vrot.slane %v5717, %v5724
        %v5727 = vunpack.c.l.s4 1934713408
        %v5728 = vunpack.c.0.s8 %v5727
        %v5729 = vlaneseq
        %v5730 = vshrl.u32 %v5729, 7
        %v5731 = vsub.s32 %v5728, %v5730
        %v5732 = vrot.slane %v5718, %v5731
        %v5733 = vcombine.low %v5708, %v5716
        %v5734 = vcombine.high %v5708, %v5716
        %v5736 = vunpack.c.l.s4 1934713408
        %v5737 = vunpack.c.0.s8 %v5736
        %v5738 = vlaneseq
        %v5739 = vshrl.u32 %v5738, 7
        %v5740 = vsub.s32 %v5737, %v5739
        %v5741 = vrot.slane %v5733, %v5740
        %v5743 = vunpack.c.l.s4 1934713408
        %v5744 = vunpack.c.0.s8 %v5743
        %v5745 = vlaneseq
        %v5746 = vshrl.u32 %v5745, 7
        %v5747 = vsub.s32 %v5744, %v5746
        %v5748 = vrot.slane %v5734, %v5747
        %v5749 = vcombine.low %v5725, %v5741
        %v5750 = vcombine.high %v5725, %v5741
        %v5751 = vcombine.low %v5732, %v5748
        %v5752 = vcombine.high %v5732, %v5748
        %5755 = vrot.lane.b32.xlu0 %v5594, 120
        %v5756 = vpop.permute.xlu0 %5755
        %5757 = vrot.lane.b32.xlu0 %v5599, 120
        %v5758 = vpop.permute.xlu0 %5757
        %5761 = vrot.lane.b32.xlu0 %v5594, 112
        %v5762 = vpop.permute.xlu0 %5761
        %5763 = vrot.lane.b32.xlu0 %v5599, 112
        %v5764 = vpop.permute.xlu0 %5763
        %5767 = vrot.lane.b32.xlu0 %v5594, 104
        %v5768 = vpop.permute.xlu0 %5767
        %5769 = vrot.lane.b32.xlu0 %v5599, 104
        %v5770 = vpop.permute.xlu0 %5769
        %v5773 = vcombine.low %v5594, %v5762
        %v5774 = vcombine.high %v5594, %v5762
        %v5776 = vunpack.c.l.s4 1983009808
        %v5777 = vunpack.c.0.s8 %v5776
        %v5778 = vlaneseq
        %v5779 = vshrl.u32 %v5778, 7
        %v5780 = vsub.s32 %v5777, %v5779
        %v5781 = vrot.slane %v5773, %v5780
        %v5783 = vunpack.c.l.s4 1983009808
        %v5784 = vunpack.c.0.s8 %v5783
        %v5785 = vlaneseq
        %v5786 = vshrl.u32 %v5785, 7
        %v5787 = vsub.s32 %v5784, %v5786
        %v5788 = vrot.slane %v5774, %v5787
        %v5789 = vcombine.low %v5756, %v5768
        %v5790 = vcombine.high %v5756, %v5768
        %v5792 = vunpack.c.l.s4 1983009808
        %v5793 = vunpack.c.0.s8 %v5792
        %v5794 = vlaneseq
        %v5795 = vshrl.u32 %v5794, 7
        %v5796 = vsub.s32 %v5793, %v5795
        %v5797 = vrot.slane %v5789, %v5796
        %v5799 = vunpack.c.l.s4 1983009808
        %v5800 = vunpack.c.0.s8 %v5799
        %v5801 = vlaneseq
        %v5802 = vshrl.u32 %v5801, 7
        %v5803 = vsub.s32 %v5800, %v5802
        %v5804 = vrot.slane %v5790, %v5803
        %v5805 = vcombine.low %v5781, %v5797
        %v5806 = vcombine.high %v5781, %v5797
        %v5808 = vunpack.c.l.s4 1934713408
        %v5809 = vunpack.c.0.s8 %v5808
        %v5810 = vlaneseq
        %v5811 = vshrl.u32 %v5810, 7
        %v5812 = vsub.s32 %v5809, %v5811
        %v5813 = vrot.slane %v5805, %v5812
        %v5815 = vunpack.c.l.s4 1934713408
        %v5816 = vunpack.c.0.s8 %v5815
        %v5817 = vlaneseq
        %v5818 = vshrl.u32 %v5817, 7
        %v5819 = vsub.s32 %v5816, %v5818
        %v5820 = vrot.slane %v5806, %v5819
        %v5821 = vcombine.low %v5788, %v5804
        %v5822 = vcombine.high %v5788, %v5804
        %v5824 = vunpack.c.l.s4 1934713408
        %v5825 = vunpack.c.0.s8 %v5824
        %v5826 = vlaneseq
        %v5827 = vshrl.u32 %v5826, 7
        %v5828 = vsub.s32 %v5825, %v5827
        %v5829 = vrot.slane %v5821, %v5828
        %v5831 = vunpack.c.l.s4 1934713408
        %v5832 = vunpack.c.0.s8 %v5831
        %v5833 = vlaneseq
        %v5834 = vshrl.u32 %v5833, 7
        %v5835 = vsub.s32 %v5832, %v5834
        %v5836 = vrot.slane %v5822, %v5835
        %v5837 = vcombine.high %v5813, 0.0
        %v5838 = vcombine.high %v5820, 0.0
        %v5839 = vcombine.high %v5829, 0.0
        %v5840 = vcombine.high %v5836, 0.0
        %v5841 = vcombine.low %v5599, %v5764
        %v5842 = vcombine.high %v5599, %v5764
        %v5844 = vunpack.c.l.s4 1983009808
        %v5845 = vunpack.c.0.s8 %v5844
        %v5846 = vlaneseq
        %v5847 = vshrl.u32 %v5846, 7
        %v5848 = vsub.s32 %v5845, %v5847
        %v5849 = vrot.slane %v5841, %v5848
        %v5851 = vunpack.c.l.s4 1983009808
        %v5852 = vunpack.c.0.s8 %v5851
        %v5853 = vlaneseq
        %v5854 = vshrl.u32 %v5853, 7
        %v5855 = vsub.s32 %v5852, %v5854
        %v5856 = vrot.slane %v5842, %v5855
        %v5857 = vcombine.low %v5758, %v5770
        %v5858 = vcombine.high %v5758, %v5770
        %v5860 = vunpack.c.l.s4 1983009808
        %v5861 = vunpack.c.0.s8 %v5860
        %v5862 = vlaneseq
        %v5863 = vshrl.u32 %v5862, 7
        %v5864 = vsub.s32 %v5861, %v5863
        %v5865 = vrot.slane %v5857, %v5864
        %v5867 = vunpack.c.l.s4 1983009808
        %v5868 = vunpack.c.0.s8 %v5867
        %v5869 = vlaneseq
        %v5870 = vshrl.u32 %v5869, 7
        %v5871 = vsub.s32 %v5868, %v5870
        %v5872 = vrot.slane %v5858, %v5871
        %v5873 = vcombine.low %v5849, %v5865
        %v5874 = vcombine.high %v5849, %v5865
        %v5876 = vunpack.c.l.s4 1934713408
        %v5877 = vunpack.c.0.s8 %v5876
        %v5878 = vlaneseq
        %v5879 = vshrl.u32 %v5878, 7
        %v5880 = vsub.s32 %v5877, %v5879
        %v5881 = vrot.slane %v5873, %v5880
        %v5883 = vunpack.c.l.s4 1934713408
        %v5884 = vunpack.c.0.s8 %v5883
        %v5885 = vlaneseq
        %v5886 = vshrl.u32 %v5885, 7
        %v5887 = vsub.s32 %v5884, %v5886
        %v5888 = vrot.slane %v5874, %v5887
        %v5889 = vcombine.low %v5856, %v5872
        %v5890 = vcombine.high %v5856, %v5872
        %v5892 = vunpack.c.l.s4 1934713408
        %v5893 = vunpack.c.0.s8 %v5892
        %v5894 = vlaneseq
        %v5895 = vshrl.u32 %v5894, 7
        %v5896 = vsub.s32 %v5893, %v5895
        %v5897 = vrot.slane %v5889, %v5896
        %v5899 = vunpack.c.l.s4 1934713408
        %v5900 = vunpack.c.0.s8 %v5899
        %v5901 = vlaneseq
        %v5902 = vshrl.u32 %v5901, 7
        %v5903 = vsub.s32 %v5900, %v5902
        %v5904 = vrot.slane %v5890, %v5903
        %v5905 = vcombine.high %v5881, 0.0
        %v5906 = vcombine.high %v5888, 0.0
        %v5907 = vcombine.high %v5897, 0.0
        %v5908 = vcombine.high %v5904, 0.0
        %v5909 = vcombine.low %v5813, %v5820
        %v5911 = vunpack.c.l.s4 1983009808
        %v5912 = vunpack.c.0.s8 %v5911
        %v5913 = vlaneseq
        %v5914 = vshrl.u32 %v5913, 7
        %v5915 = vsub.s32 %v5912, %v5914
        %v5916 = vrot.slane %v5909, %v5915
        %v5917 = vcombine.low %v5837, %v5838
        %v5919 = vunpack.c.l.s4 1983009808
        %v5920 = vunpack.c.0.s8 %v5919
        %v5921 = vlaneseq
        %v5922 = vshrl.u32 %v5921, 7
        %v5923 = vsub.s32 %v5920, %v5922
        %v5924 = vrot.slane %v5917, %v5923
        %v5925 = vcombine.low %v5829, %v5836
        %v5927 = vunpack.c.l.s4 1983009808
        %v5928 = vunpack.c.0.s8 %v5927
        %v5929 = vlaneseq
        %v5930 = vshrl.u32 %v5929, 7
        %v5931 = vsub.s32 %v5928, %v5930
        %v5932 = vrot.slane %v5925, %v5931
        %v5933 = vcombine.low %v5839, %v5840
        %v5935 = vunpack.c.l.s4 1983009808
        %v5936 = vunpack.c.0.s8 %v5935
        %v5937 = vlaneseq
        %v5938 = vshrl.u32 %v5937, 7
        %v5939 = vsub.s32 %v5936, %v5938
        %v5940 = vrot.slane %v5933, %v5939
        %v5941 = vcombine.low %v5916, %v5924
        %v5942 = vcombine.high %v5916, %v5924
        %v5944 = vunpack.c.l.s4 1934713408
        %v5945 = vunpack.c.0.s8 %v5944
        %v5946 = vlaneseq
        %v5947 = vshrl.u32 %v5946, 7
        %v5948 = vsub.s32 %v5945, %v5947
        %v5949 = vrot.slane %v5941, %v5948
        %v5951 = vunpack.c.l.s4 1934713408
        %v5952 = vunpack.c.0.s8 %v5951
        %v5953 = vlaneseq
        %v5954 = vshrl.u32 %v5953, 7
        %v5955 = vsub.s32 %v5952, %v5954
        %v5956 = vrot.slane %v5942, %v5955
        %v5957 = vcombine.low %v5932, %v5940
        %v5958 = vcombine.high %v5932, %v5940
        %v5960 = vunpack.c.l.s4 1934713408
        %v5961 = vunpack.c.0.s8 %v5960
        %v5962 = vlaneseq
        %v5963 = vshrl.u32 %v5962, 7
        %v5964 = vsub.s32 %v5961, %v5963
        %v5965 = vrot.slane %v5957, %v5964
        %v5967 = vunpack.c.l.s4 1934713408
        %v5968 = vunpack.c.0.s8 %v5967
        %v5969 = vlaneseq
        %v5970 = vshrl.u32 %v5969, 7
        %v5971 = vsub.s32 %v5968, %v5970
        %v5972 = vrot.slane %v5958, %v5971
        %v5973 = vcombine.low %v5949, %v5965
        %v5974 = vcombine.high %v5949, %v5965
        %v5975 = vcombine.low %v5956, %v5972
        %v5976 = vcombine.high %v5956, %v5972
        %v5977 = vcombine.low %v5881, %v5888
        %v5979 = vunpack.c.l.s4 1983009808
        %v5980 = vunpack.c.0.s8 %v5979
        %v5981 = vlaneseq
        %v5982 = vshrl.u32 %v5981, 7
        %v5983 = vsub.s32 %v5980, %v5982
        %v5984 = vrot.slane %v5977, %v5983
        %v5985 = vcombine.low %v5905, %v5906
        %v5987 = vunpack.c.l.s4 1983009808
        %v5988 = vunpack.c.0.s8 %v5987
        %v5989 = vlaneseq
        %v5990 = vshrl.u32 %v5989, 7
        %v5991 = vsub.s32 %v5988, %v5990
        %v5992 = vrot.slane %v5985, %v5991
        %v5993 = vcombine.low %v5897, %v5904
        %v5995 = vunpack.c.l.s4 1983009808
        %v5996 = vunpack.c.0.s8 %v5995
        %v5997 = vlaneseq
        %v5998 = vshrl.u32 %v5997, 7
        %v5999 = vsub.s32 %v5996, %v5998
        %v6000 = vrot.slane %v5993, %v5999
        %v6001 = vcombine.low %v5907, %v5908
        %v6003 = vunpack.c.l.s4 1983009808
        %v6004 = vunpack.c.0.s8 %v6003
        %v6005 = vlaneseq
        %v6006 = vshrl.u32 %v6005, 7
        %v6007 = vsub.s32 %v6004, %v6006
        %v6008 = vrot.slane %v6001, %v6007
        %v6009 = vcombine.low %v5984, %v5992
        %v6010 = vcombine.high %v5984, %v5992
        %v6012 = vunpack.c.l.s4 1934713408
        %v6013 = vunpack.c.0.s8 %v6012
        %v6014 = vlaneseq
        %v6015 = vshrl.u32 %v6014, 7
        %v6016 = vsub.s32 %v6013, %v6015
        %v6017 = vrot.slane %v6009, %v6016
        %v6019 = vunpack.c.l.s4 1934713408
        %v6020 = vunpack.c.0.s8 %v6019
        %v6021 = vlaneseq
        %v6022 = vshrl.u32 %v6021, 7
        %v6023 = vsub.s32 %v6020, %v6022
        %v6024 = vrot.slane %v6010, %v6023
        %v6025 = vcombine.low %v6000, %v6008
        %v6026 = vcombine.high %v6000, %v6008
        %v6028 = vunpack.c.l.s4 1934713408
        %v6029 = vunpack.c.0.s8 %v6028
        %v6030 = vlaneseq
        %v6031 = vshrl.u32 %v6030, 7
        %v6032 = vsub.s32 %v6029, %v6031
        %v6033 = vrot.slane %v6025, %v6032
        %v6035 = vunpack.c.l.s4 1934713408
        %v6036 = vunpack.c.0.s8 %v6035
        %v6037 = vlaneseq
        %v6038 = vshrl.u32 %v6037, 7
        %v6039 = vsub.s32 %v6036, %v6038
        %v6040 = vrot.slane %v6026, %v6039
        %v6041 = vcombine.low %v6017, %v6033
        %v6042 = vcombine.high %v6017, %v6033
        %v6043 = vcombine.low %v6024, %v6040
        %v6044 = vcombine.high %v6024, %v6040
        %6045 = vrot.lane.b32.xlu0 %v5594, 96
        %v6046 = vpop.permute.xlu0 %6045
        %6047 = vrot.lane.b32.xlu0 %v5599, 96
        %v6048 = vpop.permute.xlu0 %6047
        %6049 = vrot.lane.b32.xlu0 %v5756, 96
        %v6050 = vpop.permute.xlu0 %6049
        %6051 = vrot.lane.b32.xlu0 %v5758, 96
        %v6052 = vpop.permute.xlu0 %6051
        %6053 = vrot.lane.b32.xlu0 %v5762, 96
        %v6054 = vpop.permute.xlu0 %6053
        %6055 = vrot.lane.b32.xlu0 %v5764, 96
        %v6056 = vpop.permute.xlu0 %6055
        %6057 = vrot.lane.b32.xlu0 %v5768, 96
        %v6058 = vpop.permute.xlu0 %6057
        %6059 = vrot.lane.b32.xlu0 %v5770, 96
        %v6060 = vpop.permute.xlu0 %6059
        %v6069 = vcombine.low %v6046, %v6054
        %v6070 = vcombine.high %v6046, %v6054
        %v6072 = vunpack.c.l.s4 1983009808
        %v6073 = vunpack.c.0.s8 %v6072
        %v6074 = vlaneseq
        %v6075 = vshrl.u32 %v6074, 7
        %v6076 = vsub.s32 %v6073, %v6075
        %v6077 = vrot.slane %v6069, %v6076
        %v6079 = vunpack.c.l.s4 1983009808
        %v6080 = vunpack.c.0.s8 %v6079
        %v6081 = vlaneseq
        %v6082 = vshrl.u32 %v6081, 7
        %v6083 = vsub.s32 %v6080, %v6082
        %v6084 = vrot.slane %v6070, %v6083
        %v6085 = vcombine.low %v6050, %v6058
        %v6086 = vcombine.high %v6050, %v6058
        %v6088 = vunpack.c.l.s4 1983009808
        %v6089 = vunpack.c.0.s8 %v6088
        %v6090 = vlaneseq
        %v6091 = vshrl.u32 %v6090, 7
        %v6092 = vsub.s32 %v6089, %v6091
        %v6093 = vrot.slane %v6085, %v6092
        %v6095 = vunpack.c.l.s4 1983009808
        %v6096 = vunpack.c.0.s8 %v6095
        %v6097 = vlaneseq
        %v6098 = vshrl.u32 %v6097, 7
        %v6099 = vsub.s32 %v6096, %v6098
        %v6100 = vrot.slane %v6086, %v6099
        %v6101 = vcombine.low %v6077, %v6093
        %v6102 = vcombine.high %v6077, %v6093
        %v6104 = vunpack.c.l.s4 1934713408
        %v6105 = vunpack.c.0.s8 %v6104
        %v6106 = vlaneseq
        %v6107 = vshrl.u32 %v6106, 7
        %v6108 = vsub.s32 %v6105, %v6107
        %v6109 = vrot.slane %v6101, %v6108
        %v6111 = vunpack.c.l.s4 1934713408
        %v6112 = vunpack.c.0.s8 %v6111
        %v6113 = vlaneseq
        %v6114 = vshrl.u32 %v6113, 7
        %v6115 = vsub.s32 %v6112, %v6114
        %v6116 = vrot.slane %v6102, %v6115
        %v6117 = vcombine.low %v6084, %v6100
        %v6118 = vcombine.high %v6084, %v6100
        %v6120 = vunpack.c.l.s4 1934713408
        %v6121 = vunpack.c.0.s8 %v6120
        %v6122 = vlaneseq
        %v6123 = vshrl.u32 %v6122, 7
        %v6124 = vsub.s32 %v6121, %v6123
        %v6125 = vrot.slane %v6117, %v6124
        %v6127 = vunpack.c.l.s4 1934713408
        %v6128 = vunpack.c.0.s8 %v6127
        %v6129 = vlaneseq
        %v6130 = vshrl.u32 %v6129, 7
        %v6131 = vsub.s32 %v6128, %v6130
        %v6132 = vrot.slane %v6118, %v6131
        %v6133 = vcombine.high %v6109, 0.0
        %v6134 = vcombine.high %v6116, 0.0
        %v6135 = vcombine.high %v6125, 0.0
        %v6136 = vcombine.high %v6132, 0.0
        %v6137 = vcombine.low %v6048, %v6056
        %v6138 = vcombine.high %v6048, %v6056
        %v6140 = vunpack.c.l.s4 1983009808
        %v6141 = vunpack.c.0.s8 %v6140
        %v6142 = vlaneseq
        %v6143 = vshrl.u32 %v6142, 7
        %v6144 = vsub.s32 %v6141, %v6143
        %v6145 = vrot.slane %v6137, %v6144
        %v6147 = vunpack.c.l.s4 1983009808
        %v6148 = vunpack.c.0.s8 %v6147
        %v6149 = vlaneseq
        %v6150 = vshrl.u32 %v6149, 7
        %v6151 = vsub.s32 %v6148, %v6150
        %v6152 = vrot.slane %v6138, %v6151
        %v6153 = vcombine.low %v6052, %v6060
        %v6154 = vcombine.high %v6052, %v6060
        %v6156 = vunpack.c.l.s4 1983009808
        %v6157 = vunpack.c.0.s8 %v6156
        %v6158 = vlaneseq
        %v6159 = vshrl.u32 %v6158, 7
        %v6160 = vsub.s32 %v6157, %v6159
        %v6161 = vrot.slane %v6153, %v6160
        %v6163 = vunpack.c.l.s4 1983009808
        %v6164 = vunpack.c.0.s8 %v6163
        %v6165 = vlaneseq
        %v6166 = vshrl.u32 %v6165, 7
        %v6167 = vsub.s32 %v6164, %v6166
        %v6168 = vrot.slane %v6154, %v6167
        %v6169 = vcombine.low %v6145, %v6161
        %v6170 = vcombine.high %v6145, %v6161
        %v6172 = vunpack.c.l.s4 1934713408
        %v6173 = vunpack.c.0.s8 %v6172
        %v6174 = vlaneseq
        %v6175 = vshrl.u32 %v6174, 7
        %v6176 = vsub.s32 %v6173, %v6175
        %v6177 = vrot.slane %v6169, %v6176
        %v6179 = vunpack.c.l.s4 1934713408
        %v6180 = vunpack.c.0.s8 %v6179
        %v6181 = vlaneseq
        %v6182 = vshrl.u32 %v6181, 7
        %v6183 = vsub.s32 %v6180, %v6182
        %v6184 = vrot.slane %v6170, %v6183
        %v6185 = vcombine.low %v6152, %v6168
        %v6186 = vcombine.high %v6152, %v6168
        %v6188 = vunpack.c.l.s4 1934713408
        %v6189 = vunpack.c.0.s8 %v6188
        %v6190 = vlaneseq
        %v6191 = vshrl.u32 %v6190, 7
        %v6192 = vsub.s32 %v6189, %v6191
        %v6193 = vrot.slane %v6185, %v6192
        %v6195 = vunpack.c.l.s4 1934713408
        %v6196 = vunpack.c.0.s8 %v6195
        %v6197 = vlaneseq
        %v6198 = vshrl.u32 %v6197, 7
        %v6199 = vsub.s32 %v6196, %v6198
        %v6200 = vrot.slane %v6186, %v6199
        %v6201 = vcombine.high %v6177, 0.0
        %v6202 = vcombine.high %v6184, 0.0
        %v6203 = vcombine.high %v6193, 0.0
        %v6204 = vcombine.high %v6200, 0.0
        %v6205 = vcombine.low %v6109, %v6116
        %v6207 = vunpack.c.l.s4 1983009808
        %v6208 = vunpack.c.0.s8 %v6207
        %v6209 = vlaneseq
        %v6210 = vshrl.u32 %v6209, 7
        %v6211 = vsub.s32 %v6208, %v6210
        %v6212 = vrot.slane %v6205, %v6211
        %v6213 = vcombine.low %v6133, %v6134
        %v6215 = vunpack.c.l.s4 1983009808
        %v6216 = vunpack.c.0.s8 %v6215
        %v6217 = vlaneseq
        %v6218 = vshrl.u32 %v6217, 7
        %v6219 = vsub.s32 %v6216, %v6218
        %v6220 = vrot.slane %v6213, %v6219
        %v6221 = vcombine.low %v6125, %v6132
        %v6223 = vunpack.c.l.s4 1983009808
        %v6224 = vunpack.c.0.s8 %v6223
        %v6225 = vlaneseq
        %v6226 = vshrl.u32 %v6225, 7
        %v6227 = vsub.s32 %v6224, %v6226
        %v6228 = vrot.slane %v6221, %v6227
        %v6229 = vcombine.low %v6135, %v6136
        %v6231 = vunpack.c.l.s4 1983009808
        %v6232 = vunpack.c.0.s8 %v6231
        %v6233 = vlaneseq
        %v6234 = vshrl.u32 %v6233, 7
        %v6235 = vsub.s32 %v6232, %v6234
        %v6236 = vrot.slane %v6229, %v6235
        %v6237 = vcombine.low %v6212, %v6220
        %v6238 = vcombine.high %v6212, %v6220
        %v6240 = vunpack.c.l.s4 1934713408
        %v6241 = vunpack.c.0.s8 %v6240
        %v6242 = vlaneseq
        %v6243 = vshrl.u32 %v6242, 7
        %v6244 = vsub.s32 %v6241, %v6243
        %v6245 = vrot.slane %v6237, %v6244
        %v6247 = vunpack.c.l.s4 1934713408
        %v6248 = vunpack.c.0.s8 %v6247
        %v6249 = vlaneseq
        %v6250 = vshrl.u32 %v6249, 7
        %v6251 = vsub.s32 %v6248, %v6250
        %v6252 = vrot.slane %v6238, %v6251
        %v6253 = vcombine.low %v6228, %v6236
        %v6254 = vcombine.high %v6228, %v6236
        %v6256 = vunpack.c.l.s4 1934713408
        %v6257 = vunpack.c.0.s8 %v6256
        %v6258 = vlaneseq
        %v6259 = vshrl.u32 %v6258, 7
        %v6260 = vsub.s32 %v6257, %v6259
        %v6261 = vrot.slane %v6253, %v6260
        %v6263 = vunpack.c.l.s4 1934713408
        %v6264 = vunpack.c.0.s8 %v6263
        %v6265 = vlaneseq
        %v6266 = vshrl.u32 %v6265, 7
        %v6267 = vsub.s32 %v6264, %v6266
        %v6268 = vrot.slane %v6254, %v6267
        %v6269 = vcombine.low %v6245, %v6261
        %v6270 = vcombine.high %v6245, %v6261
        %v6271 = vcombine.low %v6252, %v6268
        %v6272 = vcombine.high %v6252, %v6268
        %v6273 = vcombine.low %v6177, %v6184
        %v6275 = vunpack.c.l.s4 1983009808
        %v6276 = vunpack.c.0.s8 %v6275
        %v6277 = vlaneseq
        %v6278 = vshrl.u32 %v6277, 7
        %v6279 = vsub.s32 %v6276, %v6278
        %v6280 = vrot.slane %v6273, %v6279
        %v6281 = vcombine.low %v6201, %v6202
        %v6283 = vunpack.c.l.s4 1983009808
        %v6284 = vunpack.c.0.s8 %v6283
        %v6285 = vlaneseq
        %v6286 = vshrl.u32 %v6285, 7
        %v6287 = vsub.s32 %v6284, %v6286
        %v6288 = vrot.slane %v6281, %v6287
        %v6289 = vcombine.low %v6193, %v6200
        %v6291 = vunpack.c.l.s4 1983009808
        %v6292 = vunpack.c.0.s8 %v6291
        %v6293 = vlaneseq
        %v6294 = vshrl.u32 %v6293, 7
        %v6295 = vsub.s32 %v6292, %v6294
        %v6296 = vrot.slane %v6289, %v6295
        %v6297 = vcombine.low %v6203, %v6204
        %v6299 = vunpack.c.l.s4 1983009808
        %v6300 = vunpack.c.0.s8 %v6299
        %v6301 = vlaneseq
        %v6302 = vshrl.u32 %v6301, 7
        %v6303 = vsub.s32 %v6300, %v6302
        %v6304 = vrot.slane %v6297, %v6303
        %v6305 = vcombine.low %v6280, %v6288
        %v6306 = vcombine.high %v6280, %v6288
        %v6308 = vunpack.c.l.s4 1934713408
        %v6309 = vunpack.c.0.s8 %v6308
        %v6310 = vlaneseq
        %v6311 = vshrl.u32 %v6310, 7
        %v6312 = vsub.s32 %v6309, %v6311
        %v6313 = vrot.slane %v6305, %v6312
        %v6315 = vunpack.c.l.s4 1934713408
        %v6316 = vunpack.c.0.s8 %v6315
        %v6317 = vlaneseq
        %v6318 = vshrl.u32 %v6317, 7
        %v6319 = vsub.s32 %v6316, %v6318
        %v6320 = vrot.slane %v6306, %v6319
        %v6321 = vcombine.low %v6296, %v6304
        %v6322 = vcombine.high %v6296, %v6304
        %v6324 = vunpack.c.l.s4 1934713408
        %v6325 = vunpack.c.0.s8 %v6324
        %v6326 = vlaneseq
        %v6327 = vshrl.u32 %v6326, 7
        %v6328 = vsub.s32 %v6325, %v6327
        %v6329 = vrot.slane %v6321, %v6328
        %v6331 = vunpack.c.l.s4 1934713408
        %v6332 = vunpack.c.0.s8 %v6331
        %v6333 = vlaneseq
        %v6334 = vshrl.u32 %v6333, 7
        %v6335 = vsub.s32 %v6332, %v6334
        %v6336 = vrot.slane %v6322, %v6335
        %v6337 = vcombine.low %v6313, %v6329
        %v6338 = vcombine.high %v6313, %v6329
        %v6339 = vcombine.low %v6320, %v6336
        %v6340 = vcombine.high %v6320, %v6336
        %v6342 = vsel %vm1060, %v5749, 0
        %v6345 = vsel %vm1060, %v5973, 0
        %v6348 = vsel %vm1060, %v6041, 0
        %6350 = vmatprep.subr.mxu0 0.0
        %6351 = vmatpush1.xpose.msra.mxu0 0.0
        %6352 = vmatprep.subr.mxu0 0.0
        %6353 = vmatpush1.xpose.msra.mxu0 0.0
        %6354 = vmatprep.subr.mxu0 0.0
        %6355 = vmatpush1.xpose.msra.mxu0 0.0
        %6356 = vmatprep.subr.mxu0 0.0
        %6357 = vmatpush1.xpose.msra.mxu0 0.0
        %6358 = vmatprep.subr.mxu0 0.0
        %6359 = vmatpush1.xpose.msra.mxu0 0.0
        %6360 = vmatprep.subr.mxu0 0.0
        %6361 = vmatpush1.xpose.msra.mxu0 0.0
        %6362 = vmatprep.subr.mxu0 0.0
        %6363 = vmatpush1.xpose.msra.mxu0 0.0
        %6364 = vmatprep.subr.mxu0 0.0
        %6365 = vmatpush1.xpose.msra.mxu0 0.0
        %6366 = vmatprep.subr.mxu0 0.0
        %6367 = vmatpush1.xpose.msra.mxu0 0.0
        %6368 = vmatprep.subr.mxu0 0.0
        %6369 = vmatpush1.xpose.msra.mxu0 0.0
        %6370 = vmatprep.subr.mxu0 0.0
        %6371 = vmatpush1.xpose.msra.mxu0 0.0
        %6372 = vmatprep.subr.mxu0 0.0
        %6373 = vmatpush1.xpose.msra.mxu0 0.0
        %6374 = vmatprep.subr.mxu0 0.0
        %6375 = vmatpush1.xpose.msra.mxu0 0.0
        %6376 = vmatprep.subr.mxu0 0.0
        %6377 = vmatpush1.xpose.msra.mxu0 0.0
        %6378 = vmatprep.subr.mxu0 0.0
        %6379 = vmatpush1.xpose.msra.mxu0 %v6348
        %6380 = vmatprep.subr.mxu0 0.0
        %6381 = vmatpush1.xpose.msra.mxu0 %v6345
        %6382 = vmatprep.subr.mxu0 0.0
        %6383 = vmatpush2.xpose.msra.mxu0 0.0
        %6384 = vmatprep.subr.mxu0 0.0
        %6385 = vmatpush2.xpose.msra.mxu0 0.0
        %6386 = vmatprep.subr.mxu0 0.0
        %6387 = vmatpush2.xpose.msra.mxu0 0.0
        %6388 = vmatprep.subr.mxu0 0.0
        %6389 = vmatpush2.xpose.msra.mxu0 0.0
        %6390 = vmatprep.subr.mxu0 0.0
        %6391 = vmatpush2.xpose.msra.mxu0 0.0
        %6392 = vmatprep.subr.mxu0 0.0
        %6393 = vmatpush2.xpose.msra.mxu0 0.0
        %6394 = vmatprep.subr.mxu0 0.0
        %6395 = vmatpush2.xpose.msra.mxu0 0.0
        %6396 = vmatprep.subr.mxu0 0.0
        %6397 = vmatpush2.xpose.msra.mxu0 0.0
        %6398 = vmatprep.subr.mxu0 0.0
        %6399 = vmatpush2.xpose.msra.mxu0 0.0
        %6400 = vmatprep.subr.mxu0 0.0
        %6401 = vmatpush2.xpose.msra.mxu0 0.0
        %6402 = vmatprep.subr.mxu0 0.0
        %6403 = vmatpush2.xpose.msra.mxu0 0.0
        %6404 = vmatprep.subr.mxu0 0.0
        %6405 = vmatpush2.xpose.msra.mxu0 0.0
        %6406 = vmatprep.subr.mxu0 0.0
        %6407 = vmatpush2.xpose.msra.mxu0 0.0
        %6408 = vmatprep.subr.mxu0 0.0
        %6409 = vmatpush2.xpose.msra.mxu0 0.0
        %6410 = vmatprep.subr.mxu0 0.0
        %6411 = vmatpush2.xpose.msra.mxu0 0.0
        %6412 = vmatprep.subr.mxu0 0.0
        %6413 = vmatpush2.xpose.msra.mxu0 0.0
        %6414 = vmatprep.mubr.f32.mxu0 0.0
        %6415 = vmatmul.mubr.f32.gmra.mxu0 %v6342
        %v6416 = vpop.f32.mrf.mxu0
        %v6417 = vadd.f32 0.0, %v6416
        %v6418 = vpop.f32.mrf.mxu0
        %6419 = vdwg.mxu0
        %v6421 = vsel %vm1060, %v5750, 0
        %v6424 = vsel %vm1060, %v5974, 0
        %v6427 = vsel %vm1060, %v6042, 0
        %6429 = vmatprep.subr.mxu0 0.0
        %6430 = vmatpush1.xpose.msra.mxu0 0.0
        %6431 = vmatprep.subr.mxu0 0.0
        %6432 = vmatpush1.xpose.msra.mxu0 0.0
        %6433 = vmatprep.subr.mxu0 0.0
        %6434 = vmatpush1.xpose.msra.mxu0 0.0
        %6435 = vmatprep.subr.mxu0 0.0
        %6436 = vmatpush1.xpose.msra.mxu0 0.0
        %6437 = vmatprep.subr.mxu0 0.0
        %6438 = vmatpush1.xpose.msra.mxu0 0.0
        %6439 = vmatprep.subr.mxu0 0.0
        %6440 = vmatpush1.xpose.msra.mxu0 0.0
        %6441 = vmatprep.subr.mxu0 0.0
        %6442 = vmatpush1.xpose.msra.mxu0 0.0
        %6443 = vmatprep.subr.mxu0 0.0
        %6444 = vmatpush1.xpose.msra.mxu0 0.0
        %6445 = vmatprep.subr.mxu0 0.0
        %6446 = vmatpush1.xpose.msra.mxu0 0.0
        %6447 = vmatprep.subr.mxu0 0.0
        %6448 = vmatpush1.xpose.msra.mxu0 0.0
        %6449 = vmatprep.subr.mxu0 0.0
        %6450 = vmatpush1.xpose.msra.mxu0 0.0
        %6451 = vmatprep.subr.mxu0 0.0
        %6452 = vmatpush1.xpose.msra.mxu0 0.0
        %6453 = vmatprep.subr.mxu0 0.0
        %6454 = vmatpush1.xpose.msra.mxu0 0.0
        %6455 = vmatprep.subr.mxu0 0.0
        %6456 = vmatpush1.xpose.msra.mxu0 0.0
        %6457 = vmatprep.subr.mxu0 0.0
        %6458 = vmatpush1.xpose.msra.mxu0 %v6427
        %6459 = vmatprep.subr.mxu0 0.0
        %6460 = vmatpush1.xpose.msra.mxu0 %v6424
        %6461 = vmatprep.subr.mxu0 0.0
        %6462 = vmatpush2.xpose.msra.mxu0 0.0
        %6463 = vmatprep.subr.mxu0 0.0
        %6464 = vmatpush2.xpose.msra.mxu0 0.0
        %6465 = vmatprep.subr.mxu0 0.0
        %6466 = vmatpush2.xpose.msra.mxu0 0.0
        %6467 = vmatprep.subr.mxu0 0.0
        %6468 = vmatpush2.xpose.msra.mxu0 0.0
        %6469 = vmatprep.subr.mxu0 0.0
        %6470 = vmatpush2.xpose.msra.mxu0 0.0
        %6471 = vmatprep.subr.mxu0 0.0
        %6472 = vmatpush2.xpose.msra.mxu0 0.0
        %6473 = vmatprep.subr.mxu0 0.0
        %6474 = vmatpush2.xpose.msra.mxu0 0.0
        %6475 = vmatprep.subr.mxu0 0.0
        %6476 = vmatpush2.xpose.msra.mxu0 0.0
        %6477 = vmatprep.subr.mxu0 0.0
        %6478 = vmatpush2.xpose.msra.mxu0 0.0
        %6479 = vmatprep.subr.mxu0 0.0
        %6480 = vmatpush2.xpose.msra.mxu0 0.0
        %6481 = vmatprep.subr.mxu0 0.0
        %6482 = vmatpush2.xpose.msra.mxu0 0.0
        %6483 = vmatprep.subr.mxu0 0.0
        %6484 = vmatpush2.xpose.msra.mxu0 0.0
        %6485 = vmatprep.subr.mxu0 0.0
        %6486 = vmatpush2.xpose.msra.mxu0 0.0
        %6487 = vmatprep.subr.mxu0 0.0
        %6488 = vmatpush2.xpose.msra.mxu0 0.0
        %6489 = vmatprep.subr.mxu0 0.0
        %6490 = vmatpush2.xpose.msra.mxu0 0.0
        %6491 = vmatprep.subr.mxu0 0.0
        %6492 = vmatpush2.xpose.msra.mxu0 0.0
        %6493 = vmatprep.mubr.f32.mxu0 0.0
        %6494 = vmatmul.mubr.f32.gmra.mxu0 %v6421
        %v6495 = vpop.f32.mrf.mxu0
        %v6496 = vadd.f32 0.0, %v6495
        %v6497 = vpop.f32.mrf.mxu0
        %6498 = vdwg.mxu0
        %v6500 = vsel %vm1060, %v5751, 0
        %v6503 = vsel %vm1060, %v5975, 0
        %v6506 = vsel %vm1060, %v6043, 0
        %6508 = vmatprep.subr.mxu0 0.0
        %6509 = vmatpush1.xpose.msra.mxu0 0.0
        %6510 = vmatprep.subr.mxu0 0.0
        %6511 = vmatpush1.xpose.msra.mxu0 0.0
        %6512 = vmatprep.subr.mxu0 0.0
        %6513 = vmatpush1.xpose.msra.mxu0 0.0
        %6514 = vmatprep.subr.mxu0 0.0
        %6515 = vmatpush1.xpose.msra.mxu0 0.0
        %6516 = vmatprep.subr.mxu0 0.0
        %6517 = vmatpush1.xpose.msra.mxu0 0.0
        %6518 = vmatprep.subr.mxu0 0.0
        %6519 = vmatpush1.xpose.msra.mxu0 0.0
        %6520 = vmatprep.subr.mxu0 0.0
        %6521 = vmatpush1.xpose.msra.mxu0 0.0
        %6522 = vmatprep.subr.mxu0 0.0
        %6523 = vmatpush1.xpose.msra.mxu0 0.0
        %6524 = vmatprep.subr.mxu0 0.0
        %6525 = vmatpush1.xpose.msra.mxu0 0.0
        %6526 = vmatprep.subr.mxu0 0.0
        %6527 = vmatpush1.xpose.msra.mxu0 0.0
        %6528 = vmatprep.subr.mxu0 0.0
        %6529 = vmatpush1.xpose.msra.mxu0 0.0
        %6530 = vmatprep.subr.mxu0 0.0
        %6531 = vmatpush1.xpose.msra.mxu0 0.0
        %6532 = vmatprep.subr.mxu0 0.0
        %6533 = vmatpush1.xpose.msra.mxu0 0.0
        %6534 = vmatprep.subr.mxu0 0.0
        %6535 = vmatpush1.xpose.msra.mxu0 0.0
        %6536 = vmatprep.subr.mxu0 0.0
        %6537 = vmatpush1.xpose.msra.mxu0 %v6506
        %6538 = vmatprep.subr.mxu0 0.0
        %6539 = vmatpush1.xpose.msra.mxu0 %v6503
        %6540 = vmatprep.subr.mxu0 0.0
        %6541 = vmatpush2.xpose.msra.mxu0 0.0
        %6542 = vmatprep.subr.mxu0 0.0
        %6543 = vmatpush2.xpose.msra.mxu0 0.0
        %6544 = vmatprep.subr.mxu0 0.0
        %6545 = vmatpush2.xpose.msra.mxu0 0.0
        %6546 = vmatprep.subr.mxu0 0.0
        %6547 = vmatpush2.xpose.msra.mxu0 0.0
        %6548 = vmatprep.subr.mxu0 0.0
        %6549 = vmatpush2.xpose.msra.mxu0 0.0
        %6550 = vmatprep.subr.mxu0 0.0
        %6551 = vmatpush2.xpose.msra.mxu0 0.0
        %6552 = vmatprep.subr.mxu0 0.0
        %6553 = vmatpush2.xpose.msra.mxu0 0.0
        %6554 = vmatprep.subr.mxu0 0.0
        %6555 = vmatpush2.xpose.msra.mxu0 0.0
        %6556 = vmatprep.subr.mxu0 0.0
        %6557 = vmatpush2.xpose.msra.mxu0 0.0
        %6558 = vmatprep.subr.mxu0 0.0
        %6559 = vmatpush2.xpose.msra.mxu0 0.0
        %6560 = vmatprep.subr.mxu0 0.0
        %6561 = vmatpush2.xpose.msra.mxu0 0.0
        %6562 = vmatprep.subr.mxu0 0.0
        %6563 = vmatpush2.xpose.msra.mxu0 0.0
        %6564 = vmatprep.subr.mxu0 0.0
        %6565 = vmatpush2.xpose.msra.mxu0 0.0
        %6566 = vmatprep.subr.mxu0 0.0
        %6567 = vmatpush2.xpose.msra.mxu0 0.0
        %6568 = vmatprep.subr.mxu0 0.0
        %6569 = vmatpush2.xpose.msra.mxu0 0.0
        %6570 = vmatprep.subr.mxu0 0.0
        %6571 = vmatpush2.xpose.msra.mxu0 0.0
        %6572 = vmatprep.mubr.f32.mxu0 0.0
        %6573 = vmatmul.mubr.f32.gmra.mxu0 %v6500
        %v6574 = vpop.f32.mrf.mxu0
        %v6575 = vadd.f32 0.0, %v6574
        %v6576 = vpop.f32.mrf.mxu0
        %6577 = vdwg.mxu0
        %v6579 = vsel %vm1060, %v5752, 0
        %v6582 = vsel %vm1060, %v5976, 0
        %v6585 = vsel %vm1060, %v6044, 0
        %6587 = vmatprep.subr.mxu0 0.0
        %6588 = vmatpush1.xpose.msra.mxu0 0.0
        %6589 = vmatprep.subr.mxu0 0.0
        %6590 = vmatpush1.xpose.msra.mxu0 0.0
        %6591 = vmatprep.subr.mxu0 0.0
        %6592 = vmatpush1.xpose.msra.mxu0 0.0
        %6593 = vmatprep.subr.mxu0 0.0
        %6594 = vmatpush1.xpose.msra.mxu0 0.0
        %6595 = vmatprep.subr.mxu0 0.0
        %6596 = vmatpush1.xpose.msra.mxu0 0.0
        %6597 = vmatprep.subr.mxu0 0.0
        %6598 = vmatpush1.xpose.msra.mxu0 0.0
        %6599 = vmatprep.subr.mxu0 0.0
        %6600 = vmatpush1.xpose.msra.mxu0 0.0
        %6601 = vmatprep.subr.mxu0 0.0
        %6602 = vmatpush1.xpose.msra.mxu0 0.0
        %6603 = vmatprep.subr.mxu0 0.0
        %6604 = vmatpush1.xpose.msra.mxu0 0.0
        %6605 = vmatprep.subr.mxu0 0.0
        %6606 = vmatpush1.xpose.msra.mxu0 0.0
        %6607 = vmatprep.subr.mxu0 0.0
        %6608 = vmatpush1.xpose.msra.mxu0 0.0
        %6609 = vmatprep.subr.mxu0 0.0
        %6610 = vmatpush1.xpose.msra.mxu0 0.0
        %6611 = vmatprep.subr.mxu0 0.0
        %6612 = vmatpush1.xpose.msra.mxu0 0.0
        %6613 = vmatprep.subr.mxu0 0.0
        %6614 = vmatpush1.xpose.msra.mxu0 0.0
        %6615 = vmatprep.subr.mxu0 0.0
        %6616 = vmatpush1.xpose.msra.mxu0 %v6585
        %6617 = vmatprep.subr.mxu0 0.0
        %6618 = vmatpush1.xpose.msra.mxu0 %v6582
        %6619 = vmatprep.subr.mxu0 0.0
        %6620 = vmatpush2.xpose.msra.mxu0 0.0
        %6621 = vmatprep.subr.mxu0 0.0
        %6622 = vmatpush2.xpose.msra.mxu0 0.0
        %6623 = vmatprep.subr.mxu0 0.0
        %6624 = vmatpush2.xpose.msra.mxu0 0.0
        %6625 = vmatprep.subr.mxu0 0.0
        %6626 = vmatpush2.xpose.msra.mxu0 0.0
        %6627 = vmatprep.subr.mxu0 0.0
        %6628 = vmatpush2.xpose.msra.mxu0 0.0
        %6629 = vmatprep.subr.mxu0 0.0
        %6630 = vmatpush2.xpose.msra.mxu0 0.0
        %6631 = vmatprep.subr.mxu0 0.0
        %6632 = vmatpush2.xpose.msra.mxu0 0.0
        %6633 = vmatprep.subr.mxu0 0.0
        %6634 = vmatpush2.xpose.msra.mxu0 0.0
        %6635 = vmatprep.subr.mxu0 0.0
        %6636 = vmatpush2.xpose.msra.mxu0 0.0
        %6637 = vmatprep.subr.mxu0 0.0
        %6638 = vmatpush2.xpose.msra.mxu0 0.0
        %6639 = vmatprep.subr.mxu0 0.0
        %6640 = vmatpush2.xpose.msra.mxu0 0.0
        %6641 = vmatprep.subr.mxu0 0.0
        %6642 = vmatpush2.xpose.msra.mxu0 0.0
        %6643 = vmatprep.subr.mxu0 0.0
        %6644 = vmatpush2.xpose.msra.mxu0 0.0
        %6645 = vmatprep.subr.mxu0 0.0
        %6646 = vmatpush2.xpose.msra.mxu0 0.0
        %6647 = vmatprep.subr.mxu0 0.0
        %6648 = vmatpush2.xpose.msra.mxu0 0.0
        %6649 = vmatprep.subr.mxu0 0.0
        %6650 = vmatpush2.xpose.msra.mxu0 0.0
        %6651 = vmatprep.mubr.f32.mxu0 0.0
        %6652 = vmatmul.mubr.f32.gmra.mxu0 %v6579
        %v6653 = vpop.f32.mrf.mxu0
        %v6654 = vadd.f32 0.0, %v6653
        %v6655 = vpop.f32.mrf.mxu0
        %6656 = vdwg.mxu0
        %v6657 = vmul.f32 %v6417, 0.35355338
        %v6658 = vmul.f32 %v6496, 0.35355338
        %v6659 = vmul.f32 %v6575, 0.35355338
        %v6660 = vmul.f32 %v6654, 0.35355338
        %v6661 = vadd.f32 %v6657, %v498
        %v6662 = vadd.f32 %v6658, %v498
        %v6663 = vadd.f32 %v6659, %v498
        %v6664 = vadd.f32 %v6660, %v498
        %v6665 = vsel %vm1858, %v6661, -inf
        %6666 = vmax.xlane.f32.xlu0 %v6665
        %v6667 = vpop.xlane.xlu0 %6666
        %v6668 = vsel %vm1858, %v6662, -inf
        %6669 = vmax.xlane.f32.xlu0 %v6668
        %v6670 = vpop.xlane.xlu0 %6669
        %v6671 = vsel %vm1858, %v6663, -inf
        %6672 = vmax.xlane.f32.xlu0 %v6671
        %v6673 = vpop.xlane.xlu0 %6672
        %v6674 = vsel %vm1858, %v6664, -inf
        %6675 = vmax.xlane.f32.xlu0 %v6674
        %v6676 = vpop.xlane.xlu0 %6675
        %v6677 = vsub.f32 %v6661, %v6667
        %v6678 = vsub.f32 %v6662, %v6670
        %v6679 = vsub.f32 %v6663, %v6673
        %v6680 = vsub.f32 %v6664, %v6676
        %v6681 = vmul.f32 %v6677, 1.442695
        %v6682 = vpow.pop %v6681
        %v6683 = vmul.f32 %v6678, 1.442695
        %v6684 = vpow.pop %v6683
        %v6685 = vmul.f32 %v6679, 1.442695
        %v6686 = vpow.pop %v6685
        %v6687 = vmul.f32 %v6680, 1.442695
        %v6688 = vpow.pop %v6687
        %v6689 = vsel %vm1858, %v6682, 0.0
        %6690 = vadd.xlane.f32.xlu0 %v6689
        %v6691 = vpop.xlane.xlu0 %6690
        %v6692 = vsel %vm1858, %v6684, 0.0
        %6693 = vadd.xlane.f32.xlu0 %v6692
        %v6694 = vpop.xlane.xlu0 %6693
        %v6695 = vsel %vm1858, %v6686, 0.0
        %6696 = vadd.xlane.f32.xlu0 %v6695
        %v6697 = vpop.xlane.xlu0 %6696
        %v6698 = vsel %vm1858, %v6688, 0.0
        %6699 = vadd.xlane.f32.xlu0 %v6698
        %v6700 = vpop.xlane.xlu0 %6699
        %v6701 = vrcp.pop %v6691
        %v6702 = vmul.f32 %v6682, %v6701
        %v6703 = vrcp.pop %v6694
        %v6704 = vmul.f32 %v6684, %v6703
        %v6705 = vrcp.pop %v6697
        %v6706 = vmul.f32 %v6686, %v6705
        %v6707 = vrcp.pop %v6700
        %v6708 = vmul.f32 %v6688, %v6707
        %v6710 = vsel %vm1858, %v6702, 0
        %6712 = vmatprep.subr.mxu0 0.0
        %6713 = vmatpush1.msra.mxu0 0.0
        %6714 = vmatprep.subr.mxu0 0.0
        %6715 = vmatpush1.msra.mxu0 0.0
        %6716 = vmatprep.subr.mxu0 0.0
        %6717 = vmatpush1.msra.mxu0 0.0
        %6718 = vmatprep.subr.mxu0 0.0
        %6719 = vmatpush1.msra.mxu0 0.0
        %6720 = vmatprep.subr.mxu0 0.0
        %6721 = vmatpush1.msra.mxu0 0.0
        %6722 = vmatprep.subr.mxu0 0.0
        %6723 = vmatpush1.msra.mxu0 0.0
        %6724 = vmatprep.subr.mxu0 0.0
        %6725 = vmatpush1.msra.mxu0 0.0
        %6726 = vmatprep.subr.mxu0 0.0
        %6727 = vmatpush1.msra.mxu0 0.0
        %6728 = vmatprep.subr.mxu0 0.0
        %6729 = vmatpush1.msra.mxu0 0.0
        %6730 = vmatprep.subr.mxu0 0.0
        %6731 = vmatpush1.msra.mxu0 0.0
        %6732 = vmatprep.subr.mxu0 0.0
        %6733 = vmatpush1.msra.mxu0 0.0
        %6734 = vmatprep.subr.mxu0 0.0
        %6735 = vmatpush1.msra.mxu0 0.0
        %6736 = vmatprep.subr.mxu0 0.0
        %6737 = vmatpush1.msra.mxu0 0.0
        %6738 = vmatprep.subr.mxu0 0.0
        %6739 = vmatpush1.msra.mxu0 0.0
        %6740 = vmatprep.subr.mxu0 0.0
        %6741 = vmatpush1.msra.mxu0 %v6337
        %6742 = vmatprep.subr.mxu0 0.0
        %6743 = vmatpush1.msra.mxu0 %v6269
        %6744 = vmatprep.subr.mxu0 0.0
        %6745 = vmatpush2.msra.mxu0 0.0
        %6746 = vmatprep.subr.mxu0 0.0
        %6747 = vmatpush2.msra.mxu0 0.0
        %6748 = vmatprep.subr.mxu0 0.0
        %6749 = vmatpush2.msra.mxu0 0.0
        %6750 = vmatprep.subr.mxu0 0.0
        %6751 = vmatpush2.msra.mxu0 0.0
        %6752 = vmatprep.subr.mxu0 0.0
        %6753 = vmatpush2.msra.mxu0 0.0
        %6754 = vmatprep.subr.mxu0 0.0
        %6755 = vmatpush2.msra.mxu0 0.0
        %6756 = vmatprep.subr.mxu0 0.0
        %6757 = vmatpush2.msra.mxu0 0.0
        %6758 = vmatprep.subr.mxu0 0.0
        %6759 = vmatpush2.msra.mxu0 0.0
        %6760 = vmatprep.subr.mxu0 0.0
        %6761 = vmatpush2.msra.mxu0 0.0
        %6762 = vmatprep.subr.mxu0 0.0
        %6763 = vmatpush2.msra.mxu0 0.0
        %6764 = vmatprep.subr.mxu0 0.0
        %6765 = vmatpush2.msra.mxu0 0.0
        %6766 = vmatprep.subr.mxu0 0.0
        %6767 = vmatpush2.msra.mxu0 0.0
        %6768 = vmatprep.subr.mxu0 0.0
        %6769 = vmatpush2.msra.mxu0 0.0
        %6770 = vmatprep.subr.mxu0 0.0
        %6771 = vmatpush2.msra.mxu0 0.0
        %6772 = vmatprep.subr.mxu0 0.0
        %6773 = vmatpush2.msra.mxu0 0.0
        %6774 = vmatprep.subr.mxu0 0.0
        %6775 = vmatpush2.msra.mxu0 0.0
        %6776 = vmatprep.mubr.f32.mxu0 0.0
        %6777 = vmatmul.mubr.f32.gmra.mxu0 %v6710
        %v6778 = vpop.f32.mrf.mxu0
        %v6779 = vadd.f32 0.0, %v6778
        %v6780 = vpop.f32.mrf.mxu0
        %6781 = vdwg.mxu0
        %v6783 = vsel %vm1858, %v6704, 0
        %6785 = vmatprep.subr.mxu0 0.0
        %6786 = vmatpush1.msra.mxu0 0.0
        %6787 = vmatprep.subr.mxu0 0.0
        %6788 = vmatpush1.msra.mxu0 0.0
        %6789 = vmatprep.subr.mxu0 0.0
        %6790 = vmatpush1.msra.mxu0 0.0
        %6791 = vmatprep.subr.mxu0 0.0
        %6792 = vmatpush1.msra.mxu0 0.0
        %6793 = vmatprep.subr.mxu0 0.0
        %6794 = vmatpush1.msra.mxu0 0.0
        %6795 = vmatprep.subr.mxu0 0.0
        %6796 = vmatpush1.msra.mxu0 0.0
        %6797 = vmatprep.subr.mxu0 0.0
        %6798 = vmatpush1.msra.mxu0 0.0
        %6799 = vmatprep.subr.mxu0 0.0
        %6800 = vmatpush1.msra.mxu0 0.0
        %6801 = vmatprep.subr.mxu0 0.0
        %6802 = vmatpush1.msra.mxu0 0.0
        %6803 = vmatprep.subr.mxu0 0.0
        %6804 = vmatpush1.msra.mxu0 0.0
        %6805 = vmatprep.subr.mxu0 0.0
        %6806 = vmatpush1.msra.mxu0 0.0
        %6807 = vmatprep.subr.mxu0 0.0
        %6808 = vmatpush1.msra.mxu0 0.0
        %6809 = vmatprep.subr.mxu0 0.0
        %6810 = vmatpush1.msra.mxu0 0.0
        %6811 = vmatprep.subr.mxu0 0.0
        %6812 = vmatpush1.msra.mxu0 0.0
        %6813 = vmatprep.subr.mxu0 0.0
        %6814 = vmatpush1.msra.mxu0 %v6338
        %6815 = vmatprep.subr.mxu0 0.0
        %6816 = vmatpush1.msra.mxu0 %v6270
        %6817 = vmatprep.subr.mxu0 0.0
        %6818 = vmatpush2.msra.mxu0 0.0
        %6819 = vmatprep.subr.mxu0 0.0
        %6820 = vmatpush2.msra.mxu0 0.0
        %6821 = vmatprep.subr.mxu0 0.0
        %6822 = vmatpush2.msra.mxu0 0.0
        %6823 = vmatprep.subr.mxu0 0.0
        %6824 = vmatpush2.msra.mxu0 0.0
        %6825 = vmatprep.subr.mxu0 0.0
        %6826 = vmatpush2.msra.mxu0 0.0
        %6827 = vmatprep.subr.mxu0 0.0
        %6828 = vmatpush2.msra.mxu0 0.0
        %6829 = vmatprep.subr.mxu0 0.0
        %6830 = vmatpush2.msra.mxu0 0.0
        %6831 = vmatprep.subr.mxu0 0.0
        %6832 = vmatpush2.msra.mxu0 0.0
        %6833 = vmatprep.subr.mxu0 0.0
        %6834 = vmatpush2.msra.mxu0 0.0
        %6835 = vmatprep.subr.mxu0 0.0
        %6836 = vmatpush2.msra.mxu0 0.0
        %6837 = vmatprep.subr.mxu0 0.0
        %6838 = vmatpush2.msra.mxu0 0.0
        %6839 = vmatprep.subr.mxu0 0.0
        %6840 = vmatpush2.msra.mxu0 0.0
        %6841 = vmatprep.subr.mxu0 0.0
        %6842 = vmatpush2.msra.mxu0 0.0
        %6843 = vmatprep.subr.mxu0 0.0
        %6844 = vmatpush2.msra.mxu0 0.0
        %6845 = vmatprep.subr.mxu0 0.0
        %6846 = vmatpush2.msra.mxu0 0.0
        %6847 = vmatprep.subr.mxu0 0.0
        %6848 = vmatpush2.msra.mxu0 0.0
        %6849 = vmatprep.mubr.f32.mxu0 0.0
        %6850 = vmatmul.mubr.f32.gmra.mxu0 %v6783
        %v6851 = vpop.f32.mrf.mxu0
        %v6852 = vadd.f32 0.0, %v6851
        %v6853 = vpop.f32.mrf.mxu0
        %6854 = vdwg.mxu0
        %v6856 = vsel %vm1858, %v6706, 0
        %6858 = vmatprep.subr.mxu0 0.0
        %6859 = vmatpush1.msra.mxu0 0.0
        %6860 = vmatprep.subr.mxu0 0.0
        %6861 = vmatpush1.msra.mxu0 0.0
        %6862 = vmatprep.subr.mxu0 0.0
        %6863 = vmatpush1.msra.mxu0 0.0
        %6864 = vmatprep.subr.mxu0 0.0
        %6865 = vmatpush1.msra.mxu0 0.0
        %6866 = vmatprep.subr.mxu0 0.0
        %6867 = vmatpush1.msra.mxu0 0.0
        %6868 = vmatprep.subr.mxu0 0.0
        %6869 = vmatpush1.msra.mxu0 0.0
        %6870 = vmatprep.subr.mxu0 0.0
        %6871 = vmatpush1.msra.mxu0 0.0
        %6872 = vmatprep.subr.mxu0 0.0
        %6873 = vmatpush1.msra.mxu0 0.0
        %6874 = vmatprep.subr.mxu0 0.0
        %6875 = vmatpush1.msra.mxu0 0.0
        %6876 = vmatprep.subr.mxu0 0.0
        %6877 = vmatpush1.msra.mxu0 0.0
        %6878 = vmatprep.subr.mxu0 0.0
        %6879 = vmatpush1.msra.mxu0 0.0
        %6880 = vmatprep.subr.mxu0 0.0
        %6881 = vmatpush1.msra.mxu0 0.0
        %6882 = vmatprep.subr.mxu0 0.0
        %6883 = vmatpush1.msra.mxu0 0.0
        %6884 = vmatprep.subr.mxu0 0.0
        %6885 = vmatpush1.msra.mxu0 0.0
        %6886 = vmatprep.subr.mxu0 0.0
        %6887 = vmatpush1.msra.mxu0 %v6339
        %6888 = vmatprep.subr.mxu0 0.0
        %6889 = vmatpush1.msra.mxu0 %v6271
        %6890 = vmatprep.subr.mxu0 0.0
        %6891 = vmatpush2.msra.mxu0 0.0
        %6892 = vmatprep.subr.mxu0 0.0
        %6893 = vmatpush2.msra.mxu0 0.0
        %6894 = vmatprep.subr.mxu0 0.0
        %6895 = vmatpush2.msra.mxu0 0.0
        %6896 = vmatprep.subr.mxu0 0.0
        %6897 = vmatpush2.msra.mxu0 0.0
        %6898 = vmatprep.subr.mxu0 0.0
        %6899 = vmatpush2.msra.mxu0 0.0
        %6900 = vmatprep.subr.mxu0 0.0
        %6901 = vmatpush2.msra.mxu0 0.0
        %6902 = vmatprep.subr.mxu0 0.0
        %6903 = vmatpush2.msra.mxu0 0.0
        %6904 = vmatprep.subr.mxu0 0.0
        %6905 = vmatpush2.msra.mxu0 0.0
        %6906 = vmatprep.subr.mxu0 0.0
        %6907 = vmatpush2.msra.mxu0 0.0
        %6908 = vmatprep.subr.mxu0 0.0
        %6909 = vmatpush2.msra.mxu0 0.0
        %6910 = vmatprep.subr.mxu0 0.0
        %6911 = vmatpush2.msra.mxu0 0.0
        %6912 = vmatprep.subr.mxu0 0.0
        %6913 = vmatpush2.msra.mxu0 0.0
        %6914 = vmatprep.subr.mxu0 0.0
        %6915 = vmatpush2.msra.mxu0 0.0
        %6916 = vmatprep.subr.mxu0 0.0
        %6917 = vmatpush2.msra.mxu0 0.0
        %6918 = vmatprep.subr.mxu0 0.0
        %6919 = vmatpush2.msra.mxu0 0.0
        %6920 = vmatprep.subr.mxu0 0.0
        %6921 = vmatpush2.msra.mxu0 0.0
        %6922 = vmatprep.mubr.f32.mxu0 0.0
        %6923 = vmatmul.mubr.f32.gmra.mxu0 %v6856
        %v6924 = vpop.f32.mrf.mxu0
        %v6925 = vadd.f32 0.0, %v6924
        %v6926 = vpop.f32.mrf.mxu0
        %6927 = vdwg.mxu0
        %v6929 = vsel %vm1858, %v6708, 0
        %6931 = vmatprep.subr.mxu0 0.0
        %6932 = vmatpush1.msra.mxu0 0.0
        %6933 = vmatprep.subr.mxu0 0.0
        %6934 = vmatpush1.msra.mxu0 0.0
        %6935 = vmatprep.subr.mxu0 0.0
        %6936 = vmatpush1.msra.mxu0 0.0
        %6937 = vmatprep.subr.mxu0 0.0
        %6938 = vmatpush1.msra.mxu0 0.0
        %6939 = vmatprep.subr.mxu0 0.0
        %6940 = vmatpush1.msra.mxu0 0.0
        %6941 = vmatprep.subr.mxu0 0.0
        %6942 = vmatpush1.msra.mxu0 0.0
        %6943 = vmatprep.subr.mxu0 0.0
        %6944 = vmatpush1.msra.mxu0 0.0
        %6945 = vmatprep.subr.mxu0 0.0
        %6946 = vmatpush1.msra.mxu0 0.0
        %6947 = vmatprep.subr.mxu0 0.0
        %6948 = vmatpush1.msra.mxu0 0.0
        %6949 = vmatprep.subr.mxu0 0.0
        %6950 = vmatpush1.msra.mxu0 0.0
        %6951 = vmatprep.subr.mxu0 0.0
        %6952 = vmatpush1.msra.mxu0 0.0
        %6953 = vmatprep.subr.mxu0 0.0
        %6954 = vmatpush1.msra.mxu0 0.0
        %6955 = vmatprep.subr.mxu0 0.0
        %6956 = vmatpush1.msra.mxu0 0.0
        %6957 = vmatprep.subr.mxu0 0.0
        %6958 = vmatpush1.msra.mxu0 0.0
        %6959 = vmatprep.subr.mxu0 0.0
        %6960 = vmatpush1.msra.mxu0 %v6340
        %6961 = vmatprep.subr.mxu0 0.0
        %6962 = vmatpush1.msra.mxu0 %v6272
        %6963 = vmatprep.subr.mxu0 0.0
        %6964 = vmatpush2.msra.mxu0 0.0
        %6965 = vmatprep.subr.mxu0 0.0
        %6966 = vmatpush2.msra.mxu0 0.0
        %6967 = vmatprep.subr.mxu0 0.0
        %6968 = vmatpush2.msra.mxu0 0.0
        %6969 = vmatprep.subr.mxu0 0.0
        %6970 = vmatpush2.msra.mxu0 0.0
        %6971 = vmatprep.subr.mxu0 0.0
        %6972 = vmatpush2.msra.mxu0 0.0
        %6973 = vmatprep.subr.mxu0 0.0
        %6974 = vmatpush2.msra.mxu0 0.0
        %6975 = vmatprep.subr.mxu0 0.0
        %6976 = vmatpush2.msra.mxu0 0.0
        %6977 = vmatprep.subr.mxu0 0.0
        %6978 = vmatpush2.msra.mxu0 0.0
        %6979 = vmatprep.subr.mxu0 0.0
        %6980 = vmatpush2.msra.mxu0 0.0
        %6981 = vmatprep.subr.mxu0 0.0
        %6982 = vmatpush2.msra.mxu0 0.0
        %6983 = vmatprep.subr.mxu0 0.0
        %6984 = vmatpush2.msra.mxu0 0.0
        %6985 = vmatprep.subr.mxu0 0.0
        %6986 = vmatpush2.msra.mxu0 0.0
        %6987 = vmatprep.subr.mxu0 0.0
        %6988 = vmatpush2.msra.mxu0 0.0
        %6989 = vmatprep.subr.mxu0 0.0
        %6990 = vmatpush2.msra.mxu0 0.0
        %6991 = vmatprep.subr.mxu0 0.0
        %6992 = vmatpush2.msra.mxu0 0.0
        %6993 = vmatprep.subr.mxu0 0.0
        %6994 = vmatpush2.msra.mxu0 0.0
        %6995 = vmatprep.mubr.f32.mxu0 0.0
        %6996 = vmatmul.mubr.f32.gmra.mxu0 %v6929
        %v6997 = vpop.f32.mrf.mxu0
        %v6998 = vadd.f32 0.0, %v6997
        %v6999 = vpop.f32.mrf.mxu0
        %7000 = vdwg.mxu0
        %v7001 = vcombine.low %v6779, %v6925
        %v7002 = vcombine.high %v6779, %v6925
        %v7004 = vunpack.c.l.s4 1983009808
        %v7005 = vunpack.c.0.s8 %v7004
        %v7006 = vlaneseq
        %v7007 = vshrl.u32 %v7006, 7
        %v7008 = vsub.s32 %v7005, %v7007
        %v7009 = vrot.slane %v7001, %v7008
        %v7011 = vunpack.c.l.s4 1983009808
        %v7012 = vunpack.c.0.s8 %v7011
        %v7013 = vlaneseq
        %v7014 = vshrl.u32 %v7013, 7
        %v7015 = vsub.s32 %v7012, %v7014
        %v7016 = vrot.slane %v7002, %v7015
        %v7017 = vcombine.low %v6852, %v6998
        %v7018 = vcombine.high %v6852, %v6998
        %v7020 = vunpack.c.l.s4 1983009808
        %v7021 = vunpack.c.0.s8 %v7020
        %v7022 = vlaneseq
        %v7023 = vshrl.u32 %v7022, 7
        %v7024 = vsub.s32 %v7021, %v7023
        %v7025 = vrot.slane %v7017, %v7024
        %v7027 = vunpack.c.l.s4 1983009808
        %v7028 = vunpack.c.0.s8 %v7027
        %v7029 = vlaneseq
        %v7030 = vshrl.u32 %v7029, 7
        %v7031 = vsub.s32 %v7028, %v7030
        %v7032 = vrot.slane %v7018, %v7031
        %v7033 = vcombine.low %v7009, %v7025
        %v7034 = vcombine.high %v7009, %v7025
        %v7036 = vunpack.c.l.s4 1934713408
        %v7037 = vunpack.c.0.s8 %v7036
        %v7038 = vlaneseq
        %v7039 = vshrl.u32 %v7038, 7
        %v7040 = vsub.s32 %v7037, %v7039
        %v7041 = vrot.slane %v7033, %v7040
        %v7043 = vunpack.c.l.s4 1934713408
        %v7044 = vunpack.c.0.s8 %v7043
        %v7045 = vlaneseq
        %v7046 = vshrl.u32 %v7045, 7
        %v7047 = vsub.s32 %v7044, %v7046
        %v7048 = vrot.slane %v7034, %v7047
        %v7049 = vcombine.low %v7016, %v7032
        %v7050 = vcombine.high %v7016, %v7032
        %v7052 = vunpack.c.l.s4 1934713408
        %v7053 = vunpack.c.0.s8 %v7052
        %v7054 = vlaneseq
        %v7055 = vshrl.u32 %v7054, 7
        %v7056 = vsub.s32 %v7053, %v7055
        %v7057 = vrot.slane %v7049, %v7056
        %v7059 = vunpack.c.l.s4 1934713408
        %v7060 = vunpack.c.0.s8 %v7059
        %v7061 = vlaneseq
        %v7062 = vshrl.u32 %v7061, 7
        %v7063 = vsub.s32 %v7060, %v7062
        %v7064 = vrot.slane %v7050, %v7063
        %v7065 = vcombine.high %v7041, 0.0
        %v7066 = vcombine.high %v7048, 0.0
        %v7067 = vcombine.high %v7057, 0.0
        %v7068 = vcombine.high %v7064, 0.0
        %v7069 = vcombine.low %v7041, %v7048
        %v7071 = vunpack.c.l.s4 1983009808
        %v7072 = vunpack.c.0.s8 %v7071
        %v7073 = vlaneseq
        %v7074 = vshrl.u32 %v7073, 7
        %v7075 = vsub.s32 %v7072, %v7074
        %v7076 = vrot.slane %v7069, %v7075
        %v7077 = vcombine.low %v7065, %v7066
        %v7079 = vunpack.c.l.s4 1983009808
        %v7080 = vunpack.c.0.s8 %v7079
        %v7081 = vlaneseq
        %v7082 = vshrl.u32 %v7081, 7
        %v7083 = vsub.s32 %v7080, %v7082
        %v7084 = vrot.slane %v7077, %v7083
        %v7085 = vcombine.low %v7057, %v7064
        %v7087 = vunpack.c.l.s4 1983009808
        %v7088 = vunpack.c.0.s8 %v7087
        %v7089 = vlaneseq
        %v7090 = vshrl.u32 %v7089, 7
        %v7091 = vsub.s32 %v7088, %v7090
        %v7092 = vrot.slane %v7085, %v7091
        %v7093 = vcombine.low %v7067, %v7068
        %v7095 = vunpack.c.l.s4 1983009808
        %v7096 = vunpack.c.0.s8 %v7095
        %v7097 = vlaneseq
        %v7098 = vshrl.u32 %v7097, 7
        %v7099 = vsub.s32 %v7096, %v7098
        %v7100 = vrot.slane %v7093, %v7099
        %v7101 = vcombine.low %v7076, %v7084
        %v7102 = vcombine.high %v7076, %v7084
        %v7104 = vunpack.c.l.s4 1934713408
        %v7105 = vunpack.c.0.s8 %v7104
        %v7106 = vlaneseq
        %v7107 = vshrl.u32 %v7106, 7
        %v7108 = vsub.s32 %v7105, %v7107
        %v7109 = vrot.slane %v7101, %v7108
        %v7111 = vunpack.c.l.s4 1934713408
        %v7112 = vunpack.c.0.s8 %v7111
        %v7113 = vlaneseq
        %v7114 = vshrl.u32 %v7113, 7
        %v7115 = vsub.s32 %v7112, %v7114
        %v7116 = vrot.slane %v7102, %v7115
        %v7117 = vcombine.low %v7092, %v7100
        %v7118 = vcombine.high %v7092, %v7100
        %v7120 = vunpack.c.l.s4 1934713408
        %v7121 = vunpack.c.0.s8 %v7120
        %v7122 = vlaneseq
        %v7123 = vshrl.u32 %v7122, 7
        %v7124 = vsub.s32 %v7121, %v7123
        %v7125 = vrot.slane %v7117, %v7124
        %v7127 = vunpack.c.l.s4 1934713408
        %v7128 = vunpack.c.0.s8 %v7127
        %v7129 = vlaneseq
        %v7130 = vshrl.u32 %v7129, 7
        %v7131 = vsub.s32 %v7128, %v7130
        %v7132 = vrot.slane %v7118, %v7131
        %v7133 = vcombine.low %v7109, %v7125
        %v7134 = vcombine.high %v7109, %v7125
        %v7135 = vcombine.low %v7116, %v7132
        %v7136 = vcombine.high %v7116, %v7132
        %7138 = vrot.lane.b32.xlu0 %v7134, 8
        %v7139 = vpop.permute.xlu0 %7138
        %7142 = vrot.lane.b32.xlu0 %v7135, 16
        %v7143 = vpop.permute.xlu0 %7142
        %7146 = vrot.lane.b32.xlu0 %v7136, 24
        %v7147 = vpop.permute.xlu0 %7146
        %v7149 = vsel %vm1060, %v7133, %v7139
        %v7150 = vsel %vm1858, %v7149, %v7143
        %v7151 = vsel %vm1860, %v7150, %v7147
        %v7152 = vlaneseq
        %v7153 = vshrl.u32 %v7152, 7
        %v7154 = vsub.s32 2, %v7153
        %v7155 = vrot.slane %v3969, %v7154
        %v7157 = vsel %vm501, %v7151, 0
        %7159 = vmatprep.subr.mxu0 0.0
        %7160 = vmatpush1.msra.mxu0 0.0
        %7161 = vmatprep.subr.mxu0 0.0
        %7162 = vmatpush1.msra.mxu0 0.0
        %7163 = vmatprep.subr.mxu0 0.0
        %7164 = vmatpush1.msra.mxu0 0.0
        %7165 = vmatprep.subr.mxu0 0.0
        %7166 = vmatpush1.msra.mxu0 0.0
        %7167 = vmatprep.subr.mxu0 0.0
        %7168 = vmatpush1.msra.mxu0 0.0
        %7169 = vmatprep.subr.mxu0 0.0
        %7170 = vmatpush1.msra.mxu0 0.0
        %7171 = vmatprep.subr.mxu0 0.0
        %7172 = vmatpush1.msra.mxu0 0.0
        %7173 = vmatprep.subr.mxu0 0.0
        %7174 = vmatpush1.msra.mxu0 0.0
        %7175 = vmatprep.subr.mxu0 0.0
        %7176 = vmatpush1.msra.mxu0 0.0
        %7177 = vmatprep.subr.mxu0 0.0
        %7178 = vmatpush1.msra.mxu0 0.0
        %7179 = vmatprep.subr.mxu0 0.0
        %7180 = vmatpush1.msra.mxu0 0.0
        %7181 = vmatprep.subr.mxu0 0.0
        %7182 = vmatpush1.msra.mxu0 0.0
        %7183 = vmatprep.subr.mxu0 0.0
        %7184 = vmatpush1.msra.mxu0 %v5606
        %7185 = vmatprep.subr.mxu0 0.0
        %7186 = vmatpush1.msra.mxu0 %v5605
        %7187 = vmatprep.subr.mxu0 0.0
        %7188 = vmatpush1.msra.mxu0 %v5604
        %7189 = vmatprep.subr.mxu0 0.0
        %7190 = vmatpush1.msra.mxu0 %v5603
        %7191 = vmatprep.subr.mxu0 0.0
        %7192 = vmatpush2.msra.mxu0 0.0
        %7193 = vmatprep.subr.mxu0 0.0
        %7194 = vmatpush2.msra.mxu0 0.0
        %7195 = vmatprep.subr.mxu0 0.0
        %7196 = vmatpush2.msra.mxu0 0.0
        %7197 = vmatprep.subr.mxu0 0.0
        %7198 = vmatpush2.msra.mxu0 0.0
        %7199 = vmatprep.subr.mxu0 0.0
        %7200 = vmatpush2.msra.mxu0 0.0
        %7201 = vmatprep.subr.mxu0 0.0
        %7202 = vmatpush2.msra.mxu0 0.0
        %7203 = vmatprep.subr.mxu0 0.0
        %7204 = vmatpush2.msra.mxu0 0.0
        %7205 = vmatprep.subr.mxu0 0.0
        %7206 = vmatpush2.msra.mxu0 0.0
        %7207 = vmatprep.subr.mxu0 0.0
        %7208 = vmatpush2.msra.mxu0 0.0
        %7209 = vmatprep.subr.mxu0 0.0
        %7210 = vmatpush2.msra.mxu0 0.0
        %7211 = vmatprep.subr.mxu0 0.0
        %7212 = vmatpush2.msra.mxu0 0.0
        %7213 = vmatprep.subr.mxu0 0.0
        %7214 = vmatpush2.msra.mxu0 0.0
        %7215 = vmatprep.subr.mxu0 0.0
        %7216 = vmatpush2.msra.mxu0 0.0
        %7217 = vmatprep.subr.mxu0 0.0
        %7218 = vmatpush2.msra.mxu0 0.0
        %7219 = vmatprep.subr.mxu0 0.0
        %7220 = vmatpush2.msra.mxu0 0.0
        %7221 = vmatprep.subr.mxu0 0.0
        %7222 = vmatpush2.msra.mxu0 0.0
        %7223 = vmatprep.mubr.f32.mxu0 0.0
        %7224 = vmatmul.mubr.f32.gmra.mxu0 %v7157
        %v7225 = vpop.f32.mrf.mxu0
        %v7226 = vadd.f32 %v7155, %v7225
        %v7227 = vpop.f32.mrf.mxu0
        %7228 = vdwg.mxu0
        %v7229 = vadd.f32 %v5405, %v7226
        %v7230 = vsel %vm501, %v7229, 0.0
        %7231 = vadd.xlane.f32.xlu0 %v7230
        %v7232 = vpop.xlane.xlu0 %7231
        %v7233 = vmul.f32 %v7232, %v505
        %v7234 = vsub.f32 %v7229, %v7233
        %v7235 = vmul.f32 %v7234, %v7234
        %v7236 = vsel %vm501, %v7235, 0.0
        %7237 = vadd.xlane.f32.xlu0 %v7236
        %v7238 = vpop.xlane.xlu0 %7237
        %v7239 = vmul.f32 %v7238, 0.032258064
        %v7240 = vlaneseq
        %v7241 = vshrl.u32 %v7240, 7
        %v7242 = vsub.s32 2, %v7241
        %v7243 = vrot.slane %v3968, %v7242
        %v7244 = vmul.f32 %v7243, %v7234
        %v7245 = vrsqrt.pop %v7239
        %v7246 = vmul.f32 %v7239, %v7245
        %vm7247 = vcmp.eq.f32.partialorder %v7239, inf
        %v7248 = vsel %vm7247, %v7239, %v7246
        %vm7249 = vcmp.eq.f32.partialorder %v7239, 0.0
        %v7250 = vand.u32 %v7239, 2147483648
        %v7251 = vsel %vm7249, %v7250, %v7248
        %v7252 = vadd.f32 %v7251, 1e-06
        %v7253 = vrcp.pop %v7252
        %v7254 = vmul.f32 %v7244, %v7253
        %v7255 = vlaneseq
        %v7256 = vshrl.u32 %v7255, 7
        %v7257 = vsub.s32 5, %v7256
        %v7258 = vrot.slane %v3968, %v7257
        %v7259 = vadd.f32 %v7254, %v7258
        %s7260 = scalar_lea.vmem %s9, 32
        %v7261 = vld [vmem:[%s7260] sm:$0xff]
        %v7262 = vld [vmem:[%s7260 + $0x8] sm:$0xff]
        %v7263 = vld [vmem:[%s7260 + $0x10] sm:$0xff]
        %v7264 = vld [vmem:[%s7260 + $0x18] sm:$0xff]
        %v7265 = vlaneseq
        %v7266 = vshrl.u32 %v7265, 7
        %v7267 = vsub.s32 3, %v7266
        %v7268 = vrot.slane %v3969, %v7267
        %v7270 = vsel %vm501, %v7259, 0
        %7272 = vmatprep.subr.mxu0 0.0
        %7273 = vmatpush1.msra.mxu0 0.0
        %7274 = vmatprep.subr.mxu0 0.0
        %7275 = vmatpush1.msra.mxu0 0.0
        %7276 = vmatprep.subr.mxu0 0.0
        %7277 = vmatpush1.msra.mxu0 0.0
        %7278 = vmatprep.subr.mxu0 0.0
        %7279 = vmatpush1.msra.mxu0 0.0
        %7280 = vmatprep.subr.mxu0 0.0
        %7281 = vmatpush1.msra.mxu0 0.0
        %7282 = vmatprep.subr.mxu0 0.0
        %7283 = vmatpush1.msra.mxu0 0.0
        %7284 = vmatprep.subr.mxu0 0.0
        %7285 = vmatpush1.msra.mxu0 0.0
        %7286 = vmatprep.subr.mxu0 0.0
        %7287 = vmatpush1.msra.mxu0 0.0
        %7288 = vmatprep.subr.mxu0 0.0
        %7289 = vmatpush1.msra.mxu0 0.0
        %7290 = vmatprep.subr.mxu0 0.0
        %7291 = vmatpush1.msra.mxu0 0.0
        %7292 = vmatprep.subr.mxu0 0.0
        %7293 = vmatpush1.msra.mxu0 0.0
        %7294 = vmatprep.subr.mxu0 0.0
        %7295 = vmatpush1.msra.mxu0 0.0
        %7296 = vmatprep.subr.mxu0 0.0
        %7297 = vmatpush1.msra.mxu0 %v7264
        %7298 = vmatprep.subr.mxu0 0.0
        %7299 = vmatpush1.msra.mxu0 %v7263
        %7300 = vmatprep.subr.mxu0 0.0
        %7301 = vmatpush1.msra.mxu0 %v7262
        %7302 = vmatprep.subr.mxu0 0.0
        %7303 = vmatpush1.msra.mxu0 %v7261
        %7304 = vmatprep.subr.mxu0 0.0
        %7305 = vmatpush2.msra.mxu0 0.0
        %7306 = vmatprep.subr.mxu0 0.0
        %7307 = vmatpush2.msra.mxu0 0.0
        %7308 = vmatprep.subr.mxu0 0.0
        %7309 = vmatpush2.msra.mxu0 0.0
        %7310 = vmatprep.subr.mxu0 0.0
        %7311 = vmatpush2.msra.mxu0 0.0
        %7312 = vmatprep.subr.mxu0 0.0
        %7313 = vmatpush2.msra.mxu0 0.0
        %7314 = vmatprep.subr.mxu0 0.0
        %7315 = vmatpush2.msra.mxu0 0.0
        %7316 = vmatprep.subr.mxu0 0.0
        %7317 = vmatpush2.msra.mxu0 0.0
        %7318 = vmatprep.subr.mxu0 0.0
        %7319 = vmatpush2.msra.mxu0 0.0
        %7320 = vmatprep.subr.mxu0 0.0
        %7321 = vmatpush2.msra.mxu0 0.0
        %7322 = vmatprep.subr.mxu0 0.0
        %7323 = vmatpush2.msra.mxu0 0.0
        %7324 = vmatprep.subr.mxu0 0.0
        %7325 = vmatpush2.msra.mxu0 0.0
        %7326 = vmatprep.subr.mxu0 0.0
        %7327 = vmatpush2.msra.mxu0 0.0
        %7328 = vmatprep.subr.mxu0 0.0
        %7329 = vmatpush2.msra.mxu0 0.0
        %7330 = vmatprep.subr.mxu0 0.0
        %7331 = vmatpush2.msra.mxu0 0.0
        %7332 = vmatprep.subr.mxu0 0.0
        %7333 = vmatpush2.msra.mxu0 0.0
        %7334 = vmatprep.subr.mxu0 0.0
        %7335 = vmatpush2.msra.mxu0 0.0
        %7336 = vmatprep.mubr.f32.mxu0 0.0
        %7337 = vmatmul.mubr.f32.gmra.mxu0 %v7270
        %v7338 = vpop.f32.mrf.mxu0
        %v7339 = vadd.f32 %v7268, %v7338
        %v7340 = vpop.f32.mrf.mxu0
        %7341 = vdwg.mxu0
        %v7342 = vmax.f32 %v7339, 0.0
        %s7343 = scalar_lea.vmem %s10, 64
        %v7344 = vld [vmem:[%s7343] sm:$0xff]
        %v7345 = vld [vmem:[%s7343 + $0x8] sm:$0xff]
        %v7346 = vld [vmem:[%s7343 + $0x10] sm:$0xff]
        %v7347 = vld [vmem:[%s7343 + $0x18] sm:$0xff]
        %v7348 = vld [vmem:[%s7343 + $0x20] sm:$0xff]
        %v7349 = vld [vmem:[%s7343 + $0x28] sm:$0xff]
        %v7350 = vld [vmem:[%s7343 + $0x30] sm:$0xff]
        %v7351 = vld [vmem:[%s7343 + $0x38] sm:$0xff]
        %v7353 = vsel %vm3887, %v7342, 0
        %7355 = vmatprep.subr.mxu0 0.0
        %7356 = vmatpush1.msra.mxu0 0.0
        %7357 = vmatprep.subr.mxu0 0.0
        %7358 = vmatpush1.msra.mxu0 0.0
        %7359 = vmatprep.subr.mxu0 0.0
        %7360 = vmatpush1.msra.mxu0 0.0
        %7361 = vmatprep.subr.mxu0 0.0
        %7362 = vmatpush1.msra.mxu0 0.0
        %7363 = vmatprep.subr.mxu0 0.0
        %7364 = vmatpush1.msra.mxu0 0.0
        %7365 = vmatprep.subr.mxu0 0.0
        %7366 = vmatpush1.msra.mxu0 0.0
        %7367 = vmatprep.subr.mxu0 0.0
        %7368 = vmatpush1.msra.mxu0 0.0
        %7369 = vmatprep.subr.mxu0 0.0
        %7370 = vmatpush1.msra.mxu0 0.0
        %7371 = vmatprep.subr.mxu0 0.0
        %7372 = vmatpush1.msra.mxu0 %v7351
        %7373 = vmatprep.subr.mxu0 0.0
        %7374 = vmatpush1.msra.mxu0 %v7350
        %7375 = vmatprep.subr.mxu0 0.0
        %7376 = vmatpush1.msra.mxu0 %v7349
        %7377 = vmatprep.subr.mxu0 0.0
        %7378 = vmatpush1.msra.mxu0 %v7348
        %7379 = vmatprep.subr.mxu0 0.0
        %7380 = vmatpush1.msra.mxu0 %v7347
        %7381 = vmatprep.subr.mxu0 0.0
        %7382 = vmatpush1.msra.mxu0 %v7346
        %7383 = vmatprep.subr.mxu0 0.0
        %7384 = vmatpush1.msra.mxu0 %v7345
        %7385 = vmatprep.subr.mxu0 0.0
        %7386 = vmatpush1.msra.mxu0 %v7344
        %7387 = vmatprep.subr.mxu0 0.0
        %7388 = vmatpush2.msra.mxu0 0.0
        %7389 = vmatprep.subr.mxu0 0.0
        %7390 = vmatpush2.msra.mxu0 0.0
        %7391 = vmatprep.subr.mxu0 0.0
        %7392 = vmatpush2.msra.mxu0 0.0
        %7393 = vmatprep.subr.mxu0 0.0
        %7394 = vmatpush2.msra.mxu0 0.0
        %7395 = vmatprep.subr.mxu0 0.0
        %7396 = vmatpush2.msra.mxu0 0.0
        %7397 = vmatprep.subr.mxu0 0.0
        %7398 = vmatpush2.msra.mxu0 0.0
        %7399 = vmatprep.subr.mxu0 0.0
        %7400 = vmatpush2.msra.mxu0 0.0
        %7401 = vmatprep.subr.mxu0 0.0
        %7402 = vmatpush2.msra.mxu0 0.0
        %7403 = vmatprep.subr.mxu0 0.0
        %7404 = vmatpush2.msra.mxu0 0.0
        %7405 = vmatprep.subr.mxu0 0.0
        %7406 = vmatpush2.msra.mxu0 0.0
        %7407 = vmatprep.subr.mxu0 0.0
        %7408 = vmatpush2.msra.mxu0 0.0
        %7409 = vmatprep.subr.mxu0 0.0
        %7410 = vmatpush2.msra.mxu0 0.0
        %7411 = vmatprep.subr.mxu0 0.0
        %7412 = vmatpush2.msra.mxu0 0.0
        %7413 = vmatprep.subr.mxu0 0.0
        %7414 = vmatpush2.msra.mxu0 0.0
        %7415 = vmatprep.subr.mxu0 0.0
        %7416 = vmatpush2.msra.mxu0 0.0
        %7417 = vmatprep.subr.mxu0 0.0
        %7418 = vmatpush2.msra.mxu0 0.0
        %7419 = vmatprep.mubr.f32.mxu0 0.0
        %7420 = vmatmul.mubr.f32.gmra.mxu0 %v7353
        %v7421 = vpop.f32.mrf.mxu0
        %v7422 = vadd.f32 0.0, %v7421
        %v7423 = vpop.f32.mrf.mxu0
        %7424 = vdwg.mxu0
        %v7425 = vadd.f32 %v7229, %v7422
        %v7426 = vlaneseq
        %v7427 = vshrl.u32 %v7426, 7
        %v7428 = vsub.s32 4, %v7427
        %v7429 = vrot.slane %v3969, %v7428
        %v7430 = vadd.f32 %v7425, %v7429
        %v7431 = vld [vmem:[%s12] sm:$0x1]
        %v7432 = vld [vmem:[%s12 + $0x1] sm:$0x1]
        %v7433 = vsel %vm501, %v7430, 0.0
        %7434 = vadd.xlane.f32.xlu0 %v7433
        %v7435 = vpop.xlane.xlu0 %7434
        %v7436 = vmul.f32 %v7435, %v505
        %v7437 = vsub.f32 %v7430, %v7436
        %v7438 = vmul.f32 %v7437, %v7437
        %v7439 = vsel %vm501, %v7438, 0.0
        %7440 = vadd.xlane.f32.xlu0 %v7439
        %v7441 = vpop.xlane.xlu0 %7440
        %v7442 = vmul.f32 %v7441, 0.032258064
        %v7443 = vlaneseq
        %v7444 = vshrl.u32 %v7443, 7
        %v7445 = vsub.s32 0, %v7444
        %v7446 = vrot.slane %v7431, %v7445
        %v7447 = vmul.f32 %v7446, %v7437
        %v7448 = vrsqrt.pop %v7442
        %v7449 = vmul.f32 %v7442, %v7448
        %vm7450 = vcmp.eq.f32.partialorder %v7442, inf
        %v7451 = vsel %vm7450, %v7442, %v7449
        %vm7452 = vcmp.eq.f32.partialorder %v7442, 0.0
        %v7453 = vand.u32 %v7442, 2147483648
        %v7454 = vsel %vm7452, %v7453, %v7451
        %v7455 = vadd.f32 %v7454, 1e-06
        %v7456 = vrcp.pop %v7455
        %v7457 = vmul.f32 %v7447, %v7456
        %v7458 = vlaneseq
        %v7459 = vshrl.u32 %v7458, 7
        %v7460 = vsub.s32 0, %v7459
        %v7461 = vrot.slane %v7432, %v7460
        %v7462 = vadd.f32 %v7457, %v7461
        %7463 = vst.msk [vmem:[%s472] sm:$0xff] %vm501, %v7462
        %s7464 = sand.u32 %s328, 1
        %s7465 = scalar_lea.sflag [#allocation3], %s7464
        %s7466 = sand.u32 %s328, 1
        %s7467 = smul.addr %s7466, 8
        %s7468 = scalar_lea.vmem [#allocation2], %s7467
        // Predicated region
        $region73: #{decoder_forward.1} parent=71 // pred_check
          %p7469 = pneg %p338
        $region74: #{decoder_forward.1} parent=71 // pred_check_branch
          %7471 = sbr.rel (%p7469) target = $region76
        $region75: #{decoder_forward.1} parent=71 // pred_region
          %s7473 = ssub.s32 128, 128
          %7474 = vsyncadd %s7465, %s7473
          %s7475 = smul.addr %s27, 128
          %s7476 = scalar_lea.hbm %s13, %s7475
          %s7478 = sshll.u32 %s7468, 4
          %s7479 = int_to_ptr.vmem [resolvable:$true] %s7478
          %7481 = dma.vmem_to_hbm [thread:$0]  %s7479, 128, %s7476, %s7465
        $region76: #{decoder_forward.1} parent=71 // pred_fallthru
          _
      $region72: #{decoder_forward.1} parent=5 // pred_fallthru
        _
      %p7482 = scmp.le.s32.totalorder 2, %s22
      // Predicated region
      $region77: #{decoder_forward.1} parent=5 // pred_check
        %p7483 = pneg %p7482
      $region78: #{decoder_forward.1} parent=5 // pred_check_branch
        %7485 = sbr.rel (%p7483) target = $region80
      $region79: #{decoder_forward.1} parent=5 // pred_region
        %s7486 = ssub.s32 %s22, 2
        // Predicated region
        $region81: #{decoder_forward.1} parent=79 // pred_check
          %p7487 = pneg %p344
        $region82: #{decoder_forward.1} parent=79 // pred_check_branch
          %7489 = sbr.rel (%p7487) target = $region84
        $region83: #{decoder_forward.1} parent=79 // pred_region
          %s7490 = sand.u32 %s329, 1
          %s7491 = scalar_lea.sflag [#allocation3], %s7490
          %s7492 = sand.u32 %s329, 1
          %s7493 = smul.addr %s7492, 8
          %s7494 = scalar_lea.vmem [#allocation2], %s7493
          %7495 = dma.done %s7491, 128
        $region84: #{decoder_forward.1} parent=79 // pred_fallthru
          _
      $region80: #{decoder_forward.1} parent=5 // pred_fallthru
        _
    $region6: #{decoder_forward.1} parent=1 // loop_footer
      %s26 = sadd.s32 1, %s22
    $region7: #{decoder_forward.1} parent=1 // loop_footer_branch
      %21 = sbr.rel target = $region3
    $region8: #{decoder_forward.1} parent=1 // loop_exit
      _
    %7496 = vsyncpa [#allocation3], 1
    %s7497 = scalar_lea.sflag [#allocation3], 1
    %7498 = vsyncpa %s7497, 1

</llo_original>
